<compile_context>
chip_gen: v6e
topology: v6e:2x2x1
jax: 0.10.0
libtpu: 0.0.40
codegen_flags: <defaults>
</compile_context>

<pallas_src>
import jax
import jax.numpy as jnp
from jax import lax
from jax.experimental import pallas as pl
from jax.experimental.pallas import tpu as pltpu

EPS = 1e-5


def voxres_kernel(x_ref, g1_ref, b1_ref, w1_ref, cb1_ref,
                  g2_ref, b2_ref, w2_ref, cb2_ref, o_ref):
    N, H, Wd, L = x_ref.shape          # L = 2*C = 128 (two pixels per row)
    C = L // 2
    R = N * H * Wd                     # dense rows
    inv_n = 1.0 / (2 * R)              # 1 / (N*H*W) total pixels

    # (N,H,Wd,128) -> (R,128): free reshape (minor dim unchanged).
    x = x_ref[...].reshape(R, L)

    lane = lax.broadcasted_iota(jnp.int32, (1, 1, 1, L), 3)
    lmask = lane < C                   # lanes [0,64): "even" pixel of the pair

    def batchnorm_relu(v, gamma, beta):
        # v: (R,128); lane c holds channel c of even pixels, lane c+64 of odd
        # pixels.  Fold the two 64-lane halves of the (1,128) partial with one
        # lane roll -> the result is already the (1,128)-tiled channel stat.
        s1 = jnp.sum(v, axis=0, keepdims=True)
        s1 = s1 + pltpu.roll(s1, shift=C, axis=1)
        mean = s1 * inv_n
        d = v - mean
        s2 = jnp.sum(d * d, axis=0, keepdims=True)      # centered two-pass var
        s2 = s2 + pltpu.roll(s2, shift=C, axis=1)
        var = s2 * inv_n
        scale = gamma * lax.rsqrt(var + EPS)
        return jnp.maximum(d * scale + beta, 0.0)

    def conv3x3(v, w_ref, bias):
        # v: (R,128) dense activations.  Build the 3 W-shift taps in the dense
        # layout (no im2col slab, no padded scratch buffer):
        #   padded : [p_{2r}   | p_{2r+1}]   (dx = 1, center)
        #   left   : [p_{2r-1} | p_{2r}  ]   (dx = 0)
        #   right  : [p_{2r+1} | p_{2r+2}]   (dx = 2)
        # and accumulate 9 MXU matmuls against block-diagonal (128,128) taps.
        act = v.reshape(N, H, Wd, L)
        zrow = jnp.zeros((N, 1, Wd, L), jnp.float32)
        padded = jnp.concatenate([zrow, act, zrow], axis=1)    # H zero border
        # Lane half-swap: [p_{2r+1} | p_{2r}] (shift = half width -> direction
        # agnostic, pure XLU lane rotate).
        swapped = pltpu.roll(padded, shift=C, axis=3)
        zcol = jnp.zeros((N, H + 2, 1, L), jnp.float32)
        # One-dense-column shifts; the zero column doubles as the W border.
        down = jnp.concatenate([zcol, swapped[:, :, :Wd - 1, :]], axis=2)  # r <- r-1
        up = jnp.concatenate([swapped[:, :, 1:, :], zcol], axis=2)         # r <- r+1
        left = jnp.where(lmask, down, swapped)     # [p_{2r-1} | p_{2r}]
        right = jnp.where(lmask, swapped, up)      # [p_{2r+1} | p_{2r+2}]

        # Optional bf16 MXU path (w_ref dtype chosen in the wrapper).
        taps = tuple(t.astype(w_ref.dtype) for t in (left, padded, right))

        acc = jnp.zeros((R, L), jnp.float32)
        for dy in range(3):
            for dx in range(3):
                t = taps[dx][:, dy:dy + H].reshape(R, L)   # vreg-aligned slice
                acc = acc + jnp.dot(t, w_ref[dy, dx],
                                    preferred_element_type=jnp.float32)
        return acc + bias                    # single (1,128) broadcast add

    h = batchnorm_relu(x, g1_ref[...], b1_ref[...])
    h = conv3x3(h, w1_ref, cb1_ref[...])
    h = batchnorm_relu(h, g2_ref[...], b2_ref[...])
    h = conv3x3(h, w2_ref, cb2_ref[...])
    o_ref[...] = (h + x).reshape(N, H, Wd, L)    # lane-dense, unmasked store


def _pack_conv_weight(w, dtype):
    """(3,3,Cin,Cout) HWIO -> (3,3,2C,2C) block_diag(w_tap, w_tap) per tap.

    A dense row [pixA(64) | pixB(64)] times block_diag(w, w) yields the
    lane-dense [outA(64) | outB(64)] contribution of that tap on the MXU."""
    Cc = w.shape[-1]
    z = jnp.zeros((3, 3, Cc, Cc), w.dtype)
    top = jnp.concatenate([w, z], axis=-1)      # (3,3,C,2C)
    bot = jnp.concatenate([z, w], axis=-1)      # (3,3,C,2C)
    return jnp.concatenate([top, bot], axis=-2).astype(dtype)   # (3,3,2C,2C)


def voxres_2d(x_nchw, params, conv_dtype=jnp.float32):
    """x_nchw: (N, 64, H, W) float32. Returns (N, 64, H, W)."""
    g1, b1, w1, cb1, g2, b2, w2, cb2 = params
    x = jnp.transpose(x_nchw, (0, 2, 3, 1)).astype(jnp.float32)   # -> NHWC
    N, H, W, C = x.shape
    assert C == 64 and W % 2 == 0, "module hard-codes 64 channels; W must be even"
    Wd = W // 2
    xd = x.reshape(N, H, Wd, 2 * C)             # lane-dense, free reshape

    w1d = _pack_conv_weight(w1, conv_dtype)
    w2d = _pack_conv_weight(w2, conv_dtype)

    def tile2(p):                                # (1,C)/(C,) -> (1,128) tiled
        return jnp.tile(p.reshape(1, C).astype(jnp.float32), (1, 2))

    g1d, b1d, cb1d = tile2(g1), tile2(b1), tile2(cb1)
    g2d, b2d, cb2d = tile2(g2), tile2(b2), tile2(cb2)

    vmem = pl.BlockSpec(memory_space=pltpu.MemorySpace.VMEM)
    outd = pl.pallas_call(
        voxres_kernel,
        out_shape=jax.ShapeDtypeStruct((N, H, Wd, 2 * C), jnp.float32),
        in_specs=[vmem] * 9,
        out_specs=vmem,
        compiler_params=pltpu.CompilerParams(
            vmem_limit_bytes=32 * 1024 * 1024),
    )(xd, g1d, b1d, w1d, cb1d, g2d, b2d, w2d, cb2d)

    out = outd.reshape(N, H, W, C)               # free reshape back
    return jnp.transpose(out, (0, 3, 1, 2))      # -> NCHW


def voxres_2d_reference(x, params):
    """Pure-JAX NCHW reference for validation."""
    g1, b1, w1, cb1, g2, b2, w2, cb2 = params

    def bnrelu(v, g, b):
        m = v.mean(axis=(0, 2, 3), keepdims=True)
        va = ((v - m) ** 2).mean(axis=(0, 2, 3), keepdims=True)
        y = (v - m) / jnp.sqrt(va + EPS) * g.reshape(1, -1, 1, 1) + b.reshape(1, -1, 1, 1)
        return jax.nn.relu(y)

    def conv(v, w4, cb):  # w4: (ky, kx, Cin, Cout) = HWIO
        out = lax.conv_general_dilated(
            v, w4, window_strides=(1, 1), padding="SAME",
            dimension_numbers=("NCHW", "HWIO", "NCHW"))
        return out + cb.reshape(1, -1, 1, 1)

    h = conv(bnrelu(x, g1, b1), w1, cb1)
    h = conv(bnrelu(h, g2, b2), w2, cb2)
    return h + x


if __name__ == "__main__":
    N, C, H, W = 2, 64, 16, 16  # module hard-codes 64 channels
    key = jax.random.PRNGKey(0)
    kx, kw1, kb1, kw2, kb2 = jax.random.split(key, 5)

    x = jax.random.normal(kx, (N, C, H, W), jnp.float32)

    fan_in = 9 * C
    w1 = jax.random.normal(kw1, (3, 3, C, C), jnp.float32) / jnp.sqrt(fan_in)
    w2 = jax.random.normal(kw2, (3, 3, C, C), jnp.float32) / jnp.sqrt(fan_in)
    cb1 = jax.random.normal(kb1, (1, C), jnp.float32) * 0.01
    cb2 = jax.random.normal(kb2, (1, C), jnp.float32) * 0.01
    g1 = jnp.ones((1, C), jnp.float32)   # BatchNorm gamma init
    b1 = jnp.zeros((1, C), jnp.float32)  # BatchNorm beta init
    g2 = jnp.ones((1, C), jnp.float32)
    b2 = jnp.zeros((1, C), jnp.float32)

    params = (g1, b1, w1, cb1, g2, b2, w2, cb2)

    y = voxres_2d(x, params)
    jax.block_until_ready(y)

    y_ref = voxres_2d_reference(x, params)
    assert y.shape == (N, C, H, W)
    assert jnp.max(jnp.abs(y - y_ref)) < 1e-3, "mismatch vs reference"

    print("KERNEL_OK")
</pallas_src>

<mosaic_0001>
module attributes {stable_mosaic.version = 11 : i64} {
  func.func @voxres_kernel(%arg0: memref<2x16x8x128xf32, #tpu.memory_space<vmem>>, %arg1: memref<1x128xf32, #tpu.memory_space<vmem>>, %arg2: memref<1x128xf32, #tpu.memory_space<vmem>>, %arg3: memref<3x3x128x128xf32, #tpu.memory_space<vmem>>, %arg4: memref<1x128xf32, #tpu.memory_space<vmem>>, %arg5: memref<1x128xf32, #tpu.memory_space<vmem>>, %arg6: memref<1x128xf32, #tpu.memory_space<vmem>>, %arg7: memref<3x3x128x128xf32, #tpu.memory_space<vmem>>, %arg8: memref<1x128xf32, #tpu.memory_space<vmem>>, %arg9: memref<2x16x8x128xf32, #tpu.memory_space<vmem>>) attributes {dimension_semantics = [], scalar_prefetch = 0 : i64, scratch_operands = 0 : i64, tpu.core_type = #tpu.core_type<tc>} {
    %c0 = arith.constant 0 : index
    %c0_0 = arith.constant 0 : index
    %c0_1 = arith.constant 0 : index
    %c0_2 = arith.constant 0 : index
    %0 = vector.load %arg0[%c0, %c0_0, %c0_1, %c0_2] : memref<2x16x8x128xf32, #tpu.memory_space<vmem>>, vector<2x16x8x128xf32>
    %1 = vector.shape_cast %0 : vector<2x16x8x128xf32> to vector<256x128xf32>
    %2 = tpu.iota {dimensions = array<i32: 3>} : vector<1x1x1x128xi32>
    %c64_i32 = arith.constant 64 : i32
    %3 = vector.broadcast %c64_i32 : i32 to vector<1x1x1x128xi32>
    %4 = arith.cmpi slt, %2, %3 : vector<1x1x1x128xi32>
    %c0_3 = arith.constant 0 : index
    %c0_4 = arith.constant 0 : index
    %5 = vector.load %arg1[%c0_3, %c0_4] : memref<1x128xf32, #tpu.memory_space<vmem>>, vector<1x128xf32>
    %c0_5 = arith.constant 0 : index
    %c0_6 = arith.constant 0 : index
    %6 = vector.load %arg2[%c0_5, %c0_6] : memref<1x128xf32, #tpu.memory_space<vmem>>, vector<1x128xf32>
    %cst = arith.constant dense<0.000000e+00> : vector<128xf32>
    %7 = vector.multi_reduction <add>, %1, %cst [0] : vector<256x128xf32> to vector<128xf32>
    %8 = vector.shape_cast %7 : vector<128xf32> to vector<1x128xf32>
    %c64_i32_7 = arith.constant 64 : i32
    %9 = tpu.dynamic_rotate %8 by %c64_i32_7 dim 1 : vector<1x128xf32>, i32 -> vector<1x128xf32>
    %10 = arith.addf %8, %9 : vector<1x128xf32>
    %cst_8 = arith.constant 0.001953125 : f32
    %11 = vector.broadcast %cst_8 : f32 to vector<1x128xf32>
    %12 = arith.mulf %10, %11 : vector<1x128xf32>
    %13 = vector.broadcast %12 : vector<1x128xf32> to vector<256x128xf32>
    %14 = arith.subf %1, %13 : vector<256x128xf32>
    %15 = arith.mulf %14, %14 : vector<256x128xf32>
    %cst_9 = arith.constant dense<0.000000e+00> : vector<128xf32>
    %16 = vector.multi_reduction <add>, %15, %cst_9 [0] : vector<256x128xf32> to vector<128xf32>
    %17 = vector.shape_cast %16 : vector<128xf32> to vector<1x128xf32>
    %c64_i32_10 = arith.constant 64 : i32
    %18 = tpu.dynamic_rotate %17 by %c64_i32_10 dim 1 : vector<1x128xf32>, i32 -> vector<1x128xf32>
    %19 = arith.addf %17, %18 : vector<1x128xf32>
    %cst_11 = arith.constant 0.001953125 : f32
    %20 = vector.broadcast %cst_11 : f32 to vector<1x128xf32>
    %21 = arith.mulf %19, %20 : vector<1x128xf32>
    %cst_12 = arith.constant 9.99999974E-6 : f32
    %22 = vector.broadcast %cst_12 : f32 to vector<1x128xf32>
    %23 = arith.addf %21, %22 : vector<1x128xf32>
    %24 = math.rsqrt %23 : vector<1x128xf32>
    %25 = arith.mulf %5, %24 : vector<1x128xf32>
    %26 = vector.broadcast %25 : vector<1x128xf32> to vector<256x128xf32>
    %27 = arith.mulf %14, %26 : vector<256x128xf32>
    %28 = vector.broadcast %6 : vector<1x128xf32> to vector<256x128xf32>
    %29 = arith.addf %27, %28 : vector<256x128xf32>
    %cst_13 = arith.constant 0.000000e+00 : f32
    %30 = vector.broadcast %cst_13 : f32 to vector<256x128xf32>
    %31 = arith.maximumf %29, %30 : vector<256x128xf32>
    %c0_14 = arith.constant 0 : index
    %c0_15 = arith.constant 0 : index
    %32 = vector.load %arg4[%c0_14, %c0_15] : memref<1x128xf32, #tpu.memory_space<vmem>>, vector<1x128xf32>
    %33 = vector.shape_cast %31 : vector<256x128xf32> to vector<2x16x8x128xf32>
    %cst_16 = arith.constant 0.000000e+00 : f32
    %34 = vector.broadcast %cst_16 : f32 to vector<2x1x8x128xf32>
    %35 = tpu.concatenate %34, %33, %34 in 1 : vector<2x1x8x128xf32>, vector<2x16x8x128xf32>, vector<2x1x8x128xf32> -> vector<2x18x8x128xf32>
    %c64_i32_17 = arith.constant 64 : i32
    %36 = tpu.dynamic_rotate %35 by %c64_i32_17 dim 3 : vector<2x18x8x128xf32>, i32 -> vector<2x18x8x128xf32>
    %cst_18 = arith.constant 0.000000e+00 : f32
    %37 = vector.broadcast %cst_18 : f32 to vector<2x18x1x128xf32>
    %38 = vector.extract_strided_slice %36 {offsets = [0, 0, 0, 0], sizes = [2, 18, 7, 128], strides = [1, 1, 1, 1]} : vector<2x18x8x128xf32> to vector<2x18x7x128xf32>
    %39 = tpu.concatenate %37, %38 in 2 : vector<2x18x1x128xf32>, vector<2x18x7x128xf32> -> vector<2x18x8x128xf32>
    %40 = vector.extract_strided_slice %36 {offsets = [0, 0, 1, 0], sizes = [2, 18, 7, 128], strides = [1, 1, 1, 1]} : vector<2x18x8x128xf32> to vector<2x18x7x128xf32>
    %41 = tpu.concatenate %40, %37 in 2 : vector<2x18x7x128xf32>, vector<2x18x1x128xf32> -> vector<2x18x8x128xf32>
    %42 = vector.shape_cast %4 : vector<1x1x1x128xi1> to vector<1x1x1x128xi1>
    %43 = vector.broadcast %42 : vector<1x1x1x128xi1> to vector<2x18x8x128xi1>
    %44 = arith.select %43, %39, %36 : vector<2x18x8x128xi1>, vector<2x18x8x128xf32>
    %45 = vector.shape_cast %4 : vector<1x1x1x128xi1> to vector<1x1x1x128xi1>
    %46 = vector.broadcast %45 : vector<1x1x1x128xi1> to vector<2x18x8x128xi1>
    %47 = arith.select %46, %36, %41 : vector<2x18x8x128xi1>, vector<2x18x8x128xf32>
    %cst_19 = arith.constant 0.000000e+00 : f32
    %48 = vector.broadcast %cst_19 : f32 to vector<256x128xf32>
    %49 = vector.extract_strided_slice %44 {offsets = [0, 0, 0, 0], sizes = [2, 16, 8, 128], strides = [1, 1, 1, 1]} : vector<2x18x8x128xf32> to vector<2x16x8x128xf32>
    %50 = vector.shape_cast %49 : vector<2x16x8x128xf32> to vector<256x128xf32>
    %c0_20 = arith.constant 0 : index
    %c0_21 = arith.constant 0 : index
    %c0_22 = arith.constant 0 : index
    %c0_23 = arith.constant 0 : index
    %51 = vector.load %arg3[%c0_20, %c0_21, %c0_22, %c0_23] : memref<3x3x128x128xf32, #tpu.memory_space<vmem>>, vector<1x1x128x128xf32>
    %52 = vector.shape_cast %51 : vector<1x1x128x128xf32> to vector<128x128xf32>
    %cst_24 = arith.constant dense<0.000000e+00> : vector<256x128xf32>
    %53 = tpu.matmul %50, %52, %cst_24 {dimension_numbers = #tpu.dot_dimension_numbers<[1], [0], [0], [1], [0, 0, 1, 1], [], []>} : vector<256x128xf32>, vector<128x128xf32>, vector<256x128xf32> -> vector<256x128xf32>
    %54 = arith.addf %48, %53 : vector<256x128xf32>
    %55 = vector.extract_strided_slice %35 {offsets = [0, 0, 0, 0], sizes = [2, 16, 8, 128], strides = [1, 1, 1, 1]} : vector<2x18x8x128xf32> to vector<2x16x8x128xf32>
    %56 = vector.shape_cast %55 : vector<2x16x8x128xf32> to vector<256x128xf32>
    %c0_25 = arith.constant 0 : index
    %c1 = arith.constant 1 : index
    %c0_26 = arith.constant 0 : index
    %c0_27 = arith.constant 0 : index
    %57 = vector.load %arg3[%c0_25, %c1, %c0_26, %c0_27] : memref<3x3x128x128xf32, #tpu.memory_space<vmem>>, vector<1x1x128x128xf32>
    %58 = vector.shape_cast %57 : vector<1x1x128x128xf32> to vector<128x128xf32>
    %cst_28 = arith.constant dense<0.000000e+00> : vector<256x128xf32>
    %59 = tpu.matmul %56, %58, %cst_28 {dimension_numbers = #tpu.dot_dimension_numbers<[1], [0], [0], [1], [0, 0, 1, 1], [], []>} : vector<256x128xf32>, vector<128x128xf32>, vector<256x128xf32> -> vector<256x128xf32>
    %60 = arith.addf %54, %59 : vector<256x128xf32>
    %61 = vector.extract_strided_slice %47 {offsets = [0, 0, 0, 0], sizes = [2, 16, 8, 128], strides = [1, 1, 1, 1]} : vector<2x18x8x128xf32> to vector<2x16x8x128xf32>
    %62 = vector.shape_cast %61 : vector<2x16x8x128xf32> to vector<256x128xf32>
    %c0_29 = arith.constant 0 : index
    %c2 = arith.constant 2 : index
    %c0_30 = arith.constant 0 : index
    %c0_31 = arith.constant 0 : index
    %63 = vector.load %arg3[%c0_29, %c2, %c0_30, %c0_31] : memref<3x3x128x128xf32, #tpu.memory_space<vmem>>, vector<1x1x128x128xf32>
    %64 = vector.shape_cast %63 : vector<1x1x128x128xf32> to vector<128x128xf32>
    %cst_32 = arith.constant dense<0.000000e+00> : vector<256x128xf32>
    %65 = tpu.matmul %62, %64, %cst_32 {dimension_numbers = #tpu.dot_dimension_numbers<[1], [0], [0], [1], [0, 0, 1, 1], [], []>} : vector<256x128xf32>, vector<128x128xf32>, vector<256x128xf32> -> vector<256x128xf32>
    %66 = arith.addf %60, %65 : vector<256x128xf32>
    %67 = vector.extract_strided_slice %44 {offsets = [0, 1, 0, 0], sizes = [2, 16, 8, 128], strides = [1, 1, 1, 1]} : vector<2x18x8x128xf32> to vector<2x16x8x128xf32>
    %68 = vector.shape_cast %67 : vector<2x16x8x128xf32> to vector<256x128xf32>
    %c1_33 = arith.constant 1 : index
    %c0_34 = arith.constant 0 : index
    %c0_35 = arith.constant 0 : index
    %c0_36 = arith.constant 0 : index
    %69 = vector.load %arg3[%c1_33, %c0_34, %c0_35, %c0_36] : memref<3x3x128x128xf32, #tpu.memory_space<vmem>>, vector<1x1x128x128xf32>
    %70 = vector.shape_cast %69 : vector<1x1x128x128xf32> to vector<128x128xf32>
    %cst_37 = arith.constant dense<0.000000e+00> : vector<256x128xf32>
    %71 = tpu.matmul %68, %70, %cst_37 {dimension_numbers = #tpu.dot_dimension_numbers<[1], [0], [0], [1], [0, 0, 1, 1], [], []>} : vector<256x128xf32>, vector<128x128xf32>, vector<256x128xf32> -> vector<256x128xf32>
    %72 = arith.addf %66, %71 : vector<256x128xf32>
    %73 = vector.extract_strided_slice %35 {offsets = [0, 1, 0, 0], sizes = [2, 16, 8, 128], strides = [1, 1, 1, 1]} : vector<2x18x8x128xf32> to vector<2x16x8x128xf32>
    %74 = vector.shape_cast %73 : vector<2x16x8x128xf32> to vector<256x128xf32>
    %c1_38 = arith.constant 1 : index
    %c1_39 = arith.constant 1 : index
    %c0_40 = arith.constant 0 : index
    %c0_41 = arith.constant 0 : index
    %75 = vector.load %arg3[%c1_38, %c1_39, %c0_40, %c0_41] : memref<3x3x128x128xf32, #tpu.memory_space<vmem>>, vector<1x1x128x128xf32>
    %76 = vector.shape_cast %75 : vector<1x1x128x128xf32> to vector<128x128xf32>
    %cst_42 = arith.constant dense<0.000000e+00> : vector<256x128xf32>
    %77 = tpu.matmul %74, %76, %cst_42 {dimension_numbers = #tpu.dot_dimension_numbers<[1], [0], [0], [1], [0, 0, 1, 1], [], []>} : vector<256x128xf32>, vector<128x128xf32>, vector<256x128xf32> -> vector<256x128xf32>
    %78 = arith.addf %72, %77 : vector<256x128xf32>
    %79 = vector.extract_strided_slice %47 {offsets = [0, 1, 0, 0], sizes = [2, 16, 8, 128], strides = [1, 1, 1, 1]} : vector<2x18x8x128xf32> to vector<2x16x8x128xf32>
    %80 = vector.shape_cast %79 : vector<2x16x8x128xf32> to vector<256x128xf32>
    %c1_43 = arith.constant 1 : index
    %c2_44 = arith.constant 2 : index
    %c0_45 = arith.constant 0 : index
    %c0_46 = arith.constant 0 : index
    %81 = vector.load %arg3[%c1_43, %c2_44, %c0_45, %c0_46] : memref<3x3x128x128xf32, #tpu.memory_space<vmem>>, vector<1x1x128x128xf32>
    %82 = vector.shape_cast %81 : vector<1x1x128x128xf32> to vector<128x128xf32>
    %cst_47 = arith.constant dense<0.000000e+00> : vector<256x128xf32>
    %83 = tpu.matmul %80, %82, %cst_47 {dimension_numbers = #tpu.dot_dimension_numbers<[1], [0], [0], [1], [0, 0, 1, 1], [], []>} : vector<256x128xf32>, vector<128x128xf32>, vector<256x128xf32> -> vector<256x128xf32>
    %84 = arith.addf %78, %83 : vector<256x128xf32>
    %85 = vector.extract_strided_slice %44 {offsets = [0, 2, 0, 0], sizes = [2, 16, 8, 128], strides = [1, 1, 1, 1]} : vector<2x18x8x128xf32> to vector<2x16x8x128xf32>
    %86 = vector.shape_cast %85 : vector<2x16x8x128xf32> to vector<256x128xf32>
    %c2_48 = arith.constant 2 : index
    %c0_49 = arith.constant 0 : index
    %c0_50 = arith.constant 0 : index
    %c0_51 = arith.constant 0 : index
    %87 = vector.load %arg3[%c2_48, %c0_49, %c0_50, %c0_51] : memref<3x3x128x128xf32, #tpu.memory_space<vmem>>, vector<1x1x128x128xf32>
    %88 = vector.shape_cast %87 : vector<1x1x128x128xf32> to vector<128x128xf32>
    %cst_52 = arith.constant dense<0.000000e+00> : vector<256x128xf32>
    %89 = tpu.matmul %86, %88, %cst_52 {dimension_numbers = #tpu.dot_dimension_numbers<[1], [0], [0], [1], [0, 0, 1, 1], [], []>} : vector<256x128xf32>, vector<128x128xf32>, vector<256x128xf32> -> vector<256x128xf32>
    %90 = arith.addf %84, %89 : vector<256x128xf32>
    %91 = vector.extract_strided_slice %35 {offsets = [0, 2, 0, 0], sizes = [2, 16, 8, 128], strides = [1, 1, 1, 1]} : vector<2x18x8x128xf32> to vector<2x16x8x128xf32>
    %92 = vector.shape_cast %91 : vector<2x16x8x128xf32> to vector<256x128xf32>
    %c2_53 = arith.constant 2 : index
    %c1_54 = arith.constant 1 : index
    %c0_55 = arith.constant 0 : index
    %c0_56 = arith.constant 0 : index
    %93 = vector.load %arg3[%c2_53, %c1_54, %c0_55, %c0_56] : memref<3x3x128x128xf32, #tpu.memory_space<vmem>>, vector<1x1x128x128xf32>
    %94 = vector.shape_cast %93 : vector<1x1x128x128xf32> to vector<128x128xf32>
    %cst_57 = arith.constant dense<0.000000e+00> : vector<256x128xf32>
    %95 = tpu.matmul %92, %94, %cst_57 {dimension_numbers = #tpu.dot_dimension_numbers<[1], [0], [0], [1], [0, 0, 1, 1], [], []>} : vector<256x128xf32>, vector<128x128xf32>, vector<256x128xf32> -> vector<256x128xf32>
    %96 = arith.addf %90, %95 : vector<256x128xf32>
    %97 = vector.extract_strided_slice %47 {offsets = [0, 2, 0, 0], sizes = [2, 16, 8, 128], strides = [1, 1, 1, 1]} : vector<2x18x8x128xf32> to vector<2x16x8x128xf32>
    %98 = vector.shape_cast %97 : vector<2x16x8x128xf32> to vector<256x128xf32>
    %c2_58 = arith.constant 2 : index
    %c2_59 = arith.constant 2 : index
    %c0_60 = arith.constant 0 : index
    %c0_61 = arith.constant 0 : index
    %99 = vector.load %arg3[%c2_58, %c2_59, %c0_60, %c0_61] : memref<3x3x128x128xf32, #tpu.memory_space<vmem>>, vector<1x1x128x128xf32>
    %100 = vector.shape_cast %99 : vector<1x1x128x128xf32> to vector<128x128xf32>
    %cst_62 = arith.constant dense<0.000000e+00> : vector<256x128xf32>
    %101 = tpu.matmul %98, %100, %cst_62 {dimension_numbers = #tpu.dot_dimension_numbers<[1], [0], [0], [1], [0, 0, 1, 1], [], []>} : vector<256x128xf32>, vector<128x128xf32>, vector<256x128xf32> -> vector<256x128xf32>
    %102 = arith.addf %96, %101 : vector<256x128xf32>
    %103 = vector.broadcast %32 : vector<1x128xf32> to vector<256x128xf32>
    %104 = arith.addf %102, %103 : vector<256x128xf32>
    %c0_63 = arith.constant 0 : index
    %c0_64 = arith.constant 0 : index
    %105 = vector.load %arg5[%c0_63, %c0_64] : memref<1x128xf32, #tpu.memory_space<vmem>>, vector<1x128xf32>
    %c0_65 = arith.constant 0 : index
    %c0_66 = arith.constant 0 : index
    %106 = vector.load %arg6[%c0_65, %c0_66] : memref<1x128xf32, #tpu.memory_space<vmem>>, vector<1x128xf32>
    %cst_67 = arith.constant dense<0.000000e+00> : vector<128xf32>
    %107 = vector.multi_reduction <add>, %104, %cst_67 [0] : vector<256x128xf32> to vector<128xf32>
    %108 = vector.shape_cast %107 : vector<128xf32> to vector<1x128xf32>
    %c64_i32_68 = arith.constant 64 : i32
    %109 = tpu.dynamic_rotate %108 by %c64_i32_68 dim 1 : vector<1x128xf32>, i32 -> vector<1x128xf32>
    %110 = arith.addf %108, %109 : vector<1x128xf32>
    %cst_69 = arith.constant 0.001953125 : f32
    %111 = vector.broadcast %cst_69 : f32 to vector<1x128xf32>
    %112 = arith.mulf %110, %111 : vector<1x128xf32>
    %113 = vector.broadcast %112 : vector<1x128xf32> to vector<256x128xf32>
    %114 = arith.subf %104, %113 : vector<256x128xf32>
    %115 = arith.mulf %114, %114 : vector<256x128xf32>
    %cst_70 = arith.constant dense<0.000000e+00> : vector<128xf32>
    %116 = vector.multi_reduction <add>, %115, %cst_70 [0] : vector<256x128xf32> to vector<128xf32>
    %117 = vector.shape_cast %116 : vector<128xf32> to vector<1x128xf32>
    %c64_i32_71 = arith.constant 64 : i32
    %118 = tpu.dynamic_rotate %117 by %c64_i32_71 dim 1 : vector<1x128xf32>, i32 -> vector<1x128xf32>
    %119 = arith.addf %117, %118 : vector<1x128xf32>
    %cst_72 = arith.constant 0.001953125 : f32
    %120 = vector.broadcast %cst_72 : f32 to vector<1x128xf32>
    %121 = arith.mulf %119, %120 : vector<1x128xf32>
    %cst_73 = arith.constant 9.99999974E-6 : f32
    %122 = vector.broadcast %cst_73 : f32 to vector<1x128xf32>
    %123 = arith.addf %121, %122 : vector<1x128xf32>
    %124 = math.rsqrt %123 : vector<1x128xf32>
    %125 = arith.mulf %105, %124 : vector<1x128xf32>
    %126 = vector.broadcast %125 : vector<1x128xf32> to vector<256x128xf32>
    %127 = arith.mulf %114, %126 : vector<256x128xf32>
    %128 = vector.broadcast %106 : vector<1x128xf32> to vector<256x128xf32>
    %129 = arith.addf %127, %128 : vector<256x128xf32>
    %cst_74 = arith.constant 0.000000e+00 : f32
    %130 = vector.broadcast %cst_74 : f32 to vector<256x128xf32>
    %131 = arith.maximumf %129, %130 : vector<256x128xf32>
    %c0_75 = arith.constant 0 : index
    %c0_76 = arith.constant 0 : index
    %132 = vector.load %arg8[%c0_75, %c0_76] : memref<1x128xf32, #tpu.memory_space<vmem>>, vector<1x128xf32>
    %133 = vector.shape_cast %131 : vector<256x128xf32> to vector<2x16x8x128xf32>
    %cst_77 = arith.constant 0.000000e+00 : f32
    %134 = vector.broadcast %cst_77 : f32 to vector<2x1x8x128xf32>
    %135 = tpu.concatenate %134, %133, %134 in 1 : vector<2x1x8x128xf32>, vector<2x16x8x128xf32>, vector<2x1x8x128xf32> -> vector<2x18x8x128xf32>
    %c64_i32_78 = arith.constant 64 : i32
    %136 = tpu.dynamic_rotate %135 by %c64_i32_78 dim 3 : vector<2x18x8x128xf32>, i32 -> vector<2x18x8x128xf32>
    %cst_79 = arith.constant 0.000000e+00 : f32
    %137 = vector.broadcast %cst_79 : f32 to vector<2x18x1x128xf32>
    %138 = vector.extract_strided_slice %136 {offsets = [0, 0, 0, 0], sizes = [2, 18, 7, 128], strides = [1, 1, 1, 1]} : vector<2x18x8x128xf32> to vector<2x18x7x128xf32>
    %139 = tpu.concatenate %137, %138 in 2 : vector<2x18x1x128xf32>, vector<2x18x7x128xf32> -> vector<2x18x8x128xf32>
    %140 = vector.extract_strided_slice %136 {offsets = [0, 0, 1, 0], sizes = [2, 18, 7, 128], strides = [1, 1, 1, 1]} : vector<2x18x8x128xf32> to vector<2x18x7x128xf32>
    %141 = tpu.concatenate %140, %137 in 2 : vector<2x18x7x128xf32>, vector<2x18x1x128xf32> -> vector<2x18x8x128xf32>
    %142 = vector.shape_cast %4 : vector<1x1x1x128xi1> to vector<1x1x1x128xi1>
    %143 = vector.broadcast %142 : vector<1x1x1x128xi1> to vector<2x18x8x128xi1>
    %144 = arith.select %143, %139, %136 : vector<2x18x8x128xi1>, vector<2x18x8x128xf32>
    %145 = vector.shape_cast %4 : vector<1x1x1x128xi1> to vector<1x1x1x128xi1>
    %146 = vector.broadcast %145 : vector<1x1x1x128xi1> to vector<2x18x8x128xi1>
    %147 = arith.select %146, %136, %141 : vector<2x18x8x128xi1>, vector<2x18x8x128xf32>
    %cst_80 = arith.constant 0.000000e+00 : f32
    %148 = vector.broadcast %cst_80 : f32 to vector<256x128xf32>
    %149 = vector.extract_strided_slice %144 {offsets = [0, 0, 0, 0], sizes = [2, 16, 8, 128], strides = [1, 1, 1, 1]} : vector<2x18x8x128xf32> to vector<2x16x8x128xf32>
    %150 = vector.shape_cast %149 : vector<2x16x8x128xf32> to vector<256x128xf32>
    %c0_81 = arith.constant 0 : index
    %c0_82 = arith.constant 0 : index
    %c0_83 = arith.constant 0 : index
    %c0_84 = arith.constant 0 : index
    %151 = vector.load %arg7[%c0_81, %c0_82, %c0_83, %c0_84] : memref<3x3x128x128xf32, #tpu.memory_space<vmem>>, vector<1x1x128x128xf32>
    %152 = vector.shape_cast %151 : vector<1x1x128x128xf32> to vector<128x128xf32>
    %cst_85 = arith.constant dense<0.000000e+00> : vector<256x128xf32>
    %153 = tpu.matmul %150, %152, %cst_85 {dimension_numbers = #tpu.dot_dimension_numbers<[1], [0], [0], [1], [0, 0, 1, 1], [], []>} : vector<256x128xf32>, vector<128x128xf32>, vector<256x128xf32> -> vector<256x128xf32>
    %154 = arith.addf %148, %153 : vector<256x128xf32>
    %155 = vector.extract_strided_slice %135 {offsets = [0, 0, 0, 0], sizes = [2, 16, 8, 128], strides = [1, 1, 1, 1]} : vector<2x18x8x128xf32> to vector<2x16x8x128xf32>
    %156 = vector.shape_cast %155 : vector<2x16x8x128xf32> to vector<256x128xf32>
    %c0_86 = arith.constant 0 : index
    %c1_87 = arith.constant 1 : index
    %c0_88 = arith.constant 0 : index
    %c0_89 = arith.constant 0 : index
    %157 = vector.load %arg7[%c0_86, %c1_87, %c0_88, %c0_89] : memref<3x3x128x128xf32, #tpu.memory_space<vmem>>, vector<1x1x128x128xf32>
    %158 = vector.shape_cast %157 : vector<1x1x128x128xf32> to vector<128x128xf32>
    %cst_90 = arith.constant dense<0.000000e+00> : vector<256x128xf32>
    %159 = tpu.matmul %156, %158, %cst_90 {dimension_numbers = #tpu.dot_dimension_numbers<[1], [0], [0], [1], [0, 0, 1, 1], [], []>} : vector<256x128xf32>, vector<128x128xf32>, vector<256x128xf32> -> vector<256x128xf32>
    %160 = arith.addf %154, %159 : vector<256x128xf32>
    %161 = vector.extract_strided_slice %147 {offsets = [0, 0, 0, 0], sizes = [2, 16, 8, 128], strides = [1, 1, 1, 1]} : vector<2x18x8x128xf32> to vector<2x16x8x128xf32>
    %162 = vector.shape_cast %161 : vector<2x16x8x128xf32> to vector<256x128xf32>
    %c0_91 = arith.constant 0 : index
    %c2_92 = arith.constant 2 : index
    %c0_93 = arith.constant 0 : index
    %c0_94 = arith.constant 0 : index
    %163 = vector.load %arg7[%c0_91, %c2_92, %c0_93, %c0_94] : memref<3x3x128x128xf32, #tpu.memory_space<vmem>>, vector<1x1x128x128xf32>
    %164 = vector.shape_cast %163 : vector<1x1x128x128xf32> to vector<128x128xf32>
    %cst_95 = arith.constant dense<0.000000e+00> : vector<256x128xf32>
    %165 = tpu.matmul %162, %164, %cst_95 {dimension_numbers = #tpu.dot_dimension_numbers<[1], [0], [0], [1], [0, 0, 1, 1], [], []>} : vector<256x128xf32>, vector<128x128xf32>, vector<256x128xf32> -> vector<256x128xf32>
    %166 = arith.addf %160, %165 : vector<256x128xf32>
    %167 = vector.extract_strided_slice %144 {offsets = [0, 1, 0, 0], sizes = [2, 16, 8, 128], strides = [1, 1, 1, 1]} : vector<2x18x8x128xf32> to vector<2x16x8x128xf32>
    %168 = vector.shape_cast %167 : vector<2x16x8x128xf32> to vector<256x128xf32>
    %c1_96 = arith.constant 1 : index
    %c0_97 = arith.constant 0 : index
    %c0_98 = arith.constant 0 : index
    %c0_99 = arith.constant 0 : index
    %169 = vector.load %arg7[%c1_96, %c0_97, %c0_98, %c0_99] : memref<3x3x128x128xf32, #tpu.memory_space<vmem>>, vector<1x1x128x128xf32>
    %170 = vector.shape_cast %169 : vector<1x1x128x128xf32> to vector<128x128xf32>
    %cst_100 = arith.constant dense<0.000000e+00> : vector<256x128xf32>
    %171 = tpu.matmul %168, %170, %cst_100 {dimension_numbers = #tpu.dot_dimension_numbers<[1], [0], [0], [1], [0, 0, 1, 1], [], []>} : vector<256x128xf32>, vector<128x128xf32>, vector<256x128xf32> -> vector<256x128xf32>
    %172 = arith.addf %166, %171 : vector<256x128xf32>
    %173 = vector.extract_strided_slice %135 {offsets = [0, 1, 0, 0], sizes = [2, 16, 8, 128], strides = [1, 1, 1, 1]} : vector<2x18x8x128xf32> to vector<2x16x8x128xf32>
    %174 = vector.shape_cast %173 : vector<2x16x8x128xf32> to vector<256x128xf32>
    %c1_101 = arith.constant 1 : index
    %c1_102 = arith.constant 1 : index
    %c0_103 = arith.constant 0 : index
    %c0_104 = arith.constant 0 : index
    %175 = vector.load %arg7[%c1_101, %c1_102, %c0_103, %c0_104] : memref<3x3x128x128xf32, #tpu.memory_space<vmem>>, vector<1x1x128x128xf32>
    %176 = vector.shape_cast %175 : vector<1x1x128x128xf32> to vector<128x128xf32>
    %cst_105 = arith.constant dense<0.000000e+00> : vector<256x128xf32>
    %177 = tpu.matmul %174, %176, %cst_105 {dimension_numbers = #tpu.dot_dimension_numbers<[1], [0], [0], [1], [0, 0, 1, 1], [], []>} : vector<256x128xf32>, vector<128x128xf32>, vector<256x128xf32> -> vector<256x128xf32>
    %178 = arith.addf %172, %177 : vector<256x128xf32>
    %179 = vector.extract_strided_slice %147 {offsets = [0, 1, 0, 0], sizes = [2, 16, 8, 128], strides = [1, 1, 1, 1]} : vector<2x18x8x128xf32> to vector<2x16x8x128xf32>
    %180 = vector.shape_cast %179 : vector<2x16x8x128xf32> to vector<256x128xf32>
    %c1_106 = arith.constant 1 : index
    %c2_107 = arith.constant 2 : index
    %c0_108 = arith.constant 0 : index
    %c0_109 = arith.constant 0 : index
    %181 = vector.load %arg7[%c1_106, %c2_107, %c0_108, %c0_109] : memref<3x3x128x128xf32, #tpu.memory_space<vmem>>, vector<1x1x128x128xf32>
    %182 = vector.shape_cast %181 : vector<1x1x128x128xf32> to vector<128x128xf32>
    %cst_110 = arith.constant dense<0.000000e+00> : vector<256x128xf32>
    %183 = tpu.matmul %180, %182, %cst_110 {dimension_numbers = #tpu.dot_dimension_numbers<[1], [0], [0], [1], [0, 0, 1, 1], [], []>} : vector<256x128xf32>, vector<128x128xf32>, vector<256x128xf32> -> vector<256x128xf32>
    %184 = arith.addf %178, %183 : vector<256x128xf32>
    %185 = vector.extract_strided_slice %144 {offsets = [0, 2, 0, 0], sizes = [2, 16, 8, 128], strides = [1, 1, 1, 1]} : vector<2x18x8x128xf32> to vector<2x16x8x128xf32>
    %186 = vector.shape_cast %185 : vector<2x16x8x128xf32> to vector<256x128xf32>
    %c2_111 = arith.constant 2 : index
    %c0_112 = arith.constant 0 : index
    %c0_113 = arith.constant 0 : index
    %c0_114 = arith.constant 0 : index
    %187 = vector.load %arg7[%c2_111, %c0_112, %c0_113, %c0_114] : memref<3x3x128x128xf32, #tpu.memory_space<vmem>>, vector<1x1x128x128xf32>
    %188 = vector.shape_cast %187 : vector<1x1x128x128xf32> to vector<128x128xf32>
    %cst_115 = arith.constant dense<0.000000e+00> : vector<256x128xf32>
    %189 = tpu.matmul %186, %188, %cst_115 {dimension_numbers = #tpu.dot_dimension_numbers<[1], [0], [0], [1], [0, 0, 1, 1], [], []>} : vector<256x128xf32>, vector<128x128xf32>, vector<256x128xf32> -> vector<256x128xf32>
    %190 = arith.addf %184, %189 : vector<256x128xf32>
    %191 = vector.extract_strided_slice %135 {offsets = [0, 2, 0, 0], sizes = [2, 16, 8, 128], strides = [1, 1, 1, 1]} : vector<2x18x8x128xf32> to vector<2x16x8x128xf32>
    %192 = vector.shape_cast %191 : vector<2x16x8x128xf32> to vector<256x128xf32>
    %c2_116 = arith.constant 2 : index
    %c1_117 = arith.constant 1 : index
    %c0_118 = arith.constant 0 : index
    %c0_119 = arith.constant 0 : index
    %193 = vector.load %arg7[%c2_116, %c1_117, %c0_118, %c0_119] : memref<3x3x128x128xf32, #tpu.memory_space<vmem>>, vector<1x1x128x128xf32>
    %194 = vector.shape_cast %193 : vector<1x1x128x128xf32> to vector<128x128xf32>
    %cst_120 = arith.constant dense<0.000000e+00> : vector<256x128xf32>
    %195 = tpu.matmul %192, %194, %cst_120 {dimension_numbers = #tpu.dot_dimension_numbers<[1], [0], [0], [1], [0, 0, 1, 1], [], []>} : vector<256x128xf32>, vector<128x128xf32>, vector<256x128xf32> -> vector<256x128xf32>
    %196 = arith.addf %190, %195 : vector<256x128xf32>
    %197 = vector.extract_strided_slice %147 {offsets = [0, 2, 0, 0], sizes = [2, 16, 8, 128], strides = [1, 1, 1, 1]} : vector<2x18x8x128xf32> to vector<2x16x8x128xf32>
    %198 = vector.shape_cast %197 : vector<2x16x8x128xf32> to vector<256x128xf32>
    %c2_121 = arith.constant 2 : index
    %c2_122 = arith.constant 2 : index
    %c0_123 = arith.constant 0 : index
    %c0_124 = arith.constant 0 : index
    %199 = vector.load %arg7[%c2_121, %c2_122, %c0_123, %c0_124] : memref<3x3x128x128xf32, #tpu.memory_space<vmem>>, vector<1x1x128x128xf32>
    %200 = vector.shape_cast %199 : vector<1x1x128x128xf32> to vector<128x128xf32>
    %cst_125 = arith.constant dense<0.000000e+00> : vector<256x128xf32>
    %201 = tpu.matmul %198, %200, %cst_125 {dimension_numbers = #tpu.dot_dimension_numbers<[1], [0], [0], [1], [0, 0, 1, 1], [], []>} : vector<256x128xf32>, vector<128x128xf32>, vector<256x128xf32> -> vector<256x128xf32>
    %202 = arith.addf %196, %201 : vector<256x128xf32>
    %203 = vector.broadcast %132 : vector<1x128xf32> to vector<256x128xf32>
    %204 = arith.addf %202, %203 : vector<256x128xf32>
    %205 = arith.addf %204, %1 : vector<256x128xf32>
    %206 = vector.shape_cast %205 : vector<256x128xf32> to vector<2x16x8x128xf32>
    %c0_126 = arith.constant 0 : index
    %c0_127 = arith.constant 0 : index
    %c0_128 = arith.constant 0 : index
    %c0_129 = arith.constant 0 : index
    %207 = vector.load %arg9[%c0_126, %c0_127, %c0_128, %c0_129] : memref<2x16x8x128xf32, #tpu.memory_space<vmem>>, vector<2x16x8x128xf32>
    tpu.vector_store %arg9[%c0_126, %c0_127, %c0_128, %c0_129], %206 {strides = array<i32>} : memref<2x16x8x128xf32, #tpu.memory_space<vmem>>, vector<2x16x8x128xf32>,
    return
  }
}

</mosaic_0001>

<llo_original>
// kernel: tpu_custom_call.1
$region0: #{tpu_custom_call.1}
  #allocation0 [shape = 'u32[]', space=smem, size = 0x4, offset = 0x4, fixed_abs, tag = 'smem constant byte address 0x4 - core index']
  #allocation1 [shape = 'u32[144,128]{1,0:T(1,128)}', space=vmem, size = 0x12000, scoped, tag = 'internal scratch']
  %s0 = inlined_call_operand.hbm [shape: f32[2,16,8,128], index: 0, kind: input, shape index: {}]
  %s1 = inlined_call_operand.vmem [shape: f32[1,128], index: 1, kind: input, shape index: {}]
  %s2 = inlined_call_operand.vmem [shape: f32[1,128], index: 2, kind: input, shape index: {}]
  %s3 = inlined_call_operand.hbm [shape: f32[3,3,128,128], index: 3, kind: input, shape index: {}]
  %s4 = inlined_call_operand.vmem [shape: f32[1,128], index: 4, kind: input, shape index: {}]
  %s5 = inlined_call_operand.vmem [shape: f32[1,128], index: 5, kind: input, shape index: {}]
  %s6 = inlined_call_operand.vmem [shape: f32[1,128], index: 6, kind: input, shape index: {}]
  %s7 = inlined_call_operand.hbm [shape: f32[3,3,128,128], index: 7, kind: input, shape index: {}]
  %s8 = inlined_call_operand.vmem [shape: f32[1,128], index: 8, kind: input, shape index: {}]
  %s9 = inlined_call_operand.hbm [shape: f32[2,16,8,128], index: 9, kind: output, shape index: {}]
  %s10 = sld [smem:[#allocation0]]
  $region58: #{tpu_custom_call.1} parent=0
    _
  %s12 = ssub.s32 1, %s10
  %s13 = scalar_select 0, %s12, %s10
  $region1: #{tpu_custom_call.1} parent=0
    #allocation2 [shape = 'u8[131072]{0}', space=vmem, size = 0x20000, scoped, tag = 'input window, operand 0, single buffered']
    #allocation3 [shape = 's32[1]{0}', space=sflag, size = 0x4, scoped, tag = 'scoped memory for tpu_custom_call.1']
    #allocation4 [shape = 's32[1]{0}', space=sflag, size = 0x4, scoped, tag = 'scoped memory for tpu_custom_call.1']
    #allocation5 [shape = 'u8[589824]{0}', space=vmem, size = 0x90000, scoped, tag = 'input window, operand 3, single buffered']
    #allocation6 [shape = 's32[1]{0}', space=sflag, size = 0x4, scoped, tag = 'scoped memory for tpu_custom_call.1']
    #allocation7 [shape = 'u8[589824]{0}', space=vmem, size = 0x90000, scoped, tag = 'input window, operand 7, single buffered']
    #allocation8 [shape = 'u8[131072]{0}', space=vmem, size = 0x20000, scoped, tag = 'output window, operand 0, single buffered']
    %14 = vsyncpa [#allocation3], 0
    %15 = vsyncpa [#allocation6], 0
    %16 = vsyncpa [#allocation4], 0
    // Predicated region
    $region2: #{tpu_custom_call.1} parent=1 // pred_check
      _
    $region3: #{tpu_custom_call.1} parent=1 // pred_check_branch
      %18 = sbr.rel (0) target = $region5
    $region4: #{tpu_custom_call.1} parent=1 // pred_region
      %s20 = ssub.s32 4096, 4096
      %21 = vsyncadd [#allocation3], %s20
      %s22 = sshll.u32 [#allocation2], 4
      %s23 = int_to_ptr.vmem [resolvable:$true] %s22
      %28 = dma.hbm_to_vmem [thread:$0]  %s0, 4096, %s23, [#allocation3], 128, 128, 8
    $region5: #{tpu_custom_call.1} parent=1 // pred_fallthru
      _
    // Predicated region
    $region6: #{tpu_custom_call.1} parent=1 // pred_check
      _
    $region7: #{tpu_custom_call.1} parent=1 // pred_check_branch
      %30 = sbr.rel (0) target = $region9
    $region8: #{tpu_custom_call.1} parent=1 // pred_region
      _
    $region9: #{tpu_custom_call.1} parent=1 // pred_fallthru
      _
    // Predicated region
    $region10: #{tpu_custom_call.1} parent=1 // pred_check
      _
    $region11: #{tpu_custom_call.1} parent=1 // pred_check_branch
      %32 = sbr.rel (0) target = $region13
    $region12: #{tpu_custom_call.1} parent=1 // pred_region
      _
    $region13: #{tpu_custom_call.1} parent=1 // pred_fallthru
      _
    // Predicated region
    $region14: #{tpu_custom_call.1} parent=1 // pred_check
      _
    $region15: #{tpu_custom_call.1} parent=1 // pred_check_branch
      %34 = sbr.rel (0) target = $region17
    $region16: #{tpu_custom_call.1} parent=1 // pred_region
      %s36 = ssub.s32 18432, 18432
      %37 = vsyncadd [#allocation6], %s36
      %s38 = sshll.u32 [#allocation5], 4
      %s39 = int_to_ptr.vmem [resolvable:$true] %s38
      %44 = dma.hbm_to_vmem [thread:$0]  %s3, 18432, %s39, [#allocation6], 128, 128, 8
    $region17: #{tpu_custom_call.1} parent=1 // pred_fallthru
      _
    // Predicated region
    $region18: #{tpu_custom_call.1} parent=1 // pred_check
      _
    $region19: #{tpu_custom_call.1} parent=1 // pred_check_branch
      %46 = sbr.rel (0) target = $region21
    $region20: #{tpu_custom_call.1} parent=1 // pred_region
      _
    $region21: #{tpu_custom_call.1} parent=1 // pred_fallthru
      _
    // Predicated region
    $region22: #{tpu_custom_call.1} parent=1 // pred_check
      _
    $region23: #{tpu_custom_call.1} parent=1 // pred_check_branch
      %48 = sbr.rel (0) target = $region25
    $region24: #{tpu_custom_call.1} parent=1 // pred_region
      _
    $region25: #{tpu_custom_call.1} parent=1 // pred_fallthru
      _
    // Predicated region
    $region26: #{tpu_custom_call.1} parent=1 // pred_check
      _
    $region27: #{tpu_custom_call.1} parent=1 // pred_check_branch
      %50 = sbr.rel (0) target = $region29
    $region28: #{tpu_custom_call.1} parent=1 // pred_region
      _
    $region29: #{tpu_custom_call.1} parent=1 // pred_fallthru
      _
    // Predicated region
    $region30: #{tpu_custom_call.1} parent=1 // pred_check
      _
    $region31: #{tpu_custom_call.1} parent=1 // pred_check_branch
      %52 = sbr.rel (0) target = $region33
    $region32: #{tpu_custom_call.1} parent=1 // pred_region
      %s54 = ssub.s32 18432, 18432
      %55 = vsyncadd [#allocation6], %s54
      %s56 = sshll.u32 [#allocation7], 4
      %s57 = int_to_ptr.vmem [resolvable:$true] %s56
      %62 = dma.hbm_to_vmem [thread:$0]  %s7, 18432, %s57, [#allocation6], 128, 128, 8
    $region33: #{tpu_custom_call.1} parent=1 // pred_fallthru
      _
    // Predicated region
    $region34: #{tpu_custom_call.1} parent=1 // pred_check
      _
    $region35: #{tpu_custom_call.1} parent=1 // pred_check_branch
      %64 = sbr.rel (0) target = $region37
    $region36: #{tpu_custom_call.1} parent=1 // pred_region
      _
    $region37: #{tpu_custom_call.1} parent=1 // pred_fallthru
      _
    // Predicated region
    $region38: #{tpu_custom_call.1} parent=1 // pred_check
      _
    $region39: #{tpu_custom_call.1} parent=1 // pred_check_branch
      %66 = sbr.rel (0) target = $region41
    $region40: #{tpu_custom_call.1} parent=1 // pred_region
      %67 = dma.done [#allocation3], 4096
    $region41: #{tpu_custom_call.1} parent=1 // pred_fallthru
      _
    // Predicated region
    $region42: #{tpu_custom_call.1} parent=1 // pred_check
      _
    $region43: #{tpu_custom_call.1} parent=1 // pred_check_branch
      %69 = sbr.rel (0) target = $region45
    $region44: #{tpu_custom_call.1} parent=1 // pred_region
      %70 = dma.done [#allocation6], 18432
    $region45: #{tpu_custom_call.1} parent=1 // pred_fallthru
      _
    // Predicated region
    $region46: #{tpu_custom_call.1} parent=1 // pred_check
      _
    $region47: #{tpu_custom_call.1} parent=1 // pred_check_branch
      %72 = sbr.rel (0) target = $region49
    $region48: #{tpu_custom_call.1} parent=1 // pred_region
      %73 = dma.done [#allocation6], 18432
    $region49: #{tpu_custom_call.1} parent=1 // pred_fallthru
      _
    %v74 = vld [vmem:[#allocation2] sm:$0xff]
    %v75 = vld [vmem:[#allocation2 + $0x8] sm:$0xff]
    %v76 = vld [vmem:[#allocation2 + $0x10] sm:$0xff]
    %v77 = vld [vmem:[#allocation2 + $0x18] sm:$0xff]
    %v78 = vld [vmem:[#allocation2 + $0x20] sm:$0xff]
    %v79 = vld [vmem:[#allocation2 + $0x28] sm:$0xff]
    %v80 = vld [vmem:[#allocation2 + $0x30] sm:$0xff]
    %v81 = vld [vmem:[#allocation2 + $0x38] sm:$0xff]
    %v82 = vld [vmem:[#allocation2 + $0x40] sm:$0xff]
    %v83 = vld [vmem:[#allocation2 + $0x48] sm:$0xff]
    %v84 = vld [vmem:[#allocation2 + $0x50] sm:$0xff]
    %v85 = vld [vmem:[#allocation2 + $0x58] sm:$0xff]
    %v86 = vld [vmem:[#allocation2 + $0x60] sm:$0xff]
    %v87 = vld [vmem:[#allocation2 + $0x68] sm:$0xff]
    %v88 = vld [vmem:[#allocation2 + $0x70] sm:$0xff]
    %v89 = vld [vmem:[#allocation2 + $0x78] sm:$0xff]
    %v90 = vld [vmem:[#allocation2 + $0x80] sm:$0xff]
    %v91 = vld [vmem:[#allocation2 + $0x88] sm:$0xff]
    %v92 = vld [vmem:[#allocation2 + $0x90] sm:$0xff]
    %v93 = vld [vmem:[#allocation2 + $0x98] sm:$0xff]
    %v94 = vld [vmem:[#allocation2 + $0xa0] sm:$0xff]
    %v95 = vld [vmem:[#allocation2 + $0xa8] sm:$0xff]
    %v96 = vld [vmem:[#allocation2 + $0xb0] sm:$0xff]
    %v97 = vld [vmem:[#allocation2 + $0xb8] sm:$0xff]
    %v98 = vld [vmem:[#allocation2 + $0xc0] sm:$0xff]
    %v99 = vld [vmem:[#allocation2 + $0xc8] sm:$0xff]
    %v100 = vld [vmem:[#allocation2 + $0xd0] sm:$0xff]
    %v101 = vld [vmem:[#allocation2 + $0xd8] sm:$0xff]
    %v102 = vld [vmem:[#allocation2 + $0xe0] sm:$0xff]
    %v103 = vld [vmem:[#allocation2 + $0xe8] sm:$0xff]
    %v104 = vld [vmem:[#allocation2 + $0xf0] sm:$0xff]
    %v105 = vld [vmem:[#allocation2 + $0xf8] sm:$0xff]
    %v106 = vlaneseq
    %v107 = vand.u32 %v106, 127
    %vm108 = vcmp.lt.s32.totalorder %v107, 64
    %v109 = vld [vmem:[%s1] sm:$0x1]
    %v110 = vld [vmem:[%s2] sm:$0x1]
    %v111 = vadd.f32 %v74, %v75
    %v112 = vadd.f32 %v111, %v76
    %v113 = vadd.f32 %v112, %v77
    %v114 = vadd.f32 %v113, %v78
    %v115 = vadd.f32 %v114, %v79
    %v116 = vadd.f32 %v115, %v80
    %v117 = vadd.f32 %v116, %v81
    %v118 = vadd.f32 %v117, %v82
    %v119 = vadd.f32 %v118, %v83
    %v120 = vadd.f32 %v119, %v84
    %v121 = vadd.f32 %v120, %v85
    %v122 = vadd.f32 %v121, %v86
    %v123 = vadd.f32 %v122, %v87
    %v124 = vadd.f32 %v123, %v88
    %v125 = vadd.f32 %v124, %v89
    %v126 = vadd.f32 %v125, %v90
    %v127 = vadd.f32 %v126, %v91
    %v128 = vadd.f32 %v127, %v92
    %v129 = vadd.f32 %v128, %v93
    %v130 = vadd.f32 %v129, %v94
    %v131 = vadd.f32 %v130, %v95
    %v132 = vadd.f32 %v131, %v96
    %v133 = vadd.f32 %v132, %v97
    %v134 = vadd.f32 %v133, %v98
    %v135 = vadd.f32 %v134, %v99
    %v136 = vadd.f32 %v135, %v100
    %v137 = vadd.f32 %v136, %v101
    %v138 = vadd.f32 %v137, %v102
    %v139 = vadd.f32 %v138, %v103
    %v140 = vadd.f32 %v139, %v104
    %v141 = vadd.f32 %v140, %v105
    %v142 = vrot.slane %v141, 4
    %v143 = vadd.f32 %v141, %v142
    %v144 = vrot.slane %v143, 2
    %v145 = vadd.f32 %v143, %v144
    %v146 = vrot.slane %v145, 1
    %v147 = vadd.f32 %v145, %v146
    %148 = vrot.lane.b32.xlu0 %v147, 64
    %v149 = vpop.permute.xlu0 %148
    %v150 = vadd.f32 %v147, %v149
    %v151 = vmul.f32 %v150, 0.001953125
    %v152 = vlaneseq
    %v153 = vshrl.u32 %v152, 7
    %v154 = vsub.s32 0, %v153
    %v155 = vrot.slane %v151, %v154
    %v156 = vsub.f32 %v74, %v155
    %v157 = vsub.f32 %v75, %v155
    %v158 = vsub.f32 %v76, %v155
    %v159 = vsub.f32 %v77, %v155
    %v160 = vsub.f32 %v78, %v155
    %v161 = vsub.f32 %v79, %v155
    %v162 = vsub.f32 %v80, %v155
    %v163 = vsub.f32 %v81, %v155
    %v164 = vsub.f32 %v82, %v155
    %v165 = vsub.f32 %v83, %v155
    %v166 = vsub.f32 %v84, %v155
    %v167 = vsub.f32 %v85, %v155
    %v168 = vsub.f32 %v86, %v155
    %v169 = vsub.f32 %v87, %v155
    %v170 = vsub.f32 %v88, %v155
    %v171 = vsub.f32 %v89, %v155
    %v172 = vsub.f32 %v90, %v155
    %v173 = vsub.f32 %v91, %v155
    %v174 = vsub.f32 %v92, %v155
    %v175 = vsub.f32 %v93, %v155
    %v176 = vsub.f32 %v94, %v155
    %v177 = vsub.f32 %v95, %v155
    %v178 = vsub.f32 %v96, %v155
    %v179 = vsub.f32 %v97, %v155
    %v180 = vsub.f32 %v98, %v155
    %v181 = vsub.f32 %v99, %v155
    %v182 = vsub.f32 %v100, %v155
    %v183 = vsub.f32 %v101, %v155
    %v184 = vsub.f32 %v102, %v155
    %v185 = vsub.f32 %v103, %v155
    %v186 = vsub.f32 %v104, %v155
    %v187 = vsub.f32 %v105, %v155
    %v188 = vmul.f32 %v156, %v156
    %v189 = vmul.f32 %v157, %v157
    %v190 = vmul.f32 %v158, %v158
    %v191 = vmul.f32 %v159, %v159
    %v192 = vmul.f32 %v160, %v160
    %v193 = vmul.f32 %v161, %v161
    %v194 = vmul.f32 %v162, %v162
    %v195 = vmul.f32 %v163, %v163
    %v196 = vmul.f32 %v164, %v164
    %v197 = vmul.f32 %v165, %v165
    %v198 = vmul.f32 %v166, %v166
    %v199 = vmul.f32 %v167, %v167
    %v200 = vmul.f32 %v168, %v168
    %v201 = vmul.f32 %v169, %v169
    %v202 = vmul.f32 %v170, %v170
    %v203 = vmul.f32 %v171, %v171
    %v204 = vmul.f32 %v172, %v172
    %v205 = vmul.f32 %v173, %v173
    %v206 = vmul.f32 %v174, %v174
    %v207 = vmul.f32 %v175, %v175
    %v208 = vmul.f32 %v176, %v176
    %v209 = vmul.f32 %v177, %v177
    %v210 = vmul.f32 %v178, %v178
    %v211 = vmul.f32 %v179, %v179
    %v212 = vmul.f32 %v180, %v180
    %v213 = vmul.f32 %v181, %v181
    %v214 = vmul.f32 %v182, %v182
    %v215 = vmul.f32 %v183, %v183
    %v216 = vmul.f32 %v184, %v184
    %v217 = vmul.f32 %v185, %v185
    %v218 = vmul.f32 %v186, %v186
    %v219 = vmul.f32 %v187, %v187
    %v220 = vadd.f32 %v188, %v189
    %v221 = vadd.f32 %v220, %v190
    %v222 = vadd.f32 %v221, %v191
    %v223 = vadd.f32 %v222, %v192
    %v224 = vadd.f32 %v223, %v193
    %v225 = vadd.f32 %v224, %v194
    %v226 = vadd.f32 %v225, %v195
    %v227 = vadd.f32 %v226, %v196
    %v228 = vadd.f32 %v227, %v197
    %v229 = vadd.f32 %v228, %v198
    %v230 = vadd.f32 %v229, %v199
    %v231 = vadd.f32 %v230, %v200
    %v232 = vadd.f32 %v231, %v201
    %v233 = vadd.f32 %v232, %v202
    %v234 = vadd.f32 %v233, %v203
    %v235 = vadd.f32 %v234, %v204
    %v236 = vadd.f32 %v235, %v205
    %v237 = vadd.f32 %v236, %v206
    %v238 = vadd.f32 %v237, %v207
    %v239 = vadd.f32 %v238, %v208
    %v240 = vadd.f32 %v239, %v209
    %v241 = vadd.f32 %v240, %v210
    %v242 = vadd.f32 %v241, %v211
    %v243 = vadd.f32 %v242, %v212
    %v244 = vadd.f32 %v243, %v213
    %v245 = vadd.f32 %v244, %v214
    %v246 = vadd.f32 %v245, %v215
    %v247 = vadd.f32 %v246, %v216
    %v248 = vadd.f32 %v247, %v217
    %v249 = vadd.f32 %v248, %v218
    %v250 = vadd.f32 %v249, %v219
    %v251 = vrot.slane %v250, 4
    %v252 = vadd.f32 %v250, %v251
    %v253 = vrot.slane %v252, 2
    %v254 = vadd.f32 %v252, %v253
    %v255 = vrot.slane %v254, 1
    %v256 = vadd.f32 %v254, %v255
    %257 = vrot.lane.b32.xlu0 %v256, 64
    %v258 = vpop.permute.xlu0 %257
    %v259 = vadd.f32 %v256, %v258
    %v260 = vmul.f32 %v259, 0.001953125
    %v261 = vadd.f32 %v260, 1e-05
    %v262 = vrsqrt.pop %v261
    %v263 = vmul.f32 %v109, %v262
    %v265 = vlaneseq
    %v266 = vshrl.u32 %v265, 7
    %v267 = vsub.s32 0, %v266
    %v268 = vrot.slane %v263, %v267
    %v270 = vmul.f32 %v156, %v268
    %v271 = vmul.f32 %v157, %v268
    %v272 = vmul.f32 %v158, %v268
    %v273 = vmul.f32 %v159, %v268
    %v274 = vmul.f32 %v160, %v268
    %v275 = vmul.f32 %v161, %v268
    %v276 = vmul.f32 %v162, %v268
    %v277 = vmul.f32 %v163, %v268
    %v278 = vmul.f32 %v164, %v268
    %v279 = vmul.f32 %v165, %v268
    %v280 = vmul.f32 %v166, %v268
    %v281 = vmul.f32 %v167, %v268
    %v282 = vmul.f32 %v168, %v268
    %v283 = vmul.f32 %v169, %v268
    %v284 = vmul.f32 %v170, %v268
    %v285 = vmul.f32 %v171, %v268
    %v286 = vmul.f32 %v172, %v268
    %v287 = vmul.f32 %v173, %v268
    %v288 = vmul.f32 %v174, %v268
    %v289 = vmul.f32 %v175, %v268
    %v290 = vmul.f32 %v176, %v268
    %v291 = vmul.f32 %v177, %v268
    %v292 = vmul.f32 %v178, %v268
    %v293 = vmul.f32 %v179, %v268
    %v294 = vmul.f32 %v180, %v268
    %v295 = vmul.f32 %v181, %v268
    %v296 = vmul.f32 %v182, %v268
    %v297 = vmul.f32 %v183, %v268
    %v298 = vmul.f32 %v184, %v268
    %v299 = vmul.f32 %v185, %v268
    %v300 = vmul.f32 %v186, %v268
    %v301 = vmul.f32 %v187, %v268
    %v303 = vlaneseq
    %v304 = vshrl.u32 %v303, 7
    %v305 = vsub.s32 0, %v304
    %v306 = vrot.slane %v110, %v305
    %v308 = vadd.f32 %v270, %v306
    %v309 = vadd.f32 %v271, %v306
    %v310 = vadd.f32 %v272, %v306
    %v311 = vadd.f32 %v273, %v306
    %v312 = vadd.f32 %v274, %v306
    %v313 = vadd.f32 %v275, %v306
    %v314 = vadd.f32 %v276, %v306
    %v315 = vadd.f32 %v277, %v306
    %v316 = vadd.f32 %v278, %v306
    %v317 = vadd.f32 %v279, %v306
    %v318 = vadd.f32 %v280, %v306
    %v319 = vadd.f32 %v281, %v306
    %v320 = vadd.f32 %v282, %v306
    %v321 = vadd.f32 %v283, %v306
    %v322 = vadd.f32 %v284, %v306
    %v323 = vadd.f32 %v285, %v306
    %v324 = vadd.f32 %v286, %v306
    %v325 = vadd.f32 %v287, %v306
    %v326 = vadd.f32 %v288, %v306
    %v327 = vadd.f32 %v289, %v306
    %v328 = vadd.f32 %v290, %v306
    %v329 = vadd.f32 %v291, %v306
    %v330 = vadd.f32 %v292, %v306
    %v331 = vadd.f32 %v293, %v306
    %v332 = vadd.f32 %v294, %v306
    %v333 = vadd.f32 %v295, %v306
    %v334 = vadd.f32 %v296, %v306
    %v335 = vadd.f32 %v297, %v306
    %v336 = vadd.f32 %v298, %v306
    %v337 = vadd.f32 %v299, %v306
    %v338 = vadd.f32 %v300, %v306
    %v339 = vadd.f32 %v301, %v306
    %v340 = vmax.f32 %v308, 0.0
    %v341 = vmax.f32 %v309, 0.0
    %v342 = vmax.f32 %v310, 0.0
    %v343 = vmax.f32 %v311, 0.0
    %v344 = vmax.f32 %v312, 0.0
    %v345 = vmax.f32 %v313, 0.0
    %v346 = vmax.f32 %v314, 0.0
    %v347 = vmax.f32 %v315, 0.0
    %v348 = vmax.f32 %v316, 0.0
    %v349 = vmax.f32 %v317, 0.0
    %v350 = vmax.f32 %v318, 0.0
    %v351 = vmax.f32 %v319, 0.0
    %v352 = vmax.f32 %v320, 0.0
    %v353 = vmax.f32 %v321, 0.0
    %v354 = vmax.f32 %v322, 0.0
    %v355 = vmax.f32 %v323, 0.0
    %v356 = vmax.f32 %v324, 0.0
    %v357 = vmax.f32 %v325, 0.0
    %v358 = vmax.f32 %v326, 0.0
    %v359 = vmax.f32 %v327, 0.0
    %v360 = vmax.f32 %v328, 0.0
    %v361 = vmax.f32 %v329, 0.0
    %v362 = vmax.f32 %v330, 0.0
    %v363 = vmax.f32 %v331, 0.0
    %v364 = vmax.f32 %v332, 0.0
    %v365 = vmax.f32 %v333, 0.0
    %v366 = vmax.f32 %v334, 0.0
    %v367 = vmax.f32 %v335, 0.0
    %v368 = vmax.f32 %v336, 0.0
    %v369 = vmax.f32 %v337, 0.0
    %v370 = vmax.f32 %v338, 0.0
    %v371 = vmax.f32 %v339, 0.0
    %v372 = vld [vmem:[%s4] sm:$0x1]
    %373 = vrot.lane.b32.xlu0 0.0, 64
    %v374 = vpop.permute.xlu0 %373
    %375 = vrot.lane.b32.xlu0 %v340, 64
    %v376 = vpop.permute.xlu0 %375
    %377 = vrot.lane.b32.xlu0 %v341, 64
    %v378 = vpop.permute.xlu0 %377
    %379 = vrot.lane.b32.xlu0 %v342, 64
    %v380 = vpop.permute.xlu0 %379
    %381 = vrot.lane.b32.xlu0 %v343, 64
    %v382 = vpop.permute.xlu0 %381
    %383 = vrot.lane.b32.xlu0 %v344, 64
    %v384 = vpop.permute.xlu0 %383
    %385 = vrot.lane.b32.xlu0 %v345, 64
    %v386 = vpop.permute.xlu0 %385
    %387 = vrot.lane.b32.xlu0 %v346, 64
    %v388 = vpop.permute.xlu0 %387
    %389 = vrot.lane.b32.xlu0 %v347, 64
    %v390 = vpop.permute.xlu0 %389
    %391 = vrot.lane.b32.xlu0 %v348, 64
    %v392 = vpop.permute.xlu0 %391
    %393 = vrot.lane.b32.xlu0 %v349, 64
    %v394 = vpop.permute.xlu0 %393
    %395 = vrot.lane.b32.xlu0 %v350, 64
    %v396 = vpop.permute.xlu0 %395
    %397 = vrot.lane.b32.xlu0 %v351, 64
    %v398 = vpop.permute.xlu0 %397
    %399 = vrot.lane.b32.xlu0 %v352, 64
    %v400 = vpop.permute.xlu0 %399
    %401 = vrot.lane.b32.xlu0 %v353, 64
    %v402 = vpop.permute.xlu0 %401
    %403 = vrot.lane.b32.xlu0 %v354, 64
    %v404 = vpop.permute.xlu0 %403
    %405 = vrot.lane.b32.xlu0 %v355, 64
    %v406 = vpop.permute.xlu0 %405
    %407 = vrot.lane.b32.xlu0 %v356, 64
    %v408 = vpop.permute.xlu0 %407
    %409 = vrot.lane.b32.xlu0 %v357, 64
    %v410 = vpop.permute.xlu0 %409
    %411 = vrot.lane.b32.xlu0 %v358, 64
    %v412 = vpop.permute.xlu0 %411
    %413 = vrot.lane.b32.xlu0 %v359, 64
    %v414 = vpop.permute.xlu0 %413
    %415 = vrot.lane.b32.xlu0 %v360, 64
    %v416 = vpop.permute.xlu0 %415
    %417 = vrot.lane.b32.xlu0 %v361, 64
    %v418 = vpop.permute.xlu0 %417
    %419 = vrot.lane.b32.xlu0 %v362, 64
    %v420 = vpop.permute.xlu0 %419
    %421 = vrot.lane.b32.xlu0 %v363, 64
    %v422 = vpop.permute.xlu0 %421
    %423 = vrot.lane.b32.xlu0 %v364, 64
    %v424 = vpop.permute.xlu0 %423
    %425 = vrot.lane.b32.xlu0 %v365, 64
    %v426 = vpop.permute.xlu0 %425
    %427 = vrot.lane.b32.xlu0 %v366, 64
    %v428 = vpop.permute.xlu0 %427
    %429 = vrot.lane.b32.xlu0 %v367, 64
    %v430 = vpop.permute.xlu0 %429
    %431 = vrot.lane.b32.xlu0 %v368, 64
    %v432 = vpop.permute.xlu0 %431
    %433 = vrot.lane.b32.xlu0 %v369, 64
    %v434 = vpop.permute.xlu0 %433
    %435 = vrot.lane.b32.xlu0 %v370, 64
    %v436 = vpop.permute.xlu0 %435
    %437 = vrot.lane.b32.xlu0 %v371, 64
    %v438 = vpop.permute.xlu0 %437
    %v472 = vrot.slane %v374, 7
    %v473 = vrot.slane %v376, 7
    %v474 = vrot.slane %v378, 7
    %v475 = vrot.slane %v380, 7
    %v476 = vrot.slane %v382, 7
    %v477 = vrot.slane %v384, 7
    %v478 = vrot.slane %v386, 7
    %v479 = vrot.slane %v388, 7
    %v480 = vrot.slane %v390, 7
    %v481 = vrot.slane %v392, 7
    %v482 = vrot.slane %v394, 7
    %v483 = vrot.slane %v396, 7
    %v484 = vrot.slane %v398, 7
    %v485 = vrot.slane %v400, 7
    %v486 = vrot.slane %v402, 7
    %v487 = vrot.slane %v404, 7
    %v488 = vrot.slane %v406, 7
    %v489 = vrot.slane %v408, 7
    %v490 = vrot.slane %v410, 7
    %v491 = vrot.slane %v412, 7
    %v492 = vrot.slane %v414, 7
    %v493 = vrot.slane %v416, 7
    %v494 = vrot.slane %v418, 7
    %v495 = vrot.slane %v420, 7
    %v496 = vrot.slane %v422, 7
    %v497 = vrot.slane %v424, 7
    %v498 = vrot.slane %v426, 7
    %v499 = vrot.slane %v428, 7
    %v500 = vrot.slane %v430, 7
    %v501 = vrot.slane %v432, 7
    %v502 = vrot.slane %v434, 7
    %v503 = vrot.slane %v436, 7
    %v504 = vrot.slane %v438, 7
    %vm538 = vcmask 1040384
    %v539 = vsel %vm538, 0.0, %v472
    %v540 = vsel %vm538, 0.0, %v473
    %v541 = vsel %vm538, 0.0, %v474
    %v542 = vsel %vm538, 0.0, %v475
    %v543 = vsel %vm538, 0.0, %v476
    %v544 = vsel %vm538, 0.0, %v477
    %v545 = vsel %vm538, 0.0, %v478
    %v546 = vsel %vm538, 0.0, %v479
    %v547 = vsel %vm538, 0.0, %v480
    %v548 = vsel %vm538, 0.0, %v481
    %v549 = vsel %vm538, 0.0, %v482
    %v550 = vsel %vm538, 0.0, %v483
    %v551 = vsel %vm538, 0.0, %v484
    %v552 = vsel %vm538, 0.0, %v485
    %v553 = vsel %vm538, 0.0, %v486
    %v554 = vsel %vm538, 0.0, %v487
    %v555 = vsel %vm538, 0.0, %v488
    %v556 = vsel %vm538, 0.0, %v489
    %v557 = vsel %vm538, 0.0, %v490
    %v558 = vsel %vm538, 0.0, %v491
    %v559 = vsel %vm538, 0.0, %v492
    %v560 = vsel %vm538, 0.0, %v493
    %v561 = vsel %vm538, 0.0, %v494
    %v562 = vsel %vm538, 0.0, %v495
    %v563 = vsel %vm538, 0.0, %v496
    %v564 = vsel %vm538, 0.0, %v497
    %v565 = vsel %vm538, 0.0, %v498
    %v566 = vsel %vm538, 0.0, %v499
    %v567 = vsel %vm538, 0.0, %v500
    %v568 = vsel %vm538, 0.0, %v501
    %v569 = vsel %vm538, 0.0, %v502
    %v570 = vsel %vm538, 0.0, %v503
    %v571 = vsel %vm538, 0.0, %v504
    %v572 = vrot.slane %v374, 1
    %v573 = vrot.slane %v376, 1
    %v574 = vrot.slane %v378, 1
    %v575 = vrot.slane %v380, 1
    %v576 = vrot.slane %v382, 1
    %v577 = vrot.slane %v384, 1
    %v578 = vrot.slane %v386, 1
    %v579 = vrot.slane %v388, 1
    %v580 = vrot.slane %v390, 1
    %v581 = vrot.slane %v392, 1
    %v582 = vrot.slane %v394, 1
    %v583 = vrot.slane %v396, 1
    %v584 = vrot.slane %v398, 1
    %v585 = vrot.slane %v400, 1
    %v586 = vrot.slane %v402, 1
    %v587 = vrot.slane %v404, 1
    %v588 = vrot.slane %v406, 1
    %v589 = vrot.slane %v408, 1
    %v590 = vrot.slane %v410, 1
    %v591 = vrot.slane %v412, 1
    %v592 = vrot.slane %v414, 1
    %v593 = vrot.slane %v416, 1
    %v594 = vrot.slane %v418, 1
    %v595 = vrot.slane %v420, 1
    %v596 = vrot.slane %v422, 1
    %v597 = vrot.slane %v424, 1
    %v598 = vrot.slane %v426, 1
    %v599 = vrot.slane %v428, 1
    %v600 = vrot.slane %v430, 1
    %v601 = vrot.slane %v432, 1
    %v602 = vrot.slane %v434, 1
    %v603 = vrot.slane %v436, 1
    %v604 = vrot.slane %v438, 1
    %vm638 = vcmask 1046528
    %v639 = vsel %vm638, %v572, 0.0
    %v640 = vsel %vm638, %v573, 0.0
    %v641 = vsel %vm638, %v574, 0.0
    %v642 = vsel %vm638, %v575, 0.0
    %v643 = vsel %vm638, %v576, 0.0
    %v644 = vsel %vm638, %v577, 0.0
    %v645 = vsel %vm638, %v578, 0.0
    %v646 = vsel %vm638, %v579, 0.0
    %v647 = vsel %vm638, %v580, 0.0
    %v648 = vsel %vm638, %v581, 0.0
    %v649 = vsel %vm638, %v582, 0.0
    %v650 = vsel %vm638, %v583, 0.0
    %v651 = vsel %vm638, %v584, 0.0
    %v652 = vsel %vm638, %v585, 0.0
    %v653 = vsel %vm638, %v586, 0.0
    %v654 = vsel %vm638, %v587, 0.0
    %v655 = vsel %vm638, %v588, 0.0
    %v656 = vsel %vm638, %v589, 0.0
    %v657 = vsel %vm638, %v590, 0.0
    %v658 = vsel %vm638, %v591, 0.0
    %v659 = vsel %vm638, %v592, 0.0
    %v660 = vsel %vm638, %v593, 0.0
    %v661 = vsel %vm638, %v594, 0.0
    %v662 = vsel %vm638, %v595, 0.0
    %v663 = vsel %vm638, %v596, 0.0
    %v664 = vsel %vm638, %v597, 0.0
    %v665 = vsel %vm638, %v598, 0.0
    %v666 = vsel %vm638, %v599, 0.0
    %v667 = vsel %vm638, %v600, 0.0
    %v668 = vsel %vm638, %v601, 0.0
    %v669 = vsel %vm638, %v602, 0.0
    %v670 = vsel %vm638, %v603, 0.0
    %v671 = vsel %vm638, %v604, 0.0
    %v672 = vsel %vm108, 1, 0
    %vm673 = vcmp.eq.s32.totalorder %v672, 1
    %v674 = vsel %vm673, %v539, %v374
    %v675 = vsel %vm673, %v540, %v376
    %v676 = vsel %vm673, %v541, %v378
    %v677 = vsel %vm673, %v542, %v380
    %v678 = vsel %vm673, %v543, %v382
    %v679 = vsel %vm673, %v544, %v384
    %v680 = vsel %vm673, %v545, %v386
    %v681 = vsel %vm673, %v546, %v388
    %v682 = vsel %vm673, %v547, %v390
    %v683 = vsel %vm673, %v548, %v392
    %v684 = vsel %vm673, %v549, %v394
    %v685 = vsel %vm673, %v550, %v396
    %v686 = vsel %vm673, %v551, %v398
    %v687 = vsel %vm673, %v552, %v400
    %v688 = vsel %vm673, %v553, %v402
    %v689 = vsel %vm673, %v554, %v404
    %v690 = vsel %vm673, %v555, %v406
    %v691 = vsel %vm673, %v556, %v408
    %v692 = vsel %vm673, %v557, %v410
    %v693 = vsel %vm673, %v558, %v412
    %v694 = vsel %vm673, %v559, %v414
    %v695 = vsel %vm673, %v560, %v416
    %v696 = vsel %vm673, %v561, %v418
    %v697 = vsel %vm673, %v562, %v420
    %v698 = vsel %vm673, %v563, %v422
    %v699 = vsel %vm673, %v564, %v424
    %v700 = vsel %vm673, %v565, %v426
    %v701 = vsel %vm673, %v566, %v428
    %v702 = vsel %vm673, %v567, %v430
    %v703 = vsel %vm673, %v568, %v432
    %v704 = vsel %vm673, %v569, %v434
    %v705 = vsel %vm673, %v570, %v436
    %v706 = vsel %vm673, %v571, %v438
    %v707 = vsel %vm673, %v374, %v639
    %v708 = vsel %vm673, %v376, %v640
    %v709 = vsel %vm673, %v378, %v641
    %v710 = vsel %vm673, %v380, %v642
    %v711 = vsel %vm673, %v382, %v643
    %v712 = vsel %vm673, %v384, %v644
    %v713 = vsel %vm673, %v386, %v645
    %v714 = vsel %vm673, %v388, %v646
    %v715 = vsel %vm673, %v390, %v647
    %v716 = vsel %vm673, %v392, %v648
    %v717 = vsel %vm673, %v394, %v649
    %v718 = vsel %vm673, %v396, %v650
    %v719 = vsel %vm673, %v398, %v651
    %v720 = vsel %vm673, %v400, %v652
    %v721 = vsel %vm673, %v402, %v653
    %v722 = vsel %vm673, %v404, %v654
    %v723 = vsel %vm673, %v406, %v655
    %v724 = vsel %vm673, %v408, %v656
    %v725 = vsel %vm673, %v410, %v657
    %v726 = vsel %vm673, %v412, %v658
    %v727 = vsel %vm673, %v414, %v659
    %v728 = vsel %vm673, %v416, %v660
    %v729 = vsel %vm673, %v418, %v661
    %v730 = vsel %vm673, %v420, %v662
    %v731 = vsel %vm673, %v422, %v663
    %v732 = vsel %vm673, %v424, %v664
    %v733 = vsel %vm673, %v426, %v665
    %v734 = vsel %vm673, %v428, %v666
    %v735 = vsel %vm673, %v430, %v667
    %v736 = vsel %vm673, %v432, %v668
    %v737 = vsel %vm673, %v434, %v669
    %v738 = vsel %vm673, %v436, %v670
    %v739 = vsel %vm673, %v438, %v671
    %v740 = vld [vmem:[#allocation5] sm:$0xff]
    %v741 = vld [vmem:[#allocation5 + $0x8] sm:$0xff]
    %v742 = vld [vmem:[#allocation5 + $0x10] sm:$0xff]
    %v743 = vld [vmem:[#allocation5 + $0x18] sm:$0xff]
    %v744 = vld [vmem:[#allocation5 + $0x20] sm:$0xff]
    %v745 = vld [vmem:[#allocation5 + $0x28] sm:$0xff]
    %v746 = vld [vmem:[#allocation5 + $0x30] sm:$0xff]
    %v747 = vld [vmem:[#allocation5 + $0x38] sm:$0xff]
    %v748 = vld [vmem:[#allocation5 + $0x40] sm:$0xff]
    %v749 = vld [vmem:[#allocation5 + $0x48] sm:$0xff]
    %v750 = vld [vmem:[#allocation5 + $0x50] sm:$0xff]
    %v751 = vld [vmem:[#allocation5 + $0x58] sm:$0xff]
    %v752 = vld [vmem:[#allocation5 + $0x60] sm:$0xff]
    %v753 = vld [vmem:[#allocation5 + $0x68] sm:$0xff]
    %v754 = vld [vmem:[#allocation5 + $0x70] sm:$0xff]
    %v755 = vld [vmem:[#allocation5 + $0x78] sm:$0xff]
    %s756 = scalar_lea.vmem [#allocation5], 128
    %v757 = vld [vmem:[%s756] sm:$0xff]
    %v758 = vld [vmem:[%s756 + $0x8] sm:$0xff]
    %v759 = vld [vmem:[%s756 + $0x10] sm:$0xff]
    %v760 = vld [vmem:[%s756 + $0x18] sm:$0xff]
    %v761 = vld [vmem:[%s756 + $0x20] sm:$0xff]
    %v762 = vld [vmem:[%s756 + $0x28] sm:$0xff]
    %v763 = vld [vmem:[%s756 + $0x30] sm:$0xff]
    %v764 = vld [vmem:[%s756 + $0x38] sm:$0xff]
    %v765 = vld [vmem:[%s756 + $0x40] sm:$0xff]
    %v766 = vld [vmem:[%s756 + $0x48] sm:$0xff]
    %v767 = vld [vmem:[%s756 + $0x50] sm:$0xff]
    %v768 = vld [vmem:[%s756 + $0x58] sm:$0xff]
    %v769 = vld [vmem:[%s756 + $0x60] sm:$0xff]
    %v770 = vld [vmem:[%s756 + $0x68] sm:$0xff]
    %v771 = vld [vmem:[%s756 + $0x70] sm:$0xff]
    %v772 = vld [vmem:[%s756 + $0x78] sm:$0xff]
    %773 = vmatprep.subr.mxu0 0.0
    %774 = vmatpush1.msra.mxu0 %v772
    %775 = vmatprep.subr.mxu0 0.0
    %776 = vmatpush1.msra.mxu0 %v771
    %777 = vmatprep.subr.mxu0 0.0
    %778 = vmatpush1.msra.mxu0 %v770
    %779 = vmatprep.subr.mxu0 0.0
    %780 = vmatpush1.msra.mxu0 %v769
    %781 = vmatprep.subr.mxu0 0.0
    %782 = vmatpush1.msra.mxu0 %v768
    %783 = vmatprep.subr.mxu0 0.0
    %784 = vmatpush1.msra.mxu0 %v767
    %785 = vmatprep.subr.mxu0 0.0
    %786 = vmatpush1.msra.mxu0 %v766
    %787 = vmatprep.subr.mxu0 0.0
    %788 = vmatpush1.msra.mxu0 %v765
    %789 = vmatprep.subr.mxu0 0.0
    %790 = vmatpush1.msra.mxu0 %v764
    %791 = vmatprep.subr.mxu0 0.0
    %792 = vmatpush1.msra.mxu0 %v763
    %793 = vmatprep.subr.mxu0 0.0
    %794 = vmatpush1.msra.mxu0 %v762
    %795 = vmatprep.subr.mxu0 0.0
    %796 = vmatpush1.msra.mxu0 %v761
    %797 = vmatprep.subr.mxu0 0.0
    %798 = vmatpush1.msra.mxu0 %v760
    %799 = vmatprep.subr.mxu0 0.0
    %800 = vmatpush1.msra.mxu0 %v759
    %801 = vmatprep.subr.mxu0 0.0
    %802 = vmatpush1.msra.mxu0 %v758
    %803 = vmatprep.subr.mxu0 0.0
    %804 = vmatpush1.msra.mxu0 %v757
    %805 = vmatprep.subr.mxu0 0.0
    %806 = vmatpush2.msra.mxu0 0.0
    %807 = vmatprep.subr.mxu0 0.0
    %808 = vmatpush2.msra.mxu0 0.0
    %809 = vmatprep.subr.mxu0 0.0
    %810 = vmatpush2.msra.mxu0 0.0
    %811 = vmatprep.subr.mxu0 0.0
    %812 = vmatpush2.msra.mxu0 0.0
    %813 = vmatprep.subr.mxu0 0.0
    %814 = vmatpush2.msra.mxu0 0.0
    %815 = vmatprep.subr.mxu0 0.0
    %816 = vmatpush2.msra.mxu0 0.0
    %817 = vmatprep.subr.mxu0 0.0
    %818 = vmatpush2.msra.mxu0 0.0
    %819 = vmatprep.subr.mxu0 0.0
    %820 = vmatpush2.msra.mxu0 0.0
    %821 = vmatprep.subr.mxu0 0.0
    %822 = vmatpush2.msra.mxu0 0.0
    %823 = vmatprep.subr.mxu0 0.0
    %824 = vmatpush2.msra.mxu0 0.0
    %825 = vmatprep.subr.mxu0 0.0
    %826 = vmatpush2.msra.mxu0 0.0
    %827 = vmatprep.subr.mxu0 0.0
    %828 = vmatpush2.msra.mxu0 0.0
    %829 = vmatprep.subr.mxu0 0.0
    %830 = vmatpush2.msra.mxu0 0.0
    %831 = vmatprep.subr.mxu0 0.0
    %832 = vmatpush2.msra.mxu0 0.0
    %833 = vmatprep.subr.mxu0 0.0
    %834 = vmatpush2.msra.mxu0 0.0
    %835 = vmatprep.subr.mxu0 0.0
    %836 = vmatpush2.msra.mxu0 0.0
    %837 = vmatprep.mubr.f32.mxu0 0.0
    %838 = vmatmul.mubr.f32.gmra.mxu0 0.0
    %v839 = vpop.f32.mrf.mxu0
    %v840 = vadd.f32 0.0, %v839
    %v841 = vpop.f32.mrf.mxu0
    %842 = vmatprep.mubr.f32.mxu0 0.0
    %843 = vmatmul.mubr.f32.gmra.mxu0 %v340
    %v844 = vpop.f32.mrf.mxu0
    %v845 = vadd.f32 0.0, %v844
    %v846 = vpop.f32.mrf.mxu0
    %847 = vmatprep.mubr.f32.mxu0 0.0
    %848 = vmatmul.mubr.f32.gmra.mxu0 %v341
    %v849 = vpop.f32.mrf.mxu0
    %v850 = vadd.f32 0.0, %v849
    %v851 = vpop.f32.mrf.mxu0
    %852 = vmatprep.mubr.f32.mxu0 0.0
    %853 = vmatmul.mubr.f32.gmra.mxu0 %v342
    %v854 = vpop.f32.mrf.mxu0
    %v855 = vadd.f32 0.0, %v854
    %v856 = vpop.f32.mrf.mxu0
    %857 = vmatprep.mubr.f32.mxu0 0.0
    %858 = vmatmul.mubr.f32.gmra.mxu0 %v343
    %v859 = vpop.f32.mrf.mxu0
    %v860 = vadd.f32 0.0, %v859
    %v861 = vpop.f32.mrf.mxu0
    %862 = vmatprep.mubr.f32.mxu0 0.0
    %863 = vmatmul.mubr.f32.gmra.mxu0 %v344
    %v864 = vpop.f32.mrf.mxu0
    %v865 = vadd.f32 0.0, %v864
    %v866 = vpop.f32.mrf.mxu0
    %867 = vmatprep.mubr.f32.mxu0 0.0
    %868 = vmatmul.mubr.f32.gmra.mxu0 %v345
    %v869 = vpop.f32.mrf.mxu0
    %v870 = vadd.f32 0.0, %v869
    %v871 = vpop.f32.mrf.mxu0
    %872 = vmatprep.mubr.f32.mxu0 0.0
    %873 = vmatmul.mubr.f32.gmra.mxu0 %v346
    %v874 = vpop.f32.mrf.mxu0
    %v875 = vadd.f32 0.0, %v874
    %v876 = vpop.f32.mrf.mxu0
    %877 = vmatprep.mubr.f32.mxu0 0.0
    %878 = vmatmul.mubr.f32.gmra.mxu0 %v347
    %v879 = vpop.f32.mrf.mxu0
    %v880 = vadd.f32 0.0, %v879
    %v881 = vpop.f32.mrf.mxu0
    %882 = vmatprep.mubr.f32.mxu0 0.0
    %883 = vmatmul.mubr.f32.gmra.mxu0 %v348
    %v884 = vpop.f32.mrf.mxu0
    %v885 = vadd.f32 0.0, %v884
    %v886 = vpop.f32.mrf.mxu0
    %887 = vmatprep.mubr.f32.mxu0 0.0
    %888 = vmatmul.mubr.f32.gmra.mxu0 %v349
    %v889 = vpop.f32.mrf.mxu0
    %v890 = vadd.f32 0.0, %v889
    %v891 = vpop.f32.mrf.mxu0
    %892 = vmatprep.mubr.f32.mxu0 0.0
    %893 = vmatmul.mubr.f32.gmra.mxu0 %v350
    %v894 = vpop.f32.mrf.mxu0
    %v895 = vadd.f32 0.0, %v894
    %v896 = vpop.f32.mrf.mxu0
    %897 = vmatprep.mubr.f32.mxu0 0.0
    %898 = vmatmul.mubr.f32.gmra.mxu0 %v351
    %v899 = vpop.f32.mrf.mxu0
    %v900 = vadd.f32 0.0, %v899
    %v901 = vpop.f32.mrf.mxu0
    %902 = vmatprep.mubr.f32.mxu0 0.0
    %903 = vmatmul.mubr.f32.gmra.mxu0 %v352
    %v904 = vpop.f32.mrf.mxu0
    %v905 = vadd.f32 0.0, %v904
    %v906 = vpop.f32.mrf.mxu0
    %907 = vmatprep.mubr.f32.mxu0 0.0
    %908 = vmatmul.mubr.f32.gmra.mxu0 %v353
    %v909 = vpop.f32.mrf.mxu0
    %v910 = vadd.f32 0.0, %v909
    %v911 = vpop.f32.mrf.mxu0
    %912 = vmatprep.mubr.f32.mxu0 0.0
    %913 = vmatmul.mubr.f32.gmra.mxu0 %v354
    %v914 = vpop.f32.mrf.mxu0
    %v915 = vadd.f32 0.0, %v914
    %v916 = vpop.f32.mrf.mxu0
    %917 = vmatprep.mubr.f32.mxu0 0.0
    %918 = vmatmul.mubr.f32.gmra.mxu0 0.0
    %v919 = vpop.f32.mrf.mxu0
    %v920 = vadd.f32 0.0, %v919
    %v921 = vpop.f32.mrf.mxu0
    %922 = vmatprep.mubr.f32.mxu0 0.0
    %923 = vmatmul.mubr.f32.gmra.mxu0 %v356
    %v924 = vpop.f32.mrf.mxu0
    %v925 = vadd.f32 0.0, %v924
    %v926 = vpop.f32.mrf.mxu0
    %927 = vmatprep.mubr.f32.mxu0 0.0
    %928 = vmatmul.mubr.f32.gmra.mxu0 %v357
    %v929 = vpop.f32.mrf.mxu0
    %v930 = vadd.f32 0.0, %v929
    %v931 = vpop.f32.mrf.mxu0
    %932 = vmatprep.mubr.f32.mxu0 0.0
    %933 = vmatmul.mubr.f32.gmra.mxu0 %v358
    %v934 = vpop.f32.mrf.mxu0
    %v935 = vadd.f32 0.0, %v934
    %v936 = vpop.f32.mrf.mxu0
    %937 = vmatprep.mubr.f32.mxu0 0.0
    %938 = vmatmul.mubr.f32.gmra.mxu0 %v359
    %v939 = vpop.f32.mrf.mxu0
    %v940 = vadd.f32 0.0, %v939
    %v941 = vpop.f32.mrf.mxu0
    %942 = vmatprep.mubr.f32.mxu0 0.0
    %943 = vmatmul.mubr.f32.gmra.mxu0 %v360
    %v944 = vpop.f32.mrf.mxu0
    %v945 = vadd.f32 0.0, %v944
    %v946 = vpop.f32.mrf.mxu0
    %947 = vmatprep.mubr.f32.mxu0 0.0
    %948 = vmatmul.mubr.f32.gmra.mxu0 %v361
    %v949 = vpop.f32.mrf.mxu0
    %v950 = vadd.f32 0.0, %v949
    %v951 = vpop.f32.mrf.mxu0
    %952 = vmatprep.mubr.f32.mxu0 0.0
    %953 = vmatmul.mubr.f32.gmra.mxu0 %v362
    %v954 = vpop.f32.mrf.mxu0
    %v955 = vadd.f32 0.0, %v954
    %v956 = vpop.f32.mrf.mxu0
    %957 = vmatprep.mubr.f32.mxu0 0.0
    %958 = vmatmul.mubr.f32.gmra.mxu0 %v363
    %v959 = vpop.f32.mrf.mxu0
    %v960 = vadd.f32 0.0, %v959
    %v961 = vpop.f32.mrf.mxu0
    %962 = vmatprep.mubr.f32.mxu0 0.0
    %963 = vmatmul.mubr.f32.gmra.mxu0 %v364
    %v964 = vpop.f32.mrf.mxu0
    %v965 = vadd.f32 0.0, %v964
    %v966 = vpop.f32.mrf.mxu0
    %967 = vmatprep.mubr.f32.mxu0 0.0
    %968 = vmatmul.mubr.f32.gmra.mxu0 %v365
    %v969 = vpop.f32.mrf.mxu0
    %v970 = vadd.f32 0.0, %v969
    %v971 = vpop.f32.mrf.mxu0
    %972 = vmatprep.mubr.f32.mxu0 0.0
    %973 = vmatmul.mubr.f32.gmra.mxu0 %v366
    %v974 = vpop.f32.mrf.mxu0
    %v975 = vadd.f32 0.0, %v974
    %v976 = vpop.f32.mrf.mxu0
    %977 = vmatprep.mubr.f32.mxu0 0.0
    %978 = vmatmul.mubr.f32.gmra.mxu0 %v367
    %v979 = vpop.f32.mrf.mxu0
    %v980 = vadd.f32 0.0, %v979
    %v981 = vpop.f32.mrf.mxu0
    %982 = vmatprep.mubr.f32.mxu0 0.0
    %983 = vmatmul.mubr.f32.gmra.mxu0 %v368
    %v984 = vpop.f32.mrf.mxu0
    %v985 = vadd.f32 0.0, %v984
    %v986 = vpop.f32.mrf.mxu0
    %987 = vmatprep.mubr.f32.mxu0 0.0
    %988 = vmatmul.mubr.f32.gmra.mxu0 %v369
    %v989 = vpop.f32.mrf.mxu0
    %v990 = vadd.f32 0.0, %v989
    %v991 = vpop.f32.mrf.mxu0
    %992 = vmatprep.mubr.f32.mxu0 0.0
    %993 = vmatmul.mubr.f32.gmra.mxu0 %v370
    %v994 = vpop.f32.mrf.mxu0
    %v995 = vadd.f32 0.0, %v994
    %v996 = vpop.f32.mrf.mxu0
    %997 = vdwg.mxu0
    %998 = vmatprep.subr.mxu0 0.0
    %999 = vmatpush1.msra.mxu0 %v755
    %1000 = vmatprep.subr.mxu0 0.0
    %1001 = vmatpush1.msra.mxu0 %v754
    %1002 = vmatprep.subr.mxu0 0.0
    %1003 = vmatpush1.msra.mxu0 %v753
    %1004 = vmatprep.subr.mxu0 0.0
    %1005 = vmatpush1.msra.mxu0 %v752
    %1006 = vmatprep.subr.mxu0 0.0
    %1007 = vmatpush1.msra.mxu0 %v751
    %1008 = vmatprep.subr.mxu0 0.0
    %1009 = vmatpush1.msra.mxu0 %v750
    %1010 = vmatprep.subr.mxu0 0.0
    %1011 = vmatpush1.msra.mxu0 %v749
    %1012 = vmatprep.subr.mxu0 0.0
    %1013 = vmatpush1.msra.mxu0 %v748
    %1014 = vmatprep.subr.mxu0 0.0
    %1015 = vmatpush1.msra.mxu0 %v747
    %1016 = vmatprep.subr.mxu0 0.0
    %1017 = vmatpush1.msra.mxu0 %v746
    %1018 = vmatprep.subr.mxu0 0.0
    %1019 = vmatpush1.msra.mxu0 %v745
    %1020 = vmatprep.subr.mxu0 0.0
    %1021 = vmatpush1.msra.mxu0 %v744
    %1022 = vmatprep.subr.mxu0 0.0
    %1023 = vmatpush1.msra.mxu0 %v743
    %1024 = vmatprep.subr.mxu0 0.0
    %1025 = vmatpush1.msra.mxu0 %v742
    %1026 = vmatprep.subr.mxu0 0.0
    %1027 = vmatpush1.msra.mxu0 %v741
    %1028 = vmatprep.subr.mxu0 0.0
    %1029 = vmatpush1.msra.mxu0 %v740
    %1030 = vmatprep.subr.mxu0 0.0
    %1031 = vmatpush2.msra.mxu0 0.0
    %1032 = vmatprep.subr.mxu0 0.0
    %1033 = vmatpush2.msra.mxu0 0.0
    %1034 = vmatprep.subr.mxu0 0.0
    %1035 = vmatpush2.msra.mxu0 0.0
    %1036 = vmatprep.subr.mxu0 0.0
    %1037 = vmatpush2.msra.mxu0 0.0
    %1038 = vmatprep.subr.mxu0 0.0
    %1039 = vmatpush2.msra.mxu0 0.0
    %1040 = vmatprep.subr.mxu0 0.0
    %1041 = vmatpush2.msra.mxu0 0.0
    %1042 = vmatprep.subr.mxu0 0.0
    %1043 = vmatpush2.msra.mxu0 0.0
    %1044 = vmatprep.subr.mxu0 0.0
    %1045 = vmatpush2.msra.mxu0 0.0
    %1046 = vmatprep.subr.mxu0 0.0
    %1047 = vmatpush2.msra.mxu0 0.0
    %1048 = vmatprep.subr.mxu0 0.0
    %1049 = vmatpush2.msra.mxu0 0.0
    %1050 = vmatprep.subr.mxu0 0.0
    %1051 = vmatpush2.msra.mxu0 0.0
    %1052 = vmatprep.subr.mxu0 0.0
    %1053 = vmatpush2.msra.mxu0 0.0
    %1054 = vmatprep.subr.mxu0 0.0
    %1055 = vmatpush2.msra.mxu0 0.0
    %1056 = vmatprep.subr.mxu0 0.0
    %1057 = vmatpush2.msra.mxu0 0.0
    %1058 = vmatprep.subr.mxu0 0.0
    %1059 = vmatpush2.msra.mxu0 0.0
    %1060 = vmatprep.subr.mxu0 0.0
    %1061 = vmatpush2.msra.mxu0 0.0
    %1062 = vmatprep.mubr.f32.mxu0 0.0
    %1063 = vmatmul.mubr.f32.gmra.mxu0 %v674
    %v1064 = vpop.f32.mrf.mxu0
    %v1065 = vadd.f32 %v840, %v1064
    %v1066 = vpop.f32.mrf.mxu0
    %1067 = vmatprep.mubr.f32.mxu0 0.0
    %1068 = vmatmul.mubr.f32.gmra.mxu0 %v675
    %v1069 = vpop.f32.mrf.mxu0
    %v1070 = vadd.f32 %v845, %v1069
    %v1071 = vpop.f32.mrf.mxu0
    %1072 = vmatprep.mubr.f32.mxu0 0.0
    %1073 = vmatmul.mubr.f32.gmra.mxu0 %v676
    %v1074 = vpop.f32.mrf.mxu0
    %v1075 = vadd.f32 %v850, %v1074
    %v1076 = vpop.f32.mrf.mxu0
    %1077 = vmatprep.mubr.f32.mxu0 0.0
    %1078 = vmatmul.mubr.f32.gmra.mxu0 %v677
    %v1079 = vpop.f32.mrf.mxu0
    %v1080 = vadd.f32 %v855, %v1079
    %v1081 = vpop.f32.mrf.mxu0
    %1082 = vmatprep.mubr.f32.mxu0 0.0
    %1083 = vmatmul.mubr.f32.gmra.mxu0 %v678
    %v1084 = vpop.f32.mrf.mxu0
    %v1085 = vadd.f32 %v860, %v1084
    %v1086 = vpop.f32.mrf.mxu0
    %1087 = vmatprep.mubr.f32.mxu0 0.0
    %1088 = vmatmul.mubr.f32.gmra.mxu0 %v679
    %v1089 = vpop.f32.mrf.mxu0
    %v1090 = vadd.f32 %v865, %v1089
    %v1091 = vpop.f32.mrf.mxu0
    %1092 = vmatprep.mubr.f32.mxu0 0.0
    %1093 = vmatmul.mubr.f32.gmra.mxu0 %v680
    %v1094 = vpop.f32.mrf.mxu0
    %v1095 = vadd.f32 %v870, %v1094
    %v1096 = vpop.f32.mrf.mxu0
    %1097 = vmatprep.mubr.f32.mxu0 0.0
    %1098 = vmatmul.mubr.f32.gmra.mxu0 %v681
    %v1099 = vpop.f32.mrf.mxu0
    %v1100 = vadd.f32 %v875, %v1099
    %v1101 = vpop.f32.mrf.mxu0
    %1102 = vmatprep.mubr.f32.mxu0 0.0
    %1103 = vmatmul.mubr.f32.gmra.mxu0 %v682
    %v1104 = vpop.f32.mrf.mxu0
    %v1105 = vadd.f32 %v880, %v1104
    %v1106 = vpop.f32.mrf.mxu0
    %1107 = vmatprep.mubr.f32.mxu0 0.0
    %1108 = vmatmul.mubr.f32.gmra.mxu0 %v683
    %v1109 = vpop.f32.mrf.mxu0
    %v1110 = vadd.f32 %v885, %v1109
    %v1111 = vpop.f32.mrf.mxu0
    %1112 = vmatprep.mubr.f32.mxu0 0.0
    %1113 = vmatmul.mubr.f32.gmra.mxu0 %v684
    %v1114 = vpop.f32.mrf.mxu0
    %v1115 = vadd.f32 %v890, %v1114
    %v1116 = vpop.f32.mrf.mxu0
    %1117 = vmatprep.mubr.f32.mxu0 0.0
    %1118 = vmatmul.mubr.f32.gmra.mxu0 %v685
    %v1119 = vpop.f32.mrf.mxu0
    %v1120 = vadd.f32 %v895, %v1119
    %v1121 = vpop.f32.mrf.mxu0
    %1122 = vmatprep.mubr.f32.mxu0 0.0
    %1123 = vmatmul.mubr.f32.gmra.mxu0 %v686
    %v1124 = vpop.f32.mrf.mxu0
    %v1125 = vadd.f32 %v900, %v1124
    %v1126 = vpop.f32.mrf.mxu0
    %1127 = vmatprep.mubr.f32.mxu0 0.0
    %1128 = vmatmul.mubr.f32.gmra.mxu0 %v687
    %v1129 = vpop.f32.mrf.mxu0
    %v1130 = vadd.f32 %v905, %v1129
    %v1131 = vpop.f32.mrf.mxu0
    %1132 = vmatprep.mubr.f32.mxu0 0.0
    %1133 = vmatmul.mubr.f32.gmra.mxu0 %v688
    %v1134 = vpop.f32.mrf.mxu0
    %v1135 = vadd.f32 %v910, %v1134
    %v1136 = vpop.f32.mrf.mxu0
    %1137 = vmatprep.mubr.f32.mxu0 0.0
    %1138 = vmatmul.mubr.f32.gmra.mxu0 %v689
    %v1139 = vpop.f32.mrf.mxu0
    %v1140 = vadd.f32 %v915, %v1139
    %v1141 = vpop.f32.mrf.mxu0
    %1142 = vmatprep.mubr.f32.mxu0 0.0
    %1143 = vmatmul.mubr.f32.gmra.mxu0 %v674
    %v1144 = vpop.f32.mrf.mxu0
    %v1145 = vadd.f32 %v920, %v1144
    %v1146 = vpop.f32.mrf.mxu0
    %1147 = vmatprep.mubr.f32.mxu0 0.0
    %1148 = vmatmul.mubr.f32.gmra.mxu0 %v691
    %v1149 = vpop.f32.mrf.mxu0
    %v1150 = vadd.f32 %v925, %v1149
    %v1151 = vpop.f32.mrf.mxu0
    %1152 = vmatprep.mubr.f32.mxu0 0.0
    %1153 = vmatmul.mubr.f32.gmra.mxu0 %v692
    %v1154 = vpop.f32.mrf.mxu0
    %v1155 = vadd.f32 %v930, %v1154
    %v1156 = vpop.f32.mrf.mxu0
    %1157 = vmatprep.mubr.f32.mxu0 0.0
    %1158 = vmatmul.mubr.f32.gmra.mxu0 %v693
    %v1159 = vpop.f32.mrf.mxu0
    %v1160 = vadd.f32 %v935, %v1159
    %v1161 = vpop.f32.mrf.mxu0
    %1162 = vmatprep.mubr.f32.mxu0 0.0
    %1163 = vmatmul.mubr.f32.gmra.mxu0 %v694
    %v1164 = vpop.f32.mrf.mxu0
    %v1165 = vadd.f32 %v940, %v1164
    %v1166 = vpop.f32.mrf.mxu0
    %1167 = vmatprep.mubr.f32.mxu0 0.0
    %1168 = vmatmul.mubr.f32.gmra.mxu0 %v695
    %v1169 = vpop.f32.mrf.mxu0
    %v1170 = vadd.f32 %v945, %v1169
    %v1171 = vpop.f32.mrf.mxu0
    %1172 = vmatprep.mubr.f32.mxu0 0.0
    %1173 = vmatmul.mubr.f32.gmra.mxu0 %v696
    %v1174 = vpop.f32.mrf.mxu0
    %v1175 = vadd.f32 %v950, %v1174
    %v1176 = vpop.f32.mrf.mxu0
    %1177 = vmatprep.mubr.f32.mxu0 0.0
    %1178 = vmatmul.mubr.f32.gmra.mxu0 %v697
    %v1179 = vpop.f32.mrf.mxu0
    %v1180 = vadd.f32 %v955, %v1179
    %v1181 = vpop.f32.mrf.mxu0
    %1182 = vmatprep.mubr.f32.mxu0 0.0
    %1183 = vmatmul.mubr.f32.gmra.mxu0 %v698
    %v1184 = vpop.f32.mrf.mxu0
    %v1185 = vadd.f32 %v960, %v1184
    %v1186 = vpop.f32.mrf.mxu0
    %1187 = vmatprep.mubr.f32.mxu0 0.0
    %1188 = vmatmul.mubr.f32.gmra.mxu0 %v699
    %v1189 = vpop.f32.mrf.mxu0
    %v1190 = vadd.f32 %v965, %v1189
    %v1191 = vpop.f32.mrf.mxu0
    %1192 = vmatprep.mubr.f32.mxu0 0.0
    %1193 = vmatmul.mubr.f32.gmra.mxu0 %v700
    %v1194 = vpop.f32.mrf.mxu0
    %v1195 = vadd.f32 %v970, %v1194
    %v1196 = vpop.f32.mrf.mxu0
    %1197 = vmatprep.mubr.f32.mxu0 0.0
    %1198 = vmatmul.mubr.f32.gmra.mxu0 %v701
    %v1199 = vpop.f32.mrf.mxu0
    %v1200 = vadd.f32 %v975, %v1199
    %v1201 = vpop.f32.mrf.mxu0
    %1202 = vmatprep.mubr.f32.mxu0 0.0
    %1203 = vmatmul.mubr.f32.gmra.mxu0 %v702
    %v1204 = vpop.f32.mrf.mxu0
    %v1205 = vadd.f32 %v980, %v1204
    %v1206 = vpop.f32.mrf.mxu0
    %1207 = vmatprep.mubr.f32.mxu0 0.0
    %1208 = vmatmul.mubr.f32.gmra.mxu0 %v703
    %v1209 = vpop.f32.mrf.mxu0
    %v1210 = vadd.f32 %v985, %v1209
    %v1211 = vpop.f32.mrf.mxu0
    %1212 = vmatprep.mubr.f32.mxu0 0.0
    %1213 = vmatmul.mubr.f32.gmra.mxu0 %v704
    %v1214 = vpop.f32.mrf.mxu0
    %v1215 = vadd.f32 %v990, %v1214
    %v1216 = vpop.f32.mrf.mxu0
    %1217 = vmatprep.mubr.f32.mxu0 0.0
    %1218 = vmatmul.mubr.f32.gmra.mxu0 %v705
    %v1219 = vpop.f32.mrf.mxu0
    %v1220 = vadd.f32 %v995, %v1219
    %v1221 = vpop.f32.mrf.mxu0
    %1222 = vdwg.mxu0
    %s1223 = scalar_lea.vmem [#allocation5], 256
    %v1224 = vld [vmem:[%s1223] sm:$0xff]
    %v1225 = vld [vmem:[%s1223 + $0x8] sm:$0xff]
    %v1226 = vld [vmem:[%s1223 + $0x10] sm:$0xff]
    %v1227 = vld [vmem:[%s1223 + $0x18] sm:$0xff]
    %v1228 = vld [vmem:[%s1223 + $0x20] sm:$0xff]
    %v1229 = vld [vmem:[%s1223 + $0x28] sm:$0xff]
    %v1230 = vld [vmem:[%s1223 + $0x30] sm:$0xff]
    %v1231 = vld [vmem:[%s1223 + $0x38] sm:$0xff]
    %v1232 = vld [vmem:[%s1223 + $0x40] sm:$0xff]
    %v1233 = vld [vmem:[%s1223 + $0x48] sm:$0xff]
    %v1234 = vld [vmem:[%s1223 + $0x50] sm:$0xff]
    %v1235 = vld [vmem:[%s1223 + $0x58] sm:$0xff]
    %v1236 = vld [vmem:[%s1223 + $0x60] sm:$0xff]
    %v1237 = vld [vmem:[%s1223 + $0x68] sm:$0xff]
    %v1238 = vld [vmem:[%s1223 + $0x70] sm:$0xff]
    %v1239 = vld [vmem:[%s1223 + $0x78] sm:$0xff]
    %1240 = vmatprep.subr.mxu0 0.0
    %1241 = vmatpush1.msra.mxu0 %v1239
    %1242 = vmatprep.subr.mxu0 0.0
    %1243 = vmatpush1.msra.mxu0 %v1238
    %1244 = vmatprep.subr.mxu0 0.0
    %1245 = vmatpush1.msra.mxu0 %v1237
    %1246 = vmatprep.subr.mxu0 0.0
    %1247 = vmatpush1.msra.mxu0 %v1236
    %1248 = vmatprep.subr.mxu0 0.0
    %1249 = vmatpush1.msra.mxu0 %v1235
    %1250 = vmatprep.subr.mxu0 0.0
    %1251 = vmatpush1.msra.mxu0 %v1234
    %1252 = vmatprep.subr.mxu0 0.0
    %1253 = vmatpush1.msra.mxu0 %v1233
    %1254 = vmatprep.subr.mxu0 0.0
    %1255 = vmatpush1.msra.mxu0 %v1232
    %1256 = vmatprep.subr.mxu0 0.0
    %1257 = vmatpush1.msra.mxu0 %v1231
    %1258 = vmatprep.subr.mxu0 0.0
    %1259 = vmatpush1.msra.mxu0 %v1230
    %1260 = vmatprep.subr.mxu0 0.0
    %1261 = vmatpush1.msra.mxu0 %v1229
    %1262 = vmatprep.subr.mxu0 0.0
    %1263 = vmatpush1.msra.mxu0 %v1228
    %1264 = vmatprep.subr.mxu0 0.0
    %1265 = vmatpush1.msra.mxu0 %v1227
    %1266 = vmatprep.subr.mxu0 0.0
    %1267 = vmatpush1.msra.mxu0 %v1226
    %1268 = vmatprep.subr.mxu0 0.0
    %1269 = vmatpush1.msra.mxu0 %v1225
    %1270 = vmatprep.subr.mxu0 0.0
    %1271 = vmatpush1.msra.mxu0 %v1224
    %1272 = vmatprep.subr.mxu0 0.0
    %1273 = vmatpush2.msra.mxu0 0.0
    %1274 = vmatprep.subr.mxu0 0.0
    %1275 = vmatpush2.msra.mxu0 0.0
    %1276 = vmatprep.subr.mxu0 0.0
    %1277 = vmatpush2.msra.mxu0 0.0
    %1278 = vmatprep.subr.mxu0 0.0
    %1279 = vmatpush2.msra.mxu0 0.0
    %1280 = vmatprep.subr.mxu0 0.0
    %1281 = vmatpush2.msra.mxu0 0.0
    %1282 = vmatprep.subr.mxu0 0.0
    %1283 = vmatpush2.msra.mxu0 0.0
    %1284 = vmatprep.subr.mxu0 0.0
    %1285 = vmatpush2.msra.mxu0 0.0
    %1286 = vmatprep.subr.mxu0 0.0
    %1287 = vmatpush2.msra.mxu0 0.0
    %1288 = vmatprep.subr.mxu0 0.0
    %1289 = vmatpush2.msra.mxu0 0.0
    %1290 = vmatprep.subr.mxu0 0.0
    %1291 = vmatpush2.msra.mxu0 0.0
    %1292 = vmatprep.subr.mxu0 0.0
    %1293 = vmatpush2.msra.mxu0 0.0
    %1294 = vmatprep.subr.mxu0 0.0
    %1295 = vmatpush2.msra.mxu0 0.0
    %1296 = vmatprep.subr.mxu0 0.0
    %1297 = vmatpush2.msra.mxu0 0.0
    %1298 = vmatprep.subr.mxu0 0.0
    %1299 = vmatpush2.msra.mxu0 0.0
    %1300 = vmatprep.subr.mxu0 0.0
    %1301 = vmatpush2.msra.mxu0 0.0
    %1302 = vmatprep.subr.mxu0 0.0
    %1303 = vmatpush2.msra.mxu0 0.0
    %1304 = vmatprep.mubr.f32.mxu0 0.0
    %1305 = vmatmul.mubr.f32.gmra.mxu0 %v707
    %v1306 = vpop.f32.mrf.mxu0
    %v1307 = vadd.f32 0.0, %v1306
    %v1308 = vpop.f32.mrf.mxu0
    %1309 = vmatprep.mubr.f32.mxu0 0.0
    %1310 = vmatmul.mubr.f32.gmra.mxu0 %v708
    %v1311 = vpop.f32.mrf.mxu0
    %v1312 = vadd.f32 0.0, %v1311
    %v1313 = vpop.f32.mrf.mxu0
    %1314 = vmatprep.mubr.f32.mxu0 0.0
    %1315 = vmatmul.mubr.f32.gmra.mxu0 %v709
    %v1316 = vpop.f32.mrf.mxu0
    %v1317 = vadd.f32 0.0, %v1316
    %v1318 = vpop.f32.mrf.mxu0
    %1319 = vmatprep.mubr.f32.mxu0 0.0
    %1320 = vmatmul.mubr.f32.gmra.mxu0 %v710
    %v1321 = vpop.f32.mrf.mxu0
    %v1322 = vadd.f32 0.0, %v1321
    %v1323 = vpop.f32.mrf.mxu0
    %1324 = vmatprep.mubr.f32.mxu0 0.0
    %1325 = vmatmul.mubr.f32.gmra.mxu0 %v711
    %v1326 = vpop.f32.mrf.mxu0
    %v1327 = vadd.f32 0.0, %v1326
    %v1328 = vpop.f32.mrf.mxu0
    %1329 = vmatprep.mubr.f32.mxu0 0.0
    %1330 = vmatmul.mubr.f32.gmra.mxu0 %v712
    %v1331 = vpop.f32.mrf.mxu0
    %v1332 = vadd.f32 0.0, %v1331
    %v1333 = vpop.f32.mrf.mxu0
    %1334 = vmatprep.mubr.f32.mxu0 0.0
    %1335 = vmatmul.mubr.f32.gmra.mxu0 %v713
    %v1336 = vpop.f32.mrf.mxu0
    %v1337 = vadd.f32 0.0, %v1336
    %v1338 = vpop.f32.mrf.mxu0
    %1339 = vmatprep.mubr.f32.mxu0 0.0
    %1340 = vmatmul.mubr.f32.gmra.mxu0 %v714
    %v1341 = vpop.f32.mrf.mxu0
    %v1342 = vadd.f32 0.0, %v1341
    %v1343 = vpop.f32.mrf.mxu0
    %1344 = vmatprep.mubr.f32.mxu0 0.0
    %1345 = vmatmul.mubr.f32.gmra.mxu0 %v715
    %v1346 = vpop.f32.mrf.mxu0
    %v1347 = vadd.f32 0.0, %v1346
    %v1348 = vpop.f32.mrf.mxu0
    %1349 = vmatprep.mubr.f32.mxu0 0.0
    %1350 = vmatmul.mubr.f32.gmra.mxu0 %v716
    %v1351 = vpop.f32.mrf.mxu0
    %v1352 = vadd.f32 0.0, %v1351
    %v1353 = vpop.f32.mrf.mxu0
    %1354 = vmatprep.mubr.f32.mxu0 0.0
    %1355 = vmatmul.mubr.f32.gmra.mxu0 %v717
    %v1356 = vpop.f32.mrf.mxu0
    %v1357 = vadd.f32 0.0, %v1356
    %v1358 = vpop.f32.mrf.mxu0
    %1359 = vmatprep.mubr.f32.mxu0 0.0
    %1360 = vmatmul.mubr.f32.gmra.mxu0 %v718
    %v1361 = vpop.f32.mrf.mxu0
    %v1362 = vadd.f32 0.0, %v1361
    %v1363 = vpop.f32.mrf.mxu0
    %1364 = vmatprep.mubr.f32.mxu0 0.0
    %1365 = vmatmul.mubr.f32.gmra.mxu0 %v719
    %v1366 = vpop.f32.mrf.mxu0
    %v1367 = vadd.f32 0.0, %v1366
    %v1368 = vpop.f32.mrf.mxu0
    %1369 = vmatprep.mubr.f32.mxu0 0.0
    %1370 = vmatmul.mubr.f32.gmra.mxu0 %v720
    %v1371 = vpop.f32.mrf.mxu0
    %v1372 = vadd.f32 0.0, %v1371
    %v1373 = vpop.f32.mrf.mxu0
    %1374 = vmatprep.mubr.f32.mxu0 0.0
    %1375 = vmatmul.mubr.f32.gmra.mxu0 %v721
    %v1376 = vpop.f32.mrf.mxu0
    %v1377 = vadd.f32 0.0, %v1376
    %v1378 = vpop.f32.mrf.mxu0
    %1379 = vmatprep.mubr.f32.mxu0 0.0
    %1380 = vmatmul.mubr.f32.gmra.mxu0 %v722
    %v1381 = vpop.f32.mrf.mxu0
    %v1382 = vadd.f32 0.0, %v1381
    %v1383 = vpop.f32.mrf.mxu0
    %1384 = vmatprep.mubr.f32.mxu0 0.0
    %1385 = vmatmul.mubr.f32.gmra.mxu0 %v707
    %v1386 = vpop.f32.mrf.mxu0
    %v1387 = vadd.f32 0.0, %v1386
    %v1388 = vpop.f32.mrf.mxu0
    %1389 = vmatprep.mubr.f32.mxu0 0.0
    %1390 = vmatmul.mubr.f32.gmra.mxu0 %v724
    %v1391 = vpop.f32.mrf.mxu0
    %v1392 = vadd.f32 0.0, %v1391
    %v1393 = vpop.f32.mrf.mxu0
    %1394 = vmatprep.mubr.f32.mxu0 0.0
    %1395 = vmatmul.mubr.f32.gmra.mxu0 %v725
    %v1396 = vpop.f32.mrf.mxu0
    %v1397 = vadd.f32 0.0, %v1396
    %v1398 = vpop.f32.mrf.mxu0
    %1399 = vmatprep.mubr.f32.mxu0 0.0
    %1400 = vmatmul.mubr.f32.gmra.mxu0 %v726
    %v1401 = vpop.f32.mrf.mxu0
    %v1402 = vadd.f32 0.0, %v1401
    %v1403 = vpop.f32.mrf.mxu0
    %1404 = vmatprep.mubr.f32.mxu0 0.0
    %1405 = vmatmul.mubr.f32.gmra.mxu0 %v727
    %v1406 = vpop.f32.mrf.mxu0
    %v1407 = vadd.f32 0.0, %v1406
    %v1408 = vpop.f32.mrf.mxu0
    %1409 = vmatprep.mubr.f32.mxu0 0.0
    %1410 = vmatmul.mubr.f32.gmra.mxu0 %v728
    %v1411 = vpop.f32.mrf.mxu0
    %v1412 = vadd.f32 0.0, %v1411
    %v1413 = vpop.f32.mrf.mxu0
    %1414 = vmatprep.mubr.f32.mxu0 0.0
    %1415 = vmatmul.mubr.f32.gmra.mxu0 %v729
    %v1416 = vpop.f32.mrf.mxu0
    %v1417 = vadd.f32 0.0, %v1416
    %v1418 = vpop.f32.mrf.mxu0
    %1419 = vmatprep.mubr.f32.mxu0 0.0
    %1420 = vmatmul.mubr.f32.gmra.mxu0 %v730
    %v1421 = vpop.f32.mrf.mxu0
    %v1422 = vadd.f32 0.0, %v1421
    %v1423 = vpop.f32.mrf.mxu0
    %1424 = vmatprep.mubr.f32.mxu0 0.0
    %1425 = vmatmul.mubr.f32.gmra.mxu0 %v731
    %v1426 = vpop.f32.mrf.mxu0
    %v1427 = vadd.f32 0.0, %v1426
    %v1428 = vpop.f32.mrf.mxu0
    %1429 = vmatprep.mubr.f32.mxu0 0.0
    %1430 = vmatmul.mubr.f32.gmra.mxu0 %v732
    %v1431 = vpop.f32.mrf.mxu0
    %v1432 = vadd.f32 0.0, %v1431
    %v1433 = vpop.f32.mrf.mxu0
    %1434 = vmatprep.mubr.f32.mxu0 0.0
    %1435 = vmatmul.mubr.f32.gmra.mxu0 %v733
    %v1436 = vpop.f32.mrf.mxu0
    %v1437 = vadd.f32 0.0, %v1436
    %v1438 = vpop.f32.mrf.mxu0
    %1439 = vmatprep.mubr.f32.mxu0 0.0
    %1440 = vmatmul.mubr.f32.gmra.mxu0 %v734
    %v1441 = vpop.f32.mrf.mxu0
    %v1442 = vadd.f32 0.0, %v1441
    %v1443 = vpop.f32.mrf.mxu0
    %1444 = vmatprep.mubr.f32.mxu0 0.0
    %1445 = vmatmul.mubr.f32.gmra.mxu0 %v735
    %v1446 = vpop.f32.mrf.mxu0
    %v1447 = vadd.f32 0.0, %v1446
    %v1448 = vpop.f32.mrf.mxu0
    %1449 = vmatprep.mubr.f32.mxu0 0.0
    %1450 = vmatmul.mubr.f32.gmra.mxu0 %v736
    %v1451 = vpop.f32.mrf.mxu0
    %v1452 = vadd.f32 0.0, %v1451
    %v1453 = vpop.f32.mrf.mxu0
    %1454 = vmatprep.mubr.f32.mxu0 0.0
    %1455 = vmatmul.mubr.f32.gmra.mxu0 %v737
    %v1456 = vpop.f32.mrf.mxu0
    %v1457 = vadd.f32 0.0, %v1456
    %v1458 = vpop.f32.mrf.mxu0
    %1459 = vmatprep.mubr.f32.mxu0 0.0
    %1460 = vmatmul.mubr.f32.gmra.mxu0 %v738
    %v1461 = vpop.f32.mrf.mxu0
    %v1462 = vadd.f32 0.0, %v1461
    %v1463 = vpop.f32.mrf.mxu0
    %1464 = vdwg.mxu0
    %v1465 = vadd.f32 %v1065, %v1307
    %v1466 = vadd.f32 %v1070, %v1312
    %v1467 = vadd.f32 %v1075, %v1317
    %v1468 = vadd.f32 %v1080, %v1322
    %v1469 = vadd.f32 %v1085, %v1327
    %v1470 = vadd.f32 %v1090, %v1332
    %v1471 = vadd.f32 %v1095, %v1337
    %v1472 = vadd.f32 %v1100, %v1342
    %v1473 = vadd.f32 %v1105, %v1347
    %v1474 = vadd.f32 %v1110, %v1352
    %v1475 = vadd.f32 %v1115, %v1357
    %v1476 = vadd.f32 %v1120, %v1362
    %v1477 = vadd.f32 %v1125, %v1367
    %v1478 = vadd.f32 %v1130, %v1372
    %v1479 = vadd.f32 %v1135, %v1377
    %v1480 = vadd.f32 %v1140, %v1382
    %v1481 = vadd.f32 %v1145, %v1387
    %v1482 = vadd.f32 %v1150, %v1392
    %v1483 = vadd.f32 %v1155, %v1397
    %v1484 = vadd.f32 %v1160, %v1402
    %v1485 = vadd.f32 %v1165, %v1407
    %v1486 = vadd.f32 %v1170, %v1412
    %v1487 = vadd.f32 %v1175, %v1417
    %v1488 = vadd.f32 %v1180, %v1422
    %v1489 = vadd.f32 %v1185, %v1427
    %v1490 = vadd.f32 %v1190, %v1432
    %v1491 = vadd.f32 %v1195, %v1437
    %v1492 = vadd.f32 %v1200, %v1442
    %v1493 = vadd.f32 %v1205, %v1447
    %v1494 = vadd.f32 %v1210, %v1452
    %v1495 = vadd.f32 %v1215, %v1457
    %v1496 = vadd.f32 %v1220, %v1462
    %s1497 = scalar_lea.vmem [#allocation5], 384
    %v1498 = vld [vmem:[%s1497] sm:$0xff]
    %v1499 = vld [vmem:[%s1497 + $0x8] sm:$0xff]
    %v1500 = vld [vmem:[%s1497 + $0x10] sm:$0xff]
    %v1501 = vld [vmem:[%s1497 + $0x18] sm:$0xff]
    %v1502 = vld [vmem:[%s1497 + $0x20] sm:$0xff]
    %v1503 = vld [vmem:[%s1497 + $0x28] sm:$0xff]
    %v1504 = vld [vmem:[%s1497 + $0x30] sm:$0xff]
    %v1505 = vld [vmem:[%s1497 + $0x38] sm:$0xff]
    %v1506 = vld [vmem:[%s1497 + $0x40] sm:$0xff]
    %v1507 = vld [vmem:[%s1497 + $0x48] sm:$0xff]
    %v1508 = vld [vmem:[%s1497 + $0x50] sm:$0xff]
    %v1509 = vld [vmem:[%s1497 + $0x58] sm:$0xff]
    %v1510 = vld [vmem:[%s1497 + $0x60] sm:$0xff]
    %v1511 = vld [vmem:[%s1497 + $0x68] sm:$0xff]
    %v1512 = vld [vmem:[%s1497 + $0x70] sm:$0xff]
    %v1513 = vld [vmem:[%s1497 + $0x78] sm:$0xff]
    %1514 = vmatprep.subr.mxu0 0.0
    %1515 = vmatpush1.msra.mxu0 %v1513
    %1516 = vmatprep.subr.mxu0 0.0
    %1517 = vmatpush1.msra.mxu0 %v1512
    %1518 = vmatprep.subr.mxu0 0.0
    %1519 = vmatpush1.msra.mxu0 %v1511
    %1520 = vmatprep.subr.mxu0 0.0
    %1521 = vmatpush1.msra.mxu0 %v1510
    %1522 = vmatprep.subr.mxu0 0.0
    %1523 = vmatpush1.msra.mxu0 %v1509
    %1524 = vmatprep.subr.mxu0 0.0
    %1525 = vmatpush1.msra.mxu0 %v1508
    %1526 = vmatprep.subr.mxu0 0.0
    %1527 = vmatpush1.msra.mxu0 %v1507
    %1528 = vmatprep.subr.mxu0 0.0
    %1529 = vmatpush1.msra.mxu0 %v1506
    %1530 = vmatprep.subr.mxu0 0.0
    %1531 = vmatpush1.msra.mxu0 %v1505
    %1532 = vmatprep.subr.mxu0 0.0
    %1533 = vmatpush1.msra.mxu0 %v1504
    %1534 = vmatprep.subr.mxu0 0.0
    %1535 = vmatpush1.msra.mxu0 %v1503
    %1536 = vmatprep.subr.mxu0 0.0
    %1537 = vmatpush1.msra.mxu0 %v1502
    %1538 = vmatprep.subr.mxu0 0.0
    %1539 = vmatpush1.msra.mxu0 %v1501
    %1540 = vmatprep.subr.mxu0 0.0
    %1541 = vmatpush1.msra.mxu0 %v1500
    %1542 = vmatprep.subr.mxu0 0.0
    %1543 = vmatpush1.msra.mxu0 %v1499
    %1544 = vmatprep.subr.mxu0 0.0
    %1545 = vmatpush1.msra.mxu0 %v1498
    %1546 = vmatprep.subr.mxu0 0.0
    %1547 = vmatpush2.msra.mxu0 0.0
    %1548 = vmatprep.subr.mxu0 0.0
    %1549 = vmatpush2.msra.mxu0 0.0
    %1550 = vmatprep.subr.mxu0 0.0
    %1551 = vmatpush2.msra.mxu0 0.0
    %1552 = vmatprep.subr.mxu0 0.0
    %1553 = vmatpush2.msra.mxu0 0.0
    %1554 = vmatprep.subr.mxu0 0.0
    %1555 = vmatpush2.msra.mxu0 0.0
    %1556 = vmatprep.subr.mxu0 0.0
    %1557 = vmatpush2.msra.mxu0 0.0
    %1558 = vmatprep.subr.mxu0 0.0
    %1559 = vmatpush2.msra.mxu0 0.0
    %1560 = vmatprep.subr.mxu0 0.0
    %1561 = vmatpush2.msra.mxu0 0.0
    %1562 = vmatprep.subr.mxu0 0.0
    %1563 = vmatpush2.msra.mxu0 0.0
    %1564 = vmatprep.subr.mxu0 0.0
    %1565 = vmatpush2.msra.mxu0 0.0
    %1566 = vmatprep.subr.mxu0 0.0
    %1567 = vmatpush2.msra.mxu0 0.0
    %1568 = vmatprep.subr.mxu0 0.0
    %1569 = vmatpush2.msra.mxu0 0.0
    %1570 = vmatprep.subr.mxu0 0.0
    %1571 = vmatpush2.msra.mxu0 0.0
    %1572 = vmatprep.subr.mxu0 0.0
    %1573 = vmatpush2.msra.mxu0 0.0
    %1574 = vmatprep.subr.mxu0 0.0
    %1575 = vmatpush2.msra.mxu0 0.0
    %1576 = vmatprep.subr.mxu0 0.0
    %1577 = vmatpush2.msra.mxu0 0.0
    %1578 = vmatprep.mubr.f32.mxu0 0.0
    %1579 = vmatmul.mubr.f32.gmra.mxu0 %v675
    %v1580 = vpop.f32.mrf.mxu0
    %v1581 = vadd.f32 0.0, %v1580
    %v1582 = vpop.f32.mrf.mxu0
    %1583 = vmatprep.mubr.f32.mxu0 0.0
    %1584 = vmatmul.mubr.f32.gmra.mxu0 %v676
    %v1585 = vpop.f32.mrf.mxu0
    %v1586 = vadd.f32 0.0, %v1585
    %v1587 = vpop.f32.mrf.mxu0
    %1588 = vmatprep.mubr.f32.mxu0 0.0
    %1589 = vmatmul.mubr.f32.gmra.mxu0 %v677
    %v1590 = vpop.f32.mrf.mxu0
    %v1591 = vadd.f32 0.0, %v1590
    %v1592 = vpop.f32.mrf.mxu0
    %1593 = vmatprep.mubr.f32.mxu0 0.0
    %1594 = vmatmul.mubr.f32.gmra.mxu0 %v678
    %v1595 = vpop.f32.mrf.mxu0
    %v1596 = vadd.f32 0.0, %v1595
    %v1597 = vpop.f32.mrf.mxu0
    %1598 = vmatprep.mubr.f32.mxu0 0.0
    %1599 = vmatmul.mubr.f32.gmra.mxu0 %v679
    %v1600 = vpop.f32.mrf.mxu0
    %v1601 = vadd.f32 0.0, %v1600
    %v1602 = vpop.f32.mrf.mxu0
    %1603 = vmatprep.mubr.f32.mxu0 0.0
    %1604 = vmatmul.mubr.f32.gmra.mxu0 %v680
    %v1605 = vpop.f32.mrf.mxu0
    %v1606 = vadd.f32 0.0, %v1605
    %v1607 = vpop.f32.mrf.mxu0
    %1608 = vmatprep.mubr.f32.mxu0 0.0
    %1609 = vmatmul.mubr.f32.gmra.mxu0 %v681
    %v1610 = vpop.f32.mrf.mxu0
    %v1611 = vadd.f32 0.0, %v1610
    %v1612 = vpop.f32.mrf.mxu0
    %1613 = vmatprep.mubr.f32.mxu0 0.0
    %1614 = vmatmul.mubr.f32.gmra.mxu0 %v682
    %v1615 = vpop.f32.mrf.mxu0
    %v1616 = vadd.f32 0.0, %v1615
    %v1617 = vpop.f32.mrf.mxu0
    %1618 = vmatprep.mubr.f32.mxu0 0.0
    %1619 = vmatmul.mubr.f32.gmra.mxu0 %v683
    %v1620 = vpop.f32.mrf.mxu0
    %v1621 = vadd.f32 0.0, %v1620
    %v1622 = vpop.f32.mrf.mxu0
    %1623 = vmatprep.mubr.f32.mxu0 0.0
    %1624 = vmatmul.mubr.f32.gmra.mxu0 %v684
    %v1625 = vpop.f32.mrf.mxu0
    %v1626 = vadd.f32 0.0, %v1625
    %v1627 = vpop.f32.mrf.mxu0
    %1628 = vmatprep.mubr.f32.mxu0 0.0
    %1629 = vmatmul.mubr.f32.gmra.mxu0 %v685
    %v1630 = vpop.f32.mrf.mxu0
    %v1631 = vadd.f32 0.0, %v1630
    %v1632 = vpop.f32.mrf.mxu0
    %1633 = vmatprep.mubr.f32.mxu0 0.0
    %1634 = vmatmul.mubr.f32.gmra.mxu0 %v686
    %v1635 = vpop.f32.mrf.mxu0
    %v1636 = vadd.f32 0.0, %v1635
    %v1637 = vpop.f32.mrf.mxu0
    %1638 = vmatprep.mubr.f32.mxu0 0.0
    %1639 = vmatmul.mubr.f32.gmra.mxu0 %v687
    %v1640 = vpop.f32.mrf.mxu0
    %v1641 = vadd.f32 0.0, %v1640
    %v1642 = vpop.f32.mrf.mxu0
    %1643 = vmatprep.mubr.f32.mxu0 0.0
    %1644 = vmatmul.mubr.f32.gmra.mxu0 %v688
    %v1645 = vpop.f32.mrf.mxu0
    %v1646 = vadd.f32 0.0, %v1645
    %v1647 = vpop.f32.mrf.mxu0
    %1648 = vmatprep.mubr.f32.mxu0 0.0
    %1649 = vmatmul.mubr.f32.gmra.mxu0 %v689
    %v1650 = vpop.f32.mrf.mxu0
    %v1651 = vadd.f32 0.0, %v1650
    %v1652 = vpop.f32.mrf.mxu0
    %1653 = vmatprep.mubr.f32.mxu0 0.0
    %1654 = vmatmul.mubr.f32.gmra.mxu0 %v690
    %v1655 = vpop.f32.mrf.mxu0
    %v1656 = vadd.f32 0.0, %v1655
    %v1657 = vpop.f32.mrf.mxu0
    %1658 = vmatprep.mubr.f32.mxu0 0.0
    %1659 = vmatmul.mubr.f32.gmra.mxu0 %v691
    %v1660 = vpop.f32.mrf.mxu0
    %v1661 = vadd.f32 0.0, %v1660
    %v1662 = vpop.f32.mrf.mxu0
    %1663 = vmatprep.mubr.f32.mxu0 0.0
    %1664 = vmatmul.mubr.f32.gmra.mxu0 %v692
    %v1665 = vpop.f32.mrf.mxu0
    %v1666 = vadd.f32 0.0, %v1665
    %v1667 = vpop.f32.mrf.mxu0
    %1668 = vmatprep.mubr.f32.mxu0 0.0
    %1669 = vmatmul.mubr.f32.gmra.mxu0 %v693
    %v1670 = vpop.f32.mrf.mxu0
    %v1671 = vadd.f32 0.0, %v1670
    %v1672 = vpop.f32.mrf.mxu0
    %1673 = vmatprep.mubr.f32.mxu0 0.0
    %1674 = vmatmul.mubr.f32.gmra.mxu0 %v694
    %v1675 = vpop.f32.mrf.mxu0
    %v1676 = vadd.f32 0.0, %v1675
    %v1677 = vpop.f32.mrf.mxu0
    %1678 = vmatprep.mubr.f32.mxu0 0.0
    %1679 = vmatmul.mubr.f32.gmra.mxu0 %v695
    %v1680 = vpop.f32.mrf.mxu0
    %v1681 = vadd.f32 0.0, %v1680
    %v1682 = vpop.f32.mrf.mxu0
    %1683 = vmatprep.mubr.f32.mxu0 0.0
    %1684 = vmatmul.mubr.f32.gmra.mxu0 %v696
    %v1685 = vpop.f32.mrf.mxu0
    %v1686 = vadd.f32 0.0, %v1685
    %v1687 = vpop.f32.mrf.mxu0
    %1688 = vmatprep.mubr.f32.mxu0 0.0
    %1689 = vmatmul.mubr.f32.gmra.mxu0 %v697
    %v1690 = vpop.f32.mrf.mxu0
    %v1691 = vadd.f32 0.0, %v1690
    %v1692 = vpop.f32.mrf.mxu0
    %1693 = vmatprep.mubr.f32.mxu0 0.0
    %1694 = vmatmul.mubr.f32.gmra.mxu0 %v698
    %v1695 = vpop.f32.mrf.mxu0
    %v1696 = vadd.f32 0.0, %v1695
    %v1697 = vpop.f32.mrf.mxu0
    %1698 = vmatprep.mubr.f32.mxu0 0.0
    %1699 = vmatmul.mubr.f32.gmra.mxu0 %v699
    %v1700 = vpop.f32.mrf.mxu0
    %v1701 = vadd.f32 0.0, %v1700
    %v1702 = vpop.f32.mrf.mxu0
    %1703 = vmatprep.mubr.f32.mxu0 0.0
    %1704 = vmatmul.mubr.f32.gmra.mxu0 %v700
    %v1705 = vpop.f32.mrf.mxu0
    %v1706 = vadd.f32 0.0, %v1705
    %v1707 = vpop.f32.mrf.mxu0
    %1708 = vmatprep.mubr.f32.mxu0 0.0
    %1709 = vmatmul.mubr.f32.gmra.mxu0 %v701
    %v1710 = vpop.f32.mrf.mxu0
    %v1711 = vadd.f32 0.0, %v1710
    %v1712 = vpop.f32.mrf.mxu0
    %1713 = vmatprep.mubr.f32.mxu0 0.0
    %1714 = vmatmul.mubr.f32.gmra.mxu0 %v702
    %v1715 = vpop.f32.mrf.mxu0
    %v1716 = vadd.f32 0.0, %v1715
    %v1717 = vpop.f32.mrf.mxu0
    %1718 = vmatprep.mubr.f32.mxu0 0.0
    %1719 = vmatmul.mubr.f32.gmra.mxu0 %v703
    %v1720 = vpop.f32.mrf.mxu0
    %v1721 = vadd.f32 0.0, %v1720
    %v1722 = vpop.f32.mrf.mxu0
    %1723 = vmatprep.mubr.f32.mxu0 0.0
    %1724 = vmatmul.mubr.f32.gmra.mxu0 %v704
    %v1725 = vpop.f32.mrf.mxu0
    %v1726 = vadd.f32 0.0, %v1725
    %v1727 = vpop.f32.mrf.mxu0
    %1728 = vmatprep.mubr.f32.mxu0 0.0
    %1729 = vmatmul.mubr.f32.gmra.mxu0 %v705
    %v1730 = vpop.f32.mrf.mxu0
    %v1731 = vadd.f32 0.0, %v1730
    %v1732 = vpop.f32.mrf.mxu0
    %1733 = vmatprep.mubr.f32.mxu0 0.0
    %1734 = vmatmul.mubr.f32.gmra.mxu0 %v706
    %v1735 = vpop.f32.mrf.mxu0
    %v1736 = vadd.f32 0.0, %v1735
    %v1737 = vpop.f32.mrf.mxu0
    %1738 = vdwg.mxu0
    %v1739 = vadd.f32 %v1465, %v1581
    %v1740 = vadd.f32 %v1466, %v1586
    %v1741 = vadd.f32 %v1467, %v1591
    %v1742 = vadd.f32 %v1468, %v1596
    %v1743 = vadd.f32 %v1469, %v1601
    %v1744 = vadd.f32 %v1470, %v1606
    %v1745 = vadd.f32 %v1471, %v1611
    %v1746 = vadd.f32 %v1472, %v1616
    %v1747 = vadd.f32 %v1473, %v1621
    %v1748 = vadd.f32 %v1474, %v1626
    %v1749 = vadd.f32 %v1475, %v1631
    %v1750 = vadd.f32 %v1476, %v1636
    %v1751 = vadd.f32 %v1477, %v1641
    %v1752 = vadd.f32 %v1478, %v1646
    %v1753 = vadd.f32 %v1479, %v1651
    %v1754 = vadd.f32 %v1480, %v1656
    %v1755 = vadd.f32 %v1481, %v1661
    %v1756 = vadd.f32 %v1482, %v1666
    %v1757 = vadd.f32 %v1483, %v1671
    %v1758 = vadd.f32 %v1484, %v1676
    %v1759 = vadd.f32 %v1485, %v1681
    %v1760 = vadd.f32 %v1486, %v1686
    %v1761 = vadd.f32 %v1487, %v1691
    %v1762 = vadd.f32 %v1488, %v1696
    %v1763 = vadd.f32 %v1489, %v1701
    %v1764 = vadd.f32 %v1490, %v1706
    %v1765 = vadd.f32 %v1491, %v1711
    %v1766 = vadd.f32 %v1492, %v1716
    %v1767 = vadd.f32 %v1493, %v1721
    %v1768 = vadd.f32 %v1494, %v1726
    %v1769 = vadd.f32 %v1495, %v1731
    %v1770 = vadd.f32 %v1496, %v1736
    %s1771 = scalar_lea.vmem [#allocation5], 512
    %v1772 = vld [vmem:[%s1771] sm:$0xff]
    %v1773 = vld [vmem:[%s1771 + $0x8] sm:$0xff]
    %v1774 = vld [vmem:[%s1771 + $0x10] sm:$0xff]
    %v1775 = vld [vmem:[%s1771 + $0x18] sm:$0xff]
    %v1776 = vld [vmem:[%s1771 + $0x20] sm:$0xff]
    %v1777 = vld [vmem:[%s1771 + $0x28] sm:$0xff]
    %v1778 = vld [vmem:[%s1771 + $0x30] sm:$0xff]
    %v1779 = vld [vmem:[%s1771 + $0x38] sm:$0xff]
    %v1780 = vld [vmem:[%s1771 + $0x40] sm:$0xff]
    %v1781 = vld [vmem:[%s1771 + $0x48] sm:$0xff]
    %v1782 = vld [vmem:[%s1771 + $0x50] sm:$0xff]
    %v1783 = vld [vmem:[%s1771 + $0x58] sm:$0xff]
    %v1784 = vld [vmem:[%s1771 + $0x60] sm:$0xff]
    %v1785 = vld [vmem:[%s1771 + $0x68] sm:$0xff]
    %v1786 = vld [vmem:[%s1771 + $0x70] sm:$0xff]
    %v1787 = vld [vmem:[%s1771 + $0x78] sm:$0xff]
    %1788 = vmatprep.subr.mxu0 0.0
    %1789 = vmatpush1.msra.mxu0 %v1787
    %1790 = vmatprep.subr.mxu0 0.0
    %1791 = vmatpush1.msra.mxu0 %v1786
    %1792 = vmatprep.subr.mxu0 0.0
    %1793 = vmatpush1.msra.mxu0 %v1785
    %1794 = vmatprep.subr.mxu0 0.0
    %1795 = vmatpush1.msra.mxu0 %v1784
    %1796 = vmatprep.subr.mxu0 0.0
    %1797 = vmatpush1.msra.mxu0 %v1783
    %1798 = vmatprep.subr.mxu0 0.0
    %1799 = vmatpush1.msra.mxu0 %v1782
    %1800 = vmatprep.subr.mxu0 0.0
    %1801 = vmatpush1.msra.mxu0 %v1781
    %1802 = vmatprep.subr.mxu0 0.0
    %1803 = vmatpush1.msra.mxu0 %v1780
    %1804 = vmatprep.subr.mxu0 0.0
    %1805 = vmatpush1.msra.mxu0 %v1779
    %1806 = vmatprep.subr.mxu0 0.0
    %1807 = vmatpush1.msra.mxu0 %v1778
    %1808 = vmatprep.subr.mxu0 0.0
    %1809 = vmatpush1.msra.mxu0 %v1777
    %1810 = vmatprep.subr.mxu0 0.0
    %1811 = vmatpush1.msra.mxu0 %v1776
    %1812 = vmatprep.subr.mxu0 0.0
    %1813 = vmatpush1.msra.mxu0 %v1775
    %1814 = vmatprep.subr.mxu0 0.0
    %1815 = vmatpush1.msra.mxu0 %v1774
    %1816 = vmatprep.subr.mxu0 0.0
    %1817 = vmatpush1.msra.mxu0 %v1773
    %1818 = vmatprep.subr.mxu0 0.0
    %1819 = vmatpush1.msra.mxu0 %v1772
    %1820 = vmatprep.subr.mxu0 0.0
    %1821 = vmatpush2.msra.mxu0 0.0
    %1822 = vmatprep.subr.mxu0 0.0
    %1823 = vmatpush2.msra.mxu0 0.0
    %1824 = vmatprep.subr.mxu0 0.0
    %1825 = vmatpush2.msra.mxu0 0.0
    %1826 = vmatprep.subr.mxu0 0.0
    %1827 = vmatpush2.msra.mxu0 0.0
    %1828 = vmatprep.subr.mxu0 0.0
    %1829 = vmatpush2.msra.mxu0 0.0
    %1830 = vmatprep.subr.mxu0 0.0
    %1831 = vmatpush2.msra.mxu0 0.0
    %1832 = vmatprep.subr.mxu0 0.0
    %1833 = vmatpush2.msra.mxu0 0.0
    %1834 = vmatprep.subr.mxu0 0.0
    %1835 = vmatpush2.msra.mxu0 0.0
    %1836 = vmatprep.subr.mxu0 0.0
    %1837 = vmatpush2.msra.mxu0 0.0
    %1838 = vmatprep.subr.mxu0 0.0
    %1839 = vmatpush2.msra.mxu0 0.0
    %1840 = vmatprep.subr.mxu0 0.0
    %1841 = vmatpush2.msra.mxu0 0.0
    %1842 = vmatprep.subr.mxu0 0.0
    %1843 = vmatpush2.msra.mxu0 0.0
    %1844 = vmatprep.subr.mxu0 0.0
    %1845 = vmatpush2.msra.mxu0 0.0
    %1846 = vmatprep.subr.mxu0 0.0
    %1847 = vmatpush2.msra.mxu0 0.0
    %1848 = vmatprep.subr.mxu0 0.0
    %1849 = vmatpush2.msra.mxu0 0.0
    %1850 = vmatprep.subr.mxu0 0.0
    %1851 = vmatpush2.msra.mxu0 0.0
    %1852 = vmatprep.mubr.f32.mxu0 0.0
    %1853 = vmatmul.mubr.f32.gmra.mxu0 %v340
    %v1854 = vpop.f32.mrf.mxu0
    %v1855 = vadd.f32 0.0, %v1854
    %v1856 = vpop.f32.mrf.mxu0
    %1857 = vmatprep.mubr.f32.mxu0 0.0
    %1858 = vmatmul.mubr.f32.gmra.mxu0 %v341
    %v1859 = vpop.f32.mrf.mxu0
    %v1860 = vadd.f32 0.0, %v1859
    %v1861 = vpop.f32.mrf.mxu0
    %1862 = vmatprep.mubr.f32.mxu0 0.0
    %1863 = vmatmul.mubr.f32.gmra.mxu0 %v342
    %v1864 = vpop.f32.mrf.mxu0
    %v1865 = vadd.f32 0.0, %v1864
    %v1866 = vpop.f32.mrf.mxu0
    %1867 = vmatprep.mubr.f32.mxu0 0.0
    %1868 = vmatmul.mubr.f32.gmra.mxu0 %v343
    %v1869 = vpop.f32.mrf.mxu0
    %v1870 = vadd.f32 0.0, %v1869
    %v1871 = vpop.f32.mrf.mxu0
    %1872 = vmatprep.mubr.f32.mxu0 0.0
    %1873 = vmatmul.mubr.f32.gmra.mxu0 %v344
    %v1874 = vpop.f32.mrf.mxu0
    %v1875 = vadd.f32 0.0, %v1874
    %v1876 = vpop.f32.mrf.mxu0
    %1877 = vmatprep.mubr.f32.mxu0 0.0
    %1878 = vmatmul.mubr.f32.gmra.mxu0 %v345
    %v1879 = vpop.f32.mrf.mxu0
    %v1880 = vadd.f32 0.0, %v1879
    %v1881 = vpop.f32.mrf.mxu0
    %1882 = vmatprep.mubr.f32.mxu0 0.0
    %1883 = vmatmul.mubr.f32.gmra.mxu0 %v346
    %v1884 = vpop.f32.mrf.mxu0
    %v1885 = vadd.f32 0.0, %v1884
    %v1886 = vpop.f32.mrf.mxu0
    %1887 = vmatprep.mubr.f32.mxu0 0.0
    %1888 = vmatmul.mubr.f32.gmra.mxu0 %v347
    %v1889 = vpop.f32.mrf.mxu0
    %v1890 = vadd.f32 0.0, %v1889
    %v1891 = vpop.f32.mrf.mxu0
    %1892 = vmatprep.mubr.f32.mxu0 0.0
    %1893 = vmatmul.mubr.f32.gmra.mxu0 %v348
    %v1894 = vpop.f32.mrf.mxu0
    %v1895 = vadd.f32 0.0, %v1894
    %v1896 = vpop.f32.mrf.mxu0
    %1897 = vmatprep.mubr.f32.mxu0 0.0
    %1898 = vmatmul.mubr.f32.gmra.mxu0 %v349
    %v1899 = vpop.f32.mrf.mxu0
    %v1900 = vadd.f32 0.0, %v1899
    %v1901 = vpop.f32.mrf.mxu0
    %1902 = vmatprep.mubr.f32.mxu0 0.0
    %1903 = vmatmul.mubr.f32.gmra.mxu0 %v350
    %v1904 = vpop.f32.mrf.mxu0
    %v1905 = vadd.f32 0.0, %v1904
    %v1906 = vpop.f32.mrf.mxu0
    %1907 = vmatprep.mubr.f32.mxu0 0.0
    %1908 = vmatmul.mubr.f32.gmra.mxu0 %v351
    %v1909 = vpop.f32.mrf.mxu0
    %v1910 = vadd.f32 0.0, %v1909
    %v1911 = vpop.f32.mrf.mxu0
    %1912 = vmatprep.mubr.f32.mxu0 0.0
    %1913 = vmatmul.mubr.f32.gmra.mxu0 %v352
    %v1914 = vpop.f32.mrf.mxu0
    %v1915 = vadd.f32 0.0, %v1914
    %v1916 = vpop.f32.mrf.mxu0
    %1917 = vmatprep.mubr.f32.mxu0 0.0
    %1918 = vmatmul.mubr.f32.gmra.mxu0 %v353
    %v1919 = vpop.f32.mrf.mxu0
    %v1920 = vadd.f32 0.0, %v1919
    %v1921 = vpop.f32.mrf.mxu0
    %1922 = vmatprep.mubr.f32.mxu0 0.0
    %1923 = vmatmul.mubr.f32.gmra.mxu0 %v354
    %v1924 = vpop.f32.mrf.mxu0
    %v1925 = vadd.f32 0.0, %v1924
    %v1926 = vpop.f32.mrf.mxu0
    %1927 = vmatprep.mubr.f32.mxu0 0.0
    %1928 = vmatmul.mubr.f32.gmra.mxu0 %v355
    %v1929 = vpop.f32.mrf.mxu0
    %v1930 = vadd.f32 0.0, %v1929
    %v1931 = vpop.f32.mrf.mxu0
    %1932 = vmatprep.mubr.f32.mxu0 0.0
    %1933 = vmatmul.mubr.f32.gmra.mxu0 %v356
    %v1934 = vpop.f32.mrf.mxu0
    %v1935 = vadd.f32 0.0, %v1934
    %v1936 = vpop.f32.mrf.mxu0
    %1937 = vmatprep.mubr.f32.mxu0 0.0
    %1938 = vmatmul.mubr.f32.gmra.mxu0 %v357
    %v1939 = vpop.f32.mrf.mxu0
    %v1940 = vadd.f32 0.0, %v1939
    %v1941 = vpop.f32.mrf.mxu0
    %1942 = vmatprep.mubr.f32.mxu0 0.0
    %1943 = vmatmul.mubr.f32.gmra.mxu0 %v358
    %v1944 = vpop.f32.mrf.mxu0
    %v1945 = vadd.f32 0.0, %v1944
    %v1946 = vpop.f32.mrf.mxu0
    %1947 = vmatprep.mubr.f32.mxu0 0.0
    %1948 = vmatmul.mubr.f32.gmra.mxu0 %v359
    %v1949 = vpop.f32.mrf.mxu0
    %v1950 = vadd.f32 0.0, %v1949
    %v1951 = vpop.f32.mrf.mxu0
    %1952 = vmatprep.mubr.f32.mxu0 0.0
    %1953 = vmatmul.mubr.f32.gmra.mxu0 %v360
    %v1954 = vpop.f32.mrf.mxu0
    %v1955 = vadd.f32 0.0, %v1954
    %v1956 = vpop.f32.mrf.mxu0
    %1957 = vmatprep.mubr.f32.mxu0 0.0
    %1958 = vmatmul.mubr.f32.gmra.mxu0 %v361
    %v1959 = vpop.f32.mrf.mxu0
    %v1960 = vadd.f32 0.0, %v1959
    %v1961 = vpop.f32.mrf.mxu0
    %1962 = vmatprep.mubr.f32.mxu0 0.0
    %1963 = vmatmul.mubr.f32.gmra.mxu0 %v362
    %v1964 = vpop.f32.mrf.mxu0
    %v1965 = vadd.f32 0.0, %v1964
    %v1966 = vpop.f32.mrf.mxu0
    %1967 = vmatprep.mubr.f32.mxu0 0.0
    %1968 = vmatmul.mubr.f32.gmra.mxu0 %v363
    %v1969 = vpop.f32.mrf.mxu0
    %v1970 = vadd.f32 0.0, %v1969
    %v1971 = vpop.f32.mrf.mxu0
    %1972 = vmatprep.mubr.f32.mxu0 0.0
    %1973 = vmatmul.mubr.f32.gmra.mxu0 %v364
    %v1974 = vpop.f32.mrf.mxu0
    %v1975 = vadd.f32 0.0, %v1974
    %v1976 = vpop.f32.mrf.mxu0
    %1977 = vmatprep.mubr.f32.mxu0 0.0
    %1978 = vmatmul.mubr.f32.gmra.mxu0 %v365
    %v1979 = vpop.f32.mrf.mxu0
    %v1980 = vadd.f32 0.0, %v1979
    %v1981 = vpop.f32.mrf.mxu0
    %1982 = vmatprep.mubr.f32.mxu0 0.0
    %1983 = vmatmul.mubr.f32.gmra.mxu0 %v366
    %v1984 = vpop.f32.mrf.mxu0
    %v1985 = vadd.f32 0.0, %v1984
    %v1986 = vpop.f32.mrf.mxu0
    %1987 = vmatprep.mubr.f32.mxu0 0.0
    %1988 = vmatmul.mubr.f32.gmra.mxu0 %v367
    %v1989 = vpop.f32.mrf.mxu0
    %v1990 = vadd.f32 0.0, %v1989
    %v1991 = vpop.f32.mrf.mxu0
    %1992 = vmatprep.mubr.f32.mxu0 0.0
    %1993 = vmatmul.mubr.f32.gmra.mxu0 %v368
    %v1994 = vpop.f32.mrf.mxu0
    %v1995 = vadd.f32 0.0, %v1994
    %v1996 = vpop.f32.mrf.mxu0
    %1997 = vmatprep.mubr.f32.mxu0 0.0
    %1998 = vmatmul.mubr.f32.gmra.mxu0 %v369
    %v1999 = vpop.f32.mrf.mxu0
    %v2000 = vadd.f32 0.0, %v1999
    %v2001 = vpop.f32.mrf.mxu0
    %2002 = vmatprep.mubr.f32.mxu0 0.0
    %2003 = vmatmul.mubr.f32.gmra.mxu0 %v370
    %v2004 = vpop.f32.mrf.mxu0
    %v2005 = vadd.f32 0.0, %v2004
    %v2006 = vpop.f32.mrf.mxu0
    %2007 = vmatprep.mubr.f32.mxu0 0.0
    %2008 = vmatmul.mubr.f32.gmra.mxu0 %v371
    %v2009 = vpop.f32.mrf.mxu0
    %v2010 = vadd.f32 0.0, %v2009
    %v2011 = vpop.f32.mrf.mxu0
    %2012 = vdwg.mxu0
    %v2013 = vadd.f32 %v1739, %v1855
    %v2014 = vadd.f32 %v1740, %v1860
    %v2015 = vadd.f32 %v1741, %v1865
    %v2016 = vadd.f32 %v1742, %v1870
    %v2017 = vadd.f32 %v1743, %v1875
    %v2018 = vadd.f32 %v1744, %v1880
    %v2019 = vadd.f32 %v1745, %v1885
    %v2020 = vadd.f32 %v1746, %v1890
    %v2021 = vadd.f32 %v1747, %v1895
    %v2022 = vadd.f32 %v1748, %v1900
    %v2023 = vadd.f32 %v1749, %v1905
    %v2024 = vadd.f32 %v1750, %v1910
    %v2025 = vadd.f32 %v1751, %v1915
    %v2026 = vadd.f32 %v1752, %v1920
    %v2027 = vadd.f32 %v1753, %v1925
    %v2028 = vadd.f32 %v1754, %v1930
    %v2029 = vadd.f32 %v1755, %v1935
    %v2030 = vadd.f32 %v1756, %v1940
    %v2031 = vadd.f32 %v1757, %v1945
    %v2032 = vadd.f32 %v1758, %v1950
    %v2033 = vadd.f32 %v1759, %v1955
    %v2034 = vadd.f32 %v1760, %v1960
    %v2035 = vadd.f32 %v1761, %v1965
    %v2036 = vadd.f32 %v1762, %v1970
    %v2037 = vadd.f32 %v1763, %v1975
    %v2038 = vadd.f32 %v1764, %v1980
    %v2039 = vadd.f32 %v1765, %v1985
    %v2040 = vadd.f32 %v1766, %v1990
    %v2041 = vadd.f32 %v1767, %v1995
    %v2042 = vadd.f32 %v1768, %v2000
    %v2043 = vadd.f32 %v1769, %v2005
    %v2044 = vadd.f32 %v1770, %v2010
    %s2045 = scalar_lea.vmem [#allocation5], 640
    %v2046 = vld [vmem:[%s2045] sm:$0xff]
    %v2047 = vld [vmem:[%s2045 + $0x8] sm:$0xff]
    %v2048 = vld [vmem:[%s2045 + $0x10] sm:$0xff]
    %v2049 = vld [vmem:[%s2045 + $0x18] sm:$0xff]
    %v2050 = vld [vmem:[%s2045 + $0x20] sm:$0xff]
    %v2051 = vld [vmem:[%s2045 + $0x28] sm:$0xff]
    %v2052 = vld [vmem:[%s2045 + $0x30] sm:$0xff]
    %v2053 = vld [vmem:[%s2045 + $0x38] sm:$0xff]
    %v2054 = vld [vmem:[%s2045 + $0x40] sm:$0xff]
    %v2055 = vld [vmem:[%s2045 + $0x48] sm:$0xff]
    %v2056 = vld [vmem:[%s2045 + $0x50] sm:$0xff]
    %v2057 = vld [vmem:[%s2045 + $0x58] sm:$0xff]
    %v2058 = vld [vmem:[%s2045 + $0x60] sm:$0xff]
    %v2059 = vld [vmem:[%s2045 + $0x68] sm:$0xff]
    %v2060 = vld [vmem:[%s2045 + $0x70] sm:$0xff]
    %v2061 = vld [vmem:[%s2045 + $0x78] sm:$0xff]
    %2062 = vmatprep.subr.mxu0 0.0
    %2063 = vmatpush1.msra.mxu0 %v2061
    %2064 = vmatprep.subr.mxu0 0.0
    %2065 = vmatpush1.msra.mxu0 %v2060
    %2066 = vmatprep.subr.mxu0 0.0
    %2067 = vmatpush1.msra.mxu0 %v2059
    %2068 = vmatprep.subr.mxu0 0.0
    %2069 = vmatpush1.msra.mxu0 %v2058
    %2070 = vmatprep.subr.mxu0 0.0
    %2071 = vmatpush1.msra.mxu0 %v2057
    %2072 = vmatprep.subr.mxu0 0.0
    %2073 = vmatpush1.msra.mxu0 %v2056
    %2074 = vmatprep.subr.mxu0 0.0
    %2075 = vmatpush1.msra.mxu0 %v2055
    %2076 = vmatprep.subr.mxu0 0.0
    %2077 = vmatpush1.msra.mxu0 %v2054
    %2078 = vmatprep.subr.mxu0 0.0
    %2079 = vmatpush1.msra.mxu0 %v2053
    %2080 = vmatprep.subr.mxu0 0.0
    %2081 = vmatpush1.msra.mxu0 %v2052
    %2082 = vmatprep.subr.mxu0 0.0
    %2083 = vmatpush1.msra.mxu0 %v2051
    %2084 = vmatprep.subr.mxu0 0.0
    %2085 = vmatpush1.msra.mxu0 %v2050
    %2086 = vmatprep.subr.mxu0 0.0
    %2087 = vmatpush1.msra.mxu0 %v2049
    %2088 = vmatprep.subr.mxu0 0.0
    %2089 = vmatpush1.msra.mxu0 %v2048
    %2090 = vmatprep.subr.mxu0 0.0
    %2091 = vmatpush1.msra.mxu0 %v2047
    %2092 = vmatprep.subr.mxu0 0.0
    %2093 = vmatpush1.msra.mxu0 %v2046
    %2094 = vmatprep.subr.mxu0 0.0
    %2095 = vmatpush2.msra.mxu0 0.0
    %2096 = vmatprep.subr.mxu0 0.0
    %2097 = vmatpush2.msra.mxu0 0.0
    %2098 = vmatprep.subr.mxu0 0.0
    %2099 = vmatpush2.msra.mxu0 0.0
    %2100 = vmatprep.subr.mxu0 0.0
    %2101 = vmatpush2.msra.mxu0 0.0
    %2102 = vmatprep.subr.mxu0 0.0
    %2103 = vmatpush2.msra.mxu0 0.0
    %2104 = vmatprep.subr.mxu0 0.0
    %2105 = vmatpush2.msra.mxu0 0.0
    %2106 = vmatprep.subr.mxu0 0.0
    %2107 = vmatpush2.msra.mxu0 0.0
    %2108 = vmatprep.subr.mxu0 0.0
    %2109 = vmatpush2.msra.mxu0 0.0
    %2110 = vmatprep.subr.mxu0 0.0
    %2111 = vmatpush2.msra.mxu0 0.0
    %2112 = vmatprep.subr.mxu0 0.0
    %2113 = vmatpush2.msra.mxu0 0.0
    %2114 = vmatprep.subr.mxu0 0.0
    %2115 = vmatpush2.msra.mxu0 0.0
    %2116 = vmatprep.subr.mxu0 0.0
    %2117 = vmatpush2.msra.mxu0 0.0
    %2118 = vmatprep.subr.mxu0 0.0
    %2119 = vmatpush2.msra.mxu0 0.0
    %2120 = vmatprep.subr.mxu0 0.0
    %2121 = vmatpush2.msra.mxu0 0.0
    %2122 = vmatprep.subr.mxu0 0.0
    %2123 = vmatpush2.msra.mxu0 0.0
    %2124 = vmatprep.subr.mxu0 0.0
    %2125 = vmatpush2.msra.mxu0 0.0
    %2126 = vmatprep.mubr.f32.mxu0 0.0
    %2127 = vmatmul.mubr.f32.gmra.mxu0 %v708
    %v2128 = vpop.f32.mrf.mxu0
    %v2129 = vadd.f32 0.0, %v2128
    %v2130 = vpop.f32.mrf.mxu0
    %2131 = vmatprep.mubr.f32.mxu0 0.0
    %2132 = vmatmul.mubr.f32.gmra.mxu0 %v709
    %v2133 = vpop.f32.mrf.mxu0
    %v2134 = vadd.f32 0.0, %v2133
    %v2135 = vpop.f32.mrf.mxu0
    %2136 = vmatprep.mubr.f32.mxu0 0.0
    %2137 = vmatmul.mubr.f32.gmra.mxu0 %v710
    %v2138 = vpop.f32.mrf.mxu0
    %v2139 = vadd.f32 0.0, %v2138
    %v2140 = vpop.f32.mrf.mxu0
    %2141 = vmatprep.mubr.f32.mxu0 0.0
    %2142 = vmatmul.mubr.f32.gmra.mxu0 %v711
    %v2143 = vpop.f32.mrf.mxu0
    %v2144 = vadd.f32 0.0, %v2143
    %v2145 = vpop.f32.mrf.mxu0
    %2146 = vmatprep.mubr.f32.mxu0 0.0
    %2147 = vmatmul.mubr.f32.gmra.mxu0 %v712
    %v2148 = vpop.f32.mrf.mxu0
    %v2149 = vadd.f32 0.0, %v2148
    %v2150 = vpop.f32.mrf.mxu0
    %2151 = vmatprep.mubr.f32.mxu0 0.0
    %2152 = vmatmul.mubr.f32.gmra.mxu0 %v713
    %v2153 = vpop.f32.mrf.mxu0
    %v2154 = vadd.f32 0.0, %v2153
    %v2155 = vpop.f32.mrf.mxu0
    %2156 = vmatprep.mubr.f32.mxu0 0.0
    %2157 = vmatmul.mubr.f32.gmra.mxu0 %v714
    %v2158 = vpop.f32.mrf.mxu0
    %v2159 = vadd.f32 0.0, %v2158
    %v2160 = vpop.f32.mrf.mxu0
    %2161 = vmatprep.mubr.f32.mxu0 0.0
    %2162 = vmatmul.mubr.f32.gmra.mxu0 %v715
    %v2163 = vpop.f32.mrf.mxu0
    %v2164 = vadd.f32 0.0, %v2163
    %v2165 = vpop.f32.mrf.mxu0
    %2166 = vmatprep.mubr.f32.mxu0 0.0
    %2167 = vmatmul.mubr.f32.gmra.mxu0 %v716
    %v2168 = vpop.f32.mrf.mxu0
    %v2169 = vadd.f32 0.0, %v2168
    %v2170 = vpop.f32.mrf.mxu0
    %2171 = vmatprep.mubr.f32.mxu0 0.0
    %2172 = vmatmul.mubr.f32.gmra.mxu0 %v717
    %v2173 = vpop.f32.mrf.mxu0
    %v2174 = vadd.f32 0.0, %v2173
    %v2175 = vpop.f32.mrf.mxu0
    %2176 = vmatprep.mubr.f32.mxu0 0.0
    %2177 = vmatmul.mubr.f32.gmra.mxu0 %v718
    %v2178 = vpop.f32.mrf.mxu0
    %v2179 = vadd.f32 0.0, %v2178
    %v2180 = vpop.f32.mrf.mxu0
    %2181 = vmatprep.mubr.f32.mxu0 0.0
    %2182 = vmatmul.mubr.f32.gmra.mxu0 %v719
    %v2183 = vpop.f32.mrf.mxu0
    %v2184 = vadd.f32 0.0, %v2183
    %v2185 = vpop.f32.mrf.mxu0
    %2186 = vmatprep.mubr.f32.mxu0 0.0
    %2187 = vmatmul.mubr.f32.gmra.mxu0 %v720
    %v2188 = vpop.f32.mrf.mxu0
    %v2189 = vadd.f32 0.0, %v2188
    %v2190 = vpop.f32.mrf.mxu0
    %2191 = vmatprep.mubr.f32.mxu0 0.0
    %2192 = vmatmul.mubr.f32.gmra.mxu0 %v721
    %v2193 = vpop.f32.mrf.mxu0
    %v2194 = vadd.f32 0.0, %v2193
    %v2195 = vpop.f32.mrf.mxu0
    %2196 = vmatprep.mubr.f32.mxu0 0.0
    %2197 = vmatmul.mubr.f32.gmra.mxu0 %v722
    %v2198 = vpop.f32.mrf.mxu0
    %v2199 = vadd.f32 0.0, %v2198
    %v2200 = vpop.f32.mrf.mxu0
    %2201 = vmatprep.mubr.f32.mxu0 0.0
    %2202 = vmatmul.mubr.f32.gmra.mxu0 %v723
    %v2203 = vpop.f32.mrf.mxu0
    %v2204 = vadd.f32 0.0, %v2203
    %v2205 = vpop.f32.mrf.mxu0
    %2206 = vmatprep.mubr.f32.mxu0 0.0
    %2207 = vmatmul.mubr.f32.gmra.mxu0 %v724
    %v2208 = vpop.f32.mrf.mxu0
    %v2209 = vadd.f32 0.0, %v2208
    %v2210 = vpop.f32.mrf.mxu0
    %2211 = vmatprep.mubr.f32.mxu0 0.0
    %2212 = vmatmul.mubr.f32.gmra.mxu0 %v725
    %v2213 = vpop.f32.mrf.mxu0
    %v2214 = vadd.f32 0.0, %v2213
    %v2215 = vpop.f32.mrf.mxu0
    %2216 = vmatprep.mubr.f32.mxu0 0.0
    %2217 = vmatmul.mubr.f32.gmra.mxu0 %v726
    %v2218 = vpop.f32.mrf.mxu0
    %v2219 = vadd.f32 0.0, %v2218
    %v2220 = vpop.f32.mrf.mxu0
    %2221 = vmatprep.mubr.f32.mxu0 0.0
    %2222 = vmatmul.mubr.f32.gmra.mxu0 %v727
    %v2223 = vpop.f32.mrf.mxu0
    %v2224 = vadd.f32 0.0, %v2223
    %v2225 = vpop.f32.mrf.mxu0
    %2226 = vmatprep.mubr.f32.mxu0 0.0
    %2227 = vmatmul.mubr.f32.gmra.mxu0 %v728
    %v2228 = vpop.f32.mrf.mxu0
    %v2229 = vadd.f32 0.0, %v2228
    %v2230 = vpop.f32.mrf.mxu0
    %2231 = vmatprep.mubr.f32.mxu0 0.0
    %2232 = vmatmul.mubr.f32.gmra.mxu0 %v729
    %v2233 = vpop.f32.mrf.mxu0
    %v2234 = vadd.f32 0.0, %v2233
    %v2235 = vpop.f32.mrf.mxu0
    %2236 = vmatprep.mubr.f32.mxu0 0.0
    %2237 = vmatmul.mubr.f32.gmra.mxu0 %v730
    %v2238 = vpop.f32.mrf.mxu0
    %v2239 = vadd.f32 0.0, %v2238
    %v2240 = vpop.f32.mrf.mxu0
    %2241 = vmatprep.mubr.f32.mxu0 0.0
    %2242 = vmatmul.mubr.f32.gmra.mxu0 %v731
    %v2243 = vpop.f32.mrf.mxu0
    %v2244 = vadd.f32 0.0, %v2243
    %v2245 = vpop.f32.mrf.mxu0
    %2246 = vmatprep.mubr.f32.mxu0 0.0
    %2247 = vmatmul.mubr.f32.gmra.mxu0 %v732
    %v2248 = vpop.f32.mrf.mxu0
    %v2249 = vadd.f32 0.0, %v2248
    %v2250 = vpop.f32.mrf.mxu0
    %2251 = vmatprep.mubr.f32.mxu0 0.0
    %2252 = vmatmul.mubr.f32.gmra.mxu0 %v733
    %v2253 = vpop.f32.mrf.mxu0
    %v2254 = vadd.f32 0.0, %v2253
    %v2255 = vpop.f32.mrf.mxu0
    %2256 = vmatprep.mubr.f32.mxu0 0.0
    %2257 = vmatmul.mubr.f32.gmra.mxu0 %v734
    %v2258 = vpop.f32.mrf.mxu0
    %v2259 = vadd.f32 0.0, %v2258
    %v2260 = vpop.f32.mrf.mxu0
    %2261 = vmatprep.mubr.f32.mxu0 0.0
    %2262 = vmatmul.mubr.f32.gmra.mxu0 %v735
    %v2263 = vpop.f32.mrf.mxu0
    %v2264 = vadd.f32 0.0, %v2263
    %v2265 = vpop.f32.mrf.mxu0
    %2266 = vmatprep.mubr.f32.mxu0 0.0
    %2267 = vmatmul.mubr.f32.gmra.mxu0 %v736
    %v2268 = vpop.f32.mrf.mxu0
    %v2269 = vadd.f32 0.0, %v2268
    %v2270 = vpop.f32.mrf.mxu0
    %2271 = vmatprep.mubr.f32.mxu0 0.0
    %2272 = vmatmul.mubr.f32.gmra.mxu0 %v737
    %v2273 = vpop.f32.mrf.mxu0
    %v2274 = vadd.f32 0.0, %v2273
    %v2275 = vpop.f32.mrf.mxu0
    %2276 = vmatprep.mubr.f32.mxu0 0.0
    %2277 = vmatmul.mubr.f32.gmra.mxu0 %v738
    %v2278 = vpop.f32.mrf.mxu0
    %v2279 = vadd.f32 0.0, %v2278
    %v2280 = vpop.f32.mrf.mxu0
    %2281 = vmatprep.mubr.f32.mxu0 0.0
    %2282 = vmatmul.mubr.f32.gmra.mxu0 %v739
    %v2283 = vpop.f32.mrf.mxu0
    %v2284 = vadd.f32 0.0, %v2283
    %v2285 = vpop.f32.mrf.mxu0
    %2286 = vdwg.mxu0
    %v2287 = vadd.f32 %v2013, %v2129
    %v2288 = vadd.f32 %v2014, %v2134
    %v2289 = vadd.f32 %v2015, %v2139
    %v2290 = vadd.f32 %v2016, %v2144
    %v2291 = vadd.f32 %v2017, %v2149
    %v2292 = vadd.f32 %v2018, %v2154
    %v2293 = vadd.f32 %v2019, %v2159
    %v2294 = vadd.f32 %v2020, %v2164
    %v2295 = vadd.f32 %v2021, %v2169
    %v2296 = vadd.f32 %v2022, %v2174
    %v2297 = vadd.f32 %v2023, %v2179
    %v2298 = vadd.f32 %v2024, %v2184
    %v2299 = vadd.f32 %v2025, %v2189
    %v2300 = vadd.f32 %v2026, %v2194
    %v2301 = vadd.f32 %v2027, %v2199
    %v2302 = vadd.f32 %v2028, %v2204
    %v2303 = vadd.f32 %v2029, %v2209
    %v2304 = vadd.f32 %v2030, %v2214
    %v2305 = vadd.f32 %v2031, %v2219
    %v2306 = vadd.f32 %v2032, %v2224
    %v2307 = vadd.f32 %v2033, %v2229
    %v2308 = vadd.f32 %v2034, %v2234
    %v2309 = vadd.f32 %v2035, %v2239
    %v2310 = vadd.f32 %v2036, %v2244
    %v2311 = vadd.f32 %v2037, %v2249
    %v2312 = vadd.f32 %v2038, %v2254
    %v2313 = vadd.f32 %v2039, %v2259
    %v2314 = vadd.f32 %v2040, %v2264
    %v2315 = vadd.f32 %v2041, %v2269
    %v2316 = vadd.f32 %v2042, %v2274
    %v2317 = vadd.f32 %v2043, %v2279
    %v2318 = vadd.f32 %v2044, %v2284
    %s2319 = scalar_lea.vmem [#allocation5], 768
    %v2320 = vld [vmem:[%s2319] sm:$0xff]
    %v2321 = vld [vmem:[%s2319 + $0x8] sm:$0xff]
    %v2322 = vld [vmem:[%s2319 + $0x10] sm:$0xff]
    %v2323 = vld [vmem:[%s2319 + $0x18] sm:$0xff]
    %v2324 = vld [vmem:[%s2319 + $0x20] sm:$0xff]
    %v2325 = vld [vmem:[%s2319 + $0x28] sm:$0xff]
    %v2326 = vld [vmem:[%s2319 + $0x30] sm:$0xff]
    %v2327 = vld [vmem:[%s2319 + $0x38] sm:$0xff]
    %v2328 = vld [vmem:[%s2319 + $0x40] sm:$0xff]
    %v2329 = vld [vmem:[%s2319 + $0x48] sm:$0xff]
    %v2330 = vld [vmem:[%s2319 + $0x50] sm:$0xff]
    %v2331 = vld [vmem:[%s2319 + $0x58] sm:$0xff]
    %v2332 = vld [vmem:[%s2319 + $0x60] sm:$0xff]
    %v2333 = vld [vmem:[%s2319 + $0x68] sm:$0xff]
    %v2334 = vld [vmem:[%s2319 + $0x70] sm:$0xff]
    %v2335 = vld [vmem:[%s2319 + $0x78] sm:$0xff]
    %2336 = vmatprep.subr.mxu0 0.0
    %2337 = vmatpush1.msra.mxu0 %v2335
    %2338 = vmatprep.subr.mxu0 0.0
    %2339 = vmatpush1.msra.mxu0 %v2334
    %2340 = vmatprep.subr.mxu0 0.0
    %2341 = vmatpush1.msra.mxu0 %v2333
    %2342 = vmatprep.subr.mxu0 0.0
    %2343 = vmatpush1.msra.mxu0 %v2332
    %2344 = vmatprep.subr.mxu0 0.0
    %2345 = vmatpush1.msra.mxu0 %v2331
    %2346 = vmatprep.subr.mxu0 0.0
    %2347 = vmatpush1.msra.mxu0 %v2330
    %2348 = vmatprep.subr.mxu0 0.0
    %2349 = vmatpush1.msra.mxu0 %v2329
    %2350 = vmatprep.subr.mxu0 0.0
    %2351 = vmatpush1.msra.mxu0 %v2328
    %2352 = vmatprep.subr.mxu0 0.0
    %2353 = vmatpush1.msra.mxu0 %v2327
    %2354 = vmatprep.subr.mxu0 0.0
    %2355 = vmatpush1.msra.mxu0 %v2326
    %2356 = vmatprep.subr.mxu0 0.0
    %2357 = vmatpush1.msra.mxu0 %v2325
    %2358 = vmatprep.subr.mxu0 0.0
    %2359 = vmatpush1.msra.mxu0 %v2324
    %2360 = vmatprep.subr.mxu0 0.0
    %2361 = vmatpush1.msra.mxu0 %v2323
    %2362 = vmatprep.subr.mxu0 0.0
    %2363 = vmatpush1.msra.mxu0 %v2322
    %2364 = vmatprep.subr.mxu0 0.0
    %2365 = vmatpush1.msra.mxu0 %v2321
    %2366 = vmatprep.subr.mxu0 0.0
    %2367 = vmatpush1.msra.mxu0 %v2320
    %2368 = vmatprep.subr.mxu0 0.0
    %2369 = vmatpush2.msra.mxu0 0.0
    %2370 = vmatprep.subr.mxu0 0.0
    %2371 = vmatpush2.msra.mxu0 0.0
    %2372 = vmatprep.subr.mxu0 0.0
    %2373 = vmatpush2.msra.mxu0 0.0
    %2374 = vmatprep.subr.mxu0 0.0
    %2375 = vmatpush2.msra.mxu0 0.0
    %2376 = vmatprep.subr.mxu0 0.0
    %2377 = vmatpush2.msra.mxu0 0.0
    %2378 = vmatprep.subr.mxu0 0.0
    %2379 = vmatpush2.msra.mxu0 0.0
    %2380 = vmatprep.subr.mxu0 0.0
    %2381 = vmatpush2.msra.mxu0 0.0
    %2382 = vmatprep.subr.mxu0 0.0
    %2383 = vmatpush2.msra.mxu0 0.0
    %2384 = vmatprep.subr.mxu0 0.0
    %2385 = vmatpush2.msra.mxu0 0.0
    %2386 = vmatprep.subr.mxu0 0.0
    %2387 = vmatpush2.msra.mxu0 0.0
    %2388 = vmatprep.subr.mxu0 0.0
    %2389 = vmatpush2.msra.mxu0 0.0
    %2390 = vmatprep.subr.mxu0 0.0
    %2391 = vmatpush2.msra.mxu0 0.0
    %2392 = vmatprep.subr.mxu0 0.0
    %2393 = vmatpush2.msra.mxu0 0.0
    %2394 = vmatprep.subr.mxu0 0.0
    %2395 = vmatpush2.msra.mxu0 0.0
    %2396 = vmatprep.subr.mxu0 0.0
    %2397 = vmatpush2.msra.mxu0 0.0
    %2398 = vmatprep.subr.mxu0 0.0
    %2399 = vmatpush2.msra.mxu0 0.0
    %2400 = vmatprep.mubr.f32.mxu0 0.0
    %2401 = vmatmul.mubr.f32.gmra.mxu0 %v676
    %v2402 = vpop.f32.mrf.mxu0
    %v2403 = vadd.f32 0.0, %v2402
    %v2404 = vpop.f32.mrf.mxu0
    %2405 = vmatprep.mubr.f32.mxu0 0.0
    %2406 = vmatmul.mubr.f32.gmra.mxu0 %v677
    %v2407 = vpop.f32.mrf.mxu0
    %v2408 = vadd.f32 0.0, %v2407
    %v2409 = vpop.f32.mrf.mxu0
    %2410 = vmatprep.mubr.f32.mxu0 0.0
    %2411 = vmatmul.mubr.f32.gmra.mxu0 %v678
    %v2412 = vpop.f32.mrf.mxu0
    %v2413 = vadd.f32 0.0, %v2412
    %v2414 = vpop.f32.mrf.mxu0
    %2415 = vmatprep.mubr.f32.mxu0 0.0
    %2416 = vmatmul.mubr.f32.gmra.mxu0 %v679
    %v2417 = vpop.f32.mrf.mxu0
    %v2418 = vadd.f32 0.0, %v2417
    %v2419 = vpop.f32.mrf.mxu0
    %2420 = vmatprep.mubr.f32.mxu0 0.0
    %2421 = vmatmul.mubr.f32.gmra.mxu0 %v680
    %v2422 = vpop.f32.mrf.mxu0
    %v2423 = vadd.f32 0.0, %v2422
    %v2424 = vpop.f32.mrf.mxu0
    %2425 = vmatprep.mubr.f32.mxu0 0.0
    %2426 = vmatmul.mubr.f32.gmra.mxu0 %v681
    %v2427 = vpop.f32.mrf.mxu0
    %v2428 = vadd.f32 0.0, %v2427
    %v2429 = vpop.f32.mrf.mxu0
    %2430 = vmatprep.mubr.f32.mxu0 0.0
    %2431 = vmatmul.mubr.f32.gmra.mxu0 %v682
    %v2432 = vpop.f32.mrf.mxu0
    %v2433 = vadd.f32 0.0, %v2432
    %v2434 = vpop.f32.mrf.mxu0
    %2435 = vmatprep.mubr.f32.mxu0 0.0
    %2436 = vmatmul.mubr.f32.gmra.mxu0 %v683
    %v2437 = vpop.f32.mrf.mxu0
    %v2438 = vadd.f32 0.0, %v2437
    %v2439 = vpop.f32.mrf.mxu0
    %2440 = vmatprep.mubr.f32.mxu0 0.0
    %2441 = vmatmul.mubr.f32.gmra.mxu0 %v684
    %v2442 = vpop.f32.mrf.mxu0
    %v2443 = vadd.f32 0.0, %v2442
    %v2444 = vpop.f32.mrf.mxu0
    %2445 = vmatprep.mubr.f32.mxu0 0.0
    %2446 = vmatmul.mubr.f32.gmra.mxu0 %v685
    %v2447 = vpop.f32.mrf.mxu0
    %v2448 = vadd.f32 0.0, %v2447
    %v2449 = vpop.f32.mrf.mxu0
    %2450 = vmatprep.mubr.f32.mxu0 0.0
    %2451 = vmatmul.mubr.f32.gmra.mxu0 %v686
    %v2452 = vpop.f32.mrf.mxu0
    %v2453 = vadd.f32 0.0, %v2452
    %v2454 = vpop.f32.mrf.mxu0
    %2455 = vmatprep.mubr.f32.mxu0 0.0
    %2456 = vmatmul.mubr.f32.gmra.mxu0 %v687
    %v2457 = vpop.f32.mrf.mxu0
    %v2458 = vadd.f32 0.0, %v2457
    %v2459 = vpop.f32.mrf.mxu0
    %2460 = vmatprep.mubr.f32.mxu0 0.0
    %2461 = vmatmul.mubr.f32.gmra.mxu0 %v688
    %v2462 = vpop.f32.mrf.mxu0
    %v2463 = vadd.f32 0.0, %v2462
    %v2464 = vpop.f32.mrf.mxu0
    %2465 = vmatprep.mubr.f32.mxu0 0.0
    %2466 = vmatmul.mubr.f32.gmra.mxu0 %v689
    %v2467 = vpop.f32.mrf.mxu0
    %v2468 = vadd.f32 0.0, %v2467
    %v2469 = vpop.f32.mrf.mxu0
    %2470 = vmatprep.mubr.f32.mxu0 0.0
    %2471 = vmatmul.mubr.f32.gmra.mxu0 %v690
    %v2472 = vpop.f32.mrf.mxu0
    %v2473 = vadd.f32 0.0, %v2472
    %v2474 = vpop.f32.mrf.mxu0
    %2475 = vmatprep.mubr.f32.mxu0 0.0
    %2476 = vmatmul.mubr.f32.gmra.mxu0 %v674
    %v2477 = vpop.f32.mrf.mxu0
    %v2478 = vadd.f32 0.0, %v2477
    %v2479 = vpop.f32.mrf.mxu0
    %2480 = vmatprep.mubr.f32.mxu0 0.0
    %2481 = vmatmul.mubr.f32.gmra.mxu0 %v692
    %v2482 = vpop.f32.mrf.mxu0
    %v2483 = vadd.f32 0.0, %v2482
    %v2484 = vpop.f32.mrf.mxu0
    %2485 = vmatprep.mubr.f32.mxu0 0.0
    %2486 = vmatmul.mubr.f32.gmra.mxu0 %v693
    %v2487 = vpop.f32.mrf.mxu0
    %v2488 = vadd.f32 0.0, %v2487
    %v2489 = vpop.f32.mrf.mxu0
    %2490 = vmatprep.mubr.f32.mxu0 0.0
    %2491 = vmatmul.mubr.f32.gmra.mxu0 %v694
    %v2492 = vpop.f32.mrf.mxu0
    %v2493 = vadd.f32 0.0, %v2492
    %v2494 = vpop.f32.mrf.mxu0
    %2495 = vmatprep.mubr.f32.mxu0 0.0
    %2496 = vmatmul.mubr.f32.gmra.mxu0 %v695
    %v2497 = vpop.f32.mrf.mxu0
    %v2498 = vadd.f32 0.0, %v2497
    %v2499 = vpop.f32.mrf.mxu0
    %2500 = vmatprep.mubr.f32.mxu0 0.0
    %2501 = vmatmul.mubr.f32.gmra.mxu0 %v696
    %v2502 = vpop.f32.mrf.mxu0
    %v2503 = vadd.f32 0.0, %v2502
    %v2504 = vpop.f32.mrf.mxu0
    %2505 = vmatprep.mubr.f32.mxu0 0.0
    %2506 = vmatmul.mubr.f32.gmra.mxu0 %v697
    %v2507 = vpop.f32.mrf.mxu0
    %v2508 = vadd.f32 0.0, %v2507
    %v2509 = vpop.f32.mrf.mxu0
    %2510 = vmatprep.mubr.f32.mxu0 0.0
    %2511 = vmatmul.mubr.f32.gmra.mxu0 %v698
    %v2512 = vpop.f32.mrf.mxu0
    %v2513 = vadd.f32 0.0, %v2512
    %v2514 = vpop.f32.mrf.mxu0
    %2515 = vmatprep.mubr.f32.mxu0 0.0
    %2516 = vmatmul.mubr.f32.gmra.mxu0 %v699
    %v2517 = vpop.f32.mrf.mxu0
    %v2518 = vadd.f32 0.0, %v2517
    %v2519 = vpop.f32.mrf.mxu0
    %2520 = vmatprep.mubr.f32.mxu0 0.0
    %2521 = vmatmul.mubr.f32.gmra.mxu0 %v700
    %v2522 = vpop.f32.mrf.mxu0
    %v2523 = vadd.f32 0.0, %v2522
    %v2524 = vpop.f32.mrf.mxu0
    %2525 = vmatprep.mubr.f32.mxu0 0.0
    %2526 = vmatmul.mubr.f32.gmra.mxu0 %v701
    %v2527 = vpop.f32.mrf.mxu0
    %v2528 = vadd.f32 0.0, %v2527
    %v2529 = vpop.f32.mrf.mxu0
    %2530 = vmatprep.mubr.f32.mxu0 0.0
    %2531 = vmatmul.mubr.f32.gmra.mxu0 %v702
    %v2532 = vpop.f32.mrf.mxu0
    %v2533 = vadd.f32 0.0, %v2532
    %v2534 = vpop.f32.mrf.mxu0
    %2535 = vmatprep.mubr.f32.mxu0 0.0
    %2536 = vmatmul.mubr.f32.gmra.mxu0 %v703
    %v2537 = vpop.f32.mrf.mxu0
    %v2538 = vadd.f32 0.0, %v2537
    %v2539 = vpop.f32.mrf.mxu0
    %2540 = vmatprep.mubr.f32.mxu0 0.0
    %2541 = vmatmul.mubr.f32.gmra.mxu0 %v704
    %v2542 = vpop.f32.mrf.mxu0
    %v2543 = vadd.f32 0.0, %v2542
    %v2544 = vpop.f32.mrf.mxu0
    %2545 = vmatprep.mubr.f32.mxu0 0.0
    %2546 = vmatmul.mubr.f32.gmra.mxu0 %v705
    %v2547 = vpop.f32.mrf.mxu0
    %v2548 = vadd.f32 0.0, %v2547
    %v2549 = vpop.f32.mrf.mxu0
    %2550 = vmatprep.mubr.f32.mxu0 0.0
    %2551 = vmatmul.mubr.f32.gmra.mxu0 %v706
    %v2552 = vpop.f32.mrf.mxu0
    %v2553 = vadd.f32 0.0, %v2552
    %v2554 = vpop.f32.mrf.mxu0
    %2555 = vmatprep.mubr.f32.mxu0 0.0
    %2556 = vmatmul.mubr.f32.gmra.mxu0 %v674
    %v2557 = vpop.f32.mrf.mxu0
    %v2558 = vadd.f32 0.0, %v2557
    %v2559 = vpop.f32.mrf.mxu0
    %2560 = vdwg.mxu0
    %v2561 = vadd.f32 %v2287, %v2403
    %v2562 = vadd.f32 %v2288, %v2408
    %v2563 = vadd.f32 %v2289, %v2413
    %v2564 = vadd.f32 %v2290, %v2418
    %v2565 = vadd.f32 %v2291, %v2423
    %v2566 = vadd.f32 %v2292, %v2428
    %v2567 = vadd.f32 %v2293, %v2433
    %v2568 = vadd.f32 %v2294, %v2438
    %v2569 = vadd.f32 %v2295, %v2443
    %v2570 = vadd.f32 %v2296, %v2448
    %v2571 = vadd.f32 %v2297, %v2453
    %v2572 = vadd.f32 %v2298, %v2458
    %v2573 = vadd.f32 %v2299, %v2463
    %v2574 = vadd.f32 %v2300, %v2468
    %v2575 = vadd.f32 %v2301, %v2473
    %v2576 = vadd.f32 %v2302, %v2478
    %v2577 = vadd.f32 %v2303, %v2483
    %v2578 = vadd.f32 %v2304, %v2488
    %v2579 = vadd.f32 %v2305, %v2493
    %v2580 = vadd.f32 %v2306, %v2498
    %v2581 = vadd.f32 %v2307, %v2503
    %v2582 = vadd.f32 %v2308, %v2508
    %v2583 = vadd.f32 %v2309, %v2513
    %v2584 = vadd.f32 %v2310, %v2518
    %v2585 = vadd.f32 %v2311, %v2523
    %v2586 = vadd.f32 %v2312, %v2528
    %v2587 = vadd.f32 %v2313, %v2533
    %v2588 = vadd.f32 %v2314, %v2538
    %v2589 = vadd.f32 %v2315, %v2543
    %v2590 = vadd.f32 %v2316, %v2548
    %v2591 = vadd.f32 %v2317, %v2553
    %v2592 = vadd.f32 %v2318, %v2558
    %s2593 = scalar_lea.vmem [#allocation5], 896
    %v2594 = vld [vmem:[%s2593] sm:$0xff]
    %v2595 = vld [vmem:[%s2593 + $0x8] sm:$0xff]
    %v2596 = vld [vmem:[%s2593 + $0x10] sm:$0xff]
    %v2597 = vld [vmem:[%s2593 + $0x18] sm:$0xff]
    %v2598 = vld [vmem:[%s2593 + $0x20] sm:$0xff]
    %v2599 = vld [vmem:[%s2593 + $0x28] sm:$0xff]
    %v2600 = vld [vmem:[%s2593 + $0x30] sm:$0xff]
    %v2601 = vld [vmem:[%s2593 + $0x38] sm:$0xff]
    %v2602 = vld [vmem:[%s2593 + $0x40] sm:$0xff]
    %v2603 = vld [vmem:[%s2593 + $0x48] sm:$0xff]
    %v2604 = vld [vmem:[%s2593 + $0x50] sm:$0xff]
    %v2605 = vld [vmem:[%s2593 + $0x58] sm:$0xff]
    %v2606 = vld [vmem:[%s2593 + $0x60] sm:$0xff]
    %v2607 = vld [vmem:[%s2593 + $0x68] sm:$0xff]
    %v2608 = vld [vmem:[%s2593 + $0x70] sm:$0xff]
    %v2609 = vld [vmem:[%s2593 + $0x78] sm:$0xff]
    %2610 = vmatprep.subr.mxu0 0.0
    %2611 = vmatpush1.msra.mxu0 %v2609
    %2612 = vmatprep.subr.mxu0 0.0
    %2613 = vmatpush1.msra.mxu0 %v2608
    %2614 = vmatprep.subr.mxu0 0.0
    %2615 = vmatpush1.msra.mxu0 %v2607
    %2616 = vmatprep.subr.mxu0 0.0
    %2617 = vmatpush1.msra.mxu0 %v2606
    %2618 = vmatprep.subr.mxu0 0.0
    %2619 = vmatpush1.msra.mxu0 %v2605
    %2620 = vmatprep.subr.mxu0 0.0
    %2621 = vmatpush1.msra.mxu0 %v2604
    %2622 = vmatprep.subr.mxu0 0.0
    %2623 = vmatpush1.msra.mxu0 %v2603
    %2624 = vmatprep.subr.mxu0 0.0
    %2625 = vmatpush1.msra.mxu0 %v2602
    %2626 = vmatprep.subr.mxu0 0.0
    %2627 = vmatpush1.msra.mxu0 %v2601
    %2628 = vmatprep.subr.mxu0 0.0
    %2629 = vmatpush1.msra.mxu0 %v2600
    %2630 = vmatprep.subr.mxu0 0.0
    %2631 = vmatpush1.msra.mxu0 %v2599
    %2632 = vmatprep.subr.mxu0 0.0
    %2633 = vmatpush1.msra.mxu0 %v2598
    %2634 = vmatprep.subr.mxu0 0.0
    %2635 = vmatpush1.msra.mxu0 %v2597
    %2636 = vmatprep.subr.mxu0 0.0
    %2637 = vmatpush1.msra.mxu0 %v2596
    %2638 = vmatprep.subr.mxu0 0.0
    %2639 = vmatpush1.msra.mxu0 %v2595
    %2640 = vmatprep.subr.mxu0 0.0
    %2641 = vmatpush1.msra.mxu0 %v2594
    %2642 = vmatprep.subr.mxu0 0.0
    %2643 = vmatpush2.msra.mxu0 0.0
    %2644 = vmatprep.subr.mxu0 0.0
    %2645 = vmatpush2.msra.mxu0 0.0
    %2646 = vmatprep.subr.mxu0 0.0
    %2647 = vmatpush2.msra.mxu0 0.0
    %2648 = vmatprep.subr.mxu0 0.0
    %2649 = vmatpush2.msra.mxu0 0.0
    %2650 = vmatprep.subr.mxu0 0.0
    %2651 = vmatpush2.msra.mxu0 0.0
    %2652 = vmatprep.subr.mxu0 0.0
    %2653 = vmatpush2.msra.mxu0 0.0
    %2654 = vmatprep.subr.mxu0 0.0
    %2655 = vmatpush2.msra.mxu0 0.0
    %2656 = vmatprep.subr.mxu0 0.0
    %2657 = vmatpush2.msra.mxu0 0.0
    %2658 = vmatprep.subr.mxu0 0.0
    %2659 = vmatpush2.msra.mxu0 0.0
    %2660 = vmatprep.subr.mxu0 0.0
    %2661 = vmatpush2.msra.mxu0 0.0
    %2662 = vmatprep.subr.mxu0 0.0
    %2663 = vmatpush2.msra.mxu0 0.0
    %2664 = vmatprep.subr.mxu0 0.0
    %2665 = vmatpush2.msra.mxu0 0.0
    %2666 = vmatprep.subr.mxu0 0.0
    %2667 = vmatpush2.msra.mxu0 0.0
    %2668 = vmatprep.subr.mxu0 0.0
    %2669 = vmatpush2.msra.mxu0 0.0
    %2670 = vmatprep.subr.mxu0 0.0
    %2671 = vmatpush2.msra.mxu0 0.0
    %2672 = vmatprep.subr.mxu0 0.0
    %2673 = vmatpush2.msra.mxu0 0.0
    %2674 = vmatprep.mubr.f32.mxu0 0.0
    %2675 = vmatmul.mubr.f32.gmra.mxu0 %v341
    %v2676 = vpop.f32.mrf.mxu0
    %v2677 = vadd.f32 0.0, %v2676
    %v2678 = vpop.f32.mrf.mxu0
    %2679 = vmatprep.mubr.f32.mxu0 0.0
    %2680 = vmatmul.mubr.f32.gmra.mxu0 %v342
    %v2681 = vpop.f32.mrf.mxu0
    %v2682 = vadd.f32 0.0, %v2681
    %v2683 = vpop.f32.mrf.mxu0
    %2684 = vmatprep.mubr.f32.mxu0 0.0
    %2685 = vmatmul.mubr.f32.gmra.mxu0 %v343
    %v2686 = vpop.f32.mrf.mxu0
    %v2687 = vadd.f32 0.0, %v2686
    %v2688 = vpop.f32.mrf.mxu0
    %2689 = vmatprep.mubr.f32.mxu0 0.0
    %2690 = vmatmul.mubr.f32.gmra.mxu0 %v344
    %v2691 = vpop.f32.mrf.mxu0
    %v2692 = vadd.f32 0.0, %v2691
    %v2693 = vpop.f32.mrf.mxu0
    %2694 = vmatprep.mubr.f32.mxu0 0.0
    %2695 = vmatmul.mubr.f32.gmra.mxu0 %v345
    %v2696 = vpop.f32.mrf.mxu0
    %v2697 = vadd.f32 0.0, %v2696
    %v2698 = vpop.f32.mrf.mxu0
    %2699 = vmatprep.mubr.f32.mxu0 0.0
    %2700 = vmatmul.mubr.f32.gmra.mxu0 %v346
    %v2701 = vpop.f32.mrf.mxu0
    %v2702 = vadd.f32 0.0, %v2701
    %v2703 = vpop.f32.mrf.mxu0
    %2704 = vmatprep.mubr.f32.mxu0 0.0
    %2705 = vmatmul.mubr.f32.gmra.mxu0 %v347
    %v2706 = vpop.f32.mrf.mxu0
    %v2707 = vadd.f32 0.0, %v2706
    %v2708 = vpop.f32.mrf.mxu0
    %2709 = vmatprep.mubr.f32.mxu0 0.0
    %2710 = vmatmul.mubr.f32.gmra.mxu0 %v348
    %v2711 = vpop.f32.mrf.mxu0
    %v2712 = vadd.f32 0.0, %v2711
    %v2713 = vpop.f32.mrf.mxu0
    %2714 = vmatprep.mubr.f32.mxu0 0.0
    %2715 = vmatmul.mubr.f32.gmra.mxu0 %v349
    %v2716 = vpop.f32.mrf.mxu0
    %v2717 = vadd.f32 0.0, %v2716
    %v2718 = vpop.f32.mrf.mxu0
    %2719 = vmatprep.mubr.f32.mxu0 0.0
    %2720 = vmatmul.mubr.f32.gmra.mxu0 %v350
    %v2721 = vpop.f32.mrf.mxu0
    %v2722 = vadd.f32 0.0, %v2721
    %v2723 = vpop.f32.mrf.mxu0
    %2724 = vmatprep.mubr.f32.mxu0 0.0
    %2725 = vmatmul.mubr.f32.gmra.mxu0 %v351
    %v2726 = vpop.f32.mrf.mxu0
    %v2727 = vadd.f32 0.0, %v2726
    %v2728 = vpop.f32.mrf.mxu0
    %2729 = vmatprep.mubr.f32.mxu0 0.0
    %2730 = vmatmul.mubr.f32.gmra.mxu0 %v352
    %v2731 = vpop.f32.mrf.mxu0
    %v2732 = vadd.f32 0.0, %v2731
    %v2733 = vpop.f32.mrf.mxu0
    %2734 = vmatprep.mubr.f32.mxu0 0.0
    %2735 = vmatmul.mubr.f32.gmra.mxu0 %v353
    %v2736 = vpop.f32.mrf.mxu0
    %v2737 = vadd.f32 0.0, %v2736
    %v2738 = vpop.f32.mrf.mxu0
    %2739 = vmatprep.mubr.f32.mxu0 0.0
    %2740 = vmatmul.mubr.f32.gmra.mxu0 %v354
    %v2741 = vpop.f32.mrf.mxu0
    %v2742 = vadd.f32 0.0, %v2741
    %v2743 = vpop.f32.mrf.mxu0
    %2744 = vmatprep.mubr.f32.mxu0 0.0
    %2745 = vmatmul.mubr.f32.gmra.mxu0 %v355
    %v2746 = vpop.f32.mrf.mxu0
    %v2747 = vadd.f32 0.0, %v2746
    %v2748 = vpop.f32.mrf.mxu0
    %2749 = vmatprep.mubr.f32.mxu0 0.0
    %2750 = vmatmul.mubr.f32.gmra.mxu0 0.0
    %v2751 = vpop.f32.mrf.mxu0
    %v2752 = vadd.f32 0.0, %v2751
    %v2753 = vpop.f32.mrf.mxu0
    %2754 = vmatprep.mubr.f32.mxu0 0.0
    %2755 = vmatmul.mubr.f32.gmra.mxu0 %v357
    %v2756 = vpop.f32.mrf.mxu0
    %v2757 = vadd.f32 0.0, %v2756
    %v2758 = vpop.f32.mrf.mxu0
    %2759 = vmatprep.mubr.f32.mxu0 0.0
    %2760 = vmatmul.mubr.f32.gmra.mxu0 %v358
    %v2761 = vpop.f32.mrf.mxu0
    %v2762 = vadd.f32 0.0, %v2761
    %v2763 = vpop.f32.mrf.mxu0
    %2764 = vmatprep.mubr.f32.mxu0 0.0
    %2765 = vmatmul.mubr.f32.gmra.mxu0 %v359
    %v2766 = vpop.f32.mrf.mxu0
    %v2767 = vadd.f32 0.0, %v2766
    %v2768 = vpop.f32.mrf.mxu0
    %2769 = vmatprep.mubr.f32.mxu0 0.0
    %2770 = vmatmul.mubr.f32.gmra.mxu0 %v360
    %v2771 = vpop.f32.mrf.mxu0
    %v2772 = vadd.f32 0.0, %v2771
    %v2773 = vpop.f32.mrf.mxu0
    %2774 = vmatprep.mubr.f32.mxu0 0.0
    %2775 = vmatmul.mubr.f32.gmra.mxu0 %v361
    %v2776 = vpop.f32.mrf.mxu0
    %v2777 = vadd.f32 0.0, %v2776
    %v2778 = vpop.f32.mrf.mxu0
    %2779 = vmatprep.mubr.f32.mxu0 0.0
    %2780 = vmatmul.mubr.f32.gmra.mxu0 %v362
    %v2781 = vpop.f32.mrf.mxu0
    %v2782 = vadd.f32 0.0, %v2781
    %v2783 = vpop.f32.mrf.mxu0
    %2784 = vmatprep.mubr.f32.mxu0 0.0
    %2785 = vmatmul.mubr.f32.gmra.mxu0 %v363
    %v2786 = vpop.f32.mrf.mxu0
    %v2787 = vadd.f32 0.0, %v2786
    %v2788 = vpop.f32.mrf.mxu0
    %2789 = vmatprep.mubr.f32.mxu0 0.0
    %2790 = vmatmul.mubr.f32.gmra.mxu0 %v364
    %v2791 = vpop.f32.mrf.mxu0
    %v2792 = vadd.f32 0.0, %v2791
    %v2793 = vpop.f32.mrf.mxu0
    %2794 = vmatprep.mubr.f32.mxu0 0.0
    %2795 = vmatmul.mubr.f32.gmra.mxu0 %v365
    %v2796 = vpop.f32.mrf.mxu0
    %v2797 = vadd.f32 0.0, %v2796
    %v2798 = vpop.f32.mrf.mxu0
    %2799 = vmatprep.mubr.f32.mxu0 0.0
    %2800 = vmatmul.mubr.f32.gmra.mxu0 %v366
    %v2801 = vpop.f32.mrf.mxu0
    %v2802 = vadd.f32 0.0, %v2801
    %v2803 = vpop.f32.mrf.mxu0
    %2804 = vmatprep.mubr.f32.mxu0 0.0
    %2805 = vmatmul.mubr.f32.gmra.mxu0 %v367
    %v2806 = vpop.f32.mrf.mxu0
    %v2807 = vadd.f32 0.0, %v2806
    %v2808 = vpop.f32.mrf.mxu0
    %2809 = vmatprep.mubr.f32.mxu0 0.0
    %2810 = vmatmul.mubr.f32.gmra.mxu0 %v368
    %v2811 = vpop.f32.mrf.mxu0
    %v2812 = vadd.f32 0.0, %v2811
    %v2813 = vpop.f32.mrf.mxu0
    %2814 = vmatprep.mubr.f32.mxu0 0.0
    %2815 = vmatmul.mubr.f32.gmra.mxu0 %v369
    %v2816 = vpop.f32.mrf.mxu0
    %v2817 = vadd.f32 0.0, %v2816
    %v2818 = vpop.f32.mrf.mxu0
    %2819 = vmatprep.mubr.f32.mxu0 0.0
    %2820 = vmatmul.mubr.f32.gmra.mxu0 %v370
    %v2821 = vpop.f32.mrf.mxu0
    %v2822 = vadd.f32 0.0, %v2821
    %v2823 = vpop.f32.mrf.mxu0
    %2824 = vmatprep.mubr.f32.mxu0 0.0
    %2825 = vmatmul.mubr.f32.gmra.mxu0 %v371
    %v2826 = vpop.f32.mrf.mxu0
    %v2827 = vadd.f32 0.0, %v2826
    %v2828 = vpop.f32.mrf.mxu0
    %2829 = vmatprep.mubr.f32.mxu0 0.0
    %2830 = vmatmul.mubr.f32.gmra.mxu0 0.0
    %v2831 = vpop.f32.mrf.mxu0
    %v2832 = vadd.f32 0.0, %v2831
    %v2833 = vpop.f32.mrf.mxu0
    %2834 = vdwg.mxu0
    %v2835 = vadd.f32 %v2561, %v2677
    %v2836 = vadd.f32 %v2562, %v2682
    %v2837 = vadd.f32 %v2563, %v2687
    %v2838 = vadd.f32 %v2564, %v2692
    %v2839 = vadd.f32 %v2565, %v2697
    %v2840 = vadd.f32 %v2566, %v2702
    %v2841 = vadd.f32 %v2567, %v2707
    %v2842 = vadd.f32 %v2568, %v2712
    %v2843 = vadd.f32 %v2569, %v2717
    %v2844 = vadd.f32 %v2570, %v2722
    %v2845 = vadd.f32 %v2571, %v2727
    %v2846 = vadd.f32 %v2572, %v2732
    %v2847 = vadd.f32 %v2573, %v2737
    %v2848 = vadd.f32 %v2574, %v2742
    %v2849 = vadd.f32 %v2575, %v2747
    %v2850 = vadd.f32 %v2576, %v2752
    %v2851 = vadd.f32 %v2577, %v2757
    %v2852 = vadd.f32 %v2578, %v2762
    %v2853 = vadd.f32 %v2579, %v2767
    %v2854 = vadd.f32 %v2580, %v2772
    %v2855 = vadd.f32 %v2581, %v2777
    %v2856 = vadd.f32 %v2582, %v2782
    %v2857 = vadd.f32 %v2583, %v2787
    %v2858 = vadd.f32 %v2584, %v2792
    %v2859 = vadd.f32 %v2585, %v2797
    %v2860 = vadd.f32 %v2586, %v2802
    %v2861 = vadd.f32 %v2587, %v2807
    %v2862 = vadd.f32 %v2588, %v2812
    %v2863 = vadd.f32 %v2589, %v2817
    %v2864 = vadd.f32 %v2590, %v2822
    %v2865 = vadd.f32 %v2591, %v2827
    %v2866 = vadd.f32 %v2592, %v2832
    %s2867 = scalar_lea.vmem [#allocation5], 1024
    %v2868 = vld [vmem:[%s2867] sm:$0xff]
    %v2869 = vld [vmem:[%s2867 + $0x8] sm:$0xff]
    %v2870 = vld [vmem:[%s2867 + $0x10] sm:$0xff]
    %v2871 = vld [vmem:[%s2867 + $0x18] sm:$0xff]
    %v2872 = vld [vmem:[%s2867 + $0x20] sm:$0xff]
    %v2873 = vld [vmem:[%s2867 + $0x28] sm:$0xff]
    %v2874 = vld [vmem:[%s2867 + $0x30] sm:$0xff]
    %v2875 = vld [vmem:[%s2867 + $0x38] sm:$0xff]
    %v2876 = vld [vmem:[%s2867 + $0x40] sm:$0xff]
    %v2877 = vld [vmem:[%s2867 + $0x48] sm:$0xff]
    %v2878 = vld [vmem:[%s2867 + $0x50] sm:$0xff]
    %v2879 = vld [vmem:[%s2867 + $0x58] sm:$0xff]
    %v2880 = vld [vmem:[%s2867 + $0x60] sm:$0xff]
    %v2881 = vld [vmem:[%s2867 + $0x68] sm:$0xff]
    %v2882 = vld [vmem:[%s2867 + $0x70] sm:$0xff]
    %v2883 = vld [vmem:[%s2867 + $0x78] sm:$0xff]
    %2884 = vmatprep.subr.mxu0 0.0
    %2885 = vmatpush1.msra.mxu0 %v2883
    %2886 = vmatprep.subr.mxu0 0.0
    %2887 = vmatpush1.msra.mxu0 %v2882
    %2888 = vmatprep.subr.mxu0 0.0
    %2889 = vmatpush1.msra.mxu0 %v2881
    %2890 = vmatprep.subr.mxu0 0.0
    %2891 = vmatpush1.msra.mxu0 %v2880
    %2892 = vmatprep.subr.mxu0 0.0
    %2893 = vmatpush1.msra.mxu0 %v2879
    %2894 = vmatprep.subr.mxu0 0.0
    %2895 = vmatpush1.msra.mxu0 %v2878
    %2896 = vmatprep.subr.mxu0 0.0
    %2897 = vmatpush1.msra.mxu0 %v2877
    %2898 = vmatprep.subr.mxu0 0.0
    %2899 = vmatpush1.msra.mxu0 %v2876
    %2900 = vmatprep.subr.mxu0 0.0
    %2901 = vmatpush1.msra.mxu0 %v2875
    %2902 = vmatprep.subr.mxu0 0.0
    %2903 = vmatpush1.msra.mxu0 %v2874
    %2904 = vmatprep.subr.mxu0 0.0
    %2905 = vmatpush1.msra.mxu0 %v2873
    %2906 = vmatprep.subr.mxu0 0.0
    %2907 = vmatpush1.msra.mxu0 %v2872
    %2908 = vmatprep.subr.mxu0 0.0
    %2909 = vmatpush1.msra.mxu0 %v2871
    %2910 = vmatprep.subr.mxu0 0.0
    %2911 = vmatpush1.msra.mxu0 %v2870
    %2912 = vmatprep.subr.mxu0 0.0
    %2913 = vmatpush1.msra.mxu0 %v2869
    %2914 = vmatprep.subr.mxu0 0.0
    %2915 = vmatpush1.msra.mxu0 %v2868
    %2916 = vmatprep.subr.mxu0 0.0
    %2917 = vmatpush2.msra.mxu0 0.0
    %2918 = vmatprep.subr.mxu0 0.0
    %2919 = vmatpush2.msra.mxu0 0.0
    %2920 = vmatprep.subr.mxu0 0.0
    %2921 = vmatpush2.msra.mxu0 0.0
    %2922 = vmatprep.subr.mxu0 0.0
    %2923 = vmatpush2.msra.mxu0 0.0
    %2924 = vmatprep.subr.mxu0 0.0
    %2925 = vmatpush2.msra.mxu0 0.0
    %2926 = vmatprep.subr.mxu0 0.0
    %2927 = vmatpush2.msra.mxu0 0.0
    %2928 = vmatprep.subr.mxu0 0.0
    %2929 = vmatpush2.msra.mxu0 0.0
    %2930 = vmatprep.subr.mxu0 0.0
    %2931 = vmatpush2.msra.mxu0 0.0
    %2932 = vmatprep.subr.mxu0 0.0
    %2933 = vmatpush2.msra.mxu0 0.0
    %2934 = vmatprep.subr.mxu0 0.0
    %2935 = vmatpush2.msra.mxu0 0.0
    %2936 = vmatprep.subr.mxu0 0.0
    %2937 = vmatpush2.msra.mxu0 0.0
    %2938 = vmatprep.subr.mxu0 0.0
    %2939 = vmatpush2.msra.mxu0 0.0
    %2940 = vmatprep.subr.mxu0 0.0
    %2941 = vmatpush2.msra.mxu0 0.0
    %2942 = vmatprep.subr.mxu0 0.0
    %2943 = vmatpush2.msra.mxu0 0.0
    %2944 = vmatprep.subr.mxu0 0.0
    %2945 = vmatpush2.msra.mxu0 0.0
    %2946 = vmatprep.subr.mxu0 0.0
    %2947 = vmatpush2.msra.mxu0 0.0
    %2948 = vmatprep.mubr.f32.mxu0 0.0
    %2949 = vmatmul.mubr.f32.gmra.mxu0 %v709
    %v2950 = vpop.f32.mrf.mxu0
    %v2951 = vadd.f32 0.0, %v2950
    %v2952 = vpop.f32.mrf.mxu0
    %2953 = vmatprep.mubr.f32.mxu0 0.0
    %2954 = vmatmul.mubr.f32.gmra.mxu0 %v710
    %v2955 = vpop.f32.mrf.mxu0
    %v2956 = vadd.f32 0.0, %v2955
    %v2957 = vpop.f32.mrf.mxu0
    %2958 = vmatprep.mubr.f32.mxu0 0.0
    %2959 = vmatmul.mubr.f32.gmra.mxu0 %v711
    %v2960 = vpop.f32.mrf.mxu0
    %v2961 = vadd.f32 0.0, %v2960
    %v2962 = vpop.f32.mrf.mxu0
    %2963 = vmatprep.mubr.f32.mxu0 0.0
    %2964 = vmatmul.mubr.f32.gmra.mxu0 %v712
    %v2965 = vpop.f32.mrf.mxu0
    %v2966 = vadd.f32 0.0, %v2965
    %v2967 = vpop.f32.mrf.mxu0
    %2968 = vmatprep.mubr.f32.mxu0 0.0
    %2969 = vmatmul.mubr.f32.gmra.mxu0 %v713
    %v2970 = vpop.f32.mrf.mxu0
    %v2971 = vadd.f32 0.0, %v2970
    %v2972 = vpop.f32.mrf.mxu0
    %2973 = vmatprep.mubr.f32.mxu0 0.0
    %2974 = vmatmul.mubr.f32.gmra.mxu0 %v714
    %v2975 = vpop.f32.mrf.mxu0
    %v2976 = vadd.f32 0.0, %v2975
    %v2977 = vpop.f32.mrf.mxu0
    %2978 = vmatprep.mubr.f32.mxu0 0.0
    %2979 = vmatmul.mubr.f32.gmra.mxu0 %v715
    %v2980 = vpop.f32.mrf.mxu0
    %v2981 = vadd.f32 0.0, %v2980
    %v2982 = vpop.f32.mrf.mxu0
    %2983 = vmatprep.mubr.f32.mxu0 0.0
    %2984 = vmatmul.mubr.f32.gmra.mxu0 %v716
    %v2985 = vpop.f32.mrf.mxu0
    %v2986 = vadd.f32 0.0, %v2985
    %v2987 = vpop.f32.mrf.mxu0
    %2988 = vmatprep.mubr.f32.mxu0 0.0
    %2989 = vmatmul.mubr.f32.gmra.mxu0 %v717
    %v2990 = vpop.f32.mrf.mxu0
    %v2991 = vadd.f32 0.0, %v2990
    %v2992 = vpop.f32.mrf.mxu0
    %2993 = vmatprep.mubr.f32.mxu0 0.0
    %2994 = vmatmul.mubr.f32.gmra.mxu0 %v718
    %v2995 = vpop.f32.mrf.mxu0
    %v2996 = vadd.f32 0.0, %v2995
    %v2997 = vpop.f32.mrf.mxu0
    %2998 = vmatprep.mubr.f32.mxu0 0.0
    %2999 = vmatmul.mubr.f32.gmra.mxu0 %v719
    %v3000 = vpop.f32.mrf.mxu0
    %v3001 = vadd.f32 0.0, %v3000
    %v3002 = vpop.f32.mrf.mxu0
    %3003 = vmatprep.mubr.f32.mxu0 0.0
    %3004 = vmatmul.mubr.f32.gmra.mxu0 %v720
    %v3005 = vpop.f32.mrf.mxu0
    %v3006 = vadd.f32 0.0, %v3005
    %v3007 = vpop.f32.mrf.mxu0
    %3008 = vmatprep.mubr.f32.mxu0 0.0
    %3009 = vmatmul.mubr.f32.gmra.mxu0 %v721
    %v3010 = vpop.f32.mrf.mxu0
    %v3011 = vadd.f32 0.0, %v3010
    %v3012 = vpop.f32.mrf.mxu0
    %3013 = vmatprep.mubr.f32.mxu0 0.0
    %3014 = vmatmul.mubr.f32.gmra.mxu0 %v722
    %v3015 = vpop.f32.mrf.mxu0
    %v3016 = vadd.f32 0.0, %v3015
    %v3017 = vpop.f32.mrf.mxu0
    %3018 = vmatprep.mubr.f32.mxu0 0.0
    %3019 = vmatmul.mubr.f32.gmra.mxu0 %v723
    %v3020 = vpop.f32.mrf.mxu0
    %v3021 = vadd.f32 0.0, %v3020
    %v3022 = vpop.f32.mrf.mxu0
    %3023 = vmatprep.mubr.f32.mxu0 0.0
    %3024 = vmatmul.mubr.f32.gmra.mxu0 %v707
    %v3025 = vpop.f32.mrf.mxu0
    %v3026 = vadd.f32 0.0, %v3025
    %v3027 = vpop.f32.mrf.mxu0
    %3028 = vmatprep.mubr.f32.mxu0 0.0
    %3029 = vmatmul.mubr.f32.gmra.mxu0 %v725
    %v3030 = vpop.f32.mrf.mxu0
    %v3031 = vadd.f32 0.0, %v3030
    %v3032 = vpop.f32.mrf.mxu0
    %3033 = vmatprep.mubr.f32.mxu0 0.0
    %3034 = vmatmul.mubr.f32.gmra.mxu0 %v726
    %v3035 = vpop.f32.mrf.mxu0
    %v3036 = vadd.f32 0.0, %v3035
    %v3037 = vpop.f32.mrf.mxu0
    %3038 = vmatprep.mubr.f32.mxu0 0.0
    %3039 = vmatmul.mubr.f32.gmra.mxu0 %v727
    %v3040 = vpop.f32.mrf.mxu0
    %v3041 = vadd.f32 0.0, %v3040
    %v3042 = vpop.f32.mrf.mxu0
    %3043 = vmatprep.mubr.f32.mxu0 0.0
    %3044 = vmatmul.mubr.f32.gmra.mxu0 %v728
    %v3045 = vpop.f32.mrf.mxu0
    %v3046 = vadd.f32 0.0, %v3045
    %v3047 = vpop.f32.mrf.mxu0
    %3048 = vmatprep.mubr.f32.mxu0 0.0
    %3049 = vmatmul.mubr.f32.gmra.mxu0 %v729
    %v3050 = vpop.f32.mrf.mxu0
    %v3051 = vadd.f32 0.0, %v3050
    %v3052 = vpop.f32.mrf.mxu0
    %3053 = vmatprep.mubr.f32.mxu0 0.0
    %3054 = vmatmul.mubr.f32.gmra.mxu0 %v730
    %v3055 = vpop.f32.mrf.mxu0
    %v3056 = vadd.f32 0.0, %v3055
    %v3057 = vpop.f32.mrf.mxu0
    %3058 = vmatprep.mubr.f32.mxu0 0.0
    %3059 = vmatmul.mubr.f32.gmra.mxu0 %v731
    %v3060 = vpop.f32.mrf.mxu0
    %v3061 = vadd.f32 0.0, %v3060
    %v3062 = vpop.f32.mrf.mxu0
    %3063 = vmatprep.mubr.f32.mxu0 0.0
    %3064 = vmatmul.mubr.f32.gmra.mxu0 %v732
    %v3065 = vpop.f32.mrf.mxu0
    %v3066 = vadd.f32 0.0, %v3065
    %v3067 = vpop.f32.mrf.mxu0
    %3068 = vmatprep.mubr.f32.mxu0 0.0
    %3069 = vmatmul.mubr.f32.gmra.mxu0 %v733
    %v3070 = vpop.f32.mrf.mxu0
    %v3071 = vadd.f32 0.0, %v3070
    %v3072 = vpop.f32.mrf.mxu0
    %3073 = vmatprep.mubr.f32.mxu0 0.0
    %3074 = vmatmul.mubr.f32.gmra.mxu0 %v734
    %v3075 = vpop.f32.mrf.mxu0
    %v3076 = vadd.f32 0.0, %v3075
    %v3077 = vpop.f32.mrf.mxu0
    %3078 = vmatprep.mubr.f32.mxu0 0.0
    %3079 = vmatmul.mubr.f32.gmra.mxu0 %v735
    %v3080 = vpop.f32.mrf.mxu0
    %v3081 = vadd.f32 0.0, %v3080
    %v3082 = vpop.f32.mrf.mxu0
    %3083 = vmatprep.mubr.f32.mxu0 0.0
    %3084 = vmatmul.mubr.f32.gmra.mxu0 %v736
    %v3085 = vpop.f32.mrf.mxu0
    %v3086 = vadd.f32 0.0, %v3085
    %v3087 = vpop.f32.mrf.mxu0
    %3088 = vmatprep.mubr.f32.mxu0 0.0
    %3089 = vmatmul.mubr.f32.gmra.mxu0 %v737
    %v3090 = vpop.f32.mrf.mxu0
    %v3091 = vadd.f32 0.0, %v3090
    %v3092 = vpop.f32.mrf.mxu0
    %3093 = vmatprep.mubr.f32.mxu0 0.0
    %3094 = vmatmul.mubr.f32.gmra.mxu0 %v738
    %v3095 = vpop.f32.mrf.mxu0
    %v3096 = vadd.f32 0.0, %v3095
    %v3097 = vpop.f32.mrf.mxu0
    %3098 = vmatprep.mubr.f32.mxu0 0.0
    %3099 = vmatmul.mubr.f32.gmra.mxu0 %v739
    %v3100 = vpop.f32.mrf.mxu0
    %v3101 = vadd.f32 0.0, %v3100
    %v3102 = vpop.f32.mrf.mxu0
    %3103 = vmatprep.mubr.f32.mxu0 0.0
    %3104 = vmatmul.mubr.f32.gmra.mxu0 %v707
    %v3105 = vpop.f32.mrf.mxu0
    %v3106 = vadd.f32 0.0, %v3105
    %v3107 = vpop.f32.mrf.mxu0
    %3108 = vdwg.mxu0
    %v3109 = vadd.f32 %v2835, %v2951
    %v3110 = vadd.f32 %v2836, %v2956
    %v3111 = vadd.f32 %v2837, %v2961
    %v3112 = vadd.f32 %v2838, %v2966
    %v3113 = vadd.f32 %v2839, %v2971
    %v3114 = vadd.f32 %v2840, %v2976
    %v3115 = vadd.f32 %v2841, %v2981
    %v3116 = vadd.f32 %v2842, %v2986
    %v3117 = vadd.f32 %v2843, %v2991
    %v3118 = vadd.f32 %v2844, %v2996
    %v3119 = vadd.f32 %v2845, %v3001
    %v3120 = vadd.f32 %v2846, %v3006
    %v3121 = vadd.f32 %v2847, %v3011
    %v3122 = vadd.f32 %v2848, %v3016
    %v3123 = vadd.f32 %v2849, %v3021
    %v3124 = vadd.f32 %v2850, %v3026
    %v3125 = vadd.f32 %v2851, %v3031
    %v3126 = vadd.f32 %v2852, %v3036
    %v3127 = vadd.f32 %v2853, %v3041
    %v3128 = vadd.f32 %v2854, %v3046
    %v3129 = vadd.f32 %v2855, %v3051
    %v3130 = vadd.f32 %v2856, %v3056
    %v3131 = vadd.f32 %v2857, %v3061
    %v3132 = vadd.f32 %v2858, %v3066
    %v3133 = vadd.f32 %v2859, %v3071
    %v3134 = vadd.f32 %v2860, %v3076
    %v3135 = vadd.f32 %v2861, %v3081
    %v3136 = vadd.f32 %v2862, %v3086
    %v3137 = vadd.f32 %v2863, %v3091
    %v3138 = vadd.f32 %v2864, %v3096
    %v3139 = vadd.f32 %v2865, %v3101
    %v3140 = vadd.f32 %v2866, %v3106
    %v3142 = vlaneseq
    %v3143 = vshrl.u32 %v3142, 7
    %v3144 = vsub.s32 0, %v3143
    %v3145 = vrot.slane %v372, %v3144
    %v3147 = vadd.f32 %v3109, %v3145
    %v3148 = vadd.f32 %v3110, %v3145
    %v3149 = vadd.f32 %v3111, %v3145
    %v3150 = vadd.f32 %v3112, %v3145
    %v3151 = vadd.f32 %v3113, %v3145
    %v3152 = vadd.f32 %v3114, %v3145
    %v3153 = vadd.f32 %v3115, %v3145
    %v3154 = vadd.f32 %v3116, %v3145
    %v3155 = vadd.f32 %v3117, %v3145
    %v3156 = vadd.f32 %v3118, %v3145
    %v3157 = vadd.f32 %v3119, %v3145
    %v3158 = vadd.f32 %v3120, %v3145
    %v3159 = vadd.f32 %v3121, %v3145
    %v3160 = vadd.f32 %v3122, %v3145
    %v3161 = vadd.f32 %v3123, %v3145
    %v3162 = vadd.f32 %v3124, %v3145
    %v3163 = vadd.f32 %v3125, %v3145
    %v3164 = vadd.f32 %v3126, %v3145
    %v3165 = vadd.f32 %v3127, %v3145
    %v3166 = vadd.f32 %v3128, %v3145
    %v3167 = vadd.f32 %v3129, %v3145
    %v3168 = vadd.f32 %v3130, %v3145
    %v3169 = vadd.f32 %v3131, %v3145
    %v3170 = vadd.f32 %v3132, %v3145
    %v3171 = vadd.f32 %v3133, %v3145
    %v3172 = vadd.f32 %v3134, %v3145
    %v3173 = vadd.f32 %v3135, %v3145
    %v3174 = vadd.f32 %v3136, %v3145
    %v3175 = vadd.f32 %v3137, %v3145
    %v3176 = vadd.f32 %v3138, %v3145
    %v3177 = vadd.f32 %v3139, %v3145
    %v3178 = vadd.f32 %v3140, %v3145
    %v3179 = vld [vmem:[%s5] sm:$0x1]
    %v3180 = vld [vmem:[%s6] sm:$0x1]
    %v3181 = vadd.f32 %v3147, %v3148
    %v3182 = vadd.f32 %v3181, %v3149
    %v3183 = vadd.f32 %v3182, %v3150
    %v3184 = vadd.f32 %v3183, %v3151
    %v3185 = vadd.f32 %v3184, %v3152
    %v3186 = vadd.f32 %v3185, %v3153
    %v3187 = vadd.f32 %v3186, %v3154
    %v3188 = vadd.f32 %v3187, %v3155
    %v3189 = vadd.f32 %v3188, %v3156
    %v3190 = vadd.f32 %v3189, %v3157
    %v3191 = vadd.f32 %v3190, %v3158
    %v3192 = vadd.f32 %v3191, %v3159
    %v3193 = vadd.f32 %v3192, %v3160
    %v3194 = vadd.f32 %v3193, %v3161
    %v3195 = vadd.f32 %v3194, %v3162
    %v3196 = vadd.f32 %v3195, %v3163
    %v3197 = vadd.f32 %v3196, %v3164
    %v3198 = vadd.f32 %v3197, %v3165
    %v3199 = vadd.f32 %v3198, %v3166
    %v3200 = vadd.f32 %v3199, %v3167
    %v3201 = vadd.f32 %v3200, %v3168
    %v3202 = vadd.f32 %v3201, %v3169
    %v3203 = vadd.f32 %v3202, %v3170
    %v3204 = vadd.f32 %v3203, %v3171
    %v3205 = vadd.f32 %v3204, %v3172
    %v3206 = vadd.f32 %v3205, %v3173
    %v3207 = vadd.f32 %v3206, %v3174
    %v3208 = vadd.f32 %v3207, %v3175
    %v3209 = vadd.f32 %v3208, %v3176
    %v3210 = vadd.f32 %v3209, %v3177
    %v3211 = vadd.f32 %v3210, %v3178
    %v3212 = vrot.slane %v3211, 4
    %v3213 = vadd.f32 %v3211, %v3212
    %v3214 = vrot.slane %v3213, 2
    %v3215 = vadd.f32 %v3213, %v3214
    %v3216 = vrot.slane %v3215, 1
    %v3217 = vadd.f32 %v3215, %v3216
    %3218 = vrot.lane.b32.xlu0 %v3217, 64
    %v3219 = vpop.permute.xlu0 %3218
    %v3220 = vadd.f32 %v3217, %v3219
    %v3221 = vmul.f32 %v3220, 0.001953125
    %v3222 = vlaneseq
    %v3223 = vshrl.u32 %v3222, 7
    %v3224 = vsub.s32 0, %v3223
    %v3225 = vrot.slane %v3221, %v3224
    %v3226 = vsub.f32 %v3147, %v3225
    %v3227 = vsub.f32 %v3148, %v3225
    %v3228 = vsub.f32 %v3149, %v3225
    %v3229 = vsub.f32 %v3150, %v3225
    %v3230 = vsub.f32 %v3151, %v3225
    %v3231 = vsub.f32 %v3152, %v3225
    %v3232 = vsub.f32 %v3153, %v3225
    %v3233 = vsub.f32 %v3154, %v3225
    %v3234 = vsub.f32 %v3155, %v3225
    %v3235 = vsub.f32 %v3156, %v3225
    %v3236 = vsub.f32 %v3157, %v3225
    %v3237 = vsub.f32 %v3158, %v3225
    %v3238 = vsub.f32 %v3159, %v3225
    %v3239 = vsub.f32 %v3160, %v3225
    %v3240 = vsub.f32 %v3161, %v3225
    %v3241 = vsub.f32 %v3162, %v3225
    %v3242 = vsub.f32 %v3163, %v3225
    %v3243 = vsub.f32 %v3164, %v3225
    %v3244 = vsub.f32 %v3165, %v3225
    %v3245 = vsub.f32 %v3166, %v3225
    %v3246 = vsub.f32 %v3167, %v3225
    %v3247 = vsub.f32 %v3168, %v3225
    %v3248 = vsub.f32 %v3169, %v3225
    %v3249 = vsub.f32 %v3170, %v3225
    %v3250 = vsub.f32 %v3171, %v3225
    %v3251 = vsub.f32 %v3172, %v3225
    %v3252 = vsub.f32 %v3173, %v3225
    %v3253 = vsub.f32 %v3174, %v3225
    %v3254 = vsub.f32 %v3175, %v3225
    %v3255 = vsub.f32 %v3176, %v3225
    %v3256 = vsub.f32 %v3177, %v3225
    %v3257 = vsub.f32 %v3178, %v3225
    %v3258 = vmul.f32 %v3226, %v3226
    %v3259 = vmul.f32 %v3227, %v3227
    %v3260 = vmul.f32 %v3228, %v3228
    %v3261 = vmul.f32 %v3229, %v3229
    %v3262 = vmul.f32 %v3230, %v3230
    %v3263 = vmul.f32 %v3231, %v3231
    %v3264 = vmul.f32 %v3232, %v3232
    %v3265 = vmul.f32 %v3233, %v3233
    %v3266 = vmul.f32 %v3234, %v3234
    %v3267 = vmul.f32 %v3235, %v3235
    %v3268 = vmul.f32 %v3236, %v3236
    %v3269 = vmul.f32 %v3237, %v3237
    %v3270 = vmul.f32 %v3238, %v3238
    %v3271 = vmul.f32 %v3239, %v3239
    %v3272 = vmul.f32 %v3240, %v3240
    %v3273 = vmul.f32 %v3241, %v3241
    %v3274 = vmul.f32 %v3242, %v3242
    %v3275 = vmul.f32 %v3243, %v3243
    %v3276 = vmul.f32 %v3244, %v3244
    %v3277 = vmul.f32 %v3245, %v3245
    %v3278 = vmul.f32 %v3246, %v3246
    %v3279 = vmul.f32 %v3247, %v3247
    %v3280 = vmul.f32 %v3248, %v3248
    %v3281 = vmul.f32 %v3249, %v3249
    %v3282 = vmul.f32 %v3250, %v3250
    %v3283 = vmul.f32 %v3251, %v3251
    %v3284 = vmul.f32 %v3252, %v3252
    %v3285 = vmul.f32 %v3253, %v3253
    %v3286 = vmul.f32 %v3254, %v3254
    %v3287 = vmul.f32 %v3255, %v3255
    %v3288 = vmul.f32 %v3256, %v3256
    %v3289 = vmul.f32 %v3257, %v3257
    %v3290 = vadd.f32 %v3258, %v3259
    %v3291 = vadd.f32 %v3290, %v3260
    %v3292 = vadd.f32 %v3291, %v3261
    %v3293 = vadd.f32 %v3292, %v3262
    %v3294 = vadd.f32 %v3293, %v3263
    %v3295 = vadd.f32 %v3294, %v3264
    %v3296 = vadd.f32 %v3295, %v3265
    %v3297 = vadd.f32 %v3296, %v3266
    %v3298 = vadd.f32 %v3297, %v3267
    %v3299 = vadd.f32 %v3298, %v3268
    %v3300 = vadd.f32 %v3299, %v3269
    %v3301 = vadd.f32 %v3300, %v3270
    %v3302 = vadd.f32 %v3301, %v3271
    %v3303 = vadd.f32 %v3302, %v3272
    %v3304 = vadd.f32 %v3303, %v3273
    %v3305 = vadd.f32 %v3304, %v3274
    %v3306 = vadd.f32 %v3305, %v3275
    %v3307 = vadd.f32 %v3306, %v3276
    %v3308 = vadd.f32 %v3307, %v3277
    %v3309 = vadd.f32 %v3308, %v3278
    %v3310 = vadd.f32 %v3309, %v3279
    %v3311 = vadd.f32 %v3310, %v3280
    %v3312 = vadd.f32 %v3311, %v3281
    %v3313 = vadd.f32 %v3312, %v3282
    %v3314 = vadd.f32 %v3313, %v3283
    %v3315 = vadd.f32 %v3314, %v3284
    %v3316 = vadd.f32 %v3315, %v3285
    %v3317 = vadd.f32 %v3316, %v3286
    %v3318 = vadd.f32 %v3317, %v3287
    %v3319 = vadd.f32 %v3318, %v3288
    %v3320 = vadd.f32 %v3319, %v3289
    %v3321 = vrot.slane %v3320, 4
    %v3322 = vadd.f32 %v3320, %v3321
    %v3323 = vrot.slane %v3322, 2
    %v3324 = vadd.f32 %v3322, %v3323
    %v3325 = vrot.slane %v3324, 1
    %v3326 = vadd.f32 %v3324, %v3325
    %3327 = vrot.lane.b32.xlu0 %v3326, 64
    %v3328 = vpop.permute.xlu0 %3327
    %v3329 = vadd.f32 %v3326, %v3328
    %v3330 = vmul.f32 %v3329, 0.001953125
    %v3331 = vadd.f32 %v3330, 1e-05
    %v3332 = vrsqrt.pop %v3331
    %v3333 = vmul.f32 %v3179, %v3332
    %v3335 = vlaneseq
    %v3336 = vshrl.u32 %v3335, 7
    %v3337 = vsub.s32 0, %v3336
    %v3338 = vrot.slane %v3333, %v3337
    %v3340 = vmul.f32 %v3226, %v3338
    %v3341 = vmul.f32 %v3227, %v3338
    %v3342 = vmul.f32 %v3228, %v3338
    %v3343 = vmul.f32 %v3229, %v3338
    %v3344 = vmul.f32 %v3230, %v3338
    %v3345 = vmul.f32 %v3231, %v3338
    %v3346 = vmul.f32 %v3232, %v3338
    %v3347 = vmul.f32 %v3233, %v3338
    %v3348 = vmul.f32 %v3234, %v3338
    %v3349 = vmul.f32 %v3235, %v3338
    %v3350 = vmul.f32 %v3236, %v3338
    %v3351 = vmul.f32 %v3237, %v3338
    %v3352 = vmul.f32 %v3238, %v3338
    %v3353 = vmul.f32 %v3239, %v3338
    %v3354 = vmul.f32 %v3240, %v3338
    %v3355 = vmul.f32 %v3241, %v3338
    %v3356 = vmul.f32 %v3242, %v3338
    %v3357 = vmul.f32 %v3243, %v3338
    %v3358 = vmul.f32 %v3244, %v3338
    %v3359 = vmul.f32 %v3245, %v3338
    %v3360 = vmul.f32 %v3246, %v3338
    %v3361 = vmul.f32 %v3247, %v3338
    %v3362 = vmul.f32 %v3248, %v3338
    %v3363 = vmul.f32 %v3249, %v3338
    %v3364 = vmul.f32 %v3250, %v3338
    %v3365 = vmul.f32 %v3251, %v3338
    %v3366 = vmul.f32 %v3252, %v3338
    %v3367 = vmul.f32 %v3253, %v3338
    %v3368 = vmul.f32 %v3254, %v3338
    %v3369 = vmul.f32 %v3255, %v3338
    %v3370 = vmul.f32 %v3256, %v3338
    %v3371 = vmul.f32 %v3257, %v3338
    %v3373 = vlaneseq
    %v3374 = vshrl.u32 %v3373, 7
    %v3375 = vsub.s32 0, %v3374
    %v3376 = vrot.slane %v3180, %v3375
    %v3378 = vadd.f32 %v3340, %v3376
    %v3379 = vadd.f32 %v3341, %v3376
    %v3380 = vadd.f32 %v3342, %v3376
    %v3381 = vadd.f32 %v3343, %v3376
    %v3382 = vadd.f32 %v3344, %v3376
    %v3383 = vadd.f32 %v3345, %v3376
    %v3384 = vadd.f32 %v3346, %v3376
    %v3385 = vadd.f32 %v3347, %v3376
    %v3386 = vadd.f32 %v3348, %v3376
    %v3387 = vadd.f32 %v3349, %v3376
    %v3388 = vadd.f32 %v3350, %v3376
    %v3389 = vadd.f32 %v3351, %v3376
    %v3390 = vadd.f32 %v3352, %v3376
    %v3391 = vadd.f32 %v3353, %v3376
    %v3392 = vadd.f32 %v3354, %v3376
    %v3393 = vadd.f32 %v3355, %v3376
    %v3394 = vadd.f32 %v3356, %v3376
    %v3395 = vadd.f32 %v3357, %v3376
    %v3396 = vadd.f32 %v3358, %v3376
    %v3397 = vadd.f32 %v3359, %v3376
    %v3398 = vadd.f32 %v3360, %v3376
    %v3399 = vadd.f32 %v3361, %v3376
    %v3400 = vadd.f32 %v3362, %v3376
    %v3401 = vadd.f32 %v3363, %v3376
    %v3402 = vadd.f32 %v3364, %v3376
    %v3403 = vadd.f32 %v3365, %v3376
    %v3404 = vadd.f32 %v3366, %v3376
    %v3405 = vadd.f32 %v3367, %v3376
    %v3406 = vadd.f32 %v3368, %v3376
    %v3407 = vadd.f32 %v3369, %v3376
    %v3408 = vadd.f32 %v3370, %v3376
    %v3409 = vadd.f32 %v3371, %v3376
    %v3410 = vmax.f32 %v3378, 0.0
    %v3411 = vmax.f32 %v3379, 0.0
    %v3412 = vmax.f32 %v3380, 0.0
    %v3413 = vmax.f32 %v3381, 0.0
    %v3414 = vmax.f32 %v3382, 0.0
    %v3415 = vmax.f32 %v3383, 0.0
    %v3416 = vmax.f32 %v3384, 0.0
    %v3417 = vmax.f32 %v3385, 0.0
    %v3418 = vmax.f32 %v3386, 0.0
    %v3419 = vmax.f32 %v3387, 0.0
    %v3420 = vmax.f32 %v3388, 0.0
    %v3421 = vmax.f32 %v3389, 0.0
    %v3422 = vmax.f32 %v3390, 0.0
    %v3423 = vmax.f32 %v3391, 0.0
    %v3424 = vmax.f32 %v3392, 0.0
    %v3425 = vmax.f32 %v3393, 0.0
    %v3426 = vmax.f32 %v3394, 0.0
    %v3427 = vmax.f32 %v3395, 0.0
    %v3428 = vmax.f32 %v3396, 0.0
    %v3429 = vmax.f32 %v3397, 0.0
    %v3430 = vmax.f32 %v3398, 0.0
    %v3431 = vmax.f32 %v3399, 0.0
    %v3432 = vmax.f32 %v3400, 0.0
    %v3433 = vmax.f32 %v3401, 0.0
    %v3434 = vmax.f32 %v3402, 0.0
    %v3435 = vmax.f32 %v3403, 0.0
    %v3436 = vmax.f32 %v3404, 0.0
    %v3437 = vmax.f32 %v3405, 0.0
    %v3438 = vmax.f32 %v3406, 0.0
    %v3439 = vmax.f32 %v3407, 0.0
    %v3440 = vmax.f32 %v3408, 0.0
    %v3441 = vmax.f32 %v3409, 0.0
    %v3442 = vld [vmem:[%s8] sm:$0x1]
    %3443 = vrot.lane.b32.xlu0 %v3410, 64
    %v3444 = vpop.permute.xlu0 %3443
    %3445 = vrot.lane.b32.xlu0 %v3411, 64
    %v3446 = vpop.permute.xlu0 %3445
    %3447 = vrot.lane.b32.xlu0 %v3412, 64
    %v3448 = vpop.permute.xlu0 %3447
    %3449 = vrot.lane.b32.xlu0 %v3413, 64
    %v3450 = vpop.permute.xlu0 %3449
    %3451 = vrot.lane.b32.xlu0 %v3414, 64
    %v3452 = vpop.permute.xlu0 %3451
    %3453 = vrot.lane.b32.xlu0 %v3415, 64
    %v3454 = vpop.permute.xlu0 %3453
    %3455 = vrot.lane.b32.xlu0 %v3416, 64
    %v3456 = vpop.permute.xlu0 %3455
    %3457 = vrot.lane.b32.xlu0 %v3417, 64
    %v3458 = vpop.permute.xlu0 %3457
    %3459 = vrot.lane.b32.xlu0 %v3418, 64
    %v3460 = vpop.permute.xlu0 %3459
    %3461 = vrot.lane.b32.xlu0 %v3419, 64
    %v3462 = vpop.permute.xlu0 %3461
    %3463 = vrot.lane.b32.xlu0 %v3420, 64
    %v3464 = vpop.permute.xlu0 %3463
    %3465 = vrot.lane.b32.xlu0 %v3421, 64
    %v3466 = vpop.permute.xlu0 %3465
    %3467 = vrot.lane.b32.xlu0 %v3422, 64
    %v3468 = vpop.permute.xlu0 %3467
    %3469 = vrot.lane.b32.xlu0 %v3423, 64
    %v3470 = vpop.permute.xlu0 %3469
    %3471 = vrot.lane.b32.xlu0 %v3424, 64
    %v3472 = vpop.permute.xlu0 %3471
    %3473 = vrot.lane.b32.xlu0 %v3425, 64
    %v3474 = vpop.permute.xlu0 %3473
    %3475 = vrot.lane.b32.xlu0 %v3426, 64
    %v3476 = vpop.permute.xlu0 %3475
    %3477 = vrot.lane.b32.xlu0 %v3427, 64
    %v3478 = vpop.permute.xlu0 %3477
    %3479 = vrot.lane.b32.xlu0 %v3428, 64
    %v3480 = vpop.permute.xlu0 %3479
    %3481 = vrot.lane.b32.xlu0 %v3429, 64
    %v3482 = vpop.permute.xlu0 %3481
    %3483 = vrot.lane.b32.xlu0 %v3430, 64
    %v3484 = vpop.permute.xlu0 %3483
    %3485 = vrot.lane.b32.xlu0 %v3431, 64
    %v3486 = vpop.permute.xlu0 %3485
    %3487 = vrot.lane.b32.xlu0 %v3432, 64
    %v3488 = vpop.permute.xlu0 %3487
    %3489 = vrot.lane.b32.xlu0 %v3433, 64
    %v3490 = vpop.permute.xlu0 %3489
    %3491 = vrot.lane.b32.xlu0 %v3434, 64
    %v3492 = vpop.permute.xlu0 %3491
    %3493 = vrot.lane.b32.xlu0 %v3435, 64
    %v3494 = vpop.permute.xlu0 %3493
    %3495 = vrot.lane.b32.xlu0 %v3436, 64
    %v3496 = vpop.permute.xlu0 %3495
    %3497 = vrot.lane.b32.xlu0 %v3437, 64
    %v3498 = vpop.permute.xlu0 %3497
    %3499 = vrot.lane.b32.xlu0 %v3438, 64
    %v3500 = vpop.permute.xlu0 %3499
    %3501 = vrot.lane.b32.xlu0 %v3439, 64
    %v3502 = vpop.permute.xlu0 %3501
    %3503 = vrot.lane.b32.xlu0 %v3440, 64
    %v3504 = vpop.permute.xlu0 %3503
    %3505 = vrot.lane.b32.xlu0 %v3441, 64
    %v3506 = vpop.permute.xlu0 %3505
    %v3539 = vrot.slane %v3444, 7
    %v3540 = vrot.slane %v3446, 7
    %v3541 = vrot.slane %v3448, 7
    %v3542 = vrot.slane %v3450, 7
    %v3543 = vrot.slane %v3452, 7
    %v3544 = vrot.slane %v3454, 7
    %v3545 = vrot.slane %v3456, 7
    %v3546 = vrot.slane %v3458, 7
    %v3547 = vrot.slane %v3460, 7
    %v3548 = vrot.slane %v3462, 7
    %v3549 = vrot.slane %v3464, 7
    %v3550 = vrot.slane %v3466, 7
    %v3551 = vrot.slane %v3468, 7
    %v3552 = vrot.slane %v3470, 7
    %v3553 = vrot.slane %v3472, 7
    %v3554 = vrot.slane %v3474, 7
    %v3555 = vrot.slane %v3476, 7
    %v3556 = vrot.slane %v3478, 7
    %v3557 = vrot.slane %v3480, 7
    %v3558 = vrot.slane %v3482, 7
    %v3559 = vrot.slane %v3484, 7
    %v3560 = vrot.slane %v3486, 7
    %v3561 = vrot.slane %v3488, 7
    %v3562 = vrot.slane %v3490, 7
    %v3563 = vrot.slane %v3492, 7
    %v3564 = vrot.slane %v3494, 7
    %v3565 = vrot.slane %v3496, 7
    %v3566 = vrot.slane %v3498, 7
    %v3567 = vrot.slane %v3500, 7
    %v3568 = vrot.slane %v3502, 7
    %v3569 = vrot.slane %v3504, 7
    %v3570 = vrot.slane %v3506, 7
    %v3603 = vsel %vm538, 0.0, %v3539
    %v3604 = vsel %vm538, 0.0, %v3540
    %v3605 = vsel %vm538, 0.0, %v3541
    %v3606 = vsel %vm538, 0.0, %v3542
    %v3607 = vsel %vm538, 0.0, %v3543
    %v3608 = vsel %vm538, 0.0, %v3544
    %v3609 = vsel %vm538, 0.0, %v3545
    %v3610 = vsel %vm538, 0.0, %v3546
    %v3611 = vsel %vm538, 0.0, %v3547
    %v3612 = vsel %vm538, 0.0, %v3548
    %v3613 = vsel %vm538, 0.0, %v3549
    %v3614 = vsel %vm538, 0.0, %v3550
    %v3615 = vsel %vm538, 0.0, %v3551
    %v3616 = vsel %vm538, 0.0, %v3552
    %v3617 = vsel %vm538, 0.0, %v3553
    %v3618 = vsel %vm538, 0.0, %v3554
    %v3619 = vsel %vm538, 0.0, %v3555
    %v3620 = vsel %vm538, 0.0, %v3556
    %v3621 = vsel %vm538, 0.0, %v3557
    %v3622 = vsel %vm538, 0.0, %v3558
    %v3623 = vsel %vm538, 0.0, %v3559
    %v3624 = vsel %vm538, 0.0, %v3560
    %v3625 = vsel %vm538, 0.0, %v3561
    %v3626 = vsel %vm538, 0.0, %v3562
    %v3627 = vsel %vm538, 0.0, %v3563
    %v3628 = vsel %vm538, 0.0, %v3564
    %v3629 = vsel %vm538, 0.0, %v3565
    %v3630 = vsel %vm538, 0.0, %v3566
    %v3631 = vsel %vm538, 0.0, %v3567
    %v3632 = vsel %vm538, 0.0, %v3568
    %v3633 = vsel %vm538, 0.0, %v3569
    %v3634 = vsel %vm538, 0.0, %v3570
    %v3635 = vrot.slane %v3444, 1
    %v3636 = vrot.slane %v3446, 1
    %v3637 = vrot.slane %v3448, 1
    %v3638 = vrot.slane %v3450, 1
    %v3639 = vrot.slane %v3452, 1
    %v3640 = vrot.slane %v3454, 1
    %v3641 = vrot.slane %v3456, 1
    %v3642 = vrot.slane %v3458, 1
    %v3643 = vrot.slane %v3460, 1
    %v3644 = vrot.slane %v3462, 1
    %v3645 = vrot.slane %v3464, 1
    %v3646 = vrot.slane %v3466, 1
    %v3647 = vrot.slane %v3468, 1
    %v3648 = vrot.slane %v3470, 1
    %v3649 = vrot.slane %v3472, 1
    %v3650 = vrot.slane %v3474, 1
    %v3651 = vrot.slane %v3476, 1
    %v3652 = vrot.slane %v3478, 1
    %v3653 = vrot.slane %v3480, 1
    %v3654 = vrot.slane %v3482, 1
    %v3655 = vrot.slane %v3484, 1
    %v3656 = vrot.slane %v3486, 1
    %v3657 = vrot.slane %v3488, 1
    %v3658 = vrot.slane %v3490, 1
    %v3659 = vrot.slane %v3492, 1
    %v3660 = vrot.slane %v3494, 1
    %v3661 = vrot.slane %v3496, 1
    %v3662 = vrot.slane %v3498, 1
    %v3663 = vrot.slane %v3500, 1
    %v3664 = vrot.slane %v3502, 1
    %v3665 = vrot.slane %v3504, 1
    %v3666 = vrot.slane %v3506, 1
    %v3699 = vsel %vm638, %v3635, 0.0
    %v3700 = vsel %vm638, %v3636, 0.0
    %v3701 = vsel %vm638, %v3637, 0.0
    %v3702 = vsel %vm638, %v3638, 0.0
    %v3703 = vsel %vm638, %v3639, 0.0
    %v3704 = vsel %vm638, %v3640, 0.0
    %v3705 = vsel %vm638, %v3641, 0.0
    %v3706 = vsel %vm638, %v3642, 0.0
    %v3707 = vsel %vm638, %v3643, 0.0
    %v3708 = vsel %vm638, %v3644, 0.0
    %v3709 = vsel %vm638, %v3645, 0.0
    %v3710 = vsel %vm638, %v3646, 0.0
    %v3711 = vsel %vm638, %v3647, 0.0
    %v3712 = vsel %vm638, %v3648, 0.0
    %v3713 = vsel %vm638, %v3649, 0.0
    %v3714 = vsel %vm638, %v3650, 0.0
    %v3715 = vsel %vm638, %v3651, 0.0
    %v3716 = vsel %vm638, %v3652, 0.0
    %v3717 = vsel %vm638, %v3653, 0.0
    %v3718 = vsel %vm638, %v3654, 0.0
    %v3719 = vsel %vm638, %v3655, 0.0
    %v3720 = vsel %vm638, %v3656, 0.0
    %v3721 = vsel %vm638, %v3657, 0.0
    %v3722 = vsel %vm638, %v3658, 0.0
    %v3723 = vsel %vm638, %v3659, 0.0
    %v3724 = vsel %vm638, %v3660, 0.0
    %v3725 = vsel %vm638, %v3661, 0.0
    %v3726 = vsel %vm638, %v3662, 0.0
    %v3727 = vsel %vm638, %v3663, 0.0
    %v3728 = vsel %vm638, %v3664, 0.0
    %v3729 = vsel %vm638, %v3665, 0.0
    %v3730 = vsel %vm638, %v3666, 0.0
    %v3731 = vsel %vm673, %v3603, %v3444
    %v3732 = vsel %vm673, %v3604, %v3446
    %v3733 = vsel %vm673, %v3605, %v3448
    %v3734 = vsel %vm673, %v3606, %v3450
    %v3735 = vsel %vm673, %v3607, %v3452
    %v3736 = vsel %vm673, %v3608, %v3454
    %v3737 = vsel %vm673, %v3609, %v3456
    %v3738 = vsel %vm673, %v3610, %v3458
    %v3739 = vsel %vm673, %v3611, %v3460
    %v3740 = vsel %vm673, %v3612, %v3462
    %v3741 = vsel %vm673, %v3613, %v3464
    %v3742 = vsel %vm673, %v3614, %v3466
    %v3743 = vsel %vm673, %v3615, %v3468
    %v3744 = vsel %vm673, %v3616, %v3470
    %v3745 = vsel %vm673, %v3617, %v3472
    %v3746 = vsel %vm673, %v3618, %v3474
    %v3747 = vsel %vm673, %v3619, %v3476
    %v3748 = vsel %vm673, %v3620, %v3478
    %v3749 = vsel %vm673, %v3621, %v3480
    %v3750 = vsel %vm673, %v3622, %v3482
    %v3751 = vsel %vm673, %v3623, %v3484
    %v3752 = vsel %vm673, %v3624, %v3486
    %v3753 = vsel %vm673, %v3625, %v3488
    %v3754 = vsel %vm673, %v3626, %v3490
    %v3755 = vsel %vm673, %v3627, %v3492
    %v3756 = vsel %vm673, %v3628, %v3494
    %v3757 = vsel %vm673, %v3629, %v3496
    %v3758 = vsel %vm673, %v3630, %v3498
    %v3759 = vsel %vm673, %v3631, %v3500
    %v3760 = vsel %vm673, %v3632, %v3502
    %v3761 = vsel %vm673, %v3633, %v3504
    %v3762 = vsel %vm673, %v3634, %v3506
    %v3763 = vsel %vm673, %v3444, %v3699
    %v3764 = vsel %vm673, %v3446, %v3700
    %v3765 = vsel %vm673, %v3448, %v3701
    %v3766 = vsel %vm673, %v3450, %v3702
    %v3767 = vsel %vm673, %v3452, %v3703
    %v3768 = vsel %vm673, %v3454, %v3704
    %v3769 = vsel %vm673, %v3456, %v3705
    %v3770 = vsel %vm673, %v3458, %v3706
    %v3771 = vsel %vm673, %v3460, %v3707
    %v3772 = vsel %vm673, %v3462, %v3708
    %v3773 = vsel %vm673, %v3464, %v3709
    %v3774 = vsel %vm673, %v3466, %v3710
    %v3775 = vsel %vm673, %v3468, %v3711
    %v3776 = vsel %vm673, %v3470, %v3712
    %v3777 = vsel %vm673, %v3472, %v3713
    %v3778 = vsel %vm673, %v3474, %v3714
    %v3779 = vsel %vm673, %v3476, %v3715
    %v3780 = vsel %vm673, %v3478, %v3716
    %v3781 = vsel %vm673, %v3480, %v3717
    %v3782 = vsel %vm673, %v3482, %v3718
    %v3783 = vsel %vm673, %v3484, %v3719
    %v3784 = vsel %vm673, %v3486, %v3720
    %v3785 = vsel %vm673, %v3488, %v3721
    %v3786 = vsel %vm673, %v3490, %v3722
    %v3787 = vsel %vm673, %v3492, %v3723
    %v3788 = vsel %vm673, %v3494, %v3724
    %v3789 = vsel %vm673, %v3496, %v3725
    %v3790 = vsel %vm673, %v3498, %v3726
    %v3791 = vsel %vm673, %v3500, %v3727
    %v3792 = vsel %vm673, %v3502, %v3728
    %v3793 = vsel %vm673, %v3504, %v3729
    %v3794 = vsel %vm673, %v3506, %v3730
    %v3795 = vld [vmem:[#allocation7] sm:$0xff]
    %v3796 = vld [vmem:[#allocation7 + $0x8] sm:$0xff]
    %v3797 = vld [vmem:[#allocation7 + $0x10] sm:$0xff]
    %v3798 = vld [vmem:[#allocation7 + $0x18] sm:$0xff]
    %v3799 = vld [vmem:[#allocation7 + $0x20] sm:$0xff]
    %v3800 = vld [vmem:[#allocation7 + $0x28] sm:$0xff]
    %v3801 = vld [vmem:[#allocation7 + $0x30] sm:$0xff]
    %v3802 = vld [vmem:[#allocation7 + $0x38] sm:$0xff]
    %v3803 = vld [vmem:[#allocation7 + $0x40] sm:$0xff]
    %v3804 = vld [vmem:[#allocation7 + $0x48] sm:$0xff]
    %v3805 = vld [vmem:[#allocation7 + $0x50] sm:$0xff]
    %v3806 = vld [vmem:[#allocation7 + $0x58] sm:$0xff]
    %v3807 = vld [vmem:[#allocation7 + $0x60] sm:$0xff]
    %v3808 = vld [vmem:[#allocation7 + $0x68] sm:$0xff]
    %v3809 = vld [vmem:[#allocation7 + $0x70] sm:$0xff]
    %v3810 = vld [vmem:[#allocation7 + $0x78] sm:$0xff]
    %s3811 = scalar_lea.vmem [#allocation7], 128
    %v3812 = vld [vmem:[%s3811] sm:$0xff]
    %v3813 = vld [vmem:[%s3811 + $0x8] sm:$0xff]
    %v3814 = vld [vmem:[%s3811 + $0x10] sm:$0xff]
    %v3815 = vld [vmem:[%s3811 + $0x18] sm:$0xff]
    %v3816 = vld [vmem:[%s3811 + $0x20] sm:$0xff]
    %v3817 = vld [vmem:[%s3811 + $0x28] sm:$0xff]
    %v3818 = vld [vmem:[%s3811 + $0x30] sm:$0xff]
    %v3819 = vld [vmem:[%s3811 + $0x38] sm:$0xff]
    %v3820 = vld [vmem:[%s3811 + $0x40] sm:$0xff]
    %v3821 = vld [vmem:[%s3811 + $0x48] sm:$0xff]
    %v3822 = vld [vmem:[%s3811 + $0x50] sm:$0xff]
    %v3823 = vld [vmem:[%s3811 + $0x58] sm:$0xff]
    %v3824 = vld [vmem:[%s3811 + $0x60] sm:$0xff]
    %v3825 = vld [vmem:[%s3811 + $0x68] sm:$0xff]
    %v3826 = vld [vmem:[%s3811 + $0x70] sm:$0xff]
    %v3827 = vld [vmem:[%s3811 + $0x78] sm:$0xff]
    %3828 = vmatprep.subr.mxu0 0.0
    %3829 = vmatpush1.msra.mxu0 %v3827
    %3830 = vmatprep.subr.mxu0 0.0
    %3831 = vmatpush1.msra.mxu0 %v3826
    %3832 = vmatprep.subr.mxu0 0.0
    %3833 = vmatpush1.msra.mxu0 %v3825
    %3834 = vmatprep.subr.mxu0 0.0
    %3835 = vmatpush1.msra.mxu0 %v3824
    %3836 = vmatprep.subr.mxu0 0.0
    %3837 = vmatpush1.msra.mxu0 %v3823
    %3838 = vmatprep.subr.mxu0 0.0
    %3839 = vmatpush1.msra.mxu0 %v3822
    %3840 = vmatprep.subr.mxu0 0.0
    %3841 = vmatpush1.msra.mxu0 %v3821
    %3842 = vmatprep.subr.mxu0 0.0
    %3843 = vmatpush1.msra.mxu0 %v3820
    %3844 = vmatprep.subr.mxu0 0.0
    %3845 = vmatpush1.msra.mxu0 %v3819
    %3846 = vmatprep.subr.mxu0 0.0
    %3847 = vmatpush1.msra.mxu0 %v3818
    %3848 = vmatprep.subr.mxu0 0.0
    %3849 = vmatpush1.msra.mxu0 %v3817
    %3850 = vmatprep.subr.mxu0 0.0
    %3851 = vmatpush1.msra.mxu0 %v3816
    %3852 = vmatprep.subr.mxu0 0.0
    %3853 = vmatpush1.msra.mxu0 %v3815
    %3854 = vmatprep.subr.mxu0 0.0
    %3855 = vmatpush1.msra.mxu0 %v3814
    %3856 = vmatprep.subr.mxu0 0.0
    %3857 = vmatpush1.msra.mxu0 %v3813
    %3858 = vmatprep.subr.mxu0 0.0
    %3859 = vmatpush1.msra.mxu0 %v3812
    %3860 = vmatprep.subr.mxu0 0.0
    %3861 = vmatpush2.msra.mxu0 0.0
    %3862 = vmatprep.subr.mxu0 0.0
    %3863 = vmatpush2.msra.mxu0 0.0
    %3864 = vmatprep.subr.mxu0 0.0
    %3865 = vmatpush2.msra.mxu0 0.0
    %3866 = vmatprep.subr.mxu0 0.0
    %3867 = vmatpush2.msra.mxu0 0.0
    %3868 = vmatprep.subr.mxu0 0.0
    %3869 = vmatpush2.msra.mxu0 0.0
    %3870 = vmatprep.subr.mxu0 0.0
    %3871 = vmatpush2.msra.mxu0 0.0
    %3872 = vmatprep.subr.mxu0 0.0
    %3873 = vmatpush2.msra.mxu0 0.0
    %3874 = vmatprep.subr.mxu0 0.0
    %3875 = vmatpush2.msra.mxu0 0.0
    %3876 = vmatprep.subr.mxu0 0.0
    %3877 = vmatpush2.msra.mxu0 0.0
    %3878 = vmatprep.subr.mxu0 0.0
    %3879 = vmatpush2.msra.mxu0 0.0
    %3880 = vmatprep.subr.mxu0 0.0
    %3881 = vmatpush2.msra.mxu0 0.0
    %3882 = vmatprep.subr.mxu0 0.0
    %3883 = vmatpush2.msra.mxu0 0.0
    %3884 = vmatprep.subr.mxu0 0.0
    %3885 = vmatpush2.msra.mxu0 0.0
    %3886 = vmatprep.subr.mxu0 0.0
    %3887 = vmatpush2.msra.mxu0 0.0
    %3888 = vmatprep.subr.mxu0 0.0
    %3889 = vmatpush2.msra.mxu0 0.0
    %3890 = vmatprep.subr.mxu0 0.0
    %3891 = vmatpush2.msra.mxu0 0.0
    %3892 = vmatprep.mubr.f32.mxu0 0.0
    %3893 = vmatmul.mubr.f32.gmra.mxu0 0.0
    %v3894 = vpop.f32.mrf.mxu0
    %v3895 = vadd.f32 0.0, %v3894
    %v3896 = vpop.f32.mrf.mxu0
    %3897 = vmatprep.mubr.f32.mxu0 0.0
    %3898 = vmatmul.mubr.f32.gmra.mxu0 %v3410
    %v3899 = vpop.f32.mrf.mxu0
    %v3900 = vadd.f32 0.0, %v3899
    %v3901 = vpop.f32.mrf.mxu0
    %3902 = vmatprep.mubr.f32.mxu0 0.0
    %3903 = vmatmul.mubr.f32.gmra.mxu0 %v3411
    %v3904 = vpop.f32.mrf.mxu0
    %v3905 = vadd.f32 0.0, %v3904
    %v3906 = vpop.f32.mrf.mxu0
    %3907 = vmatprep.mubr.f32.mxu0 0.0
    %3908 = vmatmul.mubr.f32.gmra.mxu0 %v3412
    %v3909 = vpop.f32.mrf.mxu0
    %v3910 = vadd.f32 0.0, %v3909
    %v3911 = vpop.f32.mrf.mxu0
    %3912 = vmatprep.mubr.f32.mxu0 0.0
    %3913 = vmatmul.mubr.f32.gmra.mxu0 %v3413
    %v3914 = vpop.f32.mrf.mxu0
    %v3915 = vadd.f32 0.0, %v3914
    %v3916 = vpop.f32.mrf.mxu0
    %3917 = vmatprep.mubr.f32.mxu0 0.0
    %3918 = vmatmul.mubr.f32.gmra.mxu0 %v3414
    %v3919 = vpop.f32.mrf.mxu0
    %v3920 = vadd.f32 0.0, %v3919
    %v3921 = vpop.f32.mrf.mxu0
    %3922 = vmatprep.mubr.f32.mxu0 0.0
    %3923 = vmatmul.mubr.f32.gmra.mxu0 %v3415
    %v3924 = vpop.f32.mrf.mxu0
    %v3925 = vadd.f32 0.0, %v3924
    %v3926 = vpop.f32.mrf.mxu0
    %3927 = vmatprep.mubr.f32.mxu0 0.0
    %3928 = vmatmul.mubr.f32.gmra.mxu0 %v3416
    %v3929 = vpop.f32.mrf.mxu0
    %v3930 = vadd.f32 0.0, %v3929
    %v3931 = vpop.f32.mrf.mxu0
    %3932 = vmatprep.mubr.f32.mxu0 0.0
    %3933 = vmatmul.mubr.f32.gmra.mxu0 %v3417
    %v3934 = vpop.f32.mrf.mxu0
    %v3935 = vadd.f32 0.0, %v3934
    %v3936 = vpop.f32.mrf.mxu0
    %3937 = vmatprep.mubr.f32.mxu0 0.0
    %3938 = vmatmul.mubr.f32.gmra.mxu0 %v3418
    %v3939 = vpop.f32.mrf.mxu0
    %v3940 = vadd.f32 0.0, %v3939
    %v3941 = vpop.f32.mrf.mxu0
    %3942 = vmatprep.mubr.f32.mxu0 0.0
    %3943 = vmatmul.mubr.f32.gmra.mxu0 %v3419
    %v3944 = vpop.f32.mrf.mxu0
    %v3945 = vadd.f32 0.0, %v3944
    %v3946 = vpop.f32.mrf.mxu0
    %3947 = vmatprep.mubr.f32.mxu0 0.0
    %3948 = vmatmul.mubr.f32.gmra.mxu0 %v3420
    %v3949 = vpop.f32.mrf.mxu0
    %v3950 = vadd.f32 0.0, %v3949
    %v3951 = vpop.f32.mrf.mxu0
    %3952 = vmatprep.mubr.f32.mxu0 0.0
    %3953 = vmatmul.mubr.f32.gmra.mxu0 %v3421
    %v3954 = vpop.f32.mrf.mxu0
    %v3955 = vadd.f32 0.0, %v3954
    %v3956 = vpop.f32.mrf.mxu0
    %3957 = vmatprep.mubr.f32.mxu0 0.0
    %3958 = vmatmul.mubr.f32.gmra.mxu0 %v3422
    %v3959 = vpop.f32.mrf.mxu0
    %v3960 = vadd.f32 0.0, %v3959
    %v3961 = vpop.f32.mrf.mxu0
    %3962 = vmatprep.mubr.f32.mxu0 0.0
    %3963 = vmatmul.mubr.f32.gmra.mxu0 %v3423
    %v3964 = vpop.f32.mrf.mxu0
    %v3965 = vadd.f32 0.0, %v3964
    %v3966 = vpop.f32.mrf.mxu0
    %3967 = vmatprep.mubr.f32.mxu0 0.0
    %3968 = vmatmul.mubr.f32.gmra.mxu0 %v3424
    %v3969 = vpop.f32.mrf.mxu0
    %v3970 = vadd.f32 0.0, %v3969
    %v3971 = vpop.f32.mrf.mxu0
    %3972 = vmatprep.mubr.f32.mxu0 0.0
    %3973 = vmatmul.mubr.f32.gmra.mxu0 0.0
    %v3974 = vpop.f32.mrf.mxu0
    %v3975 = vadd.f32 0.0, %v3974
    %v3976 = vpop.f32.mrf.mxu0
    %3977 = vmatprep.mubr.f32.mxu0 0.0
    %3978 = vmatmul.mubr.f32.gmra.mxu0 %v3426
    %v3979 = vpop.f32.mrf.mxu0
    %v3980 = vadd.f32 0.0, %v3979
    %v3981 = vpop.f32.mrf.mxu0
    %3982 = vmatprep.mubr.f32.mxu0 0.0
    %3983 = vmatmul.mubr.f32.gmra.mxu0 %v3427
    %v3984 = vpop.f32.mrf.mxu0
    %v3985 = vadd.f32 0.0, %v3984
    %v3986 = vpop.f32.mrf.mxu0
    %3987 = vmatprep.mubr.f32.mxu0 0.0
    %3988 = vmatmul.mubr.f32.gmra.mxu0 %v3428
    %v3989 = vpop.f32.mrf.mxu0
    %v3990 = vadd.f32 0.0, %v3989
    %v3991 = vpop.f32.mrf.mxu0
    %3992 = vmatprep.mubr.f32.mxu0 0.0
    %3993 = vmatmul.mubr.f32.gmra.mxu0 %v3429
    %v3994 = vpop.f32.mrf.mxu0
    %v3995 = vadd.f32 0.0, %v3994
    %v3996 = vpop.f32.mrf.mxu0
    %3997 = vmatprep.mubr.f32.mxu0 0.0
    %3998 = vmatmul.mubr.f32.gmra.mxu0 %v3430
    %v3999 = vpop.f32.mrf.mxu0
    %v4000 = vadd.f32 0.0, %v3999
    %v4001 = vpop.f32.mrf.mxu0
    %4002 = vmatprep.mubr.f32.mxu0 0.0
    %4003 = vmatmul.mubr.f32.gmra.mxu0 %v3431
    %v4004 = vpop.f32.mrf.mxu0
    %v4005 = vadd.f32 0.0, %v4004
    %v4006 = vpop.f32.mrf.mxu0
    %4007 = vmatprep.mubr.f32.mxu0 0.0
    %4008 = vmatmul.mubr.f32.gmra.mxu0 %v3432
    %v4009 = vpop.f32.mrf.mxu0
    %v4010 = vadd.f32 0.0, %v4009
    %v4011 = vpop.f32.mrf.mxu0
    %4012 = vmatprep.mubr.f32.mxu0 0.0
    %4013 = vmatmul.mubr.f32.gmra.mxu0 %v3433
    %v4014 = vpop.f32.mrf.mxu0
    %v4015 = vadd.f32 0.0, %v4014
    %v4016 = vpop.f32.mrf.mxu0
    %4017 = vmatprep.mubr.f32.mxu0 0.0
    %4018 = vmatmul.mubr.f32.gmra.mxu0 %v3434
    %v4019 = vpop.f32.mrf.mxu0
    %v4020 = vadd.f32 0.0, %v4019
    %v4021 = vpop.f32.mrf.mxu0
    %4022 = vmatprep.mubr.f32.mxu0 0.0
    %4023 = vmatmul.mubr.f32.gmra.mxu0 %v3435
    %v4024 = vpop.f32.mrf.mxu0
    %v4025 = vadd.f32 0.0, %v4024
    %v4026 = vpop.f32.mrf.mxu0
    %4027 = vmatprep.mubr.f32.mxu0 0.0
    %4028 = vmatmul.mubr.f32.gmra.mxu0 %v3436
    %v4029 = vpop.f32.mrf.mxu0
    %v4030 = vadd.f32 0.0, %v4029
    %v4031 = vpop.f32.mrf.mxu0
    %4032 = vmatprep.mubr.f32.mxu0 0.0
    %4033 = vmatmul.mubr.f32.gmra.mxu0 %v3437
    %v4034 = vpop.f32.mrf.mxu0
    %v4035 = vadd.f32 0.0, %v4034
    %v4036 = vpop.f32.mrf.mxu0
    %4037 = vmatprep.mubr.f32.mxu0 0.0
    %4038 = vmatmul.mubr.f32.gmra.mxu0 %v3438
    %v4039 = vpop.f32.mrf.mxu0
    %v4040 = vadd.f32 0.0, %v4039
    %v4041 = vpop.f32.mrf.mxu0
    %4042 = vmatprep.mubr.f32.mxu0 0.0
    %4043 = vmatmul.mubr.f32.gmra.mxu0 %v3439
    %v4044 = vpop.f32.mrf.mxu0
    %v4045 = vadd.f32 0.0, %v4044
    %v4046 = vpop.f32.mrf.mxu0
    %4047 = vmatprep.mubr.f32.mxu0 0.0
    %4048 = vmatmul.mubr.f32.gmra.mxu0 %v3440
    %v4049 = vpop.f32.mrf.mxu0
    %v4050 = vadd.f32 0.0, %v4049
    %v4051 = vpop.f32.mrf.mxu0
    %4052 = vdwg.mxu0
    %4053 = vmatprep.subr.mxu0 0.0
    %4054 = vmatpush1.msra.mxu0 %v3810
    %4055 = vmatprep.subr.mxu0 0.0
    %4056 = vmatpush1.msra.mxu0 %v3809
    %4057 = vmatprep.subr.mxu0 0.0
    %4058 = vmatpush1.msra.mxu0 %v3808
    %4059 = vmatprep.subr.mxu0 0.0
    %4060 = vmatpush1.msra.mxu0 %v3807
    %4061 = vmatprep.subr.mxu0 0.0
    %4062 = vmatpush1.msra.mxu0 %v3806
    %4063 = vmatprep.subr.mxu0 0.0
    %4064 = vmatpush1.msra.mxu0 %v3805
    %4065 = vmatprep.subr.mxu0 0.0
    %4066 = vmatpush1.msra.mxu0 %v3804
    %4067 = vmatprep.subr.mxu0 0.0
    %4068 = vmatpush1.msra.mxu0 %v3803
    %4069 = vmatprep.subr.mxu0 0.0
    %4070 = vmatpush1.msra.mxu0 %v3802
    %4071 = vmatprep.subr.mxu0 0.0
    %4072 = vmatpush1.msra.mxu0 %v3801
    %4073 = vmatprep.subr.mxu0 0.0
    %4074 = vmatpush1.msra.mxu0 %v3800
    %4075 = vmatprep.subr.mxu0 0.0
    %4076 = vmatpush1.msra.mxu0 %v3799
    %4077 = vmatprep.subr.mxu0 0.0
    %4078 = vmatpush1.msra.mxu0 %v3798
    %4079 = vmatprep.subr.mxu0 0.0
    %4080 = vmatpush1.msra.mxu0 %v3797
    %4081 = vmatprep.subr.mxu0 0.0
    %4082 = vmatpush1.msra.mxu0 %v3796
    %4083 = vmatprep.subr.mxu0 0.0
    %4084 = vmatpush1.msra.mxu0 %v3795
    %4085 = vmatprep.subr.mxu0 0.0
    %4086 = vmatpush2.msra.mxu0 0.0
    %4087 = vmatprep.subr.mxu0 0.0
    %4088 = vmatpush2.msra.mxu0 0.0
    %4089 = vmatprep.subr.mxu0 0.0
    %4090 = vmatpush2.msra.mxu0 0.0
    %4091 = vmatprep.subr.mxu0 0.0
    %4092 = vmatpush2.msra.mxu0 0.0
    %4093 = vmatprep.subr.mxu0 0.0
    %4094 = vmatpush2.msra.mxu0 0.0
    %4095 = vmatprep.subr.mxu0 0.0
    %4096 = vmatpush2.msra.mxu0 0.0
    %4097 = vmatprep.subr.mxu0 0.0
    %4098 = vmatpush2.msra.mxu0 0.0
    %4099 = vmatprep.subr.mxu0 0.0
    %4100 = vmatpush2.msra.mxu0 0.0
    %4101 = vmatprep.subr.mxu0 0.0
    %4102 = vmatpush2.msra.mxu0 0.0
    %4103 = vmatprep.subr.mxu0 0.0
    %4104 = vmatpush2.msra.mxu0 0.0
    %4105 = vmatprep.subr.mxu0 0.0
    %4106 = vmatpush2.msra.mxu0 0.0
    %4107 = vmatprep.subr.mxu0 0.0
    %4108 = vmatpush2.msra.mxu0 0.0
    %4109 = vmatprep.subr.mxu0 0.0
    %4110 = vmatpush2.msra.mxu0 0.0
    %4111 = vmatprep.subr.mxu0 0.0
    %4112 = vmatpush2.msra.mxu0 0.0
    %4113 = vmatprep.subr.mxu0 0.0
    %4114 = vmatpush2.msra.mxu0 0.0
    %4115 = vmatprep.subr.mxu0 0.0
    %4116 = vmatpush2.msra.mxu0 0.0
    %4117 = vmatprep.mubr.f32.mxu0 0.0
    %4118 = vmatmul.mubr.f32.gmra.mxu0 %v674
    %v4119 = vpop.f32.mrf.mxu0
    %v4120 = vadd.f32 %v3895, %v4119
    %v4121 = vpop.f32.mrf.mxu0
    %4122 = vmatprep.mubr.f32.mxu0 0.0
    %4123 = vmatmul.mubr.f32.gmra.mxu0 %v3731
    %v4124 = vpop.f32.mrf.mxu0
    %v4125 = vadd.f32 %v3900, %v4124
    %v4126 = vpop.f32.mrf.mxu0
    %4127 = vmatprep.mubr.f32.mxu0 0.0
    %4128 = vmatmul.mubr.f32.gmra.mxu0 %v3732
    %v4129 = vpop.f32.mrf.mxu0
    %v4130 = vadd.f32 %v3905, %v4129
    %v4131 = vpop.f32.mrf.mxu0
    %4132 = vmatprep.mubr.f32.mxu0 0.0
    %4133 = vmatmul.mubr.f32.gmra.mxu0 %v3733
    %v4134 = vpop.f32.mrf.mxu0
    %v4135 = vadd.f32 %v3910, %v4134
    %v4136 = vpop.f32.mrf.mxu0
    %4137 = vmatprep.mubr.f32.mxu0 0.0
    %4138 = vmatmul.mubr.f32.gmra.mxu0 %v3734
    %v4139 = vpop.f32.mrf.mxu0
    %v4140 = vadd.f32 %v3915, %v4139
    %v4141 = vpop.f32.mrf.mxu0
    %4142 = vmatprep.mubr.f32.mxu0 0.0
    %4143 = vmatmul.mubr.f32.gmra.mxu0 %v3735
    %v4144 = vpop.f32.mrf.mxu0
    %v4145 = vadd.f32 %v3920, %v4144
    %v4146 = vpop.f32.mrf.mxu0
    %4147 = vmatprep.mubr.f32.mxu0 0.0
    %4148 = vmatmul.mubr.f32.gmra.mxu0 %v3736
    %v4149 = vpop.f32.mrf.mxu0
    %v4150 = vadd.f32 %v3925, %v4149
    %v4151 = vpop.f32.mrf.mxu0
    %4152 = vmatprep.mubr.f32.mxu0 0.0
    %4153 = vmatmul.mubr.f32.gmra.mxu0 %v3737
    %v4154 = vpop.f32.mrf.mxu0
    %v4155 = vadd.f32 %v3930, %v4154
    %v4156 = vpop.f32.mrf.mxu0
    %4157 = vmatprep.mubr.f32.mxu0 0.0
    %4158 = vmatmul.mubr.f32.gmra.mxu0 %v3738
    %v4159 = vpop.f32.mrf.mxu0
    %v4160 = vadd.f32 %v3935, %v4159
    %v4161 = vpop.f32.mrf.mxu0
    %4162 = vmatprep.mubr.f32.mxu0 0.0
    %4163 = vmatmul.mubr.f32.gmra.mxu0 %v3739
    %v4164 = vpop.f32.mrf.mxu0
    %v4165 = vadd.f32 %v3940, %v4164
    %v4166 = vpop.f32.mrf.mxu0
    %4167 = vmatprep.mubr.f32.mxu0 0.0
    %4168 = vmatmul.mubr.f32.gmra.mxu0 %v3740
    %v4169 = vpop.f32.mrf.mxu0
    %v4170 = vadd.f32 %v3945, %v4169
    %v4171 = vpop.f32.mrf.mxu0
    %4172 = vmatprep.mubr.f32.mxu0 0.0
    %4173 = vmatmul.mubr.f32.gmra.mxu0 %v3741
    %v4174 = vpop.f32.mrf.mxu0
    %v4175 = vadd.f32 %v3950, %v4174
    %v4176 = vpop.f32.mrf.mxu0
    %4177 = vmatprep.mubr.f32.mxu0 0.0
    %4178 = vmatmul.mubr.f32.gmra.mxu0 %v3742
    %v4179 = vpop.f32.mrf.mxu0
    %v4180 = vadd.f32 %v3955, %v4179
    %v4181 = vpop.f32.mrf.mxu0
    %4182 = vmatprep.mubr.f32.mxu0 0.0
    %4183 = vmatmul.mubr.f32.gmra.mxu0 %v3743
    %v4184 = vpop.f32.mrf.mxu0
    %v4185 = vadd.f32 %v3960, %v4184
    %v4186 = vpop.f32.mrf.mxu0
    %4187 = vmatprep.mubr.f32.mxu0 0.0
    %4188 = vmatmul.mubr.f32.gmra.mxu0 %v3744
    %v4189 = vpop.f32.mrf.mxu0
    %v4190 = vadd.f32 %v3965, %v4189
    %v4191 = vpop.f32.mrf.mxu0
    %4192 = vmatprep.mubr.f32.mxu0 0.0
    %4193 = vmatmul.mubr.f32.gmra.mxu0 %v3745
    %v4194 = vpop.f32.mrf.mxu0
    %v4195 = vadd.f32 %v3970, %v4194
    %v4196 = vpop.f32.mrf.mxu0
    %4197 = vmatprep.mubr.f32.mxu0 0.0
    %4198 = vmatmul.mubr.f32.gmra.mxu0 %v674
    %v4199 = vpop.f32.mrf.mxu0
    %v4200 = vadd.f32 %v3975, %v4199
    %v4201 = vpop.f32.mrf.mxu0
    %4202 = vmatprep.mubr.f32.mxu0 0.0
    %4203 = vmatmul.mubr.f32.gmra.mxu0 %v3747
    %v4204 = vpop.f32.mrf.mxu0
    %v4205 = vadd.f32 %v3980, %v4204
    %v4206 = vpop.f32.mrf.mxu0
    %4207 = vmatprep.mubr.f32.mxu0 0.0
    %4208 = vmatmul.mubr.f32.gmra.mxu0 %v3748
    %v4209 = vpop.f32.mrf.mxu0
    %v4210 = vadd.f32 %v3985, %v4209
    %v4211 = vpop.f32.mrf.mxu0
    %4212 = vmatprep.mubr.f32.mxu0 0.0
    %4213 = vmatmul.mubr.f32.gmra.mxu0 %v3749
    %v4214 = vpop.f32.mrf.mxu0
    %v4215 = vadd.f32 %v3990, %v4214
    %v4216 = vpop.f32.mrf.mxu0
    %4217 = vmatprep.mubr.f32.mxu0 0.0
    %4218 = vmatmul.mubr.f32.gmra.mxu0 %v3750
    %v4219 = vpop.f32.mrf.mxu0
    %v4220 = vadd.f32 %v3995, %v4219
    %v4221 = vpop.f32.mrf.mxu0
    %4222 = vmatprep.mubr.f32.mxu0 0.0
    %4223 = vmatmul.mubr.f32.gmra.mxu0 %v3751
    %v4224 = vpop.f32.mrf.mxu0
    %v4225 = vadd.f32 %v4000, %v4224
    %v4226 = vpop.f32.mrf.mxu0
    %4227 = vmatprep.mubr.f32.mxu0 0.0
    %4228 = vmatmul.mubr.f32.gmra.mxu0 %v3752
    %v4229 = vpop.f32.mrf.mxu0
    %v4230 = vadd.f32 %v4005, %v4229
    %v4231 = vpop.f32.mrf.mxu0
    %4232 = vmatprep.mubr.f32.mxu0 0.0
    %4233 = vmatmul.mubr.f32.gmra.mxu0 %v3753
    %v4234 = vpop.f32.mrf.mxu0
    %v4235 = vadd.f32 %v4010, %v4234
    %v4236 = vpop.f32.mrf.mxu0
    %4237 = vmatprep.mubr.f32.mxu0 0.0
    %4238 = vmatmul.mubr.f32.gmra.mxu0 %v3754
    %v4239 = vpop.f32.mrf.mxu0
    %v4240 = vadd.f32 %v4015, %v4239
    %v4241 = vpop.f32.mrf.mxu0
    %4242 = vmatprep.mubr.f32.mxu0 0.0
    %4243 = vmatmul.mubr.f32.gmra.mxu0 %v3755
    %v4244 = vpop.f32.mrf.mxu0
    %v4245 = vadd.f32 %v4020, %v4244
    %v4246 = vpop.f32.mrf.mxu0
    %4247 = vmatprep.mubr.f32.mxu0 0.0
    %4248 = vmatmul.mubr.f32.gmra.mxu0 %v3756
    %v4249 = vpop.f32.mrf.mxu0
    %v4250 = vadd.f32 %v4025, %v4249
    %v4251 = vpop.f32.mrf.mxu0
    %4252 = vmatprep.mubr.f32.mxu0 0.0
    %4253 = vmatmul.mubr.f32.gmra.mxu0 %v3757
    %v4254 = vpop.f32.mrf.mxu0
    %v4255 = vadd.f32 %v4030, %v4254
    %v4256 = vpop.f32.mrf.mxu0
    %4257 = vmatprep.mubr.f32.mxu0 0.0
    %4258 = vmatmul.mubr.f32.gmra.mxu0 %v3758
    %v4259 = vpop.f32.mrf.mxu0
    %v4260 = vadd.f32 %v4035, %v4259
    %v4261 = vpop.f32.mrf.mxu0
    %4262 = vmatprep.mubr.f32.mxu0 0.0
    %4263 = vmatmul.mubr.f32.gmra.mxu0 %v3759
    %v4264 = vpop.f32.mrf.mxu0
    %v4265 = vadd.f32 %v4040, %v4264
    %v4266 = vpop.f32.mrf.mxu0
    %4267 = vmatprep.mubr.f32.mxu0 0.0
    %4268 = vmatmul.mubr.f32.gmra.mxu0 %v3760
    %v4269 = vpop.f32.mrf.mxu0
    %v4270 = vadd.f32 %v4045, %v4269
    %v4271 = vpop.f32.mrf.mxu0
    %4272 = vmatprep.mubr.f32.mxu0 0.0
    %4273 = vmatmul.mubr.f32.gmra.mxu0 %v3761
    %v4274 = vpop.f32.mrf.mxu0
    %v4275 = vadd.f32 %v4050, %v4274
    %v4276 = vpop.f32.mrf.mxu0
    %4277 = vdwg.mxu0
    %s4278 = scalar_lea.vmem [#allocation7], 256
    %v4279 = vld [vmem:[%s4278] sm:$0xff]
    %v4280 = vld [vmem:[%s4278 + $0x8] sm:$0xff]
    %v4281 = vld [vmem:[%s4278 + $0x10] sm:$0xff]
    %v4282 = vld [vmem:[%s4278 + $0x18] sm:$0xff]
    %v4283 = vld [vmem:[%s4278 + $0x20] sm:$0xff]
    %v4284 = vld [vmem:[%s4278 + $0x28] sm:$0xff]
    %v4285 = vld [vmem:[%s4278 + $0x30] sm:$0xff]
    %v4286 = vld [vmem:[%s4278 + $0x38] sm:$0xff]
    %v4287 = vld [vmem:[%s4278 + $0x40] sm:$0xff]
    %v4288 = vld [vmem:[%s4278 + $0x48] sm:$0xff]
    %v4289 = vld [vmem:[%s4278 + $0x50] sm:$0xff]
    %v4290 = vld [vmem:[%s4278 + $0x58] sm:$0xff]
    %v4291 = vld [vmem:[%s4278 + $0x60] sm:$0xff]
    %v4292 = vld [vmem:[%s4278 + $0x68] sm:$0xff]
    %v4293 = vld [vmem:[%s4278 + $0x70] sm:$0xff]
    %v4294 = vld [vmem:[%s4278 + $0x78] sm:$0xff]
    %4295 = vmatprep.subr.mxu0 0.0
    %4296 = vmatpush1.msra.mxu0 %v4294
    %4297 = vmatprep.subr.mxu0 0.0
    %4298 = vmatpush1.msra.mxu0 %v4293
    %4299 = vmatprep.subr.mxu0 0.0
    %4300 = vmatpush1.msra.mxu0 %v4292
    %4301 = vmatprep.subr.mxu0 0.0
    %4302 = vmatpush1.msra.mxu0 %v4291
    %4303 = vmatprep.subr.mxu0 0.0
    %4304 = vmatpush1.msra.mxu0 %v4290
    %4305 = vmatprep.subr.mxu0 0.0
    %4306 = vmatpush1.msra.mxu0 %v4289
    %4307 = vmatprep.subr.mxu0 0.0
    %4308 = vmatpush1.msra.mxu0 %v4288
    %4309 = vmatprep.subr.mxu0 0.0
    %4310 = vmatpush1.msra.mxu0 %v4287
    %4311 = vmatprep.subr.mxu0 0.0
    %4312 = vmatpush1.msra.mxu0 %v4286
    %4313 = vmatprep.subr.mxu0 0.0
    %4314 = vmatpush1.msra.mxu0 %v4285
    %4315 = vmatprep.subr.mxu0 0.0
    %4316 = vmatpush1.msra.mxu0 %v4284
    %4317 = vmatprep.subr.mxu0 0.0
    %4318 = vmatpush1.msra.mxu0 %v4283
    %4319 = vmatprep.subr.mxu0 0.0
    %4320 = vmatpush1.msra.mxu0 %v4282
    %4321 = vmatprep.subr.mxu0 0.0
    %4322 = vmatpush1.msra.mxu0 %v4281
    %4323 = vmatprep.subr.mxu0 0.0
    %4324 = vmatpush1.msra.mxu0 %v4280
    %4325 = vmatprep.subr.mxu0 0.0
    %4326 = vmatpush1.msra.mxu0 %v4279
    %4327 = vmatprep.subr.mxu0 0.0
    %4328 = vmatpush2.msra.mxu0 0.0
    %4329 = vmatprep.subr.mxu0 0.0
    %4330 = vmatpush2.msra.mxu0 0.0
    %4331 = vmatprep.subr.mxu0 0.0
    %4332 = vmatpush2.msra.mxu0 0.0
    %4333 = vmatprep.subr.mxu0 0.0
    %4334 = vmatpush2.msra.mxu0 0.0
    %4335 = vmatprep.subr.mxu0 0.0
    %4336 = vmatpush2.msra.mxu0 0.0
    %4337 = vmatprep.subr.mxu0 0.0
    %4338 = vmatpush2.msra.mxu0 0.0
    %4339 = vmatprep.subr.mxu0 0.0
    %4340 = vmatpush2.msra.mxu0 0.0
    %4341 = vmatprep.subr.mxu0 0.0
    %4342 = vmatpush2.msra.mxu0 0.0
    %4343 = vmatprep.subr.mxu0 0.0
    %4344 = vmatpush2.msra.mxu0 0.0
    %4345 = vmatprep.subr.mxu0 0.0
    %4346 = vmatpush2.msra.mxu0 0.0
    %4347 = vmatprep.subr.mxu0 0.0
    %4348 = vmatpush2.msra.mxu0 0.0
    %4349 = vmatprep.subr.mxu0 0.0
    %4350 = vmatpush2.msra.mxu0 0.0
    %4351 = vmatprep.subr.mxu0 0.0
    %4352 = vmatpush2.msra.mxu0 0.0
    %4353 = vmatprep.subr.mxu0 0.0
    %4354 = vmatpush2.msra.mxu0 0.0
    %4355 = vmatprep.subr.mxu0 0.0
    %4356 = vmatpush2.msra.mxu0 0.0
    %4357 = vmatprep.subr.mxu0 0.0
    %4358 = vmatpush2.msra.mxu0 0.0
    %4359 = vmatprep.mubr.f32.mxu0 0.0
    %4360 = vmatmul.mubr.f32.gmra.mxu0 %v707
    %v4361 = vpop.f32.mrf.mxu0
    %v4362 = vadd.f32 0.0, %v4361
    %v4363 = vpop.f32.mrf.mxu0
    %4364 = vmatprep.mubr.f32.mxu0 0.0
    %4365 = vmatmul.mubr.f32.gmra.mxu0 %v3763
    %v4366 = vpop.f32.mrf.mxu0
    %v4367 = vadd.f32 0.0, %v4366
    %v4368 = vpop.f32.mrf.mxu0
    %4369 = vmatprep.mubr.f32.mxu0 0.0
    %4370 = vmatmul.mubr.f32.gmra.mxu0 %v3764
    %v4371 = vpop.f32.mrf.mxu0
    %v4372 = vadd.f32 0.0, %v4371
    %v4373 = vpop.f32.mrf.mxu0
    %4374 = vmatprep.mubr.f32.mxu0 0.0
    %4375 = vmatmul.mubr.f32.gmra.mxu0 %v3765
    %v4376 = vpop.f32.mrf.mxu0
    %v4377 = vadd.f32 0.0, %v4376
    %v4378 = vpop.f32.mrf.mxu0
    %4379 = vmatprep.mubr.f32.mxu0 0.0
    %4380 = vmatmul.mubr.f32.gmra.mxu0 %v3766
    %v4381 = vpop.f32.mrf.mxu0
    %v4382 = vadd.f32 0.0, %v4381
    %v4383 = vpop.f32.mrf.mxu0
    %4384 = vmatprep.mubr.f32.mxu0 0.0
    %4385 = vmatmul.mubr.f32.gmra.mxu0 %v3767
    %v4386 = vpop.f32.mrf.mxu0
    %v4387 = vadd.f32 0.0, %v4386
    %v4388 = vpop.f32.mrf.mxu0
    %4389 = vmatprep.mubr.f32.mxu0 0.0
    %4390 = vmatmul.mubr.f32.gmra.mxu0 %v3768
    %v4391 = vpop.f32.mrf.mxu0
    %v4392 = vadd.f32 0.0, %v4391
    %v4393 = vpop.f32.mrf.mxu0
    %4394 = vmatprep.mubr.f32.mxu0 0.0
    %4395 = vmatmul.mubr.f32.gmra.mxu0 %v3769
    %v4396 = vpop.f32.mrf.mxu0
    %v4397 = vadd.f32 0.0, %v4396
    %v4398 = vpop.f32.mrf.mxu0
    %4399 = vmatprep.mubr.f32.mxu0 0.0
    %4400 = vmatmul.mubr.f32.gmra.mxu0 %v3770
    %v4401 = vpop.f32.mrf.mxu0
    %v4402 = vadd.f32 0.0, %v4401
    %v4403 = vpop.f32.mrf.mxu0
    %4404 = vmatprep.mubr.f32.mxu0 0.0
    %4405 = vmatmul.mubr.f32.gmra.mxu0 %v3771
    %v4406 = vpop.f32.mrf.mxu0
    %v4407 = vadd.f32 0.0, %v4406
    %v4408 = vpop.f32.mrf.mxu0
    %4409 = vmatprep.mubr.f32.mxu0 0.0
    %4410 = vmatmul.mubr.f32.gmra.mxu0 %v3772
    %v4411 = vpop.f32.mrf.mxu0
    %v4412 = vadd.f32 0.0, %v4411
    %v4413 = vpop.f32.mrf.mxu0
    %4414 = vmatprep.mubr.f32.mxu0 0.0
    %4415 = vmatmul.mubr.f32.gmra.mxu0 %v3773
    %v4416 = vpop.f32.mrf.mxu0
    %v4417 = vadd.f32 0.0, %v4416
    %v4418 = vpop.f32.mrf.mxu0
    %4419 = vmatprep.mubr.f32.mxu0 0.0
    %4420 = vmatmul.mubr.f32.gmra.mxu0 %v3774
    %v4421 = vpop.f32.mrf.mxu0
    %v4422 = vadd.f32 0.0, %v4421
    %v4423 = vpop.f32.mrf.mxu0
    %4424 = vmatprep.mubr.f32.mxu0 0.0
    %4425 = vmatmul.mubr.f32.gmra.mxu0 %v3775
    %v4426 = vpop.f32.mrf.mxu0
    %v4427 = vadd.f32 0.0, %v4426
    %v4428 = vpop.f32.mrf.mxu0
    %4429 = vmatprep.mubr.f32.mxu0 0.0
    %4430 = vmatmul.mubr.f32.gmra.mxu0 %v3776
    %v4431 = vpop.f32.mrf.mxu0
    %v4432 = vadd.f32 0.0, %v4431
    %v4433 = vpop.f32.mrf.mxu0
    %4434 = vmatprep.mubr.f32.mxu0 0.0
    %4435 = vmatmul.mubr.f32.gmra.mxu0 %v3777
    %v4436 = vpop.f32.mrf.mxu0
    %v4437 = vadd.f32 0.0, %v4436
    %v4438 = vpop.f32.mrf.mxu0
    %4439 = vmatprep.mubr.f32.mxu0 0.0
    %4440 = vmatmul.mubr.f32.gmra.mxu0 %v707
    %v4441 = vpop.f32.mrf.mxu0
    %v4442 = vadd.f32 0.0, %v4441
    %v4443 = vpop.f32.mrf.mxu0
    %4444 = vmatprep.mubr.f32.mxu0 0.0
    %4445 = vmatmul.mubr.f32.gmra.mxu0 %v3779
    %v4446 = vpop.f32.mrf.mxu0
    %v4447 = vadd.f32 0.0, %v4446
    %v4448 = vpop.f32.mrf.mxu0
    %4449 = vmatprep.mubr.f32.mxu0 0.0
    %4450 = vmatmul.mubr.f32.gmra.mxu0 %v3780
    %v4451 = vpop.f32.mrf.mxu0
    %v4452 = vadd.f32 0.0, %v4451
    %v4453 = vpop.f32.mrf.mxu0
    %4454 = vmatprep.mubr.f32.mxu0 0.0
    %4455 = vmatmul.mubr.f32.gmra.mxu0 %v3781
    %v4456 = vpop.f32.mrf.mxu0
    %v4457 = vadd.f32 0.0, %v4456
    %v4458 = vpop.f32.mrf.mxu0
    %4459 = vmatprep.mubr.f32.mxu0 0.0
    %4460 = vmatmul.mubr.f32.gmra.mxu0 %v3782
    %v4461 = vpop.f32.mrf.mxu0
    %v4462 = vadd.f32 0.0, %v4461
    %v4463 = vpop.f32.mrf.mxu0
    %4464 = vmatprep.mubr.f32.mxu0 0.0
    %4465 = vmatmul.mubr.f32.gmra.mxu0 %v3783
    %v4466 = vpop.f32.mrf.mxu0
    %v4467 = vadd.f32 0.0, %v4466
    %v4468 = vpop.f32.mrf.mxu0
    %4469 = vmatprep.mubr.f32.mxu0 0.0
    %4470 = vmatmul.mubr.f32.gmra.mxu0 %v3784
    %v4471 = vpop.f32.mrf.mxu0
    %v4472 = vadd.f32 0.0, %v4471
    %v4473 = vpop.f32.mrf.mxu0
    %4474 = vmatprep.mubr.f32.mxu0 0.0
    %4475 = vmatmul.mubr.f32.gmra.mxu0 %v3785
    %v4476 = vpop.f32.mrf.mxu0
    %v4477 = vadd.f32 0.0, %v4476
    %v4478 = vpop.f32.mrf.mxu0
    %4479 = vmatprep.mubr.f32.mxu0 0.0
    %4480 = vmatmul.mubr.f32.gmra.mxu0 %v3786
    %v4481 = vpop.f32.mrf.mxu0
    %v4482 = vadd.f32 0.0, %v4481
    %v4483 = vpop.f32.mrf.mxu0
    %4484 = vmatprep.mubr.f32.mxu0 0.0
    %4485 = vmatmul.mubr.f32.gmra.mxu0 %v3787
    %v4486 = vpop.f32.mrf.mxu0
    %v4487 = vadd.f32 0.0, %v4486
    %v4488 = vpop.f32.mrf.mxu0
    %4489 = vmatprep.mubr.f32.mxu0 0.0
    %4490 = vmatmul.mubr.f32.gmra.mxu0 %v3788
    %v4491 = vpop.f32.mrf.mxu0
    %v4492 = vadd.f32 0.0, %v4491
    %v4493 = vpop.f32.mrf.mxu0
    %4494 = vmatprep.mubr.f32.mxu0 0.0
    %4495 = vmatmul.mubr.f32.gmra.mxu0 %v3789
    %v4496 = vpop.f32.mrf.mxu0
    %v4497 = vadd.f32 0.0, %v4496
    %v4498 = vpop.f32.mrf.mxu0
    %4499 = vmatprep.mubr.f32.mxu0 0.0
    %4500 = vmatmul.mubr.f32.gmra.mxu0 %v3790
    %v4501 = vpop.f32.mrf.mxu0
    %v4502 = vadd.f32 0.0, %v4501
    %v4503 = vpop.f32.mrf.mxu0
    %4504 = vmatprep.mubr.f32.mxu0 0.0
    %4505 = vmatmul.mubr.f32.gmra.mxu0 %v3791
    %v4506 = vpop.f32.mrf.mxu0
    %v4507 = vadd.f32 0.0, %v4506
    %v4508 = vpop.f32.mrf.mxu0
    %4509 = vmatprep.mubr.f32.mxu0 0.0
    %4510 = vmatmul.mubr.f32.gmra.mxu0 %v3792
    %v4511 = vpop.f32.mrf.mxu0
    %v4512 = vadd.f32 0.0, %v4511
    %v4513 = vpop.f32.mrf.mxu0
    %4514 = vmatprep.mubr.f32.mxu0 0.0
    %4515 = vmatmul.mubr.f32.gmra.mxu0 %v3793
    %v4516 = vpop.f32.mrf.mxu0
    %v4517 = vadd.f32 0.0, %v4516
    %v4518 = vpop.f32.mrf.mxu0
    %4519 = vdwg.mxu0
    %v4520 = vadd.f32 %v4120, %v4362
    %v4521 = vadd.f32 %v4125, %v4367
    %v4522 = vadd.f32 %v4130, %v4372
    %v4523 = vadd.f32 %v4135, %v4377
    %v4524 = vadd.f32 %v4140, %v4382
    %v4525 = vadd.f32 %v4145, %v4387
    %v4526 = vadd.f32 %v4150, %v4392
    %v4527 = vadd.f32 %v4155, %v4397
    %v4528 = vadd.f32 %v4160, %v4402
    %v4529 = vadd.f32 %v4165, %v4407
    %v4530 = vadd.f32 %v4170, %v4412
    %v4531 = vadd.f32 %v4175, %v4417
    %v4532 = vadd.f32 %v4180, %v4422
    %v4533 = vadd.f32 %v4185, %v4427
    %v4534 = vadd.f32 %v4190, %v4432
    %v4535 = vadd.f32 %v4195, %v4437
    %v4536 = vadd.f32 %v4200, %v4442
    %v4537 = vadd.f32 %v4205, %v4447
    %v4538 = vadd.f32 %v4210, %v4452
    %v4539 = vadd.f32 %v4215, %v4457
    %v4540 = vadd.f32 %v4220, %v4462
    %v4541 = vadd.f32 %v4225, %v4467
    %v4542 = vadd.f32 %v4230, %v4472
    %v4543 = vadd.f32 %v4235, %v4477
    %v4544 = vadd.f32 %v4240, %v4482
    %v4545 = vadd.f32 %v4245, %v4487
    %v4546 = vadd.f32 %v4250, %v4492
    %v4547 = vadd.f32 %v4255, %v4497
    %v4548 = vadd.f32 %v4260, %v4502
    %v4549 = vadd.f32 %v4265, %v4507
    %v4550 = vadd.f32 %v4270, %v4512
    %v4551 = vadd.f32 %v4275, %v4517
    %s4552 = scalar_lea.vmem [#allocation7], 384
    %v4553 = vld [vmem:[%s4552] sm:$0xff]
    %v4554 = vld [vmem:[%s4552 + $0x8] sm:$0xff]
    %v4555 = vld [vmem:[%s4552 + $0x10] sm:$0xff]
    %v4556 = vld [vmem:[%s4552 + $0x18] sm:$0xff]
    %v4557 = vld [vmem:[%s4552 + $0x20] sm:$0xff]
    %v4558 = vld [vmem:[%s4552 + $0x28] sm:$0xff]
    %v4559 = vld [vmem:[%s4552 + $0x30] sm:$0xff]
    %v4560 = vld [vmem:[%s4552 + $0x38] sm:$0xff]
    %v4561 = vld [vmem:[%s4552 + $0x40] sm:$0xff]
    %v4562 = vld [vmem:[%s4552 + $0x48] sm:$0xff]
    %v4563 = vld [vmem:[%s4552 + $0x50] sm:$0xff]
    %v4564 = vld [vmem:[%s4552 + $0x58] sm:$0xff]
    %v4565 = vld [vmem:[%s4552 + $0x60] sm:$0xff]
    %v4566 = vld [vmem:[%s4552 + $0x68] sm:$0xff]
    %v4567 = vld [vmem:[%s4552 + $0x70] sm:$0xff]
    %v4568 = vld [vmem:[%s4552 + $0x78] sm:$0xff]
    %4569 = vmatprep.subr.mxu0 0.0
    %4570 = vmatpush1.msra.mxu0 %v4568
    %4571 = vmatprep.subr.mxu0 0.0
    %4572 = vmatpush1.msra.mxu0 %v4567
    %4573 = vmatprep.subr.mxu0 0.0
    %4574 = vmatpush1.msra.mxu0 %v4566
    %4575 = vmatprep.subr.mxu0 0.0
    %4576 = vmatpush1.msra.mxu0 %v4565
    %4577 = vmatprep.subr.mxu0 0.0
    %4578 = vmatpush1.msra.mxu0 %v4564
    %4579 = vmatprep.subr.mxu0 0.0
    %4580 = vmatpush1.msra.mxu0 %v4563
    %4581 = vmatprep.subr.mxu0 0.0
    %4582 = vmatpush1.msra.mxu0 %v4562
    %4583 = vmatprep.subr.mxu0 0.0
    %4584 = vmatpush1.msra.mxu0 %v4561
    %4585 = vmatprep.subr.mxu0 0.0
    %4586 = vmatpush1.msra.mxu0 %v4560
    %4587 = vmatprep.subr.mxu0 0.0
    %4588 = vmatpush1.msra.mxu0 %v4559
    %4589 = vmatprep.subr.mxu0 0.0
    %4590 = vmatpush1.msra.mxu0 %v4558
    %4591 = vmatprep.subr.mxu0 0.0
    %4592 = vmatpush1.msra.mxu0 %v4557
    %4593 = vmatprep.subr.mxu0 0.0
    %4594 = vmatpush1.msra.mxu0 %v4556
    %4595 = vmatprep.subr.mxu0 0.0
    %4596 = vmatpush1.msra.mxu0 %v4555
    %4597 = vmatprep.subr.mxu0 0.0
    %4598 = vmatpush1.msra.mxu0 %v4554
    %4599 = vmatprep.subr.mxu0 0.0
    %4600 = vmatpush1.msra.mxu0 %v4553
    %4601 = vmatprep.subr.mxu0 0.0
    %4602 = vmatpush2.msra.mxu0 0.0
    %4603 = vmatprep.subr.mxu0 0.0
    %4604 = vmatpush2.msra.mxu0 0.0
    %4605 = vmatprep.subr.mxu0 0.0
    %4606 = vmatpush2.msra.mxu0 0.0
    %4607 = vmatprep.subr.mxu0 0.0
    %4608 = vmatpush2.msra.mxu0 0.0
    %4609 = vmatprep.subr.mxu0 0.0
    %4610 = vmatpush2.msra.mxu0 0.0
    %4611 = vmatprep.subr.mxu0 0.0
    %4612 = vmatpush2.msra.mxu0 0.0
    %4613 = vmatprep.subr.mxu0 0.0
    %4614 = vmatpush2.msra.mxu0 0.0
    %4615 = vmatprep.subr.mxu0 0.0
    %4616 = vmatpush2.msra.mxu0 0.0
    %4617 = vmatprep.subr.mxu0 0.0
    %4618 = vmatpush2.msra.mxu0 0.0
    %4619 = vmatprep.subr.mxu0 0.0
    %4620 = vmatpush2.msra.mxu0 0.0
    %4621 = vmatprep.subr.mxu0 0.0
    %4622 = vmatpush2.msra.mxu0 0.0
    %4623 = vmatprep.subr.mxu0 0.0
    %4624 = vmatpush2.msra.mxu0 0.0
    %4625 = vmatprep.subr.mxu0 0.0
    %4626 = vmatpush2.msra.mxu0 0.0
    %4627 = vmatprep.subr.mxu0 0.0
    %4628 = vmatpush2.msra.mxu0 0.0
    %4629 = vmatprep.subr.mxu0 0.0
    %4630 = vmatpush2.msra.mxu0 0.0
    %4631 = vmatprep.subr.mxu0 0.0
    %4632 = vmatpush2.msra.mxu0 0.0
    %4633 = vmatprep.mubr.f32.mxu0 0.0
    %4634 = vmatmul.mubr.f32.gmra.mxu0 %v3731
    %v4635 = vpop.f32.mrf.mxu0
    %v4636 = vadd.f32 0.0, %v4635
    %v4637 = vpop.f32.mrf.mxu0
    %4638 = vmatprep.mubr.f32.mxu0 0.0
    %4639 = vmatmul.mubr.f32.gmra.mxu0 %v3732
    %v4640 = vpop.f32.mrf.mxu0
    %v4641 = vadd.f32 0.0, %v4640
    %v4642 = vpop.f32.mrf.mxu0
    %4643 = vmatprep.mubr.f32.mxu0 0.0
    %4644 = vmatmul.mubr.f32.gmra.mxu0 %v3733
    %v4645 = vpop.f32.mrf.mxu0
    %v4646 = vadd.f32 0.0, %v4645
    %v4647 = vpop.f32.mrf.mxu0
    %4648 = vmatprep.mubr.f32.mxu0 0.0
    %4649 = vmatmul.mubr.f32.gmra.mxu0 %v3734
    %v4650 = vpop.f32.mrf.mxu0
    %v4651 = vadd.f32 0.0, %v4650
    %v4652 = vpop.f32.mrf.mxu0
    %4653 = vmatprep.mubr.f32.mxu0 0.0
    %4654 = vmatmul.mubr.f32.gmra.mxu0 %v3735
    %v4655 = vpop.f32.mrf.mxu0
    %v4656 = vadd.f32 0.0, %v4655
    %v4657 = vpop.f32.mrf.mxu0
    %4658 = vmatprep.mubr.f32.mxu0 0.0
    %4659 = vmatmul.mubr.f32.gmra.mxu0 %v3736
    %v4660 = vpop.f32.mrf.mxu0
    %v4661 = vadd.f32 0.0, %v4660
    %v4662 = vpop.f32.mrf.mxu0
    %4663 = vmatprep.mubr.f32.mxu0 0.0
    %4664 = vmatmul.mubr.f32.gmra.mxu0 %v3737
    %v4665 = vpop.f32.mrf.mxu0
    %v4666 = vadd.f32 0.0, %v4665
    %v4667 = vpop.f32.mrf.mxu0
    %4668 = vmatprep.mubr.f32.mxu0 0.0
    %4669 = vmatmul.mubr.f32.gmra.mxu0 %v3738
    %v4670 = vpop.f32.mrf.mxu0
    %v4671 = vadd.f32 0.0, %v4670
    %v4672 = vpop.f32.mrf.mxu0
    %4673 = vmatprep.mubr.f32.mxu0 0.0
    %4674 = vmatmul.mubr.f32.gmra.mxu0 %v3739
    %v4675 = vpop.f32.mrf.mxu0
    %v4676 = vadd.f32 0.0, %v4675
    %v4677 = vpop.f32.mrf.mxu0
    %4678 = vmatprep.mubr.f32.mxu0 0.0
    %4679 = vmatmul.mubr.f32.gmra.mxu0 %v3740
    %v4680 = vpop.f32.mrf.mxu0
    %v4681 = vadd.f32 0.0, %v4680
    %v4682 = vpop.f32.mrf.mxu0
    %4683 = vmatprep.mubr.f32.mxu0 0.0
    %4684 = vmatmul.mubr.f32.gmra.mxu0 %v3741
    %v4685 = vpop.f32.mrf.mxu0
    %v4686 = vadd.f32 0.0, %v4685
    %v4687 = vpop.f32.mrf.mxu0
    %4688 = vmatprep.mubr.f32.mxu0 0.0
    %4689 = vmatmul.mubr.f32.gmra.mxu0 %v3742
    %v4690 = vpop.f32.mrf.mxu0
    %v4691 = vadd.f32 0.0, %v4690
    %v4692 = vpop.f32.mrf.mxu0
    %4693 = vmatprep.mubr.f32.mxu0 0.0
    %4694 = vmatmul.mubr.f32.gmra.mxu0 %v3743
    %v4695 = vpop.f32.mrf.mxu0
    %v4696 = vadd.f32 0.0, %v4695
    %v4697 = vpop.f32.mrf.mxu0
    %4698 = vmatprep.mubr.f32.mxu0 0.0
    %4699 = vmatmul.mubr.f32.gmra.mxu0 %v3744
    %v4700 = vpop.f32.mrf.mxu0
    %v4701 = vadd.f32 0.0, %v4700
    %v4702 = vpop.f32.mrf.mxu0
    %4703 = vmatprep.mubr.f32.mxu0 0.0
    %4704 = vmatmul.mubr.f32.gmra.mxu0 %v3745
    %v4705 = vpop.f32.mrf.mxu0
    %v4706 = vadd.f32 0.0, %v4705
    %v4707 = vpop.f32.mrf.mxu0
    %4708 = vmatprep.mubr.f32.mxu0 0.0
    %4709 = vmatmul.mubr.f32.gmra.mxu0 %v3746
    %v4710 = vpop.f32.mrf.mxu0
    %v4711 = vadd.f32 0.0, %v4710
    %v4712 = vpop.f32.mrf.mxu0
    %4713 = vmatprep.mubr.f32.mxu0 0.0
    %4714 = vmatmul.mubr.f32.gmra.mxu0 %v3747
    %v4715 = vpop.f32.mrf.mxu0
    %v4716 = vadd.f32 0.0, %v4715
    %v4717 = vpop.f32.mrf.mxu0
    %4718 = vmatprep.mubr.f32.mxu0 0.0
    %4719 = vmatmul.mubr.f32.gmra.mxu0 %v3748
    %v4720 = vpop.f32.mrf.mxu0
    %v4721 = vadd.f32 0.0, %v4720
    %v4722 = vpop.f32.mrf.mxu0
    %4723 = vmatprep.mubr.f32.mxu0 0.0
    %4724 = vmatmul.mubr.f32.gmra.mxu0 %v3749
    %v4725 = vpop.f32.mrf.mxu0
    %v4726 = vadd.f32 0.0, %v4725
    %v4727 = vpop.f32.mrf.mxu0
    %4728 = vmatprep.mubr.f32.mxu0 0.0
    %4729 = vmatmul.mubr.f32.gmra.mxu0 %v3750
    %v4730 = vpop.f32.mrf.mxu0
    %v4731 = vadd.f32 0.0, %v4730
    %v4732 = vpop.f32.mrf.mxu0
    %4733 = vmatprep.mubr.f32.mxu0 0.0
    %4734 = vmatmul.mubr.f32.gmra.mxu0 %v3751
    %v4735 = vpop.f32.mrf.mxu0
    %v4736 = vadd.f32 0.0, %v4735
    %v4737 = vpop.f32.mrf.mxu0
    %4738 = vmatprep.mubr.f32.mxu0 0.0
    %4739 = vmatmul.mubr.f32.gmra.mxu0 %v3752
    %v4740 = vpop.f32.mrf.mxu0
    %v4741 = vadd.f32 0.0, %v4740
    %v4742 = vpop.f32.mrf.mxu0
    %4743 = vmatprep.mubr.f32.mxu0 0.0
    %4744 = vmatmul.mubr.f32.gmra.mxu0 %v3753
    %v4745 = vpop.f32.mrf.mxu0
    %v4746 = vadd.f32 0.0, %v4745
    %v4747 = vpop.f32.mrf.mxu0
    %4748 = vmatprep.mubr.f32.mxu0 0.0
    %4749 = vmatmul.mubr.f32.gmra.mxu0 %v3754
    %v4750 = vpop.f32.mrf.mxu0
    %v4751 = vadd.f32 0.0, %v4750
    %v4752 = vpop.f32.mrf.mxu0
    %4753 = vmatprep.mubr.f32.mxu0 0.0
    %4754 = vmatmul.mubr.f32.gmra.mxu0 %v3755
    %v4755 = vpop.f32.mrf.mxu0
    %v4756 = vadd.f32 0.0, %v4755
    %v4757 = vpop.f32.mrf.mxu0
    %4758 = vmatprep.mubr.f32.mxu0 0.0
    %4759 = vmatmul.mubr.f32.gmra.mxu0 %v3756
    %v4760 = vpop.f32.mrf.mxu0
    %v4761 = vadd.f32 0.0, %v4760
    %v4762 = vpop.f32.mrf.mxu0
    %4763 = vmatprep.mubr.f32.mxu0 0.0
    %4764 = vmatmul.mubr.f32.gmra.mxu0 %v3757
    %v4765 = vpop.f32.mrf.mxu0
    %v4766 = vadd.f32 0.0, %v4765
    %v4767 = vpop.f32.mrf.mxu0
    %4768 = vmatprep.mubr.f32.mxu0 0.0
    %4769 = vmatmul.mubr.f32.gmra.mxu0 %v3758
    %v4770 = vpop.f32.mrf.mxu0
    %v4771 = vadd.f32 0.0, %v4770
    %v4772 = vpop.f32.mrf.mxu0
    %4773 = vmatprep.mubr.f32.mxu0 0.0
    %4774 = vmatmul.mubr.f32.gmra.mxu0 %v3759
    %v4775 = vpop.f32.mrf.mxu0
    %v4776 = vadd.f32 0.0, %v4775
    %v4777 = vpop.f32.mrf.mxu0
    %4778 = vmatprep.mubr.f32.mxu0 0.0
    %4779 = vmatmul.mubr.f32.gmra.mxu0 %v3760
    %v4780 = vpop.f32.mrf.mxu0
    %v4781 = vadd.f32 0.0, %v4780
    %v4782 = vpop.f32.mrf.mxu0
    %4783 = vmatprep.mubr.f32.mxu0 0.0
    %4784 = vmatmul.mubr.f32.gmra.mxu0 %v3761
    %v4785 = vpop.f32.mrf.mxu0
    %v4786 = vadd.f32 0.0, %v4785
    %v4787 = vpop.f32.mrf.mxu0
    %4788 = vmatprep.mubr.f32.mxu0 0.0
    %4789 = vmatmul.mubr.f32.gmra.mxu0 %v3762
    %v4790 = vpop.f32.mrf.mxu0
    %v4791 = vadd.f32 0.0, %v4790
    %v4792 = vpop.f32.mrf.mxu0
    %4793 = vdwg.mxu0
    %v4794 = vadd.f32 %v4520, %v4636
    %v4795 = vadd.f32 %v4521, %v4641
    %v4796 = vadd.f32 %v4522, %v4646
    %v4797 = vadd.f32 %v4523, %v4651
    %v4798 = vadd.f32 %v4524, %v4656
    %v4799 = vadd.f32 %v4525, %v4661
    %v4800 = vadd.f32 %v4526, %v4666
    %v4801 = vadd.f32 %v4527, %v4671
    %v4802 = vadd.f32 %v4528, %v4676
    %v4803 = vadd.f32 %v4529, %v4681
    %v4804 = vadd.f32 %v4530, %v4686
    %v4805 = vadd.f32 %v4531, %v4691
    %v4806 = vadd.f32 %v4532, %v4696
    %v4807 = vadd.f32 %v4533, %v4701
    %v4808 = vadd.f32 %v4534, %v4706
    %v4809 = vadd.f32 %v4535, %v4711
    %v4810 = vadd.f32 %v4536, %v4716
    %v4811 = vadd.f32 %v4537, %v4721
    %v4812 = vadd.f32 %v4538, %v4726
    %v4813 = vadd.f32 %v4539, %v4731
    %v4814 = vadd.f32 %v4540, %v4736
    %v4815 = vadd.f32 %v4541, %v4741
    %v4816 = vadd.f32 %v4542, %v4746
    %v4817 = vadd.f32 %v4543, %v4751
    %v4818 = vadd.f32 %v4544, %v4756
    %v4819 = vadd.f32 %v4545, %v4761
    %v4820 = vadd.f32 %v4546, %v4766
    %v4821 = vadd.f32 %v4547, %v4771
    %v4822 = vadd.f32 %v4548, %v4776
    %v4823 = vadd.f32 %v4549, %v4781
    %v4824 = vadd.f32 %v4550, %v4786
    %v4825 = vadd.f32 %v4551, %v4791
    %s4826 = scalar_lea.vmem [#allocation7], 512
    %v4827 = vld [vmem:[%s4826] sm:$0xff]
    %v4828 = vld [vmem:[%s4826 + $0x8] sm:$0xff]
    %v4829 = vld [vmem:[%s4826 + $0x10] sm:$0xff]
    %v4830 = vld [vmem:[%s4826 + $0x18] sm:$0xff]
    %v4831 = vld [vmem:[%s4826 + $0x20] sm:$0xff]
    %v4832 = vld [vmem:[%s4826 + $0x28] sm:$0xff]
    %v4833 = vld [vmem:[%s4826 + $0x30] sm:$0xff]
    %v4834 = vld [vmem:[%s4826 + $0x38] sm:$0xff]
    %v4835 = vld [vmem:[%s4826 + $0x40] sm:$0xff]
    %v4836 = vld [vmem:[%s4826 + $0x48] sm:$0xff]
    %v4837 = vld [vmem:[%s4826 + $0x50] sm:$0xff]
    %v4838 = vld [vmem:[%s4826 + $0x58] sm:$0xff]
    %v4839 = vld [vmem:[%s4826 + $0x60] sm:$0xff]
    %v4840 = vld [vmem:[%s4826 + $0x68] sm:$0xff]
    %v4841 = vld [vmem:[%s4826 + $0x70] sm:$0xff]
    %v4842 = vld [vmem:[%s4826 + $0x78] sm:$0xff]
    %4843 = vmatprep.subr.mxu0 0.0
    %4844 = vmatpush1.msra.mxu0 %v4842
    %4845 = vmatprep.subr.mxu0 0.0
    %4846 = vmatpush1.msra.mxu0 %v4841
    %4847 = vmatprep.subr.mxu0 0.0
    %4848 = vmatpush1.msra.mxu0 %v4840
    %4849 = vmatprep.subr.mxu0 0.0
    %4850 = vmatpush1.msra.mxu0 %v4839
    %4851 = vmatprep.subr.mxu0 0.0
    %4852 = vmatpush1.msra.mxu0 %v4838
    %4853 = vmatprep.subr.mxu0 0.0
    %4854 = vmatpush1.msra.mxu0 %v4837
    %4855 = vmatprep.subr.mxu0 0.0
    %4856 = vmatpush1.msra.mxu0 %v4836
    %4857 = vmatprep.subr.mxu0 0.0
    %4858 = vmatpush1.msra.mxu0 %v4835
    %4859 = vmatprep.subr.mxu0 0.0
    %4860 = vmatpush1.msra.mxu0 %v4834
    %4861 = vmatprep.subr.mxu0 0.0
    %4862 = vmatpush1.msra.mxu0 %v4833
    %4863 = vmatprep.subr.mxu0 0.0
    %4864 = vmatpush1.msra.mxu0 %v4832
    %4865 = vmatprep.subr.mxu0 0.0
    %4866 = vmatpush1.msra.mxu0 %v4831
    %4867 = vmatprep.subr.mxu0 0.0
    %4868 = vmatpush1.msra.mxu0 %v4830
    %4869 = vmatprep.subr.mxu0 0.0
    %4870 = vmatpush1.msra.mxu0 %v4829
    %4871 = vmatprep.subr.mxu0 0.0
    %4872 = vmatpush1.msra.mxu0 %v4828
    %4873 = vmatprep.subr.mxu0 0.0
    %4874 = vmatpush1.msra.mxu0 %v4827
    %4875 = vmatprep.subr.mxu0 0.0
    %4876 = vmatpush2.msra.mxu0 0.0
    %4877 = vmatprep.subr.mxu0 0.0
    %4878 = vmatpush2.msra.mxu0 0.0
    %4879 = vmatprep.subr.mxu0 0.0
    %4880 = vmatpush2.msra.mxu0 0.0
    %4881 = vmatprep.subr.mxu0 0.0
    %4882 = vmatpush2.msra.mxu0 0.0
    %4883 = vmatprep.subr.mxu0 0.0
    %4884 = vmatpush2.msra.mxu0 0.0
    %4885 = vmatprep.subr.mxu0 0.0
    %4886 = vmatpush2.msra.mxu0 0.0
    %4887 = vmatprep.subr.mxu0 0.0
    %4888 = vmatpush2.msra.mxu0 0.0
    %4889 = vmatprep.subr.mxu0 0.0
    %4890 = vmatpush2.msra.mxu0 0.0
    %4891 = vmatprep.subr.mxu0 0.0
    %4892 = vmatpush2.msra.mxu0 0.0
    %4893 = vmatprep.subr.mxu0 0.0
    %4894 = vmatpush2.msra.mxu0 0.0
    %4895 = vmatprep.subr.mxu0 0.0
    %4896 = vmatpush2.msra.mxu0 0.0
    %4897 = vmatprep.subr.mxu0 0.0
    %4898 = vmatpush2.msra.mxu0 0.0
    %4899 = vmatprep.subr.mxu0 0.0
    %4900 = vmatpush2.msra.mxu0 0.0
    %4901 = vmatprep.subr.mxu0 0.0
    %4902 = vmatpush2.msra.mxu0 0.0
    %4903 = vmatprep.subr.mxu0 0.0
    %4904 = vmatpush2.msra.mxu0 0.0
    %4905 = vmatprep.subr.mxu0 0.0
    %4906 = vmatpush2.msra.mxu0 0.0
    %4907 = vmatprep.mubr.f32.mxu0 0.0
    %4908 = vmatmul.mubr.f32.gmra.mxu0 %v3410
    %v4909 = vpop.f32.mrf.mxu0
    %v4910 = vadd.f32 0.0, %v4909
    %v4911 = vpop.f32.mrf.mxu0
    %4912 = vmatprep.mubr.f32.mxu0 0.0
    %4913 = vmatmul.mubr.f32.gmra.mxu0 %v3411
    %v4914 = vpop.f32.mrf.mxu0
    %v4915 = vadd.f32 0.0, %v4914
    %v4916 = vpop.f32.mrf.mxu0
    %4917 = vmatprep.mubr.f32.mxu0 0.0
    %4918 = vmatmul.mubr.f32.gmra.mxu0 %v3412
    %v4919 = vpop.f32.mrf.mxu0
    %v4920 = vadd.f32 0.0, %v4919
    %v4921 = vpop.f32.mrf.mxu0
    %4922 = vmatprep.mubr.f32.mxu0 0.0
    %4923 = vmatmul.mubr.f32.gmra.mxu0 %v3413
    %v4924 = vpop.f32.mrf.mxu0
    %v4925 = vadd.f32 0.0, %v4924
    %v4926 = vpop.f32.mrf.mxu0
    %4927 = vmatprep.mubr.f32.mxu0 0.0
    %4928 = vmatmul.mubr.f32.gmra.mxu0 %v3414
    %v4929 = vpop.f32.mrf.mxu0
    %v4930 = vadd.f32 0.0, %v4929
    %v4931 = vpop.f32.mrf.mxu0
    %4932 = vmatprep.mubr.f32.mxu0 0.0
    %4933 = vmatmul.mubr.f32.gmra.mxu0 %v3415
    %v4934 = vpop.f32.mrf.mxu0
    %v4935 = vadd.f32 0.0, %v4934
    %v4936 = vpop.f32.mrf.mxu0
    %4937 = vmatprep.mubr.f32.mxu0 0.0
    %4938 = vmatmul.mubr.f32.gmra.mxu0 %v3416
    %v4939 = vpop.f32.mrf.mxu0
    %v4940 = vadd.f32 0.0, %v4939
    %v4941 = vpop.f32.mrf.mxu0
    %4942 = vmatprep.mubr.f32.mxu0 0.0
    %4943 = vmatmul.mubr.f32.gmra.mxu0 %v3417
    %v4944 = vpop.f32.mrf.mxu0
    %v4945 = vadd.f32 0.0, %v4944
    %v4946 = vpop.f32.mrf.mxu0
    %4947 = vmatprep.mubr.f32.mxu0 0.0
    %4948 = vmatmul.mubr.f32.gmra.mxu0 %v3418
    %v4949 = vpop.f32.mrf.mxu0
    %v4950 = vadd.f32 0.0, %v4949
    %v4951 = vpop.f32.mrf.mxu0
    %4952 = vmatprep.mubr.f32.mxu0 0.0
    %4953 = vmatmul.mubr.f32.gmra.mxu0 %v3419
    %v4954 = vpop.f32.mrf.mxu0
    %v4955 = vadd.f32 0.0, %v4954
    %v4956 = vpop.f32.mrf.mxu0
    %4957 = vmatprep.mubr.f32.mxu0 0.0
    %4958 = vmatmul.mubr.f32.gmra.mxu0 %v3420
    %v4959 = vpop.f32.mrf.mxu0
    %v4960 = vadd.f32 0.0, %v4959
    %v4961 = vpop.f32.mrf.mxu0
    %4962 = vmatprep.mubr.f32.mxu0 0.0
    %4963 = vmatmul.mubr.f32.gmra.mxu0 %v3421
    %v4964 = vpop.f32.mrf.mxu0
    %v4965 = vadd.f32 0.0, %v4964
    %v4966 = vpop.f32.mrf.mxu0
    %4967 = vmatprep.mubr.f32.mxu0 0.0
    %4968 = vmatmul.mubr.f32.gmra.mxu0 %v3422
    %v4969 = vpop.f32.mrf.mxu0
    %v4970 = vadd.f32 0.0, %v4969
    %v4971 = vpop.f32.mrf.mxu0
    %4972 = vmatprep.mubr.f32.mxu0 0.0
    %4973 = vmatmul.mubr.f32.gmra.mxu0 %v3423
    %v4974 = vpop.f32.mrf.mxu0
    %v4975 = vadd.f32 0.0, %v4974
    %v4976 = vpop.f32.mrf.mxu0
    %4977 = vmatprep.mubr.f32.mxu0 0.0
    %4978 = vmatmul.mubr.f32.gmra.mxu0 %v3424
    %v4979 = vpop.f32.mrf.mxu0
    %v4980 = vadd.f32 0.0, %v4979
    %v4981 = vpop.f32.mrf.mxu0
    %4982 = vmatprep.mubr.f32.mxu0 0.0
    %4983 = vmatmul.mubr.f32.gmra.mxu0 %v3425
    %v4984 = vpop.f32.mrf.mxu0
    %v4985 = vadd.f32 0.0, %v4984
    %v4986 = vpop.f32.mrf.mxu0
    %4987 = vmatprep.mubr.f32.mxu0 0.0
    %4988 = vmatmul.mubr.f32.gmra.mxu0 %v3426
    %v4989 = vpop.f32.mrf.mxu0
    %v4990 = vadd.f32 0.0, %v4989
    %v4991 = vpop.f32.mrf.mxu0
    %4992 = vmatprep.mubr.f32.mxu0 0.0
    %4993 = vmatmul.mubr.f32.gmra.mxu0 %v3427
    %v4994 = vpop.f32.mrf.mxu0
    %v4995 = vadd.f32 0.0, %v4994
    %v4996 = vpop.f32.mrf.mxu0
    %4997 = vmatprep.mubr.f32.mxu0 0.0
    %4998 = vmatmul.mubr.f32.gmra.mxu0 %v3428
    %v4999 = vpop.f32.mrf.mxu0
    %v5000 = vadd.f32 0.0, %v4999
    %v5001 = vpop.f32.mrf.mxu0
    %5002 = vmatprep.mubr.f32.mxu0 0.0
    %5003 = vmatmul.mubr.f32.gmra.mxu0 %v3429
    %v5004 = vpop.f32.mrf.mxu0
    %v5005 = vadd.f32 0.0, %v5004
    %v5006 = vpop.f32.mrf.mxu0
    %5007 = vmatprep.mubr.f32.mxu0 0.0
    %5008 = vmatmul.mubr.f32.gmra.mxu0 %v3430
    %v5009 = vpop.f32.mrf.mxu0
    %v5010 = vadd.f32 0.0, %v5009
    %v5011 = vpop.f32.mrf.mxu0
    %5012 = vmatprep.mubr.f32.mxu0 0.0
    %5013 = vmatmul.mubr.f32.gmra.mxu0 %v3431
    %v5014 = vpop.f32.mrf.mxu0
    %v5015 = vadd.f32 0.0, %v5014
    %v5016 = vpop.f32.mrf.mxu0
    %5017 = vmatprep.mubr.f32.mxu0 0.0
    %5018 = vmatmul.mubr.f32.gmra.mxu0 %v3432
    %v5019 = vpop.f32.mrf.mxu0
    %v5020 = vadd.f32 0.0, %v5019
    %v5021 = vpop.f32.mrf.mxu0
    %5022 = vmatprep.mubr.f32.mxu0 0.0
    %5023 = vmatmul.mubr.f32.gmra.mxu0 %v3433
    %v5024 = vpop.f32.mrf.mxu0
    %v5025 = vadd.f32 0.0, %v5024
    %v5026 = vpop.f32.mrf.mxu0
    %5027 = vmatprep.mubr.f32.mxu0 0.0
    %5028 = vmatmul.mubr.f32.gmra.mxu0 %v3434
    %v5029 = vpop.f32.mrf.mxu0
    %v5030 = vadd.f32 0.0, %v5029
    %v5031 = vpop.f32.mrf.mxu0
    %5032 = vmatprep.mubr.f32.mxu0 0.0
    %5033 = vmatmul.mubr.f32.gmra.mxu0 %v3435
    %v5034 = vpop.f32.mrf.mxu0
    %v5035 = vadd.f32 0.0, %v5034
    %v5036 = vpop.f32.mrf.mxu0
    %5037 = vmatprep.mubr.f32.mxu0 0.0
    %5038 = vmatmul.mubr.f32.gmra.mxu0 %v3436
    %v5039 = vpop.f32.mrf.mxu0
    %v5040 = vadd.f32 0.0, %v5039
    %v5041 = vpop.f32.mrf.mxu0
    %5042 = vmatprep.mubr.f32.mxu0 0.0
    %5043 = vmatmul.mubr.f32.gmra.mxu0 %v3437
    %v5044 = vpop.f32.mrf.mxu0
    %v5045 = vadd.f32 0.0, %v5044
    %v5046 = vpop.f32.mrf.mxu0
    %5047 = vmatprep.mubr.f32.mxu0 0.0
    %5048 = vmatmul.mubr.f32.gmra.mxu0 %v3438
    %v5049 = vpop.f32.mrf.mxu0
    %v5050 = vadd.f32 0.0, %v5049
    %v5051 = vpop.f32.mrf.mxu0
    %5052 = vmatprep.mubr.f32.mxu0 0.0
    %5053 = vmatmul.mubr.f32.gmra.mxu0 %v3439
    %v5054 = vpop.f32.mrf.mxu0
    %v5055 = vadd.f32 0.0, %v5054
    %v5056 = vpop.f32.mrf.mxu0
    %5057 = vmatprep.mubr.f32.mxu0 0.0
    %5058 = vmatmul.mubr.f32.gmra.mxu0 %v3440
    %v5059 = vpop.f32.mrf.mxu0
    %v5060 = vadd.f32 0.0, %v5059
    %v5061 = vpop.f32.mrf.mxu0
    %5062 = vmatprep.mubr.f32.mxu0 0.0
    %5063 = vmatmul.mubr.f32.gmra.mxu0 %v3441
    %v5064 = vpop.f32.mrf.mxu0
    %v5065 = vadd.f32 0.0, %v5064
    %v5066 = vpop.f32.mrf.mxu0
    %5067 = vdwg.mxu0
    %v5068 = vadd.f32 %v4794, %v4910
    %v5069 = vadd.f32 %v4795, %v4915
    %v5070 = vadd.f32 %v4796, %v4920
    %v5071 = vadd.f32 %v4797, %v4925
    %v5072 = vadd.f32 %v4798, %v4930
    %v5073 = vadd.f32 %v4799, %v4935
    %v5074 = vadd.f32 %v4800, %v4940
    %v5075 = vadd.f32 %v4801, %v4945
    %v5076 = vadd.f32 %v4802, %v4950
    %v5077 = vadd.f32 %v4803, %v4955
    %v5078 = vadd.f32 %v4804, %v4960
    %v5079 = vadd.f32 %v4805, %v4965
    %v5080 = vadd.f32 %v4806, %v4970
    %v5081 = vadd.f32 %v4807, %v4975
    %v5082 = vadd.f32 %v4808, %v4980
    %v5083 = vadd.f32 %v4809, %v4985
    %v5084 = vadd.f32 %v4810, %v4990
    %v5085 = vadd.f32 %v4811, %v4995
    %v5086 = vadd.f32 %v4812, %v5000
    %v5087 = vadd.f32 %v4813, %v5005
    %v5088 = vadd.f32 %v4814, %v5010
    %v5089 = vadd.f32 %v4815, %v5015
    %v5090 = vadd.f32 %v4816, %v5020
    %v5091 = vadd.f32 %v4817, %v5025
    %v5092 = vadd.f32 %v4818, %v5030
    %v5093 = vadd.f32 %v4819, %v5035
    %v5094 = vadd.f32 %v4820, %v5040
    %v5095 = vadd.f32 %v4821, %v5045
    %v5096 = vadd.f32 %v4822, %v5050
    %v5097 = vadd.f32 %v4823, %v5055
    %v5098 = vadd.f32 %v4824, %v5060
    %v5099 = vadd.f32 %v4825, %v5065
    %s5100 = scalar_lea.vmem [#allocation7], 640
    %v5101 = vld [vmem:[%s5100] sm:$0xff]
    %v5102 = vld [vmem:[%s5100 + $0x8] sm:$0xff]
    %v5103 = vld [vmem:[%s5100 + $0x10] sm:$0xff]
    %v5104 = vld [vmem:[%s5100 + $0x18] sm:$0xff]
    %v5105 = vld [vmem:[%s5100 + $0x20] sm:$0xff]
    %v5106 = vld [vmem:[%s5100 + $0x28] sm:$0xff]
    %v5107 = vld [vmem:[%s5100 + $0x30] sm:$0xff]
    %v5108 = vld [vmem:[%s5100 + $0x38] sm:$0xff]
    %v5109 = vld [vmem:[%s5100 + $0x40] sm:$0xff]
    %v5110 = vld [vmem:[%s5100 + $0x48] sm:$0xff]
    %v5111 = vld [vmem:[%s5100 + $0x50] sm:$0xff]
    %v5112 = vld [vmem:[%s5100 + $0x58] sm:$0xff]
    %v5113 = vld [vmem:[%s5100 + $0x60] sm:$0xff]
    %v5114 = vld [vmem:[%s5100 + $0x68] sm:$0xff]
    %v5115 = vld [vmem:[%s5100 + $0x70] sm:$0xff]
    %v5116 = vld [vmem:[%s5100 + $0x78] sm:$0xff]
    %5117 = vmatprep.subr.mxu0 0.0
    %5118 = vmatpush1.msra.mxu0 %v5116
    %5119 = vmatprep.subr.mxu0 0.0
    %5120 = vmatpush1.msra.mxu0 %v5115
    %5121 = vmatprep.subr.mxu0 0.0
    %5122 = vmatpush1.msra.mxu0 %v5114
    %5123 = vmatprep.subr.mxu0 0.0
    %5124 = vmatpush1.msra.mxu0 %v5113
    %5125 = vmatprep.subr.mxu0 0.0
    %5126 = vmatpush1.msra.mxu0 %v5112
    %5127 = vmatprep.subr.mxu0 0.0
    %5128 = vmatpush1.msra.mxu0 %v5111
    %5129 = vmatprep.subr.mxu0 0.0
    %5130 = vmatpush1.msra.mxu0 %v5110
    %5131 = vmatprep.subr.mxu0 0.0
    %5132 = vmatpush1.msra.mxu0 %v5109
    %5133 = vmatprep.subr.mxu0 0.0
    %5134 = vmatpush1.msra.mxu0 %v5108
    %5135 = vmatprep.subr.mxu0 0.0
    %5136 = vmatpush1.msra.mxu0 %v5107
    %5137 = vmatprep.subr.mxu0 0.0
    %5138 = vmatpush1.msra.mxu0 %v5106
    %5139 = vmatprep.subr.mxu0 0.0
    %5140 = vmatpush1.msra.mxu0 %v5105
    %5141 = vmatprep.subr.mxu0 0.0
    %5142 = vmatpush1.msra.mxu0 %v5104
    %5143 = vmatprep.subr.mxu0 0.0
    %5144 = vmatpush1.msra.mxu0 %v5103
    %5145 = vmatprep.subr.mxu0 0.0
    %5146 = vmatpush1.msra.mxu0 %v5102
    %5147 = vmatprep.subr.mxu0 0.0
    %5148 = vmatpush1.msra.mxu0 %v5101
    %5149 = vmatprep.subr.mxu0 0.0
    %5150 = vmatpush2.msra.mxu0 0.0
    %5151 = vmatprep.subr.mxu0 0.0
    %5152 = vmatpush2.msra.mxu0 0.0
    %5153 = vmatprep.subr.mxu0 0.0
    %5154 = vmatpush2.msra.mxu0 0.0
    %5155 = vmatprep.subr.mxu0 0.0
    %5156 = vmatpush2.msra.mxu0 0.0
    %5157 = vmatprep.subr.mxu0 0.0
    %5158 = vmatpush2.msra.mxu0 0.0
    %5159 = vmatprep.subr.mxu0 0.0
    %5160 = vmatpush2.msra.mxu0 0.0
    %5161 = vmatprep.subr.mxu0 0.0
    %5162 = vmatpush2.msra.mxu0 0.0
    %5163 = vmatprep.subr.mxu0 0.0
    %5164 = vmatpush2.msra.mxu0 0.0
    %5165 = vmatprep.subr.mxu0 0.0
    %5166 = vmatpush2.msra.mxu0 0.0
    %5167 = vmatprep.subr.mxu0 0.0
    %5168 = vmatpush2.msra.mxu0 0.0
    %5169 = vmatprep.subr.mxu0 0.0
    %5170 = vmatpush2.msra.mxu0 0.0
    %5171 = vmatprep.subr.mxu0 0.0
    %5172 = vmatpush2.msra.mxu0 0.0
    %5173 = vmatprep.subr.mxu0 0.0
    %5174 = vmatpush2.msra.mxu0 0.0
    %5175 = vmatprep.subr.mxu0 0.0
    %5176 = vmatpush2.msra.mxu0 0.0
    %5177 = vmatprep.subr.mxu0 0.0
    %5178 = vmatpush2.msra.mxu0 0.0
    %5179 = vmatprep.subr.mxu0 0.0
    %5180 = vmatpush2.msra.mxu0 0.0
    %5181 = vmatprep.mubr.f32.mxu0 0.0
    %5182 = vmatmul.mubr.f32.gmra.mxu0 %v3763
    %v5183 = vpop.f32.mrf.mxu0
    %v5184 = vadd.f32 0.0, %v5183
    %v5185 = vpop.f32.mrf.mxu0
    %5186 = vmatprep.mubr.f32.mxu0 0.0
    %5187 = vmatmul.mubr.f32.gmra.mxu0 %v3764
    %v5188 = vpop.f32.mrf.mxu0
    %v5189 = vadd.f32 0.0, %v5188
    %v5190 = vpop.f32.mrf.mxu0
    %5191 = vmatprep.mubr.f32.mxu0 0.0
    %5192 = vmatmul.mubr.f32.gmra.mxu0 %v3765
    %v5193 = vpop.f32.mrf.mxu0
    %v5194 = vadd.f32 0.0, %v5193
    %v5195 = vpop.f32.mrf.mxu0
    %5196 = vmatprep.mubr.f32.mxu0 0.0
    %5197 = vmatmul.mubr.f32.gmra.mxu0 %v3766
    %v5198 = vpop.f32.mrf.mxu0
    %v5199 = vadd.f32 0.0, %v5198
    %v5200 = vpop.f32.mrf.mxu0
    %5201 = vmatprep.mubr.f32.mxu0 0.0
    %5202 = vmatmul.mubr.f32.gmra.mxu0 %v3767
    %v5203 = vpop.f32.mrf.mxu0
    %v5204 = vadd.f32 0.0, %v5203
    %v5205 = vpop.f32.mrf.mxu0
    %5206 = vmatprep.mubr.f32.mxu0 0.0
    %5207 = vmatmul.mubr.f32.gmra.mxu0 %v3768
    %v5208 = vpop.f32.mrf.mxu0
    %v5209 = vadd.f32 0.0, %v5208
    %v5210 = vpop.f32.mrf.mxu0
    %5211 = vmatprep.mubr.f32.mxu0 0.0
    %5212 = vmatmul.mubr.f32.gmra.mxu0 %v3769
    %v5213 = vpop.f32.mrf.mxu0
    %v5214 = vadd.f32 0.0, %v5213
    %v5215 = vpop.f32.mrf.mxu0
    %5216 = vmatprep.mubr.f32.mxu0 0.0
    %5217 = vmatmul.mubr.f32.gmra.mxu0 %v3770
    %v5218 = vpop.f32.mrf.mxu0
    %v5219 = vadd.f32 0.0, %v5218
    %v5220 = vpop.f32.mrf.mxu0
    %5221 = vmatprep.mubr.f32.mxu0 0.0
    %5222 = vmatmul.mubr.f32.gmra.mxu0 %v3771
    %v5223 = vpop.f32.mrf.mxu0
    %v5224 = vadd.f32 0.0, %v5223
    %v5225 = vpop.f32.mrf.mxu0
    %5226 = vmatprep.mubr.f32.mxu0 0.0
    %5227 = vmatmul.mubr.f32.gmra.mxu0 %v3772
    %v5228 = vpop.f32.mrf.mxu0
    %v5229 = vadd.f32 0.0, %v5228
    %v5230 = vpop.f32.mrf.mxu0
    %5231 = vmatprep.mubr.f32.mxu0 0.0
    %5232 = vmatmul.mubr.f32.gmra.mxu0 %v3773
    %v5233 = vpop.f32.mrf.mxu0
    %v5234 = vadd.f32 0.0, %v5233
    %v5235 = vpop.f32.mrf.mxu0
    %5236 = vmatprep.mubr.f32.mxu0 0.0
    %5237 = vmatmul.mubr.f32.gmra.mxu0 %v3774
    %v5238 = vpop.f32.mrf.mxu0
    %v5239 = vadd.f32 0.0, %v5238
    %v5240 = vpop.f32.mrf.mxu0
    %5241 = vmatprep.mubr.f32.mxu0 0.0
    %5242 = vmatmul.mubr.f32.gmra.mxu0 %v3775
    %v5243 = vpop.f32.mrf.mxu0
    %v5244 = vadd.f32 0.0, %v5243
    %v5245 = vpop.f32.mrf.mxu0
    %5246 = vmatprep.mubr.f32.mxu0 0.0
    %5247 = vmatmul.mubr.f32.gmra.mxu0 %v3776
    %v5248 = vpop.f32.mrf.mxu0
    %v5249 = vadd.f32 0.0, %v5248
    %v5250 = vpop.f32.mrf.mxu0
    %5251 = vmatprep.mubr.f32.mxu0 0.0
    %5252 = vmatmul.mubr.f32.gmra.mxu0 %v3777
    %v5253 = vpop.f32.mrf.mxu0
    %v5254 = vadd.f32 0.0, %v5253
    %v5255 = vpop.f32.mrf.mxu0
    %5256 = vmatprep.mubr.f32.mxu0 0.0
    %5257 = vmatmul.mubr.f32.gmra.mxu0 %v3778
    %v5258 = vpop.f32.mrf.mxu0
    %v5259 = vadd.f32 0.0, %v5258
    %v5260 = vpop.f32.mrf.mxu0
    %5261 = vmatprep.mubr.f32.mxu0 0.0
    %5262 = vmatmul.mubr.f32.gmra.mxu0 %v3779
    %v5263 = vpop.f32.mrf.mxu0
    %v5264 = vadd.f32 0.0, %v5263
    %v5265 = vpop.f32.mrf.mxu0
    %5266 = vmatprep.mubr.f32.mxu0 0.0
    %5267 = vmatmul.mubr.f32.gmra.mxu0 %v3780
    %v5268 = vpop.f32.mrf.mxu0
    %v5269 = vadd.f32 0.0, %v5268
    %v5270 = vpop.f32.mrf.mxu0
    %5271 = vmatprep.mubr.f32.mxu0 0.0
    %5272 = vmatmul.mubr.f32.gmra.mxu0 %v3781
    %v5273 = vpop.f32.mrf.mxu0
    %v5274 = vadd.f32 0.0, %v5273
    %v5275 = vpop.f32.mrf.mxu0
    %5276 = vmatprep.mubr.f32.mxu0 0.0
    %5277 = vmatmul.mubr.f32.gmra.mxu0 %v3782
    %v5278 = vpop.f32.mrf.mxu0
    %v5279 = vadd.f32 0.0, %v5278
    %v5280 = vpop.f32.mrf.mxu0
    %5281 = vmatprep.mubr.f32.mxu0 0.0
    %5282 = vmatmul.mubr.f32.gmra.mxu0 %v3783
    %v5283 = vpop.f32.mrf.mxu0
    %v5284 = vadd.f32 0.0, %v5283
    %v5285 = vpop.f32.mrf.mxu0
    %5286 = vmatprep.mubr.f32.mxu0 0.0
    %5287 = vmatmul.mubr.f32.gmra.mxu0 %v3784
    %v5288 = vpop.f32.mrf.mxu0
    %v5289 = vadd.f32 0.0, %v5288
    %v5290 = vpop.f32.mrf.mxu0
    %5291 = vmatprep.mubr.f32.mxu0 0.0
    %5292 = vmatmul.mubr.f32.gmra.mxu0 %v3785
    %v5293 = vpop.f32.mrf.mxu0
    %v5294 = vadd.f32 0.0, %v5293
    %v5295 = vpop.f32.mrf.mxu0
    %5296 = vmatprep.mubr.f32.mxu0 0.0
    %5297 = vmatmul.mubr.f32.gmra.mxu0 %v3786
    %v5298 = vpop.f32.mrf.mxu0
    %v5299 = vadd.f32 0.0, %v5298
    %v5300 = vpop.f32.mrf.mxu0
    %5301 = vmatprep.mubr.f32.mxu0 0.0
    %5302 = vmatmul.mubr.f32.gmra.mxu0 %v3787
    %v5303 = vpop.f32.mrf.mxu0
    %v5304 = vadd.f32 0.0, %v5303
    %v5305 = vpop.f32.mrf.mxu0
    %5306 = vmatprep.mubr.f32.mxu0 0.0
    %5307 = vmatmul.mubr.f32.gmra.mxu0 %v3788
    %v5308 = vpop.f32.mrf.mxu0
    %v5309 = vadd.f32 0.0, %v5308
    %v5310 = vpop.f32.mrf.mxu0
    %5311 = vmatprep.mubr.f32.mxu0 0.0
    %5312 = vmatmul.mubr.f32.gmra.mxu0 %v3789
    %v5313 = vpop.f32.mrf.mxu0
    %v5314 = vadd.f32 0.0, %v5313
    %v5315 = vpop.f32.mrf.mxu0
    %5316 = vmatprep.mubr.f32.mxu0 0.0
    %5317 = vmatmul.mubr.f32.gmra.mxu0 %v3790
    %v5318 = vpop.f32.mrf.mxu0
    %v5319 = vadd.f32 0.0, %v5318
    %v5320 = vpop.f32.mrf.mxu0
    %5321 = vmatprep.mubr.f32.mxu0 0.0
    %5322 = vmatmul.mubr.f32.gmra.mxu0 %v3791
    %v5323 = vpop.f32.mrf.mxu0
    %v5324 = vadd.f32 0.0, %v5323
    %v5325 = vpop.f32.mrf.mxu0
    %5326 = vmatprep.mubr.f32.mxu0 0.0
    %5327 = vmatmul.mubr.f32.gmra.mxu0 %v3792
    %v5328 = vpop.f32.mrf.mxu0
    %v5329 = vadd.f32 0.0, %v5328
    %v5330 = vpop.f32.mrf.mxu0
    %5331 = vmatprep.mubr.f32.mxu0 0.0
    %5332 = vmatmul.mubr.f32.gmra.mxu0 %v3793
    %v5333 = vpop.f32.mrf.mxu0
    %v5334 = vadd.f32 0.0, %v5333
    %v5335 = vpop.f32.mrf.mxu0
    %5336 = vmatprep.mubr.f32.mxu0 0.0
    %5337 = vmatmul.mubr.f32.gmra.mxu0 %v3794
    %v5338 = vpop.f32.mrf.mxu0
    %v5339 = vadd.f32 0.0, %v5338
    %v5340 = vpop.f32.mrf.mxu0
    %5341 = vdwg.mxu0
    %v5342 = vadd.f32 %v5068, %v5184
    %v5343 = vadd.f32 %v5069, %v5189
    %v5344 = vadd.f32 %v5070, %v5194
    %v5345 = vadd.f32 %v5071, %v5199
    %v5346 = vadd.f32 %v5072, %v5204
    %v5347 = vadd.f32 %v5073, %v5209
    %v5348 = vadd.f32 %v5074, %v5214
    %v5349 = vadd.f32 %v5075, %v5219
    %v5350 = vadd.f32 %v5076, %v5224
    %v5351 = vadd.f32 %v5077, %v5229
    %v5352 = vadd.f32 %v5078, %v5234
    %v5353 = vadd.f32 %v5079, %v5239
    %v5354 = vadd.f32 %v5080, %v5244
    %v5355 = vadd.f32 %v5081, %v5249
    %v5356 = vadd.f32 %v5082, %v5254
    %v5357 = vadd.f32 %v5083, %v5259
    %v5358 = vadd.f32 %v5084, %v5264
    %v5359 = vadd.f32 %v5085, %v5269
    %v5360 = vadd.f32 %v5086, %v5274
    %v5361 = vadd.f32 %v5087, %v5279
    %v5362 = vadd.f32 %v5088, %v5284
    %v5363 = vadd.f32 %v5089, %v5289
    %v5364 = vadd.f32 %v5090, %v5294
    %v5365 = vadd.f32 %v5091, %v5299
    %v5366 = vadd.f32 %v5092, %v5304
    %v5367 = vadd.f32 %v5093, %v5309
    %v5368 = vadd.f32 %v5094, %v5314
    %v5369 = vadd.f32 %v5095, %v5319
    %v5370 = vadd.f32 %v5096, %v5324
    %v5371 = vadd.f32 %v5097, %v5329
    %v5372 = vadd.f32 %v5098, %v5334
    %v5373 = vadd.f32 %v5099, %v5339
    %s5374 = scalar_lea.vmem [#allocation7], 768
    %v5375 = vld [vmem:[%s5374] sm:$0xff]
    %v5376 = vld [vmem:[%s5374 + $0x8] sm:$0xff]
    %v5377 = vld [vmem:[%s5374 + $0x10] sm:$0xff]
    %v5378 = vld [vmem:[%s5374 + $0x18] sm:$0xff]
    %v5379 = vld [vmem:[%s5374 + $0x20] sm:$0xff]
    %v5380 = vld [vmem:[%s5374 + $0x28] sm:$0xff]
    %v5381 = vld [vmem:[%s5374 + $0x30] sm:$0xff]
    %v5382 = vld [vmem:[%s5374 + $0x38] sm:$0xff]
    %v5383 = vld [vmem:[%s5374 + $0x40] sm:$0xff]
    %v5384 = vld [vmem:[%s5374 + $0x48] sm:$0xff]
    %v5385 = vld [vmem:[%s5374 + $0x50] sm:$0xff]
    %v5386 = vld [vmem:[%s5374 + $0x58] sm:$0xff]
    %v5387 = vld [vmem:[%s5374 + $0x60] sm:$0xff]
    %v5388 = vld [vmem:[%s5374 + $0x68] sm:$0xff]
    %v5389 = vld [vmem:[%s5374 + $0x70] sm:$0xff]
    %v5390 = vld [vmem:[%s5374 + $0x78] sm:$0xff]
    %5391 = vmatprep.subr.mxu0 0.0
    %5392 = vmatpush1.msra.mxu0 %v5390
    %5393 = vmatprep.subr.mxu0 0.0
    %5394 = vmatpush1.msra.mxu0 %v5389
    %5395 = vmatprep.subr.mxu0 0.0
    %5396 = vmatpush1.msra.mxu0 %v5388
    %5397 = vmatprep.subr.mxu0 0.0
    %5398 = vmatpush1.msra.mxu0 %v5387
    %5399 = vmatprep.subr.mxu0 0.0
    %5400 = vmatpush1.msra.mxu0 %v5386
    %5401 = vmatprep.subr.mxu0 0.0
    %5402 = vmatpush1.msra.mxu0 %v5385
    %5403 = vmatprep.subr.mxu0 0.0
    %5404 = vmatpush1.msra.mxu0 %v5384
    %5405 = vmatprep.subr.mxu0 0.0
    %5406 = vmatpush1.msra.mxu0 %v5383
    %5407 = vmatprep.subr.mxu0 0.0
    %5408 = vmatpush1.msra.mxu0 %v5382
    %5409 = vmatprep.subr.mxu0 0.0
    %5410 = vmatpush1.msra.mxu0 %v5381
    %5411 = vmatprep.subr.mxu0 0.0
    %5412 = vmatpush1.msra.mxu0 %v5380
    %5413 = vmatprep.subr.mxu0 0.0
    %5414 = vmatpush1.msra.mxu0 %v5379
    %5415 = vmatprep.subr.mxu0 0.0
    %5416 = vmatpush1.msra.mxu0 %v5378
    %5417 = vmatprep.subr.mxu0 0.0
    %5418 = vmatpush1.msra.mxu0 %v5377
    %5419 = vmatprep.subr.mxu0 0.0
    %5420 = vmatpush1.msra.mxu0 %v5376
    %5421 = vmatprep.subr.mxu0 0.0
    %5422 = vmatpush1.msra.mxu0 %v5375
    %5423 = vmatprep.subr.mxu0 0.0
    %5424 = vmatpush2.msra.mxu0 0.0
    %5425 = vmatprep.subr.mxu0 0.0
    %5426 = vmatpush2.msra.mxu0 0.0
    %5427 = vmatprep.subr.mxu0 0.0
    %5428 = vmatpush2.msra.mxu0 0.0
    %5429 = vmatprep.subr.mxu0 0.0
    %5430 = vmatpush2.msra.mxu0 0.0
    %5431 = vmatprep.subr.mxu0 0.0
    %5432 = vmatpush2.msra.mxu0 0.0
    %5433 = vmatprep.subr.mxu0 0.0
    %5434 = vmatpush2.msra.mxu0 0.0
    %5435 = vmatprep.subr.mxu0 0.0
    %5436 = vmatpush2.msra.mxu0 0.0
    %5437 = vmatprep.subr.mxu0 0.0
    %5438 = vmatpush2.msra.mxu0 0.0
    %5439 = vmatprep.subr.mxu0 0.0
    %5440 = vmatpush2.msra.mxu0 0.0
    %5441 = vmatprep.subr.mxu0 0.0
    %5442 = vmatpush2.msra.mxu0 0.0
    %5443 = vmatprep.subr.mxu0 0.0
    %5444 = vmatpush2.msra.mxu0 0.0
    %5445 = vmatprep.subr.mxu0 0.0
    %5446 = vmatpush2.msra.mxu0 0.0
    %5447 = vmatprep.subr.mxu0 0.0
    %5448 = vmatpush2.msra.mxu0 0.0
    %5449 = vmatprep.subr.mxu0 0.0
    %5450 = vmatpush2.msra.mxu0 0.0
    %5451 = vmatprep.subr.mxu0 0.0
    %5452 = vmatpush2.msra.mxu0 0.0
    %5453 = vmatprep.subr.mxu0 0.0
    %5454 = vmatpush2.msra.mxu0 0.0
    %5455 = vmatprep.mubr.f32.mxu0 0.0
    %5456 = vmatmul.mubr.f32.gmra.mxu0 %v3732
    %v5457 = vpop.f32.mrf.mxu0
    %v5458 = vadd.f32 0.0, %v5457
    %v5459 = vpop.f32.mrf.mxu0
    %5460 = vmatprep.mubr.f32.mxu0 0.0
    %5461 = vmatmul.mubr.f32.gmra.mxu0 %v3733
    %v5462 = vpop.f32.mrf.mxu0
    %v5463 = vadd.f32 0.0, %v5462
    %v5464 = vpop.f32.mrf.mxu0
    %5465 = vmatprep.mubr.f32.mxu0 0.0
    %5466 = vmatmul.mubr.f32.gmra.mxu0 %v3734
    %v5467 = vpop.f32.mrf.mxu0
    %v5468 = vadd.f32 0.0, %v5467
    %v5469 = vpop.f32.mrf.mxu0
    %5470 = vmatprep.mubr.f32.mxu0 0.0
    %5471 = vmatmul.mubr.f32.gmra.mxu0 %v3735
    %v5472 = vpop.f32.mrf.mxu0
    %v5473 = vadd.f32 0.0, %v5472
    %v5474 = vpop.f32.mrf.mxu0
    %5475 = vmatprep.mubr.f32.mxu0 0.0
    %5476 = vmatmul.mubr.f32.gmra.mxu0 %v3736
    %v5477 = vpop.f32.mrf.mxu0
    %v5478 = vadd.f32 0.0, %v5477
    %v5479 = vpop.f32.mrf.mxu0
    %5480 = vmatprep.mubr.f32.mxu0 0.0
    %5481 = vmatmul.mubr.f32.gmra.mxu0 %v3737
    %v5482 = vpop.f32.mrf.mxu0
    %v5483 = vadd.f32 0.0, %v5482
    %v5484 = vpop.f32.mrf.mxu0
    %5485 = vmatprep.mubr.f32.mxu0 0.0
    %5486 = vmatmul.mubr.f32.gmra.mxu0 %v3738
    %v5487 = vpop.f32.mrf.mxu0
    %v5488 = vadd.f32 0.0, %v5487
    %v5489 = vpop.f32.mrf.mxu0
    %5490 = vmatprep.mubr.f32.mxu0 0.0
    %5491 = vmatmul.mubr.f32.gmra.mxu0 %v3739
    %v5492 = vpop.f32.mrf.mxu0
    %v5493 = vadd.f32 0.0, %v5492
    %v5494 = vpop.f32.mrf.mxu0
    %5495 = vmatprep.mubr.f32.mxu0 0.0
    %5496 = vmatmul.mubr.f32.gmra.mxu0 %v3740
    %v5497 = vpop.f32.mrf.mxu0
    %v5498 = vadd.f32 0.0, %v5497
    %v5499 = vpop.f32.mrf.mxu0
    %5500 = vmatprep.mubr.f32.mxu0 0.0
    %5501 = vmatmul.mubr.f32.gmra.mxu0 %v3741
    %v5502 = vpop.f32.mrf.mxu0
    %v5503 = vadd.f32 0.0, %v5502
    %v5504 = vpop.f32.mrf.mxu0
    %5505 = vmatprep.mubr.f32.mxu0 0.0
    %5506 = vmatmul.mubr.f32.gmra.mxu0 %v3742
    %v5507 = vpop.f32.mrf.mxu0
    %v5508 = vadd.f32 0.0, %v5507
    %v5509 = vpop.f32.mrf.mxu0
    %5510 = vmatprep.mubr.f32.mxu0 0.0
    %5511 = vmatmul.mubr.f32.gmra.mxu0 %v3743
    %v5512 = vpop.f32.mrf.mxu0
    %v5513 = vadd.f32 0.0, %v5512
    %v5514 = vpop.f32.mrf.mxu0
    %5515 = vmatprep.mubr.f32.mxu0 0.0
    %5516 = vmatmul.mubr.f32.gmra.mxu0 %v3744
    %v5517 = vpop.f32.mrf.mxu0
    %v5518 = vadd.f32 0.0, %v5517
    %v5519 = vpop.f32.mrf.mxu0
    %5520 = vmatprep.mubr.f32.mxu0 0.0
    %5521 = vmatmul.mubr.f32.gmra.mxu0 %v3745
    %v5522 = vpop.f32.mrf.mxu0
    %v5523 = vadd.f32 0.0, %v5522
    %v5524 = vpop.f32.mrf.mxu0
    %5525 = vmatprep.mubr.f32.mxu0 0.0
    %5526 = vmatmul.mubr.f32.gmra.mxu0 %v3746
    %v5527 = vpop.f32.mrf.mxu0
    %v5528 = vadd.f32 0.0, %v5527
    %v5529 = vpop.f32.mrf.mxu0
    %5530 = vmatprep.mubr.f32.mxu0 0.0
    %5531 = vmatmul.mubr.f32.gmra.mxu0 %v674
    %v5532 = vpop.f32.mrf.mxu0
    %v5533 = vadd.f32 0.0, %v5532
    %v5534 = vpop.f32.mrf.mxu0
    %5535 = vmatprep.mubr.f32.mxu0 0.0
    %5536 = vmatmul.mubr.f32.gmra.mxu0 %v3748
    %v5537 = vpop.f32.mrf.mxu0
    %v5538 = vadd.f32 0.0, %v5537
    %v5539 = vpop.f32.mrf.mxu0
    %5540 = vmatprep.mubr.f32.mxu0 0.0
    %5541 = vmatmul.mubr.f32.gmra.mxu0 %v3749
    %v5542 = vpop.f32.mrf.mxu0
    %v5543 = vadd.f32 0.0, %v5542
    %v5544 = vpop.f32.mrf.mxu0
    %5545 = vmatprep.mubr.f32.mxu0 0.0
    %5546 = vmatmul.mubr.f32.gmra.mxu0 %v3750
    %v5547 = vpop.f32.mrf.mxu0
    %v5548 = vadd.f32 0.0, %v5547
    %v5549 = vpop.f32.mrf.mxu0
    %5550 = vmatprep.mubr.f32.mxu0 0.0
    %5551 = vmatmul.mubr.f32.gmra.mxu0 %v3751
    %v5552 = vpop.f32.mrf.mxu0
    %v5553 = vadd.f32 0.0, %v5552
    %v5554 = vpop.f32.mrf.mxu0
    %5555 = vmatprep.mubr.f32.mxu0 0.0
    %5556 = vmatmul.mubr.f32.gmra.mxu0 %v3752
    %v5557 = vpop.f32.mrf.mxu0
    %v5558 = vadd.f32 0.0, %v5557
    %v5559 = vpop.f32.mrf.mxu0
    %5560 = vmatprep.mubr.f32.mxu0 0.0
    %5561 = vmatmul.mubr.f32.gmra.mxu0 %v3753
    %v5562 = vpop.f32.mrf.mxu0
    %v5563 = vadd.f32 0.0, %v5562
    %v5564 = vpop.f32.mrf.mxu0
    %5565 = vmatprep.mubr.f32.mxu0 0.0
    %5566 = vmatmul.mubr.f32.gmra.mxu0 %v3754
    %v5567 = vpop.f32.mrf.mxu0
    %v5568 = vadd.f32 0.0, %v5567
    %v5569 = vpop.f32.mrf.mxu0
    %5570 = vmatprep.mubr.f32.mxu0 0.0
    %5571 = vmatmul.mubr.f32.gmra.mxu0 %v3755
    %v5572 = vpop.f32.mrf.mxu0
    %v5573 = vadd.f32 0.0, %v5572
    %v5574 = vpop.f32.mrf.mxu0
    %5575 = vmatprep.mubr.f32.mxu0 0.0
    %5576 = vmatmul.mubr.f32.gmra.mxu0 %v3756
    %v5577 = vpop.f32.mrf.mxu0
    %v5578 = vadd.f32 0.0, %v5577
    %v5579 = vpop.f32.mrf.mxu0
    %5580 = vmatprep.mubr.f32.mxu0 0.0
    %5581 = vmatmul.mubr.f32.gmra.mxu0 %v3757
    %v5582 = vpop.f32.mrf.mxu0
    %v5583 = vadd.f32 0.0, %v5582
    %v5584 = vpop.f32.mrf.mxu0
    %5585 = vmatprep.mubr.f32.mxu0 0.0
    %5586 = vmatmul.mubr.f32.gmra.mxu0 %v3758
    %v5587 = vpop.f32.mrf.mxu0
    %v5588 = vadd.f32 0.0, %v5587
    %v5589 = vpop.f32.mrf.mxu0
    %5590 = vmatprep.mubr.f32.mxu0 0.0
    %5591 = vmatmul.mubr.f32.gmra.mxu0 %v3759
    %v5592 = vpop.f32.mrf.mxu0
    %v5593 = vadd.f32 0.0, %v5592
    %v5594 = vpop.f32.mrf.mxu0
    %5595 = vmatprep.mubr.f32.mxu0 0.0
    %5596 = vmatmul.mubr.f32.gmra.mxu0 %v3760
    %v5597 = vpop.f32.mrf.mxu0
    %v5598 = vadd.f32 0.0, %v5597
    %v5599 = vpop.f32.mrf.mxu0
    %5600 = vmatprep.mubr.f32.mxu0 0.0
    %5601 = vmatmul.mubr.f32.gmra.mxu0 %v3761
    %v5602 = vpop.f32.mrf.mxu0
    %v5603 = vadd.f32 0.0, %v5602
    %v5604 = vpop.f32.mrf.mxu0
    %5605 = vmatprep.mubr.f32.mxu0 0.0
    %5606 = vmatmul.mubr.f32.gmra.mxu0 %v3762
    %v5607 = vpop.f32.mrf.mxu0
    %v5608 = vadd.f32 0.0, %v5607
    %v5609 = vpop.f32.mrf.mxu0
    %5610 = vmatprep.mubr.f32.mxu0 0.0
    %5611 = vmatmul.mubr.f32.gmra.mxu0 %v674
    %v5612 = vpop.f32.mrf.mxu0
    %v5613 = vadd.f32 0.0, %v5612
    %v5614 = vpop.f32.mrf.mxu0
    %5615 = vdwg.mxu0
    %v5616 = vadd.f32 %v5342, %v5458
    %v5617 = vadd.f32 %v5343, %v5463
    %v5618 = vadd.f32 %v5344, %v5468
    %v5619 = vadd.f32 %v5345, %v5473
    %v5620 = vadd.f32 %v5346, %v5478
    %v5621 = vadd.f32 %v5347, %v5483
    %v5622 = vadd.f32 %v5348, %v5488
    %v5623 = vadd.f32 %v5349, %v5493
    %v5624 = vadd.f32 %v5350, %v5498
    %v5625 = vadd.f32 %v5351, %v5503
    %v5626 = vadd.f32 %v5352, %v5508
    %v5627 = vadd.f32 %v5353, %v5513
    %v5628 = vadd.f32 %v5354, %v5518
    %v5629 = vadd.f32 %v5355, %v5523
    %v5630 = vadd.f32 %v5356, %v5528
    %v5631 = vadd.f32 %v5357, %v5533
    %v5632 = vadd.f32 %v5358, %v5538
    %v5633 = vadd.f32 %v5359, %v5543
    %v5634 = vadd.f32 %v5360, %v5548
    %v5635 = vadd.f32 %v5361, %v5553
    %v5636 = vadd.f32 %v5362, %v5558
    %v5637 = vadd.f32 %v5363, %v5563
    %v5638 = vadd.f32 %v5364, %v5568
    %v5639 = vadd.f32 %v5365, %v5573
    %v5640 = vadd.f32 %v5366, %v5578
    %v5641 = vadd.f32 %v5367, %v5583
    %v5642 = vadd.f32 %v5368, %v5588
    %v5643 = vadd.f32 %v5369, %v5593
    %v5644 = vadd.f32 %v5370, %v5598
    %v5645 = vadd.f32 %v5371, %v5603
    %v5646 = vadd.f32 %v5372, %v5608
    %v5647 = vadd.f32 %v5373, %v5613
    %s5648 = scalar_lea.vmem [#allocation7], 896
    %v5649 = vld [vmem:[%s5648] sm:$0xff]
    %v5650 = vld [vmem:[%s5648 + $0x8] sm:$0xff]
    %v5651 = vld [vmem:[%s5648 + $0x10] sm:$0xff]
    %v5652 = vld [vmem:[%s5648 + $0x18] sm:$0xff]
    %v5653 = vld [vmem:[%s5648 + $0x20] sm:$0xff]
    %v5654 = vld [vmem:[%s5648 + $0x28] sm:$0xff]
    %v5655 = vld [vmem:[%s5648 + $0x30] sm:$0xff]
    %v5656 = vld [vmem:[%s5648 + $0x38] sm:$0xff]
    %v5657 = vld [vmem:[%s5648 + $0x40] sm:$0xff]
    %v5658 = vld [vmem:[%s5648 + $0x48] sm:$0xff]
    %v5659 = vld [vmem:[%s5648 + $0x50] sm:$0xff]
    %v5660 = vld [vmem:[%s5648 + $0x58] sm:$0xff]
    %v5661 = vld [vmem:[%s5648 + $0x60] sm:$0xff]
    %v5662 = vld [vmem:[%s5648 + $0x68] sm:$0xff]
    %v5663 = vld [vmem:[%s5648 + $0x70] sm:$0xff]
    %v5664 = vld [vmem:[%s5648 + $0x78] sm:$0xff]
    %5665 = vmatprep.subr.mxu0 0.0
    %5666 = vmatpush1.msra.mxu0 %v5664
    %5667 = vmatprep.subr.mxu0 0.0
    %5668 = vmatpush1.msra.mxu0 %v5663
    %5669 = vmatprep.subr.mxu0 0.0
    %5670 = vmatpush1.msra.mxu0 %v5662
    %5671 = vmatprep.subr.mxu0 0.0
    %5672 = vmatpush1.msra.mxu0 %v5661
    %5673 = vmatprep.subr.mxu0 0.0
    %5674 = vmatpush1.msra.mxu0 %v5660
    %5675 = vmatprep.subr.mxu0 0.0
    %5676 = vmatpush1.msra.mxu0 %v5659
    %5677 = vmatprep.subr.mxu0 0.0
    %5678 = vmatpush1.msra.mxu0 %v5658
    %5679 = vmatprep.subr.mxu0 0.0
    %5680 = vmatpush1.msra.mxu0 %v5657
    %5681 = vmatprep.subr.mxu0 0.0
    %5682 = vmatpush1.msra.mxu0 %v5656
    %5683 = vmatprep.subr.mxu0 0.0
    %5684 = vmatpush1.msra.mxu0 %v5655
    %5685 = vmatprep.subr.mxu0 0.0
    %5686 = vmatpush1.msra.mxu0 %v5654
    %5687 = vmatprep.subr.mxu0 0.0
    %5688 = vmatpush1.msra.mxu0 %v5653
    %5689 = vmatprep.subr.mxu0 0.0
    %5690 = vmatpush1.msra.mxu0 %v5652
    %5691 = vmatprep.subr.mxu0 0.0
    %5692 = vmatpush1.msra.mxu0 %v5651
    %5693 = vmatprep.subr.mxu0 0.0
    %5694 = vmatpush1.msra.mxu0 %v5650
    %5695 = vmatprep.subr.mxu0 0.0
    %5696 = vmatpush1.msra.mxu0 %v5649
    %5697 = vmatprep.subr.mxu0 0.0
    %5698 = vmatpush2.msra.mxu0 0.0
    %5699 = vmatprep.subr.mxu0 0.0
    %5700 = vmatpush2.msra.mxu0 0.0
    %5701 = vmatprep.subr.mxu0 0.0
    %5702 = vmatpush2.msra.mxu0 0.0
    %5703 = vmatprep.subr.mxu0 0.0
    %5704 = vmatpush2.msra.mxu0 0.0
    %5705 = vmatprep.subr.mxu0 0.0
    %5706 = vmatpush2.msra.mxu0 0.0
    %5707 = vmatprep.subr.mxu0 0.0
    %5708 = vmatpush2.msra.mxu0 0.0
    %5709 = vmatprep.subr.mxu0 0.0
    %5710 = vmatpush2.msra.mxu0 0.0
    %5711 = vmatprep.subr.mxu0 0.0
    %5712 = vmatpush2.msra.mxu0 0.0
    %5713 = vmatprep.subr.mxu0 0.0
    %5714 = vmatpush2.msra.mxu0 0.0
    %5715 = vmatprep.subr.mxu0 0.0
    %5716 = vmatpush2.msra.mxu0 0.0
    %5717 = vmatprep.subr.mxu0 0.0
    %5718 = vmatpush2.msra.mxu0 0.0
    %5719 = vmatprep.subr.mxu0 0.0
    %5720 = vmatpush2.msra.mxu0 0.0
    %5721 = vmatprep.subr.mxu0 0.0
    %5722 = vmatpush2.msra.mxu0 0.0
    %5723 = vmatprep.subr.mxu0 0.0
    %5724 = vmatpush2.msra.mxu0 0.0
    %5725 = vmatprep.subr.mxu0 0.0
    %5726 = vmatpush2.msra.mxu0 0.0
    %5727 = vmatprep.subr.mxu0 0.0
    %5728 = vmatpush2.msra.mxu0 0.0
    %5729 = vmatprep.mubr.f32.mxu0 0.0
    %5730 = vmatmul.mubr.f32.gmra.mxu0 %v3411
    %v5731 = vpop.f32.mrf.mxu0
    %v5732 = vadd.f32 0.0, %v5731
    %v5733 = vpop.f32.mrf.mxu0
    %5734 = vmatprep.mubr.f32.mxu0 0.0
    %5735 = vmatmul.mubr.f32.gmra.mxu0 %v3412
    %v5736 = vpop.f32.mrf.mxu0
    %v5737 = vadd.f32 0.0, %v5736
    %v5738 = vpop.f32.mrf.mxu0
    %5739 = vmatprep.mubr.f32.mxu0 0.0
    %5740 = vmatmul.mubr.f32.gmra.mxu0 %v3413
    %v5741 = vpop.f32.mrf.mxu0
    %v5742 = vadd.f32 0.0, %v5741
    %v5743 = vpop.f32.mrf.mxu0
    %5744 = vmatprep.mubr.f32.mxu0 0.0
    %5745 = vmatmul.mubr.f32.gmra.mxu0 %v3414
    %v5746 = vpop.f32.mrf.mxu0
    %v5747 = vadd.f32 0.0, %v5746
    %v5748 = vpop.f32.mrf.mxu0
    %5749 = vmatprep.mubr.f32.mxu0 0.0
    %5750 = vmatmul.mubr.f32.gmra.mxu0 %v3415
    %v5751 = vpop.f32.mrf.mxu0
    %v5752 = vadd.f32 0.0, %v5751
    %v5753 = vpop.f32.mrf.mxu0
    %5754 = vmatprep.mubr.f32.mxu0 0.0
    %5755 = vmatmul.mubr.f32.gmra.mxu0 %v3416
    %v5756 = vpop.f32.mrf.mxu0
    %v5757 = vadd.f32 0.0, %v5756
    %v5758 = vpop.f32.mrf.mxu0
    %5759 = vmatprep.mubr.f32.mxu0 0.0
    %5760 = vmatmul.mubr.f32.gmra.mxu0 %v3417
    %v5761 = vpop.f32.mrf.mxu0
    %v5762 = vadd.f32 0.0, %v5761
    %v5763 = vpop.f32.mrf.mxu0
    %5764 = vmatprep.mubr.f32.mxu0 0.0
    %5765 = vmatmul.mubr.f32.gmra.mxu0 %v3418
    %v5766 = vpop.f32.mrf.mxu0
    %v5767 = vadd.f32 0.0, %v5766
    %v5768 = vpop.f32.mrf.mxu0
    %5769 = vmatprep.mubr.f32.mxu0 0.0
    %5770 = vmatmul.mubr.f32.gmra.mxu0 %v3419
    %v5771 = vpop.f32.mrf.mxu0
    %v5772 = vadd.f32 0.0, %v5771
    %v5773 = vpop.f32.mrf.mxu0
    %5774 = vmatprep.mubr.f32.mxu0 0.0
    %5775 = vmatmul.mubr.f32.gmra.mxu0 %v3420
    %v5776 = vpop.f32.mrf.mxu0
    %v5777 = vadd.f32 0.0, %v5776
    %v5778 = vpop.f32.mrf.mxu0
    %5779 = vmatprep.mubr.f32.mxu0 0.0
    %5780 = vmatmul.mubr.f32.gmra.mxu0 %v3421
    %v5781 = vpop.f32.mrf.mxu0
    %v5782 = vadd.f32 0.0, %v5781
    %v5783 = vpop.f32.mrf.mxu0
    %5784 = vmatprep.mubr.f32.mxu0 0.0
    %5785 = vmatmul.mubr.f32.gmra.mxu0 %v3422
    %v5786 = vpop.f32.mrf.mxu0
    %v5787 = vadd.f32 0.0, %v5786
    %v5788 = vpop.f32.mrf.mxu0
    %5789 = vmatprep.mubr.f32.mxu0 0.0
    %5790 = vmatmul.mubr.f32.gmra.mxu0 %v3423
    %v5791 = vpop.f32.mrf.mxu0
    %v5792 = vadd.f32 0.0, %v5791
    %v5793 = vpop.f32.mrf.mxu0
    %5794 = vmatprep.mubr.f32.mxu0 0.0
    %5795 = vmatmul.mubr.f32.gmra.mxu0 %v3424
    %v5796 = vpop.f32.mrf.mxu0
    %v5797 = vadd.f32 0.0, %v5796
    %v5798 = vpop.f32.mrf.mxu0
    %5799 = vmatprep.mubr.f32.mxu0 0.0
    %5800 = vmatmul.mubr.f32.gmra.mxu0 %v3425
    %v5801 = vpop.f32.mrf.mxu0
    %v5802 = vadd.f32 0.0, %v5801
    %v5803 = vpop.f32.mrf.mxu0
    %5804 = vmatprep.mubr.f32.mxu0 0.0
    %5805 = vmatmul.mubr.f32.gmra.mxu0 0.0
    %v5806 = vpop.f32.mrf.mxu0
    %v5807 = vadd.f32 0.0, %v5806
    %v5808 = vpop.f32.mrf.mxu0
    %5809 = vmatprep.mubr.f32.mxu0 0.0
    %5810 = vmatmul.mubr.f32.gmra.mxu0 %v3427
    %v5811 = vpop.f32.mrf.mxu0
    %v5812 = vadd.f32 0.0, %v5811
    %v5813 = vpop.f32.mrf.mxu0
    %5814 = vmatprep.mubr.f32.mxu0 0.0
    %5815 = vmatmul.mubr.f32.gmra.mxu0 %v3428
    %v5816 = vpop.f32.mrf.mxu0
    %v5817 = vadd.f32 0.0, %v5816
    %v5818 = vpop.f32.mrf.mxu0
    %5819 = vmatprep.mubr.f32.mxu0 0.0
    %5820 = vmatmul.mubr.f32.gmra.mxu0 %v3429
    %v5821 = vpop.f32.mrf.mxu0
    %v5822 = vadd.f32 0.0, %v5821
    %v5823 = vpop.f32.mrf.mxu0
    %5824 = vmatprep.mubr.f32.mxu0 0.0
    %5825 = vmatmul.mubr.f32.gmra.mxu0 %v3430
    %v5826 = vpop.f32.mrf.mxu0
    %v5827 = vadd.f32 0.0, %v5826
    %v5828 = vpop.f32.mrf.mxu0
    %5829 = vmatprep.mubr.f32.mxu0 0.0
    %5830 = vmatmul.mubr.f32.gmra.mxu0 %v3431
    %v5831 = vpop.f32.mrf.mxu0
    %v5832 = vadd.f32 0.0, %v5831
    %v5833 = vpop.f32.mrf.mxu0
    %5834 = vmatprep.mubr.f32.mxu0 0.0
    %5835 = vmatmul.mubr.f32.gmra.mxu0 %v3432
    %v5836 = vpop.f32.mrf.mxu0
    %v5837 = vadd.f32 0.0, %v5836
    %v5838 = vpop.f32.mrf.mxu0
    %5839 = vmatprep.mubr.f32.mxu0 0.0
    %5840 = vmatmul.mubr.f32.gmra.mxu0 %v3433
    %v5841 = vpop.f32.mrf.mxu0
    %v5842 = vadd.f32 0.0, %v5841
    %v5843 = vpop.f32.mrf.mxu0
    %5844 = vmatprep.mubr.f32.mxu0 0.0
    %5845 = vmatmul.mubr.f32.gmra.mxu0 %v3434
    %v5846 = vpop.f32.mrf.mxu0
    %v5847 = vadd.f32 0.0, %v5846
    %v5848 = vpop.f32.mrf.mxu0
    %5849 = vmatprep.mubr.f32.mxu0 0.0
    %5850 = vmatmul.mubr.f32.gmra.mxu0 %v3435
    %v5851 = vpop.f32.mrf.mxu0
    %v5852 = vadd.f32 0.0, %v5851
    %v5853 = vpop.f32.mrf.mxu0
    %5854 = vmatprep.mubr.f32.mxu0 0.0
    %5855 = vmatmul.mubr.f32.gmra.mxu0 %v3436
    %v5856 = vpop.f32.mrf.mxu0
    %v5857 = vadd.f32 0.0, %v5856
    %v5858 = vpop.f32.mrf.mxu0
    %5859 = vmatprep.mubr.f32.mxu0 0.0
    %5860 = vmatmul.mubr.f32.gmra.mxu0 %v3437
    %v5861 = vpop.f32.mrf.mxu0
    %v5862 = vadd.f32 0.0, %v5861
    %v5863 = vpop.f32.mrf.mxu0
    %5864 = vmatprep.mubr.f32.mxu0 0.0
    %5865 = vmatmul.mubr.f32.gmra.mxu0 %v3438
    %v5866 = vpop.f32.mrf.mxu0
    %v5867 = vadd.f32 0.0, %v5866
    %v5868 = vpop.f32.mrf.mxu0
    %5869 = vmatprep.mubr.f32.mxu0 0.0
    %5870 = vmatmul.mubr.f32.gmra.mxu0 %v3439
    %v5871 = vpop.f32.mrf.mxu0
    %v5872 = vadd.f32 0.0, %v5871
    %v5873 = vpop.f32.mrf.mxu0
    %5874 = vmatprep.mubr.f32.mxu0 0.0
    %5875 = vmatmul.mubr.f32.gmra.mxu0 %v3440
    %v5876 = vpop.f32.mrf.mxu0
    %v5877 = vadd.f32 0.0, %v5876
    %v5878 = vpop.f32.mrf.mxu0
    %5879 = vmatprep.mubr.f32.mxu0 0.0
    %5880 = vmatmul.mubr.f32.gmra.mxu0 %v3441
    %v5881 = vpop.f32.mrf.mxu0
    %v5882 = vadd.f32 0.0, %v5881
    %v5883 = vpop.f32.mrf.mxu0
    %5884 = vmatprep.mubr.f32.mxu0 0.0
    %5885 = vmatmul.mubr.f32.gmra.mxu0 0.0
    %v5886 = vpop.f32.mrf.mxu0
    %v5887 = vadd.f32 0.0, %v5886
    %v5888 = vpop.f32.mrf.mxu0
    %5889 = vdwg.mxu0
    %v5890 = vadd.f32 %v5616, %v5732
    %v5891 = vadd.f32 %v5617, %v5737
    %v5892 = vadd.f32 %v5618, %v5742
    %v5893 = vadd.f32 %v5619, %v5747
    %v5894 = vadd.f32 %v5620, %v5752
    %v5895 = vadd.f32 %v5621, %v5757
    %v5896 = vadd.f32 %v5622, %v5762
    %v5897 = vadd.f32 %v5623, %v5767
    %v5898 = vadd.f32 %v5624, %v5772
    %v5899 = vadd.f32 %v5625, %v5777
    %v5900 = vadd.f32 %v5626, %v5782
    %v5901 = vadd.f32 %v5627, %v5787
    %v5902 = vadd.f32 %v5628, %v5792
    %v5903 = vadd.f32 %v5629, %v5797
    %v5904 = vadd.f32 %v5630, %v5802
    %v5905 = vadd.f32 %v5631, %v5807
    %v5906 = vadd.f32 %v5632, %v5812
    %v5907 = vadd.f32 %v5633, %v5817
    %v5908 = vadd.f32 %v5634, %v5822
    %v5909 = vadd.f32 %v5635, %v5827
    %v5910 = vadd.f32 %v5636, %v5832
    %v5911 = vadd.f32 %v5637, %v5837
    %v5912 = vadd.f32 %v5638, %v5842
    %v5913 = vadd.f32 %v5639, %v5847
    %v5914 = vadd.f32 %v5640, %v5852
    %v5915 = vadd.f32 %v5641, %v5857
    %v5916 = vadd.f32 %v5642, %v5862
    %v5917 = vadd.f32 %v5643, %v5867
    %v5918 = vadd.f32 %v5644, %v5872
    %v5919 = vadd.f32 %v5645, %v5877
    %v5920 = vadd.f32 %v5646, %v5882
    %v5921 = vadd.f32 %v5647, %v5887
    %s5922 = scalar_lea.vmem [#allocation7], 1024
    %v5923 = vld [vmem:[%s5922] sm:$0xff]
    %v5924 = vld [vmem:[%s5922 + $0x8] sm:$0xff]
    %v5925 = vld [vmem:[%s5922 + $0x10] sm:$0xff]
    %v5926 = vld [vmem:[%s5922 + $0x18] sm:$0xff]
    %v5927 = vld [vmem:[%s5922 + $0x20] sm:$0xff]
    %v5928 = vld [vmem:[%s5922 + $0x28] sm:$0xff]
    %v5929 = vld [vmem:[%s5922 + $0x30] sm:$0xff]
    %v5930 = vld [vmem:[%s5922 + $0x38] sm:$0xff]
    %v5931 = vld [vmem:[%s5922 + $0x40] sm:$0xff]
    %v5932 = vld [vmem:[%s5922 + $0x48] sm:$0xff]
    %v5933 = vld [vmem:[%s5922 + $0x50] sm:$0xff]
    %v5934 = vld [vmem:[%s5922 + $0x58] sm:$0xff]
    %v5935 = vld [vmem:[%s5922 + $0x60] sm:$0xff]
    %v5936 = vld [vmem:[%s5922 + $0x68] sm:$0xff]
    %v5937 = vld [vmem:[%s5922 + $0x70] sm:$0xff]
    %v5938 = vld [vmem:[%s5922 + $0x78] sm:$0xff]
    %5939 = vmatprep.subr.mxu0 0.0
    %5940 = vmatpush1.msra.mxu0 %v5938
    %5941 = vmatprep.subr.mxu0 0.0
    %5942 = vmatpush1.msra.mxu0 %v5937
    %5943 = vmatprep.subr.mxu0 0.0
    %5944 = vmatpush1.msra.mxu0 %v5936
    %5945 = vmatprep.subr.mxu0 0.0
    %5946 = vmatpush1.msra.mxu0 %v5935
    %5947 = vmatprep.subr.mxu0 0.0
    %5948 = vmatpush1.msra.mxu0 %v5934
    %5949 = vmatprep.subr.mxu0 0.0
    %5950 = vmatpush1.msra.mxu0 %v5933
    %5951 = vmatprep.subr.mxu0 0.0
    %5952 = vmatpush1.msra.mxu0 %v5932
    %5953 = vmatprep.subr.mxu0 0.0
    %5954 = vmatpush1.msra.mxu0 %v5931
    %5955 = vmatprep.subr.mxu0 0.0
    %5956 = vmatpush1.msra.mxu0 %v5930
    %5957 = vmatprep.subr.mxu0 0.0
    %5958 = vmatpush1.msra.mxu0 %v5929
    %5959 = vmatprep.subr.mxu0 0.0
    %5960 = vmatpush1.msra.mxu0 %v5928
    %5961 = vmatprep.subr.mxu0 0.0
    %5962 = vmatpush1.msra.mxu0 %v5927
    %5963 = vmatprep.subr.mxu0 0.0
    %5964 = vmatpush1.msra.mxu0 %v5926
    %5965 = vmatprep.subr.mxu0 0.0
    %5966 = vmatpush1.msra.mxu0 %v5925
    %5967 = vmatprep.subr.mxu0 0.0
    %5968 = vmatpush1.msra.mxu0 %v5924
    %5969 = vmatprep.subr.mxu0 0.0
    %5970 = vmatpush1.msra.mxu0 %v5923
    %5971 = vmatprep.subr.mxu0 0.0
    %5972 = vmatpush2.msra.mxu0 0.0
    %5973 = vmatprep.subr.mxu0 0.0
    %5974 = vmatpush2.msra.mxu0 0.0
    %5975 = vmatprep.subr.mxu0 0.0
    %5976 = vmatpush2.msra.mxu0 0.0
    %5977 = vmatprep.subr.mxu0 0.0
    %5978 = vmatpush2.msra.mxu0 0.0
    %5979 = vmatprep.subr.mxu0 0.0
    %5980 = vmatpush2.msra.mxu0 0.0
    %5981 = vmatprep.subr.mxu0 0.0
    %5982 = vmatpush2.msra.mxu0 0.0
    %5983 = vmatprep.subr.mxu0 0.0
    %5984 = vmatpush2.msra.mxu0 0.0
    %5985 = vmatprep.subr.mxu0 0.0
    %5986 = vmatpush2.msra.mxu0 0.0
    %5987 = vmatprep.subr.mxu0 0.0
    %5988 = vmatpush2.msra.mxu0 0.0
    %5989 = vmatprep.subr.mxu0 0.0
    %5990 = vmatpush2.msra.mxu0 0.0
    %5991 = vmatprep.subr.mxu0 0.0
    %5992 = vmatpush2.msra.mxu0 0.0
    %5993 = vmatprep.subr.mxu0 0.0
    %5994 = vmatpush2.msra.mxu0 0.0
    %5995 = vmatprep.subr.mxu0 0.0
    %5996 = vmatpush2.msra.mxu0 0.0
    %5997 = vmatprep.subr.mxu0 0.0
    %5998 = vmatpush2.msra.mxu0 0.0
    %5999 = vmatprep.subr.mxu0 0.0
    %6000 = vmatpush2.msra.mxu0 0.0
    %6001 = vmatprep.subr.mxu0 0.0
    %6002 = vmatpush2.msra.mxu0 0.0
    %6003 = vmatprep.mubr.f32.mxu0 0.0
    %6004 = vmatmul.mubr.f32.gmra.mxu0 %v3764
    %v6005 = vpop.f32.mrf.mxu0
    %v6006 = vadd.f32 0.0, %v6005
    %v6007 = vpop.f32.mrf.mxu0
    %6008 = vmatprep.mubr.f32.mxu0 0.0
    %6009 = vmatmul.mubr.f32.gmra.mxu0 %v3765
    %v6010 = vpop.f32.mrf.mxu0
    %v6011 = vadd.f32 0.0, %v6010
    %v6012 = vpop.f32.mrf.mxu0
    %6013 = vmatprep.mubr.f32.mxu0 0.0
    %6014 = vmatmul.mubr.f32.gmra.mxu0 %v3766
    %v6015 = vpop.f32.mrf.mxu0
    %v6016 = vadd.f32 0.0, %v6015
    %v6017 = vpop.f32.mrf.mxu0
    %6018 = vmatprep.mubr.f32.mxu0 0.0
    %6019 = vmatmul.mubr.f32.gmra.mxu0 %v3767
    %v6020 = vpop.f32.mrf.mxu0
    %v6021 = vadd.f32 0.0, %v6020
    %v6022 = vpop.f32.mrf.mxu0
    %6023 = vmatprep.mubr.f32.mxu0 0.0
    %6024 = vmatmul.mubr.f32.gmra.mxu0 %v3768
    %v6025 = vpop.f32.mrf.mxu0
    %v6026 = vadd.f32 0.0, %v6025
    %v6027 = vpop.f32.mrf.mxu0
    %6028 = vmatprep.mubr.f32.mxu0 0.0
    %6029 = vmatmul.mubr.f32.gmra.mxu0 %v3769
    %v6030 = vpop.f32.mrf.mxu0
    %v6031 = vadd.f32 0.0, %v6030
    %v6032 = vpop.f32.mrf.mxu0
    %6033 = vmatprep.mubr.f32.mxu0 0.0
    %6034 = vmatmul.mubr.f32.gmra.mxu0 %v3770
    %v6035 = vpop.f32.mrf.mxu0
    %v6036 = vadd.f32 0.0, %v6035
    %v6037 = vpop.f32.mrf.mxu0
    %6038 = vmatprep.mubr.f32.mxu0 0.0
    %6039 = vmatmul.mubr.f32.gmra.mxu0 %v3771
    %v6040 = vpop.f32.mrf.mxu0
    %v6041 = vadd.f32 0.0, %v6040
    %v6042 = vpop.f32.mrf.mxu0
    %6043 = vmatprep.mubr.f32.mxu0 0.0
    %6044 = vmatmul.mubr.f32.gmra.mxu0 %v3772
    %v6045 = vpop.f32.mrf.mxu0
    %v6046 = vadd.f32 0.0, %v6045
    %v6047 = vpop.f32.mrf.mxu0
    %6048 = vmatprep.mubr.f32.mxu0 0.0
    %6049 = vmatmul.mubr.f32.gmra.mxu0 %v3773
    %v6050 = vpop.f32.mrf.mxu0
    %v6051 = vadd.f32 0.0, %v6050
    %v6052 = vpop.f32.mrf.mxu0
    %6053 = vmatprep.mubr.f32.mxu0 0.0
    %6054 = vmatmul.mubr.f32.gmra.mxu0 %v3774
    %v6055 = vpop.f32.mrf.mxu0
    %v6056 = vadd.f32 0.0, %v6055
    %v6057 = vpop.f32.mrf.mxu0
    %6058 = vmatprep.mubr.f32.mxu0 0.0
    %6059 = vmatmul.mubr.f32.gmra.mxu0 %v3775
    %v6060 = vpop.f32.mrf.mxu0
    %v6061 = vadd.f32 0.0, %v6060
    %v6062 = vpop.f32.mrf.mxu0
    %6063 = vmatprep.mubr.f32.mxu0 0.0
    %6064 = vmatmul.mubr.f32.gmra.mxu0 %v3776
    %v6065 = vpop.f32.mrf.mxu0
    %v6066 = vadd.f32 0.0, %v6065
    %v6067 = vpop.f32.mrf.mxu0
    %6068 = vmatprep.mubr.f32.mxu0 0.0
    %6069 = vmatmul.mubr.f32.gmra.mxu0 %v3777
    %v6070 = vpop.f32.mrf.mxu0
    %v6071 = vadd.f32 0.0, %v6070
    %v6072 = vpop.f32.mrf.mxu0
    %6073 = vmatprep.mubr.f32.mxu0 0.0
    %6074 = vmatmul.mubr.f32.gmra.mxu0 %v3778
    %v6075 = vpop.f32.mrf.mxu0
    %v6076 = vadd.f32 0.0, %v6075
    %v6077 = vpop.f32.mrf.mxu0
    %6078 = vmatprep.mubr.f32.mxu0 0.0
    %6079 = vmatmul.mubr.f32.gmra.mxu0 %v707
    %v6080 = vpop.f32.mrf.mxu0
    %v6081 = vadd.f32 0.0, %v6080
    %v6082 = vpop.f32.mrf.mxu0
    %6083 = vmatprep.mubr.f32.mxu0 0.0
    %6084 = vmatmul.mubr.f32.gmra.mxu0 %v3780
    %v6085 = vpop.f32.mrf.mxu0
    %v6086 = vadd.f32 0.0, %v6085
    %v6087 = vpop.f32.mrf.mxu0
    %6088 = vmatprep.mubr.f32.mxu0 0.0
    %6089 = vmatmul.mubr.f32.gmra.mxu0 %v3781
    %v6090 = vpop.f32.mrf.mxu0
    %v6091 = vadd.f32 0.0, %v6090
    %v6092 = vpop.f32.mrf.mxu0
    %6093 = vmatprep.mubr.f32.mxu0 0.0
    %6094 = vmatmul.mubr.f32.gmra.mxu0 %v3782
    %v6095 = vpop.f32.mrf.mxu0
    %v6096 = vadd.f32 0.0, %v6095
    %v6097 = vpop.f32.mrf.mxu0
    %6098 = vmatprep.mubr.f32.mxu0 0.0
    %6099 = vmatmul.mubr.f32.gmra.mxu0 %v3783
    %v6100 = vpop.f32.mrf.mxu0
    %v6101 = vadd.f32 0.0, %v6100
    %v6102 = vpop.f32.mrf.mxu0
    %6103 = vmatprep.mubr.f32.mxu0 0.0
    %6104 = vmatmul.mubr.f32.gmra.mxu0 %v3784
    %v6105 = vpop.f32.mrf.mxu0
    %v6106 = vadd.f32 0.0, %v6105
    %v6107 = vpop.f32.mrf.mxu0
    %6108 = vmatprep.mubr.f32.mxu0 0.0
    %6109 = vmatmul.mubr.f32.gmra.mxu0 %v3785
    %v6110 = vpop.f32.mrf.mxu0
    %v6111 = vadd.f32 0.0, %v6110
    %v6112 = vpop.f32.mrf.mxu0
    %6113 = vmatprep.mubr.f32.mxu0 0.0
    %6114 = vmatmul.mubr.f32.gmra.mxu0 %v3786
    %v6115 = vpop.f32.mrf.mxu0
    %v6116 = vadd.f32 0.0, %v6115
    %v6117 = vpop.f32.mrf.mxu0
    %6118 = vmatprep.mubr.f32.mxu0 0.0
    %6119 = vmatmul.mubr.f32.gmra.mxu0 %v3787
    %v6120 = vpop.f32.mrf.mxu0
    %v6121 = vadd.f32 0.0, %v6120
    %v6122 = vpop.f32.mrf.mxu0
    %6123 = vmatprep.mubr.f32.mxu0 0.0
    %6124 = vmatmul.mubr.f32.gmra.mxu0 %v3788
    %v6125 = vpop.f32.mrf.mxu0
    %v6126 = vadd.f32 0.0, %v6125
    %v6127 = vpop.f32.mrf.mxu0
    %6128 = vmatprep.mubr.f32.mxu0 0.0
    %6129 = vmatmul.mubr.f32.gmra.mxu0 %v3789
    %v6130 = vpop.f32.mrf.mxu0
    %v6131 = vadd.f32 0.0, %v6130
    %v6132 = vpop.f32.mrf.mxu0
    %6133 = vmatprep.mubr.f32.mxu0 0.0
    %6134 = vmatmul.mubr.f32.gmra.mxu0 %v3790
    %v6135 = vpop.f32.mrf.mxu0
    %v6136 = vadd.f32 0.0, %v6135
    %v6137 = vpop.f32.mrf.mxu0
    %6138 = vmatprep.mubr.f32.mxu0 0.0
    %6139 = vmatmul.mubr.f32.gmra.mxu0 %v3791
    %v6140 = vpop.f32.mrf.mxu0
    %v6141 = vadd.f32 0.0, %v6140
    %v6142 = vpop.f32.mrf.mxu0
    %6143 = vmatprep.mubr.f32.mxu0 0.0
    %6144 = vmatmul.mubr.f32.gmra.mxu0 %v3792
    %v6145 = vpop.f32.mrf.mxu0
    %v6146 = vadd.f32 0.0, %v6145
    %v6147 = vpop.f32.mrf.mxu0
    %6148 = vmatprep.mubr.f32.mxu0 0.0
    %6149 = vmatmul.mubr.f32.gmra.mxu0 %v3793
    %v6150 = vpop.f32.mrf.mxu0
    %v6151 = vadd.f32 0.0, %v6150
    %v6152 = vpop.f32.mrf.mxu0
    %6153 = vmatprep.mubr.f32.mxu0 0.0
    %6154 = vmatmul.mubr.f32.gmra.mxu0 %v3794
    %v6155 = vpop.f32.mrf.mxu0
    %v6156 = vadd.f32 0.0, %v6155
    %v6157 = vpop.f32.mrf.mxu0
    %6158 = vmatprep.mubr.f32.mxu0 0.0
    %6159 = vmatmul.mubr.f32.gmra.mxu0 %v707
    %v6160 = vpop.f32.mrf.mxu0
    %v6161 = vadd.f32 0.0, %v6160
    %v6162 = vpop.f32.mrf.mxu0
    %6163 = vdwg.mxu0
    %v6164 = vadd.f32 %v5890, %v6006
    %v6165 = vadd.f32 %v5891, %v6011
    %v6166 = vadd.f32 %v5892, %v6016
    %v6167 = vadd.f32 %v5893, %v6021
    %v6168 = vadd.f32 %v5894, %v6026
    %v6169 = vadd.f32 %v5895, %v6031
    %v6170 = vadd.f32 %v5896, %v6036
    %v6171 = vadd.f32 %v5897, %v6041
    %v6172 = vadd.f32 %v5898, %v6046
    %v6173 = vadd.f32 %v5899, %v6051
    %v6174 = vadd.f32 %v5900, %v6056
    %v6175 = vadd.f32 %v5901, %v6061
    %v6176 = vadd.f32 %v5902, %v6066
    %v6177 = vadd.f32 %v5903, %v6071
    %v6178 = vadd.f32 %v5904, %v6076
    %v6179 = vadd.f32 %v5905, %v6081
    %v6180 = vadd.f32 %v5906, %v6086
    %v6181 = vadd.f32 %v5907, %v6091
    %v6182 = vadd.f32 %v5908, %v6096
    %v6183 = vadd.f32 %v5909, %v6101
    %v6184 = vadd.f32 %v5910, %v6106
    %v6185 = vadd.f32 %v5911, %v6111
    %v6186 = vadd.f32 %v5912, %v6116
    %v6187 = vadd.f32 %v5913, %v6121
    %v6188 = vadd.f32 %v5914, %v6126
    %v6189 = vadd.f32 %v5915, %v6131
    %v6190 = vadd.f32 %v5916, %v6136
    %v6191 = vadd.f32 %v5917, %v6141
    %v6192 = vadd.f32 %v5918, %v6146
    %v6193 = vadd.f32 %v5919, %v6151
    %v6194 = vadd.f32 %v5920, %v6156
    %v6195 = vadd.f32 %v5921, %v6161
    %v6197 = vlaneseq
    %v6198 = vshrl.u32 %v6197, 7
    %v6199 = vsub.s32 0, %v6198
    %v6200 = vrot.slane %v3442, %v6199
    %v6202 = vadd.f32 %v6164, %v6200
    %v6203 = vadd.f32 %v6165, %v6200
    %v6204 = vadd.f32 %v6166, %v6200
    %v6205 = vadd.f32 %v6167, %v6200
    %v6206 = vadd.f32 %v6168, %v6200
    %v6207 = vadd.f32 %v6169, %v6200
    %v6208 = vadd.f32 %v6170, %v6200
    %v6209 = vadd.f32 %v6171, %v6200
    %v6210 = vadd.f32 %v6172, %v6200
    %v6211 = vadd.f32 %v6173, %v6200
    %v6212 = vadd.f32 %v6174, %v6200
    %v6213 = vadd.f32 %v6175, %v6200
    %v6214 = vadd.f32 %v6176, %v6200
    %v6215 = vadd.f32 %v6177, %v6200
    %v6216 = vadd.f32 %v6178, %v6200
    %v6217 = vadd.f32 %v6179, %v6200
    %v6218 = vadd.f32 %v6180, %v6200
    %v6219 = vadd.f32 %v6181, %v6200
    %v6220 = vadd.f32 %v6182, %v6200
    %v6221 = vadd.f32 %v6183, %v6200
    %v6222 = vadd.f32 %v6184, %v6200
    %v6223 = vadd.f32 %v6185, %v6200
    %v6224 = vadd.f32 %v6186, %v6200
    %v6225 = vadd.f32 %v6187, %v6200
    %v6226 = vadd.f32 %v6188, %v6200
    %v6227 = vadd.f32 %v6189, %v6200
    %v6228 = vadd.f32 %v6190, %v6200
    %v6229 = vadd.f32 %v6191, %v6200
    %v6230 = vadd.f32 %v6192, %v6200
    %v6231 = vadd.f32 %v6193, %v6200
    %v6232 = vadd.f32 %v6194, %v6200
    %v6233 = vadd.f32 %v6195, %v6200
    %v6234 = vadd.f32 %v6202, %v74
    %v6235 = vadd.f32 %v6203, %v75
    %v6236 = vadd.f32 %v6204, %v76
    %v6237 = vadd.f32 %v6205, %v77
    %v6238 = vadd.f32 %v6206, %v78
    %v6239 = vadd.f32 %v6207, %v79
    %v6240 = vadd.f32 %v6208, %v80
    %v6241 = vadd.f32 %v6209, %v81
    %v6242 = vadd.f32 %v6210, %v82
    %v6243 = vadd.f32 %v6211, %v83
    %v6244 = vadd.f32 %v6212, %v84
    %v6245 = vadd.f32 %v6213, %v85
    %v6246 = vadd.f32 %v6214, %v86
    %v6247 = vadd.f32 %v6215, %v87
    %v6248 = vadd.f32 %v6216, %v88
    %v6249 = vadd.f32 %v6217, %v89
    %v6250 = vadd.f32 %v6218, %v90
    %v6251 = vadd.f32 %v6219, %v91
    %v6252 = vadd.f32 %v6220, %v92
    %v6253 = vadd.f32 %v6221, %v93
    %v6254 = vadd.f32 %v6222, %v94
    %v6255 = vadd.f32 %v6223, %v95
    %v6256 = vadd.f32 %v6224, %v96
    %v6257 = vadd.f32 %v6225, %v97
    %v6258 = vadd.f32 %v6226, %v98
    %v6259 = vadd.f32 %v6227, %v99
    %v6260 = vadd.f32 %v6228, %v100
    %v6261 = vadd.f32 %v6229, %v101
    %v6262 = vadd.f32 %v6230, %v102
    %v6263 = vadd.f32 %v6231, %v103
    %v6264 = vadd.f32 %v6232, %v104
    %v6265 = vadd.f32 %v6233, %v105
    %6266 = vst [vmem:[#allocation8] sm:$0xff] %v6234
    %6267 = vst [vmem:[#allocation8 + $0x8] sm:$0xff] %v6235
    %6268 = vst [vmem:[#allocation8 + $0x10] sm:$0xff] %v6236
    %6269 = vst [vmem:[#allocation8 + $0x18] sm:$0xff] %v6237
    %6270 = vst [vmem:[#allocation8 + $0x20] sm:$0xff] %v6238
    %6271 = vst [vmem:[#allocation8 + $0x28] sm:$0xff] %v6239
    %6272 = vst [vmem:[#allocation8 + $0x30] sm:$0xff] %v6240
    %6273 = vst [vmem:[#allocation8 + $0x38] sm:$0xff] %v6241
    %6274 = vst [vmem:[#allocation8 + $0x40] sm:$0xff] %v6242
    %6275 = vst [vmem:[#allocation8 + $0x48] sm:$0xff] %v6243
    %6276 = vst [vmem:[#allocation8 + $0x50] sm:$0xff] %v6244
    %6277 = vst [vmem:[#allocation8 + $0x58] sm:$0xff] %v6245
    %6278 = vst [vmem:[#allocation8 + $0x60] sm:$0xff] %v6246
    %6279 = vst [vmem:[#allocation8 + $0x68] sm:$0xff] %v6247
    %6280 = vst [vmem:[#allocation8 + $0x70] sm:$0xff] %v6248
    %6281 = vst [vmem:[#allocation8 + $0x78] sm:$0xff] %v6249
    %6282 = vst [vmem:[#allocation8 + $0x80] sm:$0xff] %v6250
    %6283 = vst [vmem:[#allocation8 + $0x88] sm:$0xff] %v6251
    %6284 = vst [vmem:[#allocation8 + $0x90] sm:$0xff] %v6252
    %6285 = vst [vmem:[#allocation8 + $0x98] sm:$0xff] %v6253
    %6286 = vst [vmem:[#allocation8 + $0xa0] sm:$0xff] %v6254
    %6287 = vst [vmem:[#allocation8 + $0xa8] sm:$0xff] %v6255
    %6288 = vst [vmem:[#allocation8 + $0xb0] sm:$0xff] %v6256
    %6289 = vst [vmem:[#allocation8 + $0xb8] sm:$0xff] %v6257
    %6290 = vst [vmem:[#allocation8 + $0xc0] sm:$0xff] %v6258
    %6291 = vst [vmem:[#allocation8 + $0xc8] sm:$0xff] %v6259
    %6292 = vst [vmem:[#allocation8 + $0xd0] sm:$0xff] %v6260
    %6293 = vst [vmem:[#allocation8 + $0xd8] sm:$0xff] %v6261
    %6294 = vst [vmem:[#allocation8 + $0xe0] sm:$0xff] %v6262
    %6295 = vst [vmem:[#allocation8 + $0xe8] sm:$0xff] %v6263
    %6296 = vst [vmem:[#allocation8 + $0xf0] sm:$0xff] %v6264
    %6297 = vst [vmem:[#allocation8 + $0xf8] sm:$0xff] %v6265
    // Predicated region
    $region50: #{tpu_custom_call.1} parent=1 // pred_check
      _
    $region51: #{tpu_custom_call.1} parent=1 // pred_check_branch
      %6299 = sbr.rel (0) target = $region53
    $region52: #{tpu_custom_call.1} parent=1 // pred_region
      %s6301 = ssub.s32 4096, 4096
      %6302 = vsyncadd [#allocation4], %s6301
      %s6303 = sshll.u32 [#allocation8], 4
      %s6304 = int_to_ptr.vmem [resolvable:$true] %s6303
      %6309 = dma.vmem_to_hbm [thread:$0]  %s6304, 4096, %s9, [#allocation4], 128, 128, 8
    $region53: #{tpu_custom_call.1} parent=1 // pred_fallthru
      _
    // Predicated region
    $region54: #{tpu_custom_call.1} parent=1 // pred_check
      _
    $region55: #{tpu_custom_call.1} parent=1 // pred_check_branch
      %6311 = sbr.rel (0) target = $region57
    $region56: #{tpu_custom_call.1} parent=1 // pred_region
      %6312 = dma.done [#allocation4], 4096
    $region57: #{tpu_custom_call.1} parent=1 // pred_fallthru
      _
    %6313 = vsyncpa [#allocation3], 1
    %6314 = vsyncpa [#allocation6], 1
    %6315 = vsyncpa [#allocation4], 1

</llo_original>
